<compile_context>
chip_gen: v6e
topology: v6e:2x2x1
jax: 0.10.0
libtpu: 0.0.40
codegen_flags: <defaults>
</compile_context>

<pallas_src>
import functools

import jax
import jax.numpy as jnp
from jax import lax
from jax.experimental import pallas as pl
from jax.experimental.pallas import tpu as pltpu


def _make_phase_weights(weight_oihw):
    """Collapse 3x3 conv weights into per-phase 2x2 kernels (nearest-x2 subpixel identity).

    Returns W_eff[a, b, r, s, ci, co]; tap (r, s) reads the original-resolution pixel at
    row offset (r - 1 + a) and col offset (s - 1 + b) for output pixel (2i + a, 2j + b).
    """
    w = jnp.transpose(weight_oihw, (2, 3, 1, 0))            # (ky, kx, ci, co)
    # collapse rows (ky) against the output-row phase a
    wr = jnp.stack([
        jnp.stack([w[0],        w[1] + w[2]], axis=0),      # a = 0
        jnp.stack([w[0] + w[1], w[2]],        axis=0),      # a = 1
    ], axis=0)                                              # (a, r, kx, ci, co)
    # collapse cols (kx) against the output-col phase b
    w_b0 = jnp.stack([wr[:, :, 0],               wr[:, :, 1] + wr[:, :, 2]], axis=2)
    w_b1 = jnp.stack([wr[:, :, 0] + wr[:, :, 1], wr[:, :, 2]],               axis=2)
    return jnp.stack([w_b0, w_b1], axis=1)                  # (a, b, r, s, ci, co)


def _make_lane_weights(w_eff, W, C):
    """Per-lane weight vectors for the folded (W*C) layout.

    v[a, b, r, s, di, j*C + co] = W_eff[a, b, r, s, co + d, co] with d = di - (C - 1),
    zero when co + d is outside [0, C).  Flattened to (16 * (2C - 1), W*C).
    """
    rows = []
    for di in range(2 * C - 1):
        d = di - (C - 1)
        cols = []
        for co in range(C):
            ci = co + d
            if 0 <= ci < C:
                cols.append(w_eff[..., ci, co])
            else:
                cols.append(jnp.zeros_like(w_eff[..., 0, 0]))
        rows.append(jnp.stack(cols, axis=-1))               # (2,2,2,2,C)
    v = jnp.stack(rows, axis=-2)                            # (2,2,2,2,2C-1,C)
    v = jnp.tile(v, (1, 1, 1, 1, 1, W))                     # (2,2,2,2,2C-1,W*C)
    return v.reshape(2 * 2 * 2 * 2 * (2 * C - 1), W * C)


def _upsample_conv_kernel(x_ref, v_ref, b_ref, o_ref, xpad_ref, *, H, W, C):
    """One batch element per grid step.

    x_ref   : (1, H, W*C)          folded NHWC input (original resolution)
    v_ref   : (16*(2C-1), W*C)     per-lane collapsed weights
    b_ref   : (1, W*C)             per-lane bias
    o_ref   : (1, H, 4*W*C)        four phase outputs concatenated along lanes [(a,b) major]
    xpad_ref: (H+2, W*C + 4C)      VMEM scratch: zero-padded copy of the input tile
    """
    WC = W * C
    ND = 2 * C - 1

    # Build the zero-padded tile entirely in VMEM (no padded HBM copy, no upsampled tensor).
    xpad_ref[...] = jnp.zeros_like(xpad_ref)
    xpad_ref[1:1 + H, 2 * C:2 * C + WC] = x_ref[0]

    # Start each phase accumulator from the bias (one fewer add per phase at the end).
    bias_tile = jnp.broadcast_to(b_ref[...], (H, WC))
    acc = {(a, b): bias_tile for a in range(2) for b in range(2)}

    # Unique shifted slices, keyed by (row offset ro = a + r, col base cb = s - 1 + b, di).
    # Each slice is loaded once and feeds every (phase, tap) pair that maps to it.
    row_users = {0: [(0, 0)], 1: [(0, 1), (1, 0)], 2: [(1, 1)]}    # ro -> [(a, r)]
    col_users = {-1: [(0, 0)], 0: [(0, 1), (1, 0)], 1: [(1, 1)]}   # cb -> [(b, s)]

    for ro, ar_list in row_users.items():
        for cb, bs_list in col_users.items():
            for di in range(ND):
                d = di - (C - 1)
                lo = 2 * C + cb * C + d                    # static lane offset into xpad
                sl = xpad_ref[ro:ro + H, lo:lo + WC]       # one load, up to 4 FMAs
                for (a, r) in ar_list:
                    for (b, s) in bs_list:
                        vidx = (((a * 2 + b) * 2 + r) * 2 + s) * ND + di
                        acc[(a, b)] = acc[(a, b)] + sl * v_ref[vidx:vidx + 1, :]

    phases = []
    for a in range(2):
        for b in range(2):
            y = acc[(a, b)]
            y = jnp.where(y >= 0.0, y, 0.2 * y)            # LeakyReLU(0.2)
            phases.append(y)

    # Single lane-dense (H, 4*W*C) store; phase order (a, b) matches the wrapper reshape.
    o_ref[0] = jnp.concatenate(phases, axis=-1).astype(o_ref.dtype)


@functools.partial(jax.jit, static_argnames=("scale_factor",))
def upsample_block(x_nchw, weight_oihw, bias, scale_factor=2):
    """Forward pass matching the PyTorch UpsampleBlock (NCHW in / NCHW out)."""
    assert scale_factor == 2, "kernel implements the scale_factor=2 subpixel identity"
    # TODO(synk): general scale factors need a (scale x scale)-phase weight decomposition.
    B, C, H, W = x_nchw.shape
    WC = W * C
    H2, W2 = 2 * H, 2 * W

    # NCHW -> folded lane-dense (B, H, W*C); this transpose touches only the small input.
    xf = jnp.transpose(x_nchw, (0, 2, 3, 1)).reshape(B, H, WC).astype(jnp.float32)

    w_eff = _make_phase_weights(weight_oihw.astype(jnp.float32))
    v = _make_lane_weights(w_eff, W, C)                     # (16*(2C-1), W*C)
    bias_row = jnp.tile(bias.astype(jnp.float32), W).reshape(1, WC)

    kernel = functools.partial(_upsample_conv_kernel, H=H, W=W, C=C)

    flops = 2 * 9 * C * C * B * H2 * W2
    bytes_accessed = 4 * (B * H * WC + v.size + bias_row.size + B * H * 4 * WC)

    out = pl.pallas_call(
        kernel,
        out_shape=jax.ShapeDtypeStruct((B, H, 4 * WC), jnp.float32),
        grid=(B,),
        in_specs=[
            pl.BlockSpec((1, H, WC), lambda n: (n, 0, 0)),
            pl.BlockSpec((v.shape[0], WC), lambda n: (0, 0)),
            pl.BlockSpec((1, WC), lambda n: (0, 0)),
        ],
        out_specs=pl.BlockSpec((1, H, 4 * WC), lambda n: (n, 0, 0)),
        scratch_shapes=[pltpu.VMEM((H + 2, WC + 4 * C), jnp.float32)],
        compiler_params=pltpu.CompilerParams(dimension_semantics=("parallel",)),
        cost_estimate=pl.CostEstimate(
            flops=flops, transcendentals=0, bytes_accessed=bytes_accessed),
    )(xf, v, bias_row)

    # (B, H, [a, b, W, C] along lanes) -> NCHW (B, C, 2H, 2W): one fused output transpose.
    out = out.reshape(B, H, 2, 2, W, C)
    out = jnp.transpose(out, (0, 5, 1, 2, 4, 3))            # (B, C, H, a, W, b)
    return out.reshape(B, C, H2, W2)


def _reference(x_nchw, weight_oihw, bias, scale_factor=2):
    """Pure-JAX reference (same math) for verification."""
    x = jnp.transpose(x_nchw, (0, 2, 3, 1))
    x = jnp.repeat(jnp.repeat(x, scale_factor, axis=1), scale_factor, axis=2)
    w_hwio = jnp.transpose(weight_oihw, (2, 3, 1, 0))
    y = lax.conv_general_dilated(
        x, w_hwio, window_strides=(1, 1), padding="SAME",
        dimension_numbers=("NHWC", "HWIO", "NHWC"),
        precision=lax.Precision.HIGHEST,
    )
    y = y + bias[None, None, None, :]
    y = jnp.where(y >= 0, y, 0.2 * y)
    return jnp.transpose(y, (0, 3, 1, 2))


if __name__ == "__main__":
    B, C, H, W = 2, 4, 16, 16
    scale = 2

    key = jax.random.PRNGKey(0)
    kx, kw, kb = jax.random.split(key, 3)

    x = jax.random.normal(kx, (B, C, H, W), dtype=jnp.float32)

    # Deterministic Conv2d-style init: U(-bound, bound), bound = 1/sqrt(fan_in), fan_in = C*3*3.
    fan_in = C * 3 * 3
    bound = 1.0 / (fan_in ** 0.5)
    weight = jax.random.uniform(kw, (C, C, 3, 3), jnp.float32, -bound, bound)
    bias = jax.random.uniform(kb, (C,), jnp.float32, -bound, bound)

    out = upsample_block(x, weight, bias, scale_factor=scale)
    out = jax.block_until_ready(out)

    ref = _reference(x, weight, bias, scale_factor=scale)
    assert out.shape == (B, C, H * scale, W * scale), out.shape
    assert jnp.allclose(out, ref, atol=1e-4, rtol=1e-4), float(
        jnp.max(jnp.abs(out - ref))
    )

    print("KERNEL_OK")
</pallas_src>

<mosaic_0001>
module attributes {stable_mosaic.version = 11 : i64} {
  func.func @_upsample_conv_kernel(%arg0: i32, %arg1: memref<1x16x64xf32, #tpu.memory_space<vmem>>, %arg2: memref<112x64xf32, #tpu.memory_space<vmem>>, %arg3: memref<1x64xf32, #tpu.memory_space<vmem>>, %arg4: memref<1x16x256xf32, #tpu.memory_space<vmem>>, %arg5: memref<18x80xf32, #tpu.memory_space<vmem>>) attributes {dimension_semantics = [#tpu.dimension_semantics<parallel>], iteration_bounds = array<i64: 2>, scalar_prefetch = 0 : i64, scratch_operands = 1 : i64, tpu.core_type = #tpu.core_type<tc>, window_params = [{transform_indices = @transform_0, window_bounds = array<i64: 1, 16, 64>}, {pipeline_mode = #tpu.pipeline_mode<synchronous>, transform_indices = @transform_1, window_bounds = array<i64: 112, 64>}, {pipeline_mode = #tpu.pipeline_mode<synchronous>, transform_indices = @transform_2, window_bounds = array<i64: 1, 64>}, {transform_indices = @transform_3, window_bounds = array<i64: 1, 16, 256>}]} {
    %cst = arith.constant 0.000000e+00 : f32
    %0 = vector.broadcast %cst : f32 to vector<18x80xf32>
    %c0 = arith.constant 0 : index
    %c0_0 = arith.constant 0 : index
    %1 = vector.load %arg5[%c0, %c0_0] : memref<18x80xf32, #tpu.memory_space<vmem>>, vector<18x80xf32>
    tpu.vector_store %arg5[%c0, %c0_0], %0 {strides = array<i32>} : memref<18x80xf32, #tpu.memory_space<vmem>>, vector<18x80xf32>,
    %c0_1 = arith.constant 0 : index
    %c0_2 = arith.constant 0 : index
    %c0_3 = arith.constant 0 : index
    %2 = vector.load %arg1[%c0_1, %c0_2, %c0_3] : memref<1x16x64xf32, #tpu.memory_space<vmem>>, vector<1x16x64xf32>
    %3 = vector.shape_cast %2 : vector<1x16x64xf32> to vector<16x64xf32>
    %c1 = arith.constant 1 : index
    %c8 = arith.constant 8 : index
    %4 = vector.load %arg5[%c1, %c8] : memref<18x80xf32, #tpu.memory_space<vmem>>, vector<16x64xf32>
    tpu.vector_store %arg5[%c1, %c8], %3 {strides = array<i32>} : memref<18x80xf32, #tpu.memory_space<vmem>>, vector<16x64xf32>,
    %c0_4 = arith.constant 0 : index
    %c0_5 = arith.constant 0 : index
    %5 = vector.load %arg3[%c0_4, %c0_5] : memref<1x64xf32, #tpu.memory_space<vmem>>, vector<1x64xf32>
    %6 = vector.shape_cast %5 : vector<1x64xf32> to vector<1x64xf32>
    %7 = vector.broadcast %6 : vector<1x64xf32> to vector<16x64xf32>
    %c0_6 = arith.constant 0 : index
    %c1_7 = arith.constant 1 : index
    %8 = vector.load %arg5[%c0_6, %c1_7] : memref<18x80xf32, #tpu.memory_space<vmem>>, vector<16x64xf32>
    %c0_8 = arith.constant 0 : index
    %c0_9 = arith.constant 0 : index
    %9 = vector.load %arg2[%c0_8, %c0_9] : memref<112x64xf32, #tpu.memory_space<vmem>>, vector<1x64xf32>
    %10 = vector.broadcast %9 : vector<1x64xf32> to vector<16x64xf32>
    %11 = arith.mulf %8, %10 : vector<16x64xf32>
    %12 = arith.addf %7, %11 : vector<16x64xf32>
    %c0_10 = arith.constant 0 : index
    %c2 = arith.constant 2 : index
    %13 = vector.load %arg5[%c0_10, %c2] : memref<18x80xf32, #tpu.memory_space<vmem>>, vector<16x64xf32>
    %c1_11 = arith.constant 1 : index
    %c0_12 = arith.constant 0 : index
    %14 = vector.load %arg2[%c1_11, %c0_12] : memref<112x64xf32, #tpu.memory_space<vmem>>, vector<1x64xf32>
    %15 = vector.broadcast %14 : vector<1x64xf32> to vector<16x64xf32>
    %16 = arith.mulf %13, %15 : vector<16x64xf32>
    %17 = arith.addf %12, %16 : vector<16x64xf32>
    %c0_13 = arith.constant 0 : index
    %c3 = arith.constant 3 : index
    %18 = vector.load %arg5[%c0_13, %c3] : memref<18x80xf32, #tpu.memory_space<vmem>>, vector<16x64xf32>
    %c2_14 = arith.constant 2 : index
    %c0_15 = arith.constant 0 : index
    %19 = vector.load %arg2[%c2_14, %c0_15] : memref<112x64xf32, #tpu.memory_space<vmem>>, vector<1x64xf32>
    %20 = vector.broadcast %19 : vector<1x64xf32> to vector<16x64xf32>
    %21 = arith.mulf %18, %20 : vector<16x64xf32>
    %22 = arith.addf %17, %21 : vector<16x64xf32>
    %c0_16 = arith.constant 0 : index
    %c4 = arith.constant 4 : index
    %23 = vector.load %arg5[%c0_16, %c4] : memref<18x80xf32, #tpu.memory_space<vmem>>, vector<16x64xf32>
    %c3_17 = arith.constant 3 : index
    %c0_18 = arith.constant 0 : index
    %24 = vector.load %arg2[%c3_17, %c0_18] : memref<112x64xf32, #tpu.memory_space<vmem>>, vector<1x64xf32>
    %25 = vector.broadcast %24 : vector<1x64xf32> to vector<16x64xf32>
    %26 = arith.mulf %23, %25 : vector<16x64xf32>
    %27 = arith.addf %22, %26 : vector<16x64xf32>
    %c0_19 = arith.constant 0 : index
    %c5 = arith.constant 5 : index
    %28 = vector.load %arg5[%c0_19, %c5] : memref<18x80xf32, #tpu.memory_space<vmem>>, vector<16x64xf32>
    %c4_20 = arith.constant 4 : index
    %c0_21 = arith.constant 0 : index
    %29 = vector.load %arg2[%c4_20, %c0_21] : memref<112x64xf32, #tpu.memory_space<vmem>>, vector<1x64xf32>
    %30 = vector.broadcast %29 : vector<1x64xf32> to vector<16x64xf32>
    %31 = arith.mulf %28, %30 : vector<16x64xf32>
    %32 = arith.addf %27, %31 : vector<16x64xf32>
    %c0_22 = arith.constant 0 : index
    %c6 = arith.constant 6 : index
    %33 = vector.load %arg5[%c0_22, %c6] : memref<18x80xf32, #tpu.memory_space<vmem>>, vector<16x64xf32>
    %c5_23 = arith.constant 5 : index
    %c0_24 = arith.constant 0 : index
    %34 = vector.load %arg2[%c5_23, %c0_24] : memref<112x64xf32, #tpu.memory_space<vmem>>, vector<1x64xf32>
    %35 = vector.broadcast %34 : vector<1x64xf32> to vector<16x64xf32>
    %36 = arith.mulf %33, %35 : vector<16x64xf32>
    %37 = arith.addf %32, %36 : vector<16x64xf32>
    %c0_25 = arith.constant 0 : index
    %c7 = arith.constant 7 : index
    %38 = vector.load %arg5[%c0_25, %c7] : memref<18x80xf32, #tpu.memory_space<vmem>>, vector<16x64xf32>
    %c6_26 = arith.constant 6 : index
    %c0_27 = arith.constant 0 : index
    %39 = vector.load %arg2[%c6_26, %c0_27] : memref<112x64xf32, #tpu.memory_space<vmem>>, vector<1x64xf32>
    %40 = vector.broadcast %39 : vector<1x64xf32> to vector<16x64xf32>
    %41 = arith.mulf %38, %40 : vector<16x64xf32>
    %42 = arith.addf %37, %41 : vector<16x64xf32>
    %c0_28 = arith.constant 0 : index
    %c5_29 = arith.constant 5 : index
    %43 = vector.load %arg5[%c0_28, %c5_29] : memref<18x80xf32, #tpu.memory_space<vmem>>, vector<16x64xf32>
    %c7_30 = arith.constant 7 : index
    %c0_31 = arith.constant 0 : index
    %44 = vector.load %arg2[%c7_30, %c0_31] : memref<112x64xf32, #tpu.memory_space<vmem>>, vector<1x64xf32>
    %45 = vector.broadcast %44 : vector<1x64xf32> to vector<16x64xf32>
    %46 = arith.mulf %43, %45 : vector<16x64xf32>
    %47 = arith.addf %42, %46 : vector<16x64xf32>
    %c28 = arith.constant 28 : index
    %c0_32 = arith.constant 0 : index
    %48 = vector.load %arg2[%c28, %c0_32] : memref<112x64xf32, #tpu.memory_space<vmem>>, vector<1x64xf32>
    %49 = vector.broadcast %48 : vector<1x64xf32> to vector<16x64xf32>
    %50 = arith.mulf %43, %49 : vector<16x64xf32>
    %51 = arith.addf %7, %50 : vector<16x64xf32>
    %c0_33 = arith.constant 0 : index
    %c6_34 = arith.constant 6 : index
    %52 = vector.load %arg5[%c0_33, %c6_34] : memref<18x80xf32, #tpu.memory_space<vmem>>, vector<16x64xf32>
    %c8_35 = arith.constant 8 : index
    %c0_36 = arith.constant 0 : index
    %53 = vector.load %arg2[%c8_35, %c0_36] : memref<112x64xf32, #tpu.memory_space<vmem>>, vector<1x64xf32>
    %54 = vector.broadcast %53 : vector<1x64xf32> to vector<16x64xf32>
    %55 = arith.mulf %52, %54 : vector<16x64xf32>
    %56 = arith.addf %47, %55 : vector<16x64xf32>
    %c29 = arith.constant 29 : index
    %c0_37 = arith.constant 0 : index
    %57 = vector.load %arg2[%c29, %c0_37] : memref<112x64xf32, #tpu.memory_space<vmem>>, vector<1x64xf32>
    %58 = vector.broadcast %57 : vector<1x64xf32> to vector<16x64xf32>
    %59 = arith.mulf %52, %58 : vector<16x64xf32>
    %60 = arith.addf %51, %59 : vector<16x64xf32>
    %c0_38 = arith.constant 0 : index
    %c7_39 = arith.constant 7 : index
    %61 = vector.load %arg5[%c0_38, %c7_39] : memref<18x80xf32, #tpu.memory_space<vmem>>, vector<16x64xf32>
    %c9 = arith.constant 9 : index
    %c0_40 = arith.constant 0 : index
    %62 = vector.load %arg2[%c9, %c0_40] : memref<112x64xf32, #tpu.memory_space<vmem>>, vector<1x64xf32>
    %63 = vector.broadcast %62 : vector<1x64xf32> to vector<16x64xf32>
    %64 = arith.mulf %61, %63 : vector<16x64xf32>
    %65 = arith.addf %56, %64 : vector<16x64xf32>
    %c30 = arith.constant 30 : index
    %c0_41 = arith.constant 0 : index
    %66 = vector.load %arg2[%c30, %c0_41] : memref<112x64xf32, #tpu.memory_space<vmem>>, vector<1x64xf32>
    %67 = vector.broadcast %66 : vector<1x64xf32> to vector<16x64xf32>
    %68 = arith.mulf %61, %67 : vector<16x64xf32>
    %69 = arith.addf %60, %68 : vector<16x64xf32>
    %c0_42 = arith.constant 0 : index
    %c8_43 = arith.constant 8 : index
    %70 = vector.load %arg5[%c0_42, %c8_43] : memref<18x80xf32, #tpu.memory_space<vmem>>, vector<16x64xf32>
    %c10 = arith.constant 10 : index
    %c0_44 = arith.constant 0 : index
    %71 = vector.load %arg2[%c10, %c0_44] : memref<112x64xf32, #tpu.memory_space<vmem>>, vector<1x64xf32>
    %72 = vector.broadcast %71 : vector<1x64xf32> to vector<16x64xf32>
    %73 = arith.mulf %70, %72 : vector<16x64xf32>
    %74 = arith.addf %65, %73 : vector<16x64xf32>
    %c31 = arith.constant 31 : index
    %c0_45 = arith.constant 0 : index
    %75 = vector.load %arg2[%c31, %c0_45] : memref<112x64xf32, #tpu.memory_space<vmem>>, vector<1x64xf32>
    %76 = vector.broadcast %75 : vector<1x64xf32> to vector<16x64xf32>
    %77 = arith.mulf %70, %76 : vector<16x64xf32>
    %78 = arith.addf %69, %77 : vector<16x64xf32>
    %c0_46 = arith.constant 0 : index
    %c9_47 = arith.constant 9 : index
    %79 = vector.load %arg5[%c0_46, %c9_47] : memref<18x80xf32, #tpu.memory_space<vmem>>, vector<16x64xf32>
    %c11 = arith.constant 11 : index
    %c0_48 = arith.constant 0 : index
    %80 = vector.load %arg2[%c11, %c0_48] : memref<112x64xf32, #tpu.memory_space<vmem>>, vector<1x64xf32>
    %81 = vector.broadcast %80 : vector<1x64xf32> to vector<16x64xf32>
    %82 = arith.mulf %79, %81 : vector<16x64xf32>
    %83 = arith.addf %74, %82 : vector<16x64xf32>
    %c32 = arith.constant 32 : index
    %c0_49 = arith.constant 0 : index
    %84 = vector.load %arg2[%c32, %c0_49] : memref<112x64xf32, #tpu.memory_space<vmem>>, vector<1x64xf32>
    %85 = vector.broadcast %84 : vector<1x64xf32> to vector<16x64xf32>
    %86 = arith.mulf %79, %85 : vector<16x64xf32>
    %87 = arith.addf %78, %86 : vector<16x64xf32>
    %c0_50 = arith.constant 0 : index
    %c10_51 = arith.constant 10 : index
    %88 = vector.load %arg5[%c0_50, %c10_51] : memref<18x80xf32, #tpu.memory_space<vmem>>, vector<16x64xf32>
    %c12 = arith.constant 12 : index
    %c0_52 = arith.constant 0 : index
    %89 = vector.load %arg2[%c12, %c0_52] : memref<112x64xf32, #tpu.memory_space<vmem>>, vector<1x64xf32>
    %90 = vector.broadcast %89 : vector<1x64xf32> to vector<16x64xf32>
    %91 = arith.mulf %88, %90 : vector<16x64xf32>
    %92 = arith.addf %83, %91 : vector<16x64xf32>
    %c33 = arith.constant 33 : index
    %c0_53 = arith.constant 0 : index
    %93 = vector.load %arg2[%c33, %c0_53] : memref<112x64xf32, #tpu.memory_space<vmem>>, vector<1x64xf32>
    %94 = vector.broadcast %93 : vector<1x64xf32> to vector<16x64xf32>
    %95 = arith.mulf %88, %94 : vector<16x64xf32>
    %96 = arith.addf %87, %95 : vector<16x64xf32>
    %c0_54 = arith.constant 0 : index
    %c11_55 = arith.constant 11 : index
    %97 = vector.load %arg5[%c0_54, %c11_55] : memref<18x80xf32, #tpu.memory_space<vmem>>, vector<16x64xf32>
    %c13 = arith.constant 13 : index
    %c0_56 = arith.constant 0 : index
    %98 = vector.load %arg2[%c13, %c0_56] : memref<112x64xf32, #tpu.memory_space<vmem>>, vector<1x64xf32>
    %99 = vector.broadcast %98 : vector<1x64xf32> to vector<16x64xf32>
    %100 = arith.mulf %97, %99 : vector<16x64xf32>
    %101 = arith.addf %92, %100 : vector<16x64xf32>
    %c34 = arith.constant 34 : index
    %c0_57 = arith.constant 0 : index
    %102 = vector.load %arg2[%c34, %c0_57] : memref<112x64xf32, #tpu.memory_space<vmem>>, vector<1x64xf32>
    %103 = vector.broadcast %102 : vector<1x64xf32> to vector<16x64xf32>
    %104 = arith.mulf %97, %103 : vector<16x64xf32>
    %105 = arith.addf %96, %104 : vector<16x64xf32>
    %c0_58 = arith.constant 0 : index
    %c9_59 = arith.constant 9 : index
    %106 = vector.load %arg5[%c0_58, %c9_59] : memref<18x80xf32, #tpu.memory_space<vmem>>, vector<16x64xf32>
    %c35 = arith.constant 35 : index
    %c0_60 = arith.constant 0 : index
    %107 = vector.load %arg2[%c35, %c0_60] : memref<112x64xf32, #tpu.memory_space<vmem>>, vector<1x64xf32>
    %108 = vector.broadcast %107 : vector<1x64xf32> to vector<16x64xf32>
    %109 = arith.mulf %106, %108 : vector<16x64xf32>
    %110 = arith.addf %105, %109 : vector<16x64xf32>
    %c0_61 = arith.constant 0 : index
    %c10_62 = arith.constant 10 : index
    %111 = vector.load %arg5[%c0_61, %c10_62] : memref<18x80xf32, #tpu.memory_space<vmem>>, vector<16x64xf32>
    %c36 = arith.constant 36 : index
    %c0_63 = arith.constant 0 : index
    %112 = vector.load %arg2[%c36, %c0_63] : memref<112x64xf32, #tpu.memory_space<vmem>>, vector<1x64xf32>
    %113 = vector.broadcast %112 : vector<1x64xf32> to vector<16x64xf32>
    %114 = arith.mulf %111, %113 : vector<16x64xf32>
    %115 = arith.addf %110, %114 : vector<16x64xf32>
    %c0_64 = arith.constant 0 : index
    %c11_65 = arith.constant 11 : index
    %116 = vector.load %arg5[%c0_64, %c11_65] : memref<18x80xf32, #tpu.memory_space<vmem>>, vector<16x64xf32>
    %c37 = arith.constant 37 : index
    %c0_66 = arith.constant 0 : index
    %117 = vector.load %arg2[%c37, %c0_66] : memref<112x64xf32, #tpu.memory_space<vmem>>, vector<1x64xf32>
    %118 = vector.broadcast %117 : vector<1x64xf32> to vector<16x64xf32>
    %119 = arith.mulf %116, %118 : vector<16x64xf32>
    %120 = arith.addf %115, %119 : vector<16x64xf32>
    %c0_67 = arith.constant 0 : index
    %c12_68 = arith.constant 12 : index
    %121 = vector.load %arg5[%c0_67, %c12_68] : memref<18x80xf32, #tpu.memory_space<vmem>>, vector<16x64xf32>
    %c38 = arith.constant 38 : index
    %c0_69 = arith.constant 0 : index
    %122 = vector.load %arg2[%c38, %c0_69] : memref<112x64xf32, #tpu.memory_space<vmem>>, vector<1x64xf32>
    %123 = vector.broadcast %122 : vector<1x64xf32> to vector<16x64xf32>
    %124 = arith.mulf %121, %123 : vector<16x64xf32>
    %125 = arith.addf %120, %124 : vector<16x64xf32>
    %c0_70 = arith.constant 0 : index
    %c13_71 = arith.constant 13 : index
    %126 = vector.load %arg5[%c0_70, %c13_71] : memref<18x80xf32, #tpu.memory_space<vmem>>, vector<16x64xf32>
    %c39 = arith.constant 39 : index
    %c0_72 = arith.constant 0 : index
    %127 = vector.load %arg2[%c39, %c0_72] : memref<112x64xf32, #tpu.memory_space<vmem>>, vector<1x64xf32>
    %128 = vector.broadcast %127 : vector<1x64xf32> to vector<16x64xf32>
    %129 = arith.mulf %126, %128 : vector<16x64xf32>
    %130 = arith.addf %125, %129 : vector<16x64xf32>
    %c0_73 = arith.constant 0 : index
    %c14 = arith.constant 14 : index
    %131 = vector.load %arg5[%c0_73, %c14] : memref<18x80xf32, #tpu.memory_space<vmem>>, vector<16x64xf32>
    %c40 = arith.constant 40 : index
    %c0_74 = arith.constant 0 : index
    %132 = vector.load %arg2[%c40, %c0_74] : memref<112x64xf32, #tpu.memory_space<vmem>>, vector<1x64xf32>
    %133 = vector.broadcast %132 : vector<1x64xf32> to vector<16x64xf32>
    %134 = arith.mulf %131, %133 : vector<16x64xf32>
    %135 = arith.addf %130, %134 : vector<16x64xf32>
    %c0_75 = arith.constant 0 : index
    %c15 = arith.constant 15 : index
    %136 = vector.load %arg5[%c0_75, %c15] : memref<18x80xf32, #tpu.memory_space<vmem>>, vector<16x64xf32>
    %c41 = arith.constant 41 : index
    %c0_76 = arith.constant 0 : index
    %137 = vector.load %arg2[%c41, %c0_76] : memref<112x64xf32, #tpu.memory_space<vmem>>, vector<1x64xf32>
    %138 = vector.broadcast %137 : vector<1x64xf32> to vector<16x64xf32>
    %139 = arith.mulf %136, %138 : vector<16x64xf32>
    %140 = arith.addf %135, %139 : vector<16x64xf32>
    %c1_77 = arith.constant 1 : index
    %c1_78 = arith.constant 1 : index
    %141 = vector.load %arg5[%c1_77, %c1_78] : memref<18x80xf32, #tpu.memory_space<vmem>>, vector<16x64xf32>
    %c14_79 = arith.constant 14 : index
    %c0_80 = arith.constant 0 : index
    %142 = vector.load %arg2[%c14_79, %c0_80] : memref<112x64xf32, #tpu.memory_space<vmem>>, vector<1x64xf32>
    %143 = vector.broadcast %142 : vector<1x64xf32> to vector<16x64xf32>
    %144 = arith.mulf %141, %143 : vector<16x64xf32>
    %145 = arith.addf %101, %144 : vector<16x64xf32>
    %c56 = arith.constant 56 : index
    %c0_81 = arith.constant 0 : index
    %146 = vector.load %arg2[%c56, %c0_81] : memref<112x64xf32, #tpu.memory_space<vmem>>, vector<1x64xf32>
    %147 = vector.broadcast %146 : vector<1x64xf32> to vector<16x64xf32>
    %148 = arith.mulf %141, %147 : vector<16x64xf32>
    %149 = arith.addf %7, %148 : vector<16x64xf32>
    %c1_82 = arith.constant 1 : index
    %c2_83 = arith.constant 2 : index
    %150 = vector.load %arg5[%c1_82, %c2_83] : memref<18x80xf32, #tpu.memory_space<vmem>>, vector<16x64xf32>
    %c15_84 = arith.constant 15 : index
    %c0_85 = arith.constant 0 : index
    %151 = vector.load %arg2[%c15_84, %c0_85] : memref<112x64xf32, #tpu.memory_space<vmem>>, vector<1x64xf32>
    %152 = vector.broadcast %151 : vector<1x64xf32> to vector<16x64xf32>
    %153 = arith.mulf %150, %152 : vector<16x64xf32>
    %154 = arith.addf %145, %153 : vector<16x64xf32>
    %c57 = arith.constant 57 : index
    %c0_86 = arith.constant 0 : index
    %155 = vector.load %arg2[%c57, %c0_86] : memref<112x64xf32, #tpu.memory_space<vmem>>, vector<1x64xf32>
    %156 = vector.broadcast %155 : vector<1x64xf32> to vector<16x64xf32>
    %157 = arith.mulf %150, %156 : vector<16x64xf32>
    %158 = arith.addf %149, %157 : vector<16x64xf32>
    %c1_87 = arith.constant 1 : index
    %c3_88 = arith.constant 3 : index
    %159 = vector.load %arg5[%c1_87, %c3_88] : memref<18x80xf32, #tpu.memory_space<vmem>>, vector<16x64xf32>
    %c16 = arith.constant 16 : index
    %c0_89 = arith.constant 0 : index
    %160 = vector.load %arg2[%c16, %c0_89] : memref<112x64xf32, #tpu.memory_space<vmem>>, vector<1x64xf32>
    %161 = vector.broadcast %160 : vector<1x64xf32> to vector<16x64xf32>
    %162 = arith.mulf %159, %161 : vector<16x64xf32>
    %163 = arith.addf %154, %162 : vector<16x64xf32>
    %c58 = arith.constant 58 : index
    %c0_90 = arith.constant 0 : index
    %164 = vector.load %arg2[%c58, %c0_90] : memref<112x64xf32, #tpu.memory_space<vmem>>, vector<1x64xf32>
    %165 = vector.broadcast %164 : vector<1x64xf32> to vector<16x64xf32>
    %166 = arith.mulf %159, %165 : vector<16x64xf32>
    %167 = arith.addf %158, %166 : vector<16x64xf32>
    %c1_91 = arith.constant 1 : index
    %c4_92 = arith.constant 4 : index
    %168 = vector.load %arg5[%c1_91, %c4_92] : memref<18x80xf32, #tpu.memory_space<vmem>>, vector<16x64xf32>
    %c17 = arith.constant 17 : index
    %c0_93 = arith.constant 0 : index
    %169 = vector.load %arg2[%c17, %c0_93] : memref<112x64xf32, #tpu.memory_space<vmem>>, vector<1x64xf32>
    %170 = vector.broadcast %169 : vector<1x64xf32> to vector<16x64xf32>
    %171 = arith.mulf %168, %170 : vector<16x64xf32>
    %172 = arith.addf %163, %171 : vector<16x64xf32>
    %c59 = arith.constant 59 : index
    %c0_94 = arith.constant 0 : index
    %173 = vector.load %arg2[%c59, %c0_94] : memref<112x64xf32, #tpu.memory_space<vmem>>, vector<1x64xf32>
    %174 = vector.broadcast %173 : vector<1x64xf32> to vector<16x64xf32>
    %175 = arith.mulf %168, %174 : vector<16x64xf32>
    %176 = arith.addf %167, %175 : vector<16x64xf32>
    %c1_95 = arith.constant 1 : index
    %c5_96 = arith.constant 5 : index
    %177 = vector.load %arg5[%c1_95, %c5_96] : memref<18x80xf32, #tpu.memory_space<vmem>>, vector<16x64xf32>
    %c18 = arith.constant 18 : index
    %c0_97 = arith.constant 0 : index
    %178 = vector.load %arg2[%c18, %c0_97] : memref<112x64xf32, #tpu.memory_space<vmem>>, vector<1x64xf32>
    %179 = vector.broadcast %178 : vector<1x64xf32> to vector<16x64xf32>
    %180 = arith.mulf %177, %179 : vector<16x64xf32>
    %181 = arith.addf %172, %180 : vector<16x64xf32>
    %c60 = arith.constant 60 : index
    %c0_98 = arith.constant 0 : index
    %182 = vector.load %arg2[%c60, %c0_98] : memref<112x64xf32, #tpu.memory_space<vmem>>, vector<1x64xf32>
    %183 = vector.broadcast %182 : vector<1x64xf32> to vector<16x64xf32>
    %184 = arith.mulf %177, %183 : vector<16x64xf32>
    %185 = arith.addf %176, %184 : vector<16x64xf32>
    %c1_99 = arith.constant 1 : index
    %c6_100 = arith.constant 6 : index
    %186 = vector.load %arg5[%c1_99, %c6_100] : memref<18x80xf32, #tpu.memory_space<vmem>>, vector<16x64xf32>
    %c19 = arith.constant 19 : index
    %c0_101 = arith.constant 0 : index
    %187 = vector.load %arg2[%c19, %c0_101] : memref<112x64xf32, #tpu.memory_space<vmem>>, vector<1x64xf32>
    %188 = vector.broadcast %187 : vector<1x64xf32> to vector<16x64xf32>
    %189 = arith.mulf %186, %188 : vector<16x64xf32>
    %190 = arith.addf %181, %189 : vector<16x64xf32>
    %c61 = arith.constant 61 : index
    %c0_102 = arith.constant 0 : index
    %191 = vector.load %arg2[%c61, %c0_102] : memref<112x64xf32, #tpu.memory_space<vmem>>, vector<1x64xf32>
    %192 = vector.broadcast %191 : vector<1x64xf32> to vector<16x64xf32>
    %193 = arith.mulf %186, %192 : vector<16x64xf32>
    %194 = arith.addf %185, %193 : vector<16x64xf32>
    %c1_103 = arith.constant 1 : index
    %c7_104 = arith.constant 7 : index
    %195 = vector.load %arg5[%c1_103, %c7_104] : memref<18x80xf32, #tpu.memory_space<vmem>>, vector<16x64xf32>
    %c20 = arith.constant 20 : index
    %c0_105 = arith.constant 0 : index
    %196 = vector.load %arg2[%c20, %c0_105] : memref<112x64xf32, #tpu.memory_space<vmem>>, vector<1x64xf32>
    %197 = vector.broadcast %196 : vector<1x64xf32> to vector<16x64xf32>
    %198 = arith.mulf %195, %197 : vector<16x64xf32>
    %199 = arith.addf %190, %198 : vector<16x64xf32>
    %c62 = arith.constant 62 : index
    %c0_106 = arith.constant 0 : index
    %200 = vector.load %arg2[%c62, %c0_106] : memref<112x64xf32, #tpu.memory_space<vmem>>, vector<1x64xf32>
    %201 = vector.broadcast %200 : vector<1x64xf32> to vector<16x64xf32>
    %202 = arith.mulf %195, %201 : vector<16x64xf32>
    %203 = arith.addf %194, %202 : vector<16x64xf32>
    %c1_107 = arith.constant 1 : index
    %c5_108 = arith.constant 5 : index
    %204 = vector.load %arg5[%c1_107, %c5_108] : memref<18x80xf32, #tpu.memory_space<vmem>>, vector<16x64xf32>
    %c21 = arith.constant 21 : index
    %c0_109 = arith.constant 0 : index
    %205 = vector.load %arg2[%c21, %c0_109] : memref<112x64xf32, #tpu.memory_space<vmem>>, vector<1x64xf32>
    %206 = vector.broadcast %205 : vector<1x64xf32> to vector<16x64xf32>
    %207 = arith.mulf %204, %206 : vector<16x64xf32>
    %208 = arith.addf %199, %207 : vector<16x64xf32>
    %c42 = arith.constant 42 : index
    %c0_110 = arith.constant 0 : index
    %209 = vector.load %arg2[%c42, %c0_110] : memref<112x64xf32, #tpu.memory_space<vmem>>, vector<1x64xf32>
    %210 = vector.broadcast %209 : vector<1x64xf32> to vector<16x64xf32>
    %211 = arith.mulf %204, %210 : vector<16x64xf32>
    %212 = arith.addf %140, %211 : vector<16x64xf32>
    %c63 = arith.constant 63 : index
    %c0_111 = arith.constant 0 : index
    %213 = vector.load %arg2[%c63, %c0_111] : memref<112x64xf32, #tpu.memory_space<vmem>>, vector<1x64xf32>
    %214 = vector.broadcast %213 : vector<1x64xf32> to vector<16x64xf32>
    %215 = arith.mulf %204, %214 : vector<16x64xf32>
    %216 = arith.addf %203, %215 : vector<16x64xf32>
    %c84 = arith.constant 84 : index
    %c0_112 = arith.constant 0 : index
    %217 = vector.load %arg2[%c84, %c0_112] : memref<112x64xf32, #tpu.memory_space<vmem>>, vector<1x64xf32>
    %218 = vector.broadcast %217 : vector<1x64xf32> to vector<16x64xf32>
    %219 = arith.mulf %204, %218 : vector<16x64xf32>
    %220 = arith.addf %7, %219 : vector<16x64xf32>
    %c1_113 = arith.constant 1 : index
    %c6_114 = arith.constant 6 : index
    %221 = vector.load %arg5[%c1_113, %c6_114] : memref<18x80xf32, #tpu.memory_space<vmem>>, vector<16x64xf32>
    %c22 = arith.constant 22 : index
    %c0_115 = arith.constant 0 : index
    %222 = vector.load %arg2[%c22, %c0_115] : memref<112x64xf32, #tpu.memory_space<vmem>>, vector<1x64xf32>
    %223 = vector.broadcast %222 : vector<1x64xf32> to vector<16x64xf32>
    %224 = arith.mulf %221, %223 : vector<16x64xf32>
    %225 = arith.addf %208, %224 : vector<16x64xf32>
    %c43 = arith.constant 43 : index
    %c0_116 = arith.constant 0 : index
    %226 = vector.load %arg2[%c43, %c0_116] : memref<112x64xf32, #tpu.memory_space<vmem>>, vector<1x64xf32>
    %227 = vector.broadcast %226 : vector<1x64xf32> to vector<16x64xf32>
    %228 = arith.mulf %221, %227 : vector<16x64xf32>
    %229 = arith.addf %212, %228 : vector<16x64xf32>
    %c64 = arith.constant 64 : index
    %c0_117 = arith.constant 0 : index
    %230 = vector.load %arg2[%c64, %c0_117] : memref<112x64xf32, #tpu.memory_space<vmem>>, vector<1x64xf32>
    %231 = vector.broadcast %230 : vector<1x64xf32> to vector<16x64xf32>
    %232 = arith.mulf %221, %231 : vector<16x64xf32>
    %233 = arith.addf %216, %232 : vector<16x64xf32>
    %c85 = arith.constant 85 : index
    %c0_118 = arith.constant 0 : index
    %234 = vector.load %arg2[%c85, %c0_118] : memref<112x64xf32, #tpu.memory_space<vmem>>, vector<1x64xf32>
    %235 = vector.broadcast %234 : vector<1x64xf32> to vector<16x64xf32>
    %236 = arith.mulf %221, %235 : vector<16x64xf32>
    %237 = arith.addf %220, %236 : vector<16x64xf32>
    %c1_119 = arith.constant 1 : index
    %c7_120 = arith.constant 7 : index
    %238 = vector.load %arg5[%c1_119, %c7_120] : memref<18x80xf32, #tpu.memory_space<vmem>>, vector<16x64xf32>
    %c23 = arith.constant 23 : index
    %c0_121 = arith.constant 0 : index
    %239 = vector.load %arg2[%c23, %c0_121] : memref<112x64xf32, #tpu.memory_space<vmem>>, vector<1x64xf32>
    %240 = vector.broadcast %239 : vector<1x64xf32> to vector<16x64xf32>
    %241 = arith.mulf %238, %240 : vector<16x64xf32>
    %242 = arith.addf %225, %241 : vector<16x64xf32>
    %c44 = arith.constant 44 : index
    %c0_122 = arith.constant 0 : index
    %243 = vector.load %arg2[%c44, %c0_122] : memref<112x64xf32, #tpu.memory_space<vmem>>, vector<1x64xf32>
    %244 = vector.broadcast %243 : vector<1x64xf32> to vector<16x64xf32>
    %245 = arith.mulf %238, %244 : vector<16x64xf32>
    %246 = arith.addf %229, %245 : vector<16x64xf32>
    %c65 = arith.constant 65 : index
    %c0_123 = arith.constant 0 : index
    %247 = vector.load %arg2[%c65, %c0_123] : memref<112x64xf32, #tpu.memory_space<vmem>>, vector<1x64xf32>
    %248 = vector.broadcast %247 : vector<1x64xf32> to vector<16x64xf32>
    %249 = arith.mulf %238, %248 : vector<16x64xf32>
    %250 = arith.addf %233, %249 : vector<16x64xf32>
    %c86 = arith.constant 86 : index
    %c0_124 = arith.constant 0 : index
    %251 = vector.load %arg2[%c86, %c0_124] : memref<112x64xf32, #tpu.memory_space<vmem>>, vector<1x64xf32>
    %252 = vector.broadcast %251 : vector<1x64xf32> to vector<16x64xf32>
    %253 = arith.mulf %238, %252 : vector<16x64xf32>
    %254 = arith.addf %237, %253 : vector<16x64xf32>
    %c1_125 = arith.constant 1 : index
    %c8_126 = arith.constant 8 : index
    %255 = vector.load %arg5[%c1_125, %c8_126] : memref<18x80xf32, #tpu.memory_space<vmem>>, vector<16x64xf32>
    %c24 = arith.constant 24 : index
    %c0_127 = arith.constant 0 : index
    %256 = vector.load %arg2[%c24, %c0_127] : memref<112x64xf32, #tpu.memory_space<vmem>>, vector<1x64xf32>
    %257 = vector.broadcast %256 : vector<1x64xf32> to vector<16x64xf32>
    %258 = arith.mulf %255, %257 : vector<16x64xf32>
    %259 = arith.addf %242, %258 : vector<16x64xf32>
    %c45 = arith.constant 45 : index
    %c0_128 = arith.constant 0 : index
    %260 = vector.load %arg2[%c45, %c0_128] : memref<112x64xf32, #tpu.memory_space<vmem>>, vector<1x64xf32>
    %261 = vector.broadcast %260 : vector<1x64xf32> to vector<16x64xf32>
    %262 = arith.mulf %255, %261 : vector<16x64xf32>
    %263 = arith.addf %246, %262 : vector<16x64xf32>
    %c66 = arith.constant 66 : index
    %c0_129 = arith.constant 0 : index
    %264 = vector.load %arg2[%c66, %c0_129] : memref<112x64xf32, #tpu.memory_space<vmem>>, vector<1x64xf32>
    %265 = vector.broadcast %264 : vector<1x64xf32> to vector<16x64xf32>
    %266 = arith.mulf %255, %265 : vector<16x64xf32>
    %267 = arith.addf %250, %266 : vector<16x64xf32>
    %c87 = arith.constant 87 : index
    %c0_130 = arith.constant 0 : index
    %268 = vector.load %arg2[%c87, %c0_130] : memref<112x64xf32, #tpu.memory_space<vmem>>, vector<1x64xf32>
    %269 = vector.broadcast %268 : vector<1x64xf32> to vector<16x64xf32>
    %270 = arith.mulf %255, %269 : vector<16x64xf32>
    %271 = arith.addf %254, %270 : vector<16x64xf32>
    %c1_131 = arith.constant 1 : index
    %c9_132 = arith.constant 9 : index
    %272 = vector.load %arg5[%c1_131, %c9_132] : memref<18x80xf32, #tpu.memory_space<vmem>>, vector<16x64xf32>
    %c25 = arith.constant 25 : index
    %c0_133 = arith.constant 0 : index
    %273 = vector.load %arg2[%c25, %c0_133] : memref<112x64xf32, #tpu.memory_space<vmem>>, vector<1x64xf32>
    %274 = vector.broadcast %273 : vector<1x64xf32> to vector<16x64xf32>
    %275 = arith.mulf %272, %274 : vector<16x64xf32>
    %276 = arith.addf %259, %275 : vector<16x64xf32>
    %c46 = arith.constant 46 : index
    %c0_134 = arith.constant 0 : index
    %277 = vector.load %arg2[%c46, %c0_134] : memref<112x64xf32, #tpu.memory_space<vmem>>, vector<1x64xf32>
    %278 = vector.broadcast %277 : vector<1x64xf32> to vector<16x64xf32>
    %279 = arith.mulf %272, %278 : vector<16x64xf32>
    %280 = arith.addf %263, %279 : vector<16x64xf32>
    %c67 = arith.constant 67 : index
    %c0_135 = arith.constant 0 : index
    %281 = vector.load %arg2[%c67, %c0_135] : memref<112x64xf32, #tpu.memory_space<vmem>>, vector<1x64xf32>
    %282 = vector.broadcast %281 : vector<1x64xf32> to vector<16x64xf32>
    %283 = arith.mulf %272, %282 : vector<16x64xf32>
    %284 = arith.addf %267, %283 : vector<16x64xf32>
    %c88 = arith.constant 88 : index
    %c0_136 = arith.constant 0 : index
    %285 = vector.load %arg2[%c88, %c0_136] : memref<112x64xf32, #tpu.memory_space<vmem>>, vector<1x64xf32>
    %286 = vector.broadcast %285 : vector<1x64xf32> to vector<16x64xf32>
    %287 = arith.mulf %272, %286 : vector<16x64xf32>
    %288 = arith.addf %271, %287 : vector<16x64xf32>
    %c1_137 = arith.constant 1 : index
    %c10_138 = arith.constant 10 : index
    %289 = vector.load %arg5[%c1_137, %c10_138] : memref<18x80xf32, #tpu.memory_space<vmem>>, vector<16x64xf32>
    %c26 = arith.constant 26 : index
    %c0_139 = arith.constant 0 : index
    %290 = vector.load %arg2[%c26, %c0_139] : memref<112x64xf32, #tpu.memory_space<vmem>>, vector<1x64xf32>
    %291 = vector.broadcast %290 : vector<1x64xf32> to vector<16x64xf32>
    %292 = arith.mulf %289, %291 : vector<16x64xf32>
    %293 = arith.addf %276, %292 : vector<16x64xf32>
    %c47 = arith.constant 47 : index
    %c0_140 = arith.constant 0 : index
    %294 = vector.load %arg2[%c47, %c0_140] : memref<112x64xf32, #tpu.memory_space<vmem>>, vector<1x64xf32>
    %295 = vector.broadcast %294 : vector<1x64xf32> to vector<16x64xf32>
    %296 = arith.mulf %289, %295 : vector<16x64xf32>
    %297 = arith.addf %280, %296 : vector<16x64xf32>
    %c68 = arith.constant 68 : index
    %c0_141 = arith.constant 0 : index
    %298 = vector.load %arg2[%c68, %c0_141] : memref<112x64xf32, #tpu.memory_space<vmem>>, vector<1x64xf32>
    %299 = vector.broadcast %298 : vector<1x64xf32> to vector<16x64xf32>
    %300 = arith.mulf %289, %299 : vector<16x64xf32>
    %301 = arith.addf %284, %300 : vector<16x64xf32>
    %c89 = arith.constant 89 : index
    %c0_142 = arith.constant 0 : index
    %302 = vector.load %arg2[%c89, %c0_142] : memref<112x64xf32, #tpu.memory_space<vmem>>, vector<1x64xf32>
    %303 = vector.broadcast %302 : vector<1x64xf32> to vector<16x64xf32>
    %304 = arith.mulf %289, %303 : vector<16x64xf32>
    %305 = arith.addf %288, %304 : vector<16x64xf32>
    %c1_143 = arith.constant 1 : index
    %c11_144 = arith.constant 11 : index
    %306 = vector.load %arg5[%c1_143, %c11_144] : memref<18x80xf32, #tpu.memory_space<vmem>>, vector<16x64xf32>
    %c27 = arith.constant 27 : index
    %c0_145 = arith.constant 0 : index
    %307 = vector.load %arg2[%c27, %c0_145] : memref<112x64xf32, #tpu.memory_space<vmem>>, vector<1x64xf32>
    %308 = vector.broadcast %307 : vector<1x64xf32> to vector<16x64xf32>
    %309 = arith.mulf %306, %308 : vector<16x64xf32>
    %310 = arith.addf %293, %309 : vector<16x64xf32>
    %c48 = arith.constant 48 : index
    %c0_146 = arith.constant 0 : index
    %311 = vector.load %arg2[%c48, %c0_146] : memref<112x64xf32, #tpu.memory_space<vmem>>, vector<1x64xf32>
    %312 = vector.broadcast %311 : vector<1x64xf32> to vector<16x64xf32>
    %313 = arith.mulf %306, %312 : vector<16x64xf32>
    %314 = arith.addf %297, %313 : vector<16x64xf32>
    %c69 = arith.constant 69 : index
    %c0_147 = arith.constant 0 : index
    %315 = vector.load %arg2[%c69, %c0_147] : memref<112x64xf32, #tpu.memory_space<vmem>>, vector<1x64xf32>
    %316 = vector.broadcast %315 : vector<1x64xf32> to vector<16x64xf32>
    %317 = arith.mulf %306, %316 : vector<16x64xf32>
    %318 = arith.addf %301, %317 : vector<16x64xf32>
    %c90 = arith.constant 90 : index
    %c0_148 = arith.constant 0 : index
    %319 = vector.load %arg2[%c90, %c0_148] : memref<112x64xf32, #tpu.memory_space<vmem>>, vector<1x64xf32>
    %320 = vector.broadcast %319 : vector<1x64xf32> to vector<16x64xf32>
    %321 = arith.mulf %306, %320 : vector<16x64xf32>
    %322 = arith.addf %305, %321 : vector<16x64xf32>
    %c1_149 = arith.constant 1 : index
    %c9_150 = arith.constant 9 : index
    %323 = vector.load %arg5[%c1_149, %c9_150] : memref<18x80xf32, #tpu.memory_space<vmem>>, vector<16x64xf32>
    %c49 = arith.constant 49 : index
    %c0_151 = arith.constant 0 : index
    %324 = vector.load %arg2[%c49, %c0_151] : memref<112x64xf32, #tpu.memory_space<vmem>>, vector<1x64xf32>
    %325 = vector.broadcast %324 : vector<1x64xf32> to vector<16x64xf32>
    %326 = arith.mulf %323, %325 : vector<16x64xf32>
    %327 = arith.addf %314, %326 : vector<16x64xf32>
    %c91 = arith.constant 91 : index
    %c0_152 = arith.constant 0 : index
    %328 = vector.load %arg2[%c91, %c0_152] : memref<112x64xf32, #tpu.memory_space<vmem>>, vector<1x64xf32>
    %329 = vector.broadcast %328 : vector<1x64xf32> to vector<16x64xf32>
    %330 = arith.mulf %323, %329 : vector<16x64xf32>
    %331 = arith.addf %322, %330 : vector<16x64xf32>
    %c1_153 = arith.constant 1 : index
    %c10_154 = arith.constant 10 : index
    %332 = vector.load %arg5[%c1_153, %c10_154] : memref<18x80xf32, #tpu.memory_space<vmem>>, vector<16x64xf32>
    %c50 = arith.constant 50 : index
    %c0_155 = arith.constant 0 : index
    %333 = vector.load %arg2[%c50, %c0_155] : memref<112x64xf32, #tpu.memory_space<vmem>>, vector<1x64xf32>
    %334 = vector.broadcast %333 : vector<1x64xf32> to vector<16x64xf32>
    %335 = arith.mulf %332, %334 : vector<16x64xf32>
    %336 = arith.addf %327, %335 : vector<16x64xf32>
    %c92 = arith.constant 92 : index
    %c0_156 = arith.constant 0 : index
    %337 = vector.load %arg2[%c92, %c0_156] : memref<112x64xf32, #tpu.memory_space<vmem>>, vector<1x64xf32>
    %338 = vector.broadcast %337 : vector<1x64xf32> to vector<16x64xf32>
    %339 = arith.mulf %332, %338 : vector<16x64xf32>
    %340 = arith.addf %331, %339 : vector<16x64xf32>
    %c1_157 = arith.constant 1 : index
    %c11_158 = arith.constant 11 : index
    %341 = vector.load %arg5[%c1_157, %c11_158] : memref<18x80xf32, #tpu.memory_space<vmem>>, vector<16x64xf32>
    %c51 = arith.constant 51 : index
    %c0_159 = arith.constant 0 : index
    %342 = vector.load %arg2[%c51, %c0_159] : memref<112x64xf32, #tpu.memory_space<vmem>>, vector<1x64xf32>
    %343 = vector.broadcast %342 : vector<1x64xf32> to vector<16x64xf32>
    %344 = arith.mulf %341, %343 : vector<16x64xf32>
    %345 = arith.addf %336, %344 : vector<16x64xf32>
    %c93 = arith.constant 93 : index
    %c0_160 = arith.constant 0 : index
    %346 = vector.load %arg2[%c93, %c0_160] : memref<112x64xf32, #tpu.memory_space<vmem>>, vector<1x64xf32>
    %347 = vector.broadcast %346 : vector<1x64xf32> to vector<16x64xf32>
    %348 = arith.mulf %341, %347 : vector<16x64xf32>
    %349 = arith.addf %340, %348 : vector<16x64xf32>
    %c1_161 = arith.constant 1 : index
    %c12_162 = arith.constant 12 : index
    %350 = vector.load %arg5[%c1_161, %c12_162] : memref<18x80xf32, #tpu.memory_space<vmem>>, vector<16x64xf32>
    %c52 = arith.constant 52 : index
    %c0_163 = arith.constant 0 : index
    %351 = vector.load %arg2[%c52, %c0_163] : memref<112x64xf32, #tpu.memory_space<vmem>>, vector<1x64xf32>
    %352 = vector.broadcast %351 : vector<1x64xf32> to vector<16x64xf32>
    %353 = arith.mulf %350, %352 : vector<16x64xf32>
    %354 = arith.addf %345, %353 : vector<16x64xf32>
    %c94 = arith.constant 94 : index
    %c0_164 = arith.constant 0 : index
    %355 = vector.load %arg2[%c94, %c0_164] : memref<112x64xf32, #tpu.memory_space<vmem>>, vector<1x64xf32>
    %356 = vector.broadcast %355 : vector<1x64xf32> to vector<16x64xf32>
    %357 = arith.mulf %350, %356 : vector<16x64xf32>
    %358 = arith.addf %349, %357 : vector<16x64xf32>
    %c1_165 = arith.constant 1 : index
    %c13_166 = arith.constant 13 : index
    %359 = vector.load %arg5[%c1_165, %c13_166] : memref<18x80xf32, #tpu.memory_space<vmem>>, vector<16x64xf32>
    %c53 = arith.constant 53 : index
    %c0_167 = arith.constant 0 : index
    %360 = vector.load %arg2[%c53, %c0_167] : memref<112x64xf32, #tpu.memory_space<vmem>>, vector<1x64xf32>
    %361 = vector.broadcast %360 : vector<1x64xf32> to vector<16x64xf32>
    %362 = arith.mulf %359, %361 : vector<16x64xf32>
    %363 = arith.addf %354, %362 : vector<16x64xf32>
    %c95 = arith.constant 95 : index
    %c0_168 = arith.constant 0 : index
    %364 = vector.load %arg2[%c95, %c0_168] : memref<112x64xf32, #tpu.memory_space<vmem>>, vector<1x64xf32>
    %365 = vector.broadcast %364 : vector<1x64xf32> to vector<16x64xf32>
    %366 = arith.mulf %359, %365 : vector<16x64xf32>
    %367 = arith.addf %358, %366 : vector<16x64xf32>
    %c1_169 = arith.constant 1 : index
    %c14_170 = arith.constant 14 : index
    %368 = vector.load %arg5[%c1_169, %c14_170] : memref<18x80xf32, #tpu.memory_space<vmem>>, vector<16x64xf32>
    %c54 = arith.constant 54 : index
    %c0_171 = arith.constant 0 : index
    %369 = vector.load %arg2[%c54, %c0_171] : memref<112x64xf32, #tpu.memory_space<vmem>>, vector<1x64xf32>
    %370 = vector.broadcast %369 : vector<1x64xf32> to vector<16x64xf32>
    %371 = arith.mulf %368, %370 : vector<16x64xf32>
    %372 = arith.addf %363, %371 : vector<16x64xf32>
    %c96 = arith.constant 96 : index
    %c0_172 = arith.constant 0 : index
    %373 = vector.load %arg2[%c96, %c0_172] : memref<112x64xf32, #tpu.memory_space<vmem>>, vector<1x64xf32>
    %374 = vector.broadcast %373 : vector<1x64xf32> to vector<16x64xf32>
    %375 = arith.mulf %368, %374 : vector<16x64xf32>
    %376 = arith.addf %367, %375 : vector<16x64xf32>
    %c1_173 = arith.constant 1 : index
    %c15_174 = arith.constant 15 : index
    %377 = vector.load %arg5[%c1_173, %c15_174] : memref<18x80xf32, #tpu.memory_space<vmem>>, vector<16x64xf32>
    %c55 = arith.constant 55 : index
    %c0_175 = arith.constant 0 : index
    %378 = vector.load %arg2[%c55, %c0_175] : memref<112x64xf32, #tpu.memory_space<vmem>>, vector<1x64xf32>
    %379 = vector.broadcast %378 : vector<1x64xf32> to vector<16x64xf32>
    %380 = arith.mulf %377, %379 : vector<16x64xf32>
    %381 = arith.addf %372, %380 : vector<16x64xf32>
    %c97 = arith.constant 97 : index
    %c0_176 = arith.constant 0 : index
    %382 = vector.load %arg2[%c97, %c0_176] : memref<112x64xf32, #tpu.memory_space<vmem>>, vector<1x64xf32>
    %383 = vector.broadcast %382 : vector<1x64xf32> to vector<16x64xf32>
    %384 = arith.mulf %377, %383 : vector<16x64xf32>
    %385 = arith.addf %376, %384 : vector<16x64xf32>
    %c2_177 = arith.constant 2 : index
    %c1_178 = arith.constant 1 : index
    %386 = vector.load %arg5[%c2_177, %c1_178] : memref<18x80xf32, #tpu.memory_space<vmem>>, vector<16x64xf32>
    %c70 = arith.constant 70 : index
    %c0_179 = arith.constant 0 : index
    %387 = vector.load %arg2[%c70, %c0_179] : memref<112x64xf32, #tpu.memory_space<vmem>>, vector<1x64xf32>
    %388 = vector.broadcast %387 : vector<1x64xf32> to vector<16x64xf32>
    %389 = arith.mulf %386, %388 : vector<16x64xf32>
    %390 = arith.addf %318, %389 : vector<16x64xf32>
    %c2_180 = arith.constant 2 : index
    %c2_181 = arith.constant 2 : index
    %391 = vector.load %arg5[%c2_180, %c2_181] : memref<18x80xf32, #tpu.memory_space<vmem>>, vector<16x64xf32>
    %c71 = arith.constant 71 : index
    %c0_182 = arith.constant 0 : index
    %392 = vector.load %arg2[%c71, %c0_182] : memref<112x64xf32, #tpu.memory_space<vmem>>, vector<1x64xf32>
    %393 = vector.broadcast %392 : vector<1x64xf32> to vector<16x64xf32>
    %394 = arith.mulf %391, %393 : vector<16x64xf32>
    %395 = arith.addf %390, %394 : vector<16x64xf32>
    %c2_183 = arith.constant 2 : index
    %c3_184 = arith.constant 3 : index
    %396 = vector.load %arg5[%c2_183, %c3_184] : memref<18x80xf32, #tpu.memory_space<vmem>>, vector<16x64xf32>
    %c72 = arith.constant 72 : index
    %c0_185 = arith.constant 0 : index
    %397 = vector.load %arg2[%c72, %c0_185] : memref<112x64xf32, #tpu.memory_space<vmem>>, vector<1x64xf32>
    %398 = vector.broadcast %397 : vector<1x64xf32> to vector<16x64xf32>
    %399 = arith.mulf %396, %398 : vector<16x64xf32>
    %400 = arith.addf %395, %399 : vector<16x64xf32>
    %c2_186 = arith.constant 2 : index
    %c4_187 = arith.constant 4 : index
    %401 = vector.load %arg5[%c2_186, %c4_187] : memref<18x80xf32, #tpu.memory_space<vmem>>, vector<16x64xf32>
    %c73 = arith.constant 73 : index
    %c0_188 = arith.constant 0 : index
    %402 = vector.load %arg2[%c73, %c0_188] : memref<112x64xf32, #tpu.memory_space<vmem>>, vector<1x64xf32>
    %403 = vector.broadcast %402 : vector<1x64xf32> to vector<16x64xf32>
    %404 = arith.mulf %401, %403 : vector<16x64xf32>
    %405 = arith.addf %400, %404 : vector<16x64xf32>
    %c2_189 = arith.constant 2 : index
    %c5_190 = arith.constant 5 : index
    %406 = vector.load %arg5[%c2_189, %c5_190] : memref<18x80xf32, #tpu.memory_space<vmem>>, vector<16x64xf32>
    %c74 = arith.constant 74 : index
    %c0_191 = arith.constant 0 : index
    %407 = vector.load %arg2[%c74, %c0_191] : memref<112x64xf32, #tpu.memory_space<vmem>>, vector<1x64xf32>
    %408 = vector.broadcast %407 : vector<1x64xf32> to vector<16x64xf32>
    %409 = arith.mulf %406, %408 : vector<16x64xf32>
    %410 = arith.addf %405, %409 : vector<16x64xf32>
    %c2_192 = arith.constant 2 : index
    %c6_193 = arith.constant 6 : index
    %411 = vector.load %arg5[%c2_192, %c6_193] : memref<18x80xf32, #tpu.memory_space<vmem>>, vector<16x64xf32>
    %c75 = arith.constant 75 : index
    %c0_194 = arith.constant 0 : index
    %412 = vector.load %arg2[%c75, %c0_194] : memref<112x64xf32, #tpu.memory_space<vmem>>, vector<1x64xf32>
    %413 = vector.broadcast %412 : vector<1x64xf32> to vector<16x64xf32>
    %414 = arith.mulf %411, %413 : vector<16x64xf32>
    %415 = arith.addf %410, %414 : vector<16x64xf32>
    %c2_195 = arith.constant 2 : index
    %c7_196 = arith.constant 7 : index
    %416 = vector.load %arg5[%c2_195, %c7_196] : memref<18x80xf32, #tpu.memory_space<vmem>>, vector<16x64xf32>
    %c76 = arith.constant 76 : index
    %c0_197 = arith.constant 0 : index
    %417 = vector.load %arg2[%c76, %c0_197] : memref<112x64xf32, #tpu.memory_space<vmem>>, vector<1x64xf32>
    %418 = vector.broadcast %417 : vector<1x64xf32> to vector<16x64xf32>
    %419 = arith.mulf %416, %418 : vector<16x64xf32>
    %420 = arith.addf %415, %419 : vector<16x64xf32>
    %c2_198 = arith.constant 2 : index
    %c5_199 = arith.constant 5 : index
    %421 = vector.load %arg5[%c2_198, %c5_199] : memref<18x80xf32, #tpu.memory_space<vmem>>, vector<16x64xf32>
    %c77 = arith.constant 77 : index
    %c0_200 = arith.constant 0 : index
    %422 = vector.load %arg2[%c77, %c0_200] : memref<112x64xf32, #tpu.memory_space<vmem>>, vector<1x64xf32>
    %423 = vector.broadcast %422 : vector<1x64xf32> to vector<16x64xf32>
    %424 = arith.mulf %421, %423 : vector<16x64xf32>
    %425 = arith.addf %420, %424 : vector<16x64xf32>
    %c98 = arith.constant 98 : index
    %c0_201 = arith.constant 0 : index
    %426 = vector.load %arg2[%c98, %c0_201] : memref<112x64xf32, #tpu.memory_space<vmem>>, vector<1x64xf32>
    %427 = vector.broadcast %426 : vector<1x64xf32> to vector<16x64xf32>
    %428 = arith.mulf %421, %427 : vector<16x64xf32>
    %429 = arith.addf %385, %428 : vector<16x64xf32>
    %c2_202 = arith.constant 2 : index
    %c6_203 = arith.constant 6 : index
    %430 = vector.load %arg5[%c2_202, %c6_203] : memref<18x80xf32, #tpu.memory_space<vmem>>, vector<16x64xf32>
    %c78 = arith.constant 78 : index
    %c0_204 = arith.constant 0 : index
    %431 = vector.load %arg2[%c78, %c0_204] : memref<112x64xf32, #tpu.memory_space<vmem>>, vector<1x64xf32>
    %432 = vector.broadcast %431 : vector<1x64xf32> to vector<16x64xf32>
    %433 = arith.mulf %430, %432 : vector<16x64xf32>
    %434 = arith.addf %425, %433 : vector<16x64xf32>
    %c99 = arith.constant 99 : index
    %c0_205 = arith.constant 0 : index
    %435 = vector.load %arg2[%c99, %c0_205] : memref<112x64xf32, #tpu.memory_space<vmem>>, vector<1x64xf32>
    %436 = vector.broadcast %435 : vector<1x64xf32> to vector<16x64xf32>
    %437 = arith.mulf %430, %436 : vector<16x64xf32>
    %438 = arith.addf %429, %437 : vector<16x64xf32>
    %c2_206 = arith.constant 2 : index
    %c7_207 = arith.constant 7 : index
    %439 = vector.load %arg5[%c2_206, %c7_207] : memref<18x80xf32, #tpu.memory_space<vmem>>, vector<16x64xf32>
    %c79 = arith.constant 79 : index
    %c0_208 = arith.constant 0 : index
    %440 = vector.load %arg2[%c79, %c0_208] : memref<112x64xf32, #tpu.memory_space<vmem>>, vector<1x64xf32>
    %441 = vector.broadcast %440 : vector<1x64xf32> to vector<16x64xf32>
    %442 = arith.mulf %439, %441 : vector<16x64xf32>
    %443 = arith.addf %434, %442 : vector<16x64xf32>
    %c100 = arith.constant 100 : index
    %c0_209 = arith.constant 0 : index
    %444 = vector.load %arg2[%c100, %c0_209] : memref<112x64xf32, #tpu.memory_space<vmem>>, vector<1x64xf32>
    %445 = vector.broadcast %444 : vector<1x64xf32> to vector<16x64xf32>
    %446 = arith.mulf %439, %445 : vector<16x64xf32>
    %447 = arith.addf %438, %446 : vector<16x64xf32>
    %c2_210 = arith.constant 2 : index
    %c8_211 = arith.constant 8 : index
    %448 = vector.load %arg5[%c2_210, %c8_211] : memref<18x80xf32, #tpu.memory_space<vmem>>, vector<16x64xf32>
    %c80 = arith.constant 80 : index
    %c0_212 = arith.constant 0 : index
    %449 = vector.load %arg2[%c80, %c0_212] : memref<112x64xf32, #tpu.memory_space<vmem>>, vector<1x64xf32>
    %450 = vector.broadcast %449 : vector<1x64xf32> to vector<16x64xf32>
    %451 = arith.mulf %448, %450 : vector<16x64xf32>
    %452 = arith.addf %443, %451 : vector<16x64xf32>
    %c101 = arith.constant 101 : index
    %c0_213 = arith.constant 0 : index
    %453 = vector.load %arg2[%c101, %c0_213] : memref<112x64xf32, #tpu.memory_space<vmem>>, vector<1x64xf32>
    %454 = vector.broadcast %453 : vector<1x64xf32> to vector<16x64xf32>
    %455 = arith.mulf %448, %454 : vector<16x64xf32>
    %456 = arith.addf %447, %455 : vector<16x64xf32>
    %c2_214 = arith.constant 2 : index
    %c9_215 = arith.constant 9 : index
    %457 = vector.load %arg5[%c2_214, %c9_215] : memref<18x80xf32, #tpu.memory_space<vmem>>, vector<16x64xf32>
    %c81 = arith.constant 81 : index
    %c0_216 = arith.constant 0 : index
    %458 = vector.load %arg2[%c81, %c0_216] : memref<112x64xf32, #tpu.memory_space<vmem>>, vector<1x64xf32>
    %459 = vector.broadcast %458 : vector<1x64xf32> to vector<16x64xf32>
    %460 = arith.mulf %457, %459 : vector<16x64xf32>
    %461 = arith.addf %452, %460 : vector<16x64xf32>
    %c102 = arith.constant 102 : index
    %c0_217 = arith.constant 0 : index
    %462 = vector.load %arg2[%c102, %c0_217] : memref<112x64xf32, #tpu.memory_space<vmem>>, vector<1x64xf32>
    %463 = vector.broadcast %462 : vector<1x64xf32> to vector<16x64xf32>
    %464 = arith.mulf %457, %463 : vector<16x64xf32>
    %465 = arith.addf %456, %464 : vector<16x64xf32>
    %c2_218 = arith.constant 2 : index
    %c10_219 = arith.constant 10 : index
    %466 = vector.load %arg5[%c2_218, %c10_219] : memref<18x80xf32, #tpu.memory_space<vmem>>, vector<16x64xf32>
    %c82 = arith.constant 82 : index
    %c0_220 = arith.constant 0 : index
    %467 = vector.load %arg2[%c82, %c0_220] : memref<112x64xf32, #tpu.memory_space<vmem>>, vector<1x64xf32>
    %468 = vector.broadcast %467 : vector<1x64xf32> to vector<16x64xf32>
    %469 = arith.mulf %466, %468 : vector<16x64xf32>
    %470 = arith.addf %461, %469 : vector<16x64xf32>
    %c103 = arith.constant 103 : index
    %c0_221 = arith.constant 0 : index
    %471 = vector.load %arg2[%c103, %c0_221] : memref<112x64xf32, #tpu.memory_space<vmem>>, vector<1x64xf32>
    %472 = vector.broadcast %471 : vector<1x64xf32> to vector<16x64xf32>
    %473 = arith.mulf %466, %472 : vector<16x64xf32>
    %474 = arith.addf %465, %473 : vector<16x64xf32>
    %c2_222 = arith.constant 2 : index
    %c11_223 = arith.constant 11 : index
    %475 = vector.load %arg5[%c2_222, %c11_223] : memref<18x80xf32, #tpu.memory_space<vmem>>, vector<16x64xf32>
    %c83 = arith.constant 83 : index
    %c0_224 = arith.constant 0 : index
    %476 = vector.load %arg2[%c83, %c0_224] : memref<112x64xf32, #tpu.memory_space<vmem>>, vector<1x64xf32>
    %477 = vector.broadcast %476 : vector<1x64xf32> to vector<16x64xf32>
    %478 = arith.mulf %475, %477 : vector<16x64xf32>
    %479 = arith.addf %470, %478 : vector<16x64xf32>
    %c104 = arith.constant 104 : index
    %c0_225 = arith.constant 0 : index
    %480 = vector.load %arg2[%c104, %c0_225] : memref<112x64xf32, #tpu.memory_space<vmem>>, vector<1x64xf32>
    %481 = vector.broadcast %480 : vector<1x64xf32> to vector<16x64xf32>
    %482 = arith.mulf %475, %481 : vector<16x64xf32>
    %483 = arith.addf %474, %482 : vector<16x64xf32>
    %c2_226 = arith.constant 2 : index
    %c9_227 = arith.constant 9 : index
    %484 = vector.load %arg5[%c2_226, %c9_227] : memref<18x80xf32, #tpu.memory_space<vmem>>, vector<16x64xf32>
    %c105 = arith.constant 105 : index
    %c0_228 = arith.constant 0 : index
    %485 = vector.load %arg2[%c105, %c0_228] : memref<112x64xf32, #tpu.memory_space<vmem>>, vector<1x64xf32>
    %486 = vector.broadcast %485 : vector<1x64xf32> to vector<16x64xf32>
    %487 = arith.mulf %484, %486 : vector<16x64xf32>
    %488 = arith.addf %483, %487 : vector<16x64xf32>
    %c2_229 = arith.constant 2 : index
    %c10_230 = arith.constant 10 : index
    %489 = vector.load %arg5[%c2_229, %c10_230] : memref<18x80xf32, #tpu.memory_space<vmem>>, vector<16x64xf32>
    %c106 = arith.constant 106 : index
    %c0_231 = arith.constant 0 : index
    %490 = vector.load %arg2[%c106, %c0_231] : memref<112x64xf32, #tpu.memory_space<vmem>>, vector<1x64xf32>
    %491 = vector.broadcast %490 : vector<1x64xf32> to vector<16x64xf32>
    %492 = arith.mulf %489, %491 : vector<16x64xf32>
    %493 = arith.addf %488, %492 : vector<16x64xf32>
    %c2_232 = arith.constant 2 : index
    %c11_233 = arith.constant 11 : index
    %494 = vector.load %arg5[%c2_232, %c11_233] : memref<18x80xf32, #tpu.memory_space<vmem>>, vector<16x64xf32>
    %c107 = arith.constant 107 : index
    %c0_234 = arith.constant 0 : index
    %495 = vector.load %arg2[%c107, %c0_234] : memref<112x64xf32, #tpu.memory_space<vmem>>, vector<1x64xf32>
    %496 = vector.broadcast %495 : vector<1x64xf32> to vector<16x64xf32>
    %497 = arith.mulf %494, %496 : vector<16x64xf32>
    %498 = arith.addf %493, %497 : vector<16x64xf32>
    %c2_235 = arith.constant 2 : index
    %c12_236 = arith.constant 12 : index
    %499 = vector.load %arg5[%c2_235, %c12_236] : memref<18x80xf32, #tpu.memory_space<vmem>>, vector<16x64xf32>
    %c108 = arith.constant 108 : index
    %c0_237 = arith.constant 0 : index
    %500 = vector.load %arg2[%c108, %c0_237] : memref<112x64xf32, #tpu.memory_space<vmem>>, vector<1x64xf32>
    %501 = vector.broadcast %500 : vector<1x64xf32> to vector<16x64xf32>
    %502 = arith.mulf %499, %501 : vector<16x64xf32>
    %503 = arith.addf %498, %502 : vector<16x64xf32>
    %c2_238 = arith.constant 2 : index
    %c13_239 = arith.constant 13 : index
    %504 = vector.load %arg5[%c2_238, %c13_239] : memref<18x80xf32, #tpu.memory_space<vmem>>, vector<16x64xf32>
    %c109 = arith.constant 109 : index
    %c0_240 = arith.constant 0 : index
    %505 = vector.load %arg2[%c109, %c0_240] : memref<112x64xf32, #tpu.memory_space<vmem>>, vector<1x64xf32>
    %506 = vector.broadcast %505 : vector<1x64xf32> to vector<16x64xf32>
    %507 = arith.mulf %504, %506 : vector<16x64xf32>
    %508 = arith.addf %503, %507 : vector<16x64xf32>
    %c2_241 = arith.constant 2 : index
    %c14_242 = arith.constant 14 : index
    %509 = vector.load %arg5[%c2_241, %c14_242] : memref<18x80xf32, #tpu.memory_space<vmem>>, vector<16x64xf32>
    %c110 = arith.constant 110 : index
    %c0_243 = arith.constant 0 : index
    %510 = vector.load %arg2[%c110, %c0_243] : memref<112x64xf32, #tpu.memory_space<vmem>>, vector<1x64xf32>
    %511 = vector.broadcast %510 : vector<1x64xf32> to vector<16x64xf32>
    %512 = arith.mulf %509, %511 : vector<16x64xf32>
    %513 = arith.addf %508, %512 : vector<16x64xf32>
    %c2_244 = arith.constant 2 : index
    %c15_245 = arith.constant 15 : index
    %514 = vector.load %arg5[%c2_244, %c15_245] : memref<18x80xf32, #tpu.memory_space<vmem>>, vector<16x64xf32>
    %c111 = arith.constant 111 : index
    %c0_246 = arith.constant 0 : index
    %515 = vector.load %arg2[%c111, %c0_246] : memref<112x64xf32, #tpu.memory_space<vmem>>, vector<1x64xf32>
    %516 = vector.broadcast %515 : vector<1x64xf32> to vector<16x64xf32>
    %517 = arith.mulf %514, %516 : vector<16x64xf32>
    %518 = arith.addf %513, %517 : vector<16x64xf32>
    %cst_247 = arith.constant 0.000000e+00 : f32
    %519 = vector.broadcast %cst_247 : f32 to vector<16x64xf32>
    %520 = arith.cmpf oge, %310, %519 : vector<16x64xf32>
    %cst_248 = arith.constant 2.000000e-01 : f32
    %521 = vector.broadcast %cst_248 : f32 to vector<16x64xf32>
    %522 = arith.mulf %521, %310 : vector<16x64xf32>
    %523 = arith.select %520, %310, %522 : vector<16x64xi1>, vector<16x64xf32>
    %cst_249 = arith.constant 0.000000e+00 : f32
    %524 = vector.broadcast %cst_249 : f32 to vector<16x64xf32>
    %525 = arith.cmpf oge, %381, %524 : vector<16x64xf32>
    %cst_250 = arith.constant 2.000000e-01 : f32
    %526 = vector.broadcast %cst_250 : f32 to vector<16x64xf32>
    %527 = arith.mulf %526, %381 : vector<16x64xf32>
    %528 = arith.select %525, %381, %527 : vector<16x64xi1>, vector<16x64xf32>
    %cst_251 = arith.constant 0.000000e+00 : f32
    %529 = vector.broadcast %cst_251 : f32 to vector<16x64xf32>
    %530 = arith.cmpf oge, %479, %529 : vector<16x64xf32>
    %cst_252 = arith.constant 2.000000e-01 : f32
    %531 = vector.broadcast %cst_252 : f32 to vector<16x64xf32>
    %532 = arith.mulf %531, %479 : vector<16x64xf32>
    %533 = arith.select %530, %479, %532 : vector<16x64xi1>, vector<16x64xf32>
    %cst_253 = arith.constant 0.000000e+00 : f32
    %534 = vector.broadcast %cst_253 : f32 to vector<16x64xf32>
    %535 = arith.cmpf oge, %518, %534 : vector<16x64xf32>
    %cst_254 = arith.constant 2.000000e-01 : f32
    %536 = vector.broadcast %cst_254 : f32 to vector<16x64xf32>
    %537 = arith.mulf %536, %518 : vector<16x64xf32>
    %538 = arith.select %535, %518, %537 : vector<16x64xi1>, vector<16x64xf32>
    %539 = tpu.concatenate %523, %528, %533, %538 in 1 : vector<16x64xf32>, vector<16x64xf32>, vector<16x64xf32>, vector<16x64xf32> -> vector<16x256xf32>
    %c0_255 = arith.constant 0 : index
    %c0_256 = arith.constant 0 : index
    %c0_257 = arith.constant 0 : index
    %540 = vector.load %arg4[%c0_255, %c0_256, %c0_257] : memref<1x16x256xf32, #tpu.memory_space<vmem>>, vector<1x16x256xf32>
    %541 = vector.shape_cast %540 : vector<1x16x256xf32> to vector<16x256xf32>
    %542 = vector.shape_cast %539 : vector<16x256xf32> to vector<1x16x256xf32>
    tpu.vector_store %arg4[%c0_255, %c0_256, %c0_257], %542 {strides = array<i32>} : memref<1x16x256xf32, #tpu.memory_space<vmem>>, vector<1x16x256xf32>,
    return
  }
  func.func @transform_0(%arg0: i32) -> (i32, i32, i32) {
    %c0_i32 = arith.constant 0 : i32
    %c0_i32_0 = arith.constant 0 : i32
    %c0_i32_1 = arith.constant 0 : i32
    return %arg0, %c0_i32, %c0_i32_0 : i32, i32, i32
  }
  func.func @transform_1(%arg0: i32) -> (i32, i32) {
    %c0_i32 = arith.constant 0 : i32
    %c0_i32_0 = arith.constant 0 : i32
    %c0_i32_1 = arith.constant 0 : i32
    return %c0_i32, %c0_i32_0 : i32, i32
  }
  func.func @transform_2(%arg0: i32) -> (i32, i32) {
    %c0_i32 = arith.constant 0 : i32
    %c0_i32_0 = arith.constant 0 : i32
    %c0_i32_1 = arith.constant 0 : i32
    return %c0_i32, %c0_i32_0 : i32, i32
  }
  func.func @transform_3(%arg0: i32) -> (i32, i32, i32) {
    %c0_i32 = arith.constant 0 : i32
    %c0_i32_0 = arith.constant 0 : i32
    %c0_i32_1 = arith.constant 0 : i32
    return %arg0, %c0_i32, %c0_i32_0 : i32, i32, i32
  }
}

</mosaic_0001>

<llo_original>
// kernel: tile.18
$region0: #{tile.18}
  #allocation0 [shape = 's32[1]{0}', space=sflag, size = 0x4, scoped, tag = 'scoped memory for tile.18']
  %s0 = inlined_call_operand.vmem [shape: f32[4], index: 0, kind: input, shape index: {}]
  %s1 = inlined_call_operand.vmem [shape: f32[16,4], index: 1, kind: output, shape index: {}]
  // Predicated region
  $region2: #{tile.18} parent=0 // pred_check
    _
  $region3: #{tile.18} parent=0 // pred_check_branch
    %3 = sbr.rel (0) target = $region5
  $region4: #{tile.18} parent=0 // pred_region
    _
  $region5: #{tile.18} parent=0 // pred_fallthru
    _
  %v4 = vld [vmem:[%s0] ss:$0 sm:$0xff]
  %5 = vst [vmem:[%s1] sm:$0xff] %v4
  %s6 = scalar_lea.vmem %s1, 8
  %7 = vst [vmem:[%s6] sm:$0xff] %v4

// kernel: tile.19
$region0: #{tile.19}
  %s0 = inlined_call_operand.vmem [shape: f32[16,4], index: 0, kind: input, shape index: {}]
  %s1 = inlined_call_operand.vmem [shape: f32[1,64], index: 1, kind: output, shape index: {}]
  $region1: #{tile.19} parent=0
    #allocation0 [shape = 'u8[4096]{0}', space=vmem, size = 0x1000, scoped, tag = 'scoped mem for output reshape']
    %v2 = vld [vmem:[%s0] sm:$0x1]
    %vm3 = vcmask 31744
    %4 = vst.msk [vmem:[#allocation0] sm:$0x1] %vm3, %v2
    %s5 = scalar_lea.vmem %s0, 15
    %v6 = vld [vmem:[%s5] sm:$0x1]
    %7 = vrot.lane.b32.xlu0 %v6, 60
    %v8 = vpop.permute.xlu0 %7
    %vm9 = vcmask 523744
    %10 = vst.msk [vmem:[#allocation0] sm:$0x1] %vm9, %v8
    %s11 = scalar_lea.vmem %s0, 14
    %v12 = vld [vmem:[%s11] sm:$0x1]
    %13 = vrot.lane.b32.xlu0 %v12, 56
    %v14 = vpop.permute.xlu0 %13
    %vm15 = vcmask 490944
    %16 = vst.msk [vmem:[#allocation0] sm:$0x1] %vm15, %v14
    %s17 = scalar_lea.vmem %s0, 13
    %v18 = vld [vmem:[%s17] sm:$0x1]
    %19 = vrot.lane.b32.xlu0 %v18, 52
    %v20 = vpop.permute.xlu0 %19
    %vm21 = vcmask 458144
    %22 = vst.msk [vmem:[#allocation0] sm:$0x1] %vm21, %v20
    %s23 = scalar_lea.vmem %s0, 12
    %v24 = vld [vmem:[%s23] sm:$0x1]
    %25 = vrot.lane.b32.xlu0 %v24, 48
    %v26 = vpop.permute.xlu0 %25
    %vm27 = vcmask 425344
    %28 = vst.msk [vmem:[#allocation0] sm:$0x1] %vm27, %v26
    %s29 = scalar_lea.vmem %s0, 11
    %v30 = vld [vmem:[%s29] sm:$0x1]
    %31 = vrot.lane.b32.xlu0 %v30, 44
    %v32 = vpop.permute.xlu0 %31
    %vm33 = vcmask 392544
    %34 = vst.msk [vmem:[#allocation0] sm:$0x1] %vm33, %v32
    %s35 = scalar_lea.vmem %s0, 10
    %v36 = vld [vmem:[%s35] sm:$0x1]
    %37 = vrot.lane.b32.xlu0 %v36, 40
    %v38 = vpop.permute.xlu0 %37
    %vm39 = vcmask 359744
    %40 = vst.msk [vmem:[#allocation0] sm:$0x1] %vm39, %v38
    %s41 = scalar_lea.vmem %s0, 9
    %v42 = vld [vmem:[%s41] sm:$0x1]
    %43 = vrot.lane.b32.xlu0 %v42, 36
    %v44 = vpop.permute.xlu0 %43
    %vm45 = vcmask 326944
    %46 = vst.msk [vmem:[#allocation0] sm:$0x1] %vm45, %v44
    %s47 = scalar_lea.vmem %s0, 8
    %v48 = vld [vmem:[%s47] sm:$0x1]
    %49 = vrot.lane.b32.xlu0 %v48, 32
    %v50 = vpop.permute.xlu0 %49
    %vm51 = vcmask 294144
    %52 = vst.msk [vmem:[#allocation0] sm:$0x1] %vm51, %v50
    %s53 = scalar_lea.vmem %s0, 7
    %v54 = vld [vmem:[%s53] sm:$0x1]
    %55 = vrot.lane.b32.xlu0 %v54, 28
    %v56 = vpop.permute.xlu0 %55
    %vm57 = vcmask 261344
    %58 = vst.msk [vmem:[#allocation0] sm:$0x1] %vm57, %v56
    %s59 = scalar_lea.vmem %s0, 6
    %v60 = vld [vmem:[%s59] sm:$0x1]
    %61 = vrot.lane.b32.xlu0 %v60, 24
    %v62 = vpop.permute.xlu0 %61
    %vm63 = vcmask 228544
    %64 = vst.msk [vmem:[#allocation0] sm:$0x1] %vm63, %v62
    %s65 = scalar_lea.vmem %s0, 5
    %v66 = vld [vmem:[%s65] sm:$0x1]
    %67 = vrot.lane.b32.xlu0 %v66, 20
    %v68 = vpop.permute.xlu0 %67
    %vm69 = vcmask 195744
    %70 = vst.msk [vmem:[#allocation0] sm:$0x1] %vm69, %v68
    %s71 = scalar_lea.vmem %s0, 4
    %v72 = vld [vmem:[%s71] sm:$0x1]
    %73 = vrot.lane.b32.xlu0 %v72, 16
    %v74 = vpop.permute.xlu0 %73
    %vm75 = vcmask 162944
    %76 = vst.msk [vmem:[#allocation0] sm:$0x1] %vm75, %v74
    %s77 = scalar_lea.vmem %s0, 3
    %v78 = vld [vmem:[%s77] sm:$0x1]
    %79 = vrot.lane.b32.xlu0 %v78, 12
    %v80 = vpop.permute.xlu0 %79
    %vm81 = vcmask 130144
    %82 = vst.msk [vmem:[#allocation0] sm:$0x1] %vm81, %v80
    %s83 = scalar_lea.vmem %s0, 2
    %v84 = vld [vmem:[%s83] sm:$0x1]
    %85 = vrot.lane.b32.xlu0 %v84, 8
    %v86 = vpop.permute.xlu0 %85
    %vm87 = vcmask 97344
    %88 = vst.msk [vmem:[#allocation0] sm:$0x1] %vm87, %v86
    %s89 = scalar_lea.vmem %s0, 1
    %v90 = vld [vmem:[%s89] sm:$0x1]
    %91 = vrot.lane.b32.xlu0 %v90, 4
    %v92 = vpop.permute.xlu0 %91
    %vm93 = vcmask 64544
    %94 = vst.msk [vmem:[#allocation0] sm:$0x1] %vm93, %v92
    %s96 = sshll.u32 1, 1
    %s97 = ssub.s32 %s96, 1
    %v99 = vld [vmem:[#allocation0] sm:%s97]
    %s100 = sshll.u32 1, 1
    %s101 = ssub.s32 %s100, 1
    %102 = vst [vmem:[%s1] sm:%s101] %v99

// kernel: tile.14
$region0: #{tile.14}
  %s0 = inlined_call_operand.vmem [shape: f32[2,1,2,1,2,1,2,1,7,16,4], index: 0, kind: input, shape index: {}]
  %s1 = inlined_call_operand.vmem [shape: f32[112,64], index: 1, kind: output, shape index: {}]
  $region1: #{tile.14} parent=0
    #allocation0 [shape = 'u8[2097152]{0}', space=vmem, size = 0x200000, scoped, tag = 'scoped mem for input reshape']
    %s3 = sshll.u32 1, 2
    %s4 = ssub.s32 %s3, 1
    %s5 = smul.addr 2, 511
    %s6 = scalar_lea.vmem %s0, %s5
    %v7 = vld [vmem:[%s6] sm:%s4]
    %s8 = scalar_lea.vmem [#allocation0], 4088
    %9 = vst [vmem:[%s8] sm:%s4] %v7
    %s10 = smul.addr 2, 510
    %s11 = scalar_lea.vmem %s0, %s10
    %v12 = vld [vmem:[%s11] sm:%s4]
    %s13 = scalar_lea.vmem [#allocation0], 4080
    %14 = vst [vmem:[%s13] sm:%s4] %v12
    %s15 = smul.addr 2, 509
    %s16 = scalar_lea.vmem %s0, %s15
    %v17 = vld [vmem:[%s16] sm:%s4]
    %s18 = scalar_lea.vmem [#allocation0], 4072
    %19 = vst [vmem:[%s18] sm:%s4] %v17
    %s20 = smul.addr 2, 508
    %s21 = scalar_lea.vmem %s0, %s20
    %v22 = vld [vmem:[%s21] sm:%s4]
    %s23 = scalar_lea.vmem [#allocation0], 4064
    %24 = vst [vmem:[%s23] sm:%s4] %v22
    %s25 = smul.addr 2, 507
    %s26 = scalar_lea.vmem %s0, %s25
    %v27 = vld [vmem:[%s26] sm:%s4]
    %s28 = scalar_lea.vmem [#allocation0], 4056
    %29 = vst [vmem:[%s28] sm:%s4] %v27
    %s30 = smul.addr 2, 506
    %s31 = scalar_lea.vmem %s0, %s30
    %v32 = vld [vmem:[%s31] sm:%s4]
    %s33 = scalar_lea.vmem [#allocation0], 4048
    %34 = vst [vmem:[%s33] sm:%s4] %v32
    %s35 = smul.addr 2, 505
    %s36 = scalar_lea.vmem %s0, %s35
    %v37 = vld [vmem:[%s36] sm:%s4]
    %s38 = scalar_lea.vmem [#allocation0], 4040
    %39 = vst [vmem:[%s38] sm:%s4] %v37
    %s40 = smul.addr 2, 504
    %s41 = scalar_lea.vmem %s0, %s40
    %v42 = vld [vmem:[%s41] sm:%s4]
    %s43 = scalar_lea.vmem [#allocation0], 4032
    %44 = vst [vmem:[%s43] sm:%s4] %v42
    %s45 = smul.addr 2, 503
    %s46 = scalar_lea.vmem %s0, %s45
    %v47 = vld [vmem:[%s46] sm:%s4]
    %s48 = scalar_lea.vmem [#allocation0], 4024
    %49 = vst [vmem:[%s48] sm:%s4] %v47
    %s50 = smul.addr 2, 502
    %s51 = scalar_lea.vmem %s0, %s50
    %v52 = vld [vmem:[%s51] sm:%s4]
    %s53 = scalar_lea.vmem [#allocation0], 4016
    %54 = vst [vmem:[%s53] sm:%s4] %v52
    %s55 = smul.addr 2, 501
    %s56 = scalar_lea.vmem %s0, %s55
    %v57 = vld [vmem:[%s56] sm:%s4]
    %s58 = scalar_lea.vmem [#allocation0], 4008
    %59 = vst [vmem:[%s58] sm:%s4] %v57
    %s60 = smul.addr 2, 500
    %s61 = scalar_lea.vmem %s0, %s60
    %v62 = vld [vmem:[%s61] sm:%s4]
    %s63 = scalar_lea.vmem [#allocation0], 4000
    %64 = vst [vmem:[%s63] sm:%s4] %v62
    %s65 = smul.addr 2, 499
    %s66 = scalar_lea.vmem %s0, %s65
    %v67 = vld [vmem:[%s66] sm:%s4]
    %s68 = scalar_lea.vmem [#allocation0], 3992
    %69 = vst [vmem:[%s68] sm:%s4] %v67
    %s70 = smul.addr 2, 498
    %s71 = scalar_lea.vmem %s0, %s70
    %v72 = vld [vmem:[%s71] sm:%s4]
    %s73 = scalar_lea.vmem [#allocation0], 3984
    %74 = vst [vmem:[%s73] sm:%s4] %v72
    %s75 = smul.addr 2, 497
    %s76 = scalar_lea.vmem %s0, %s75
    %v77 = vld [vmem:[%s76] sm:%s4]
    %s78 = scalar_lea.vmem [#allocation0], 3976
    %79 = vst [vmem:[%s78] sm:%s4] %v77
    %s80 = smul.addr 2, 496
    %s81 = scalar_lea.vmem %s0, %s80
    %v82 = vld [vmem:[%s81] sm:%s4]
    %s83 = scalar_lea.vmem [#allocation0], 3968
    %84 = vst [vmem:[%s83] sm:%s4] %v82
    %s85 = smul.addr 2, 495
    %s86 = scalar_lea.vmem %s0, %s85
    %v87 = vld [vmem:[%s86] sm:%s4]
    %s88 = scalar_lea.vmem [#allocation0], 3960
    %89 = vst [vmem:[%s88] sm:%s4] %v87
    %s90 = smul.addr 2, 494
    %s91 = scalar_lea.vmem %s0, %s90
    %v92 = vld [vmem:[%s91] sm:%s4]
    %s93 = scalar_lea.vmem [#allocation0], 3952
    %94 = vst [vmem:[%s93] sm:%s4] %v92
    %s95 = smul.addr 2, 493
    %s96 = scalar_lea.vmem %s0, %s95
    %v97 = vld [vmem:[%s96] sm:%s4]
    %s98 = scalar_lea.vmem [#allocation0], 3944
    %99 = vst [vmem:[%s98] sm:%s4] %v97
    %s100 = smul.addr 2, 492
    %s101 = scalar_lea.vmem %s0, %s100
    %v102 = vld [vmem:[%s101] sm:%s4]
    %s103 = scalar_lea.vmem [#allocation0], 3936
    %104 = vst [vmem:[%s103] sm:%s4] %v102
    %s105 = smul.addr 2, 491
    %s106 = scalar_lea.vmem %s0, %s105
    %v107 = vld [vmem:[%s106] sm:%s4]
    %s108 = scalar_lea.vmem [#allocation0], 3928
    %109 = vst [vmem:[%s108] sm:%s4] %v107
    %s110 = smul.addr 2, 490
    %s111 = scalar_lea.vmem %s0, %s110
    %v112 = vld [vmem:[%s111] sm:%s4]
    %s113 = scalar_lea.vmem [#allocation0], 3920
    %114 = vst [vmem:[%s113] sm:%s4] %v112
    %s115 = smul.addr 2, 489
    %s116 = scalar_lea.vmem %s0, %s115
    %v117 = vld [vmem:[%s116] sm:%s4]
    %s118 = scalar_lea.vmem [#allocation0], 3912
    %119 = vst [vmem:[%s118] sm:%s4] %v117
    %s120 = smul.addr 2, 488
    %s121 = scalar_lea.vmem %s0, %s120
    %v122 = vld [vmem:[%s121] sm:%s4]
    %s123 = scalar_lea.vmem [#allocation0], 3904
    %124 = vst [vmem:[%s123] sm:%s4] %v122
    %s125 = smul.addr 2, 487
    %s126 = scalar_lea.vmem %s0, %s125
    %v127 = vld [vmem:[%s126] sm:%s4]
    %s128 = scalar_lea.vmem [#allocation0], 3896
    %129 = vst [vmem:[%s128] sm:%s4] %v127
    %s130 = smul.addr 2, 486
    %s131 = scalar_lea.vmem %s0, %s130
    %v132 = vld [vmem:[%s131] sm:%s4]
    %s133 = scalar_lea.vmem [#allocation0], 3888
    %134 = vst [vmem:[%s133] sm:%s4] %v132
    %s135 = smul.addr 2, 485
    %s136 = scalar_lea.vmem %s0, %s135
    %v137 = vld [vmem:[%s136] sm:%s4]
    %s138 = scalar_lea.vmem [#allocation0], 3880
    %139 = vst [vmem:[%s138] sm:%s4] %v137
    %s140 = smul.addr 2, 484
    %s141 = scalar_lea.vmem %s0, %s140
    %v142 = vld [vmem:[%s141] sm:%s4]
    %s143 = scalar_lea.vmem [#allocation0], 3872
    %144 = vst [vmem:[%s143] sm:%s4] %v142
    %s145 = smul.addr 2, 483
    %s146 = scalar_lea.vmem %s0, %s145
    %v147 = vld [vmem:[%s146] sm:%s4]
    %s148 = scalar_lea.vmem [#allocation0], 3864
    %149 = vst [vmem:[%s148] sm:%s4] %v147
    %s150 = smul.addr 2, 482
    %s151 = scalar_lea.vmem %s0, %s150
    %v152 = vld [vmem:[%s151] sm:%s4]
    %s153 = scalar_lea.vmem [#allocation0], 3856
    %154 = vst [vmem:[%s153] sm:%s4] %v152
    %s155 = smul.addr 2, 481
    %s156 = scalar_lea.vmem %s0, %s155
    %v157 = vld [vmem:[%s156] sm:%s4]
    %s158 = scalar_lea.vmem [#allocation0], 3848
    %159 = vst [vmem:[%s158] sm:%s4] %v157
    %s160 = smul.addr 2, 480
    %s161 = scalar_lea.vmem %s0, %s160
    %v162 = vld [vmem:[%s161] sm:%s4]
    %s163 = scalar_lea.vmem [#allocation0], 3840
    %164 = vst [vmem:[%s163] sm:%s4] %v162
    %s165 = smul.addr 2, 479
    %s166 = scalar_lea.vmem %s0, %s165
    %v167 = vld [vmem:[%s166] sm:%s4]
    %s168 = scalar_lea.vmem [#allocation0], 3832
    %169 = vst [vmem:[%s168] sm:%s4] %v167
    %s170 = smul.addr 2, 478
    %s171 = scalar_lea.vmem %s0, %s170
    %v172 = vld [vmem:[%s171] sm:%s4]
    %s173 = scalar_lea.vmem [#allocation0], 3824
    %174 = vst [vmem:[%s173] sm:%s4] %v172
    %s175 = smul.addr 2, 477
    %s176 = scalar_lea.vmem %s0, %s175
    %v177 = vld [vmem:[%s176] sm:%s4]
    %s178 = scalar_lea.vmem [#allocation0], 3816
    %179 = vst [vmem:[%s178] sm:%s4] %v177
    %s180 = smul.addr 2, 476
    %s181 = scalar_lea.vmem %s0, %s180
    %v182 = vld [vmem:[%s181] sm:%s4]
    %s183 = scalar_lea.vmem [#allocation0], 3808
    %184 = vst [vmem:[%s183] sm:%s4] %v182
    %s185 = smul.addr 2, 475
    %s186 = scalar_lea.vmem %s0, %s185
    %v187 = vld [vmem:[%s186] sm:%s4]
    %s188 = scalar_lea.vmem [#allocation0], 3800
    %189 = vst [vmem:[%s188] sm:%s4] %v187
    %s190 = smul.addr 2, 474
    %s191 = scalar_lea.vmem %s0, %s190
    %v192 = vld [vmem:[%s191] sm:%s4]
    %s193 = scalar_lea.vmem [#allocation0], 3792
    %194 = vst [vmem:[%s193] sm:%s4] %v192
    %s195 = smul.addr 2, 473
    %s196 = scalar_lea.vmem %s0, %s195
    %v197 = vld [vmem:[%s196] sm:%s4]
    %s198 = scalar_lea.vmem [#allocation0], 3784
    %199 = vst [vmem:[%s198] sm:%s4] %v197
    %s200 = smul.addr 2, 472
    %s201 = scalar_lea.vmem %s0, %s200
    %v202 = vld [vmem:[%s201] sm:%s4]
    %s203 = scalar_lea.vmem [#allocation0], 3776
    %204 = vst [vmem:[%s203] sm:%s4] %v202
    %s205 = smul.addr 2, 471
    %s206 = scalar_lea.vmem %s0, %s205
    %v207 = vld [vmem:[%s206] sm:%s4]
    %s208 = scalar_lea.vmem [#allocation0], 3768
    %209 = vst [vmem:[%s208] sm:%s4] %v207
    %s210 = smul.addr 2, 470
    %s211 = scalar_lea.vmem %s0, %s210
    %v212 = vld [vmem:[%s211] sm:%s4]
    %s213 = scalar_lea.vmem [#allocation0], 3760
    %214 = vst [vmem:[%s213] sm:%s4] %v212
    %s215 = smul.addr 2, 469
    %s216 = scalar_lea.vmem %s0, %s215
    %v217 = vld [vmem:[%s216] sm:%s4]
    %s218 = scalar_lea.vmem [#allocation0], 3752
    %219 = vst [vmem:[%s218] sm:%s4] %v217
    %s220 = smul.addr 2, 468
    %s221 = scalar_lea.vmem %s0, %s220
    %v222 = vld [vmem:[%s221] sm:%s4]
    %s223 = scalar_lea.vmem [#allocation0], 3744
    %224 = vst [vmem:[%s223] sm:%s4] %v222
    %s225 = smul.addr 2, 467
    %s226 = scalar_lea.vmem %s0, %s225
    %v227 = vld [vmem:[%s226] sm:%s4]
    %s228 = scalar_lea.vmem [#allocation0], 3736
    %229 = vst [vmem:[%s228] sm:%s4] %v227
    %s230 = smul.addr 2, 466
    %s231 = scalar_lea.vmem %s0, %s230
    %v232 = vld [vmem:[%s231] sm:%s4]
    %s233 = scalar_lea.vmem [#allocation0], 3728
    %234 = vst [vmem:[%s233] sm:%s4] %v232
    %s235 = smul.addr 2, 465
    %s236 = scalar_lea.vmem %s0, %s235
    %v237 = vld [vmem:[%s236] sm:%s4]
    %s238 = scalar_lea.vmem [#allocation0], 3720
    %239 = vst [vmem:[%s238] sm:%s4] %v237
    %s240 = smul.addr 2, 464
    %s241 = scalar_lea.vmem %s0, %s240
    %v242 = vld [vmem:[%s241] sm:%s4]
    %s243 = scalar_lea.vmem [#allocation0], 3712
    %244 = vst [vmem:[%s243] sm:%s4] %v242
    %s245 = smul.addr 2, 463
    %s246 = scalar_lea.vmem %s0, %s245
    %v247 = vld [vmem:[%s246] sm:%s4]
    %s248 = scalar_lea.vmem [#allocation0], 3704
    %249 = vst [vmem:[%s248] sm:%s4] %v247
    %s250 = smul.addr 2, 462
    %s251 = scalar_lea.vmem %s0, %s250
    %v252 = vld [vmem:[%s251] sm:%s4]
    %s253 = scalar_lea.vmem [#allocation0], 3696
    %254 = vst [vmem:[%s253] sm:%s4] %v252
    %s255 = smul.addr 2, 461
    %s256 = scalar_lea.vmem %s0, %s255
    %v257 = vld [vmem:[%s256] sm:%s4]
    %s258 = scalar_lea.vmem [#allocation0], 3688
    %259 = vst [vmem:[%s258] sm:%s4] %v257
    %s260 = smul.addr 2, 460
    %s261 = scalar_lea.vmem %s0, %s260
    %v262 = vld [vmem:[%s261] sm:%s4]
    %s263 = scalar_lea.vmem [#allocation0], 3680
    %264 = vst [vmem:[%s263] sm:%s4] %v262
    %s265 = smul.addr 2, 459
    %s266 = scalar_lea.vmem %s0, %s265
    %v267 = vld [vmem:[%s266] sm:%s4]
    %s268 = scalar_lea.vmem [#allocation0], 3672
    %269 = vst [vmem:[%s268] sm:%s4] %v267
    %s270 = smul.addr 2, 458
    %s271 = scalar_lea.vmem %s0, %s270
    %v272 = vld [vmem:[%s271] sm:%s4]
    %s273 = scalar_lea.vmem [#allocation0], 3664
    %274 = vst [vmem:[%s273] sm:%s4] %v272
    %s275 = smul.addr 2, 457
    %s276 = scalar_lea.vmem %s0, %s275
    %v277 = vld [vmem:[%s276] sm:%s4]
    %s278 = scalar_lea.vmem [#allocation0], 3656
    %279 = vst [vmem:[%s278] sm:%s4] %v277
    %s280 = smul.addr 2, 456
    %s281 = scalar_lea.vmem %s0, %s280
    %v282 = vld [vmem:[%s281] sm:%s4]
    %s283 = scalar_lea.vmem [#allocation0], 3648
    %284 = vst [vmem:[%s283] sm:%s4] %v282
    %s285 = smul.addr 2, 455
    %s286 = scalar_lea.vmem %s0, %s285
    %v287 = vld [vmem:[%s286] sm:%s4]
    %s288 = scalar_lea.vmem [#allocation0], 3640
    %289 = vst [vmem:[%s288] sm:%s4] %v287
    %s290 = smul.addr 2, 454
    %s291 = scalar_lea.vmem %s0, %s290
    %v292 = vld [vmem:[%s291] sm:%s4]
    %s293 = scalar_lea.vmem [#allocation0], 3632
    %294 = vst [vmem:[%s293] sm:%s4] %v292
    %s295 = smul.addr 2, 453
    %s296 = scalar_lea.vmem %s0, %s295
    %v297 = vld [vmem:[%s296] sm:%s4]
    %s298 = scalar_lea.vmem [#allocation0], 3624
    %299 = vst [vmem:[%s298] sm:%s4] %v297
    %s300 = smul.addr 2, 452
    %s301 = scalar_lea.vmem %s0, %s300
    %v302 = vld [vmem:[%s301] sm:%s4]
    %s303 = scalar_lea.vmem [#allocation0], 3616
    %304 = vst [vmem:[%s303] sm:%s4] %v302
    %s305 = smul.addr 2, 451
    %s306 = scalar_lea.vmem %s0, %s305
    %v307 = vld [vmem:[%s306] sm:%s4]
    %s308 = scalar_lea.vmem [#allocation0], 3608
    %309 = vst [vmem:[%s308] sm:%s4] %v307
    %s310 = smul.addr 2, 450
    %s311 = scalar_lea.vmem %s0, %s310
    %v312 = vld [vmem:[%s311] sm:%s4]
    %s313 = scalar_lea.vmem [#allocation0], 3600
    %314 = vst [vmem:[%s313] sm:%s4] %v312
    %s315 = smul.addr 2, 449
    %s316 = scalar_lea.vmem %s0, %s315
    %v317 = vld [vmem:[%s316] sm:%s4]
    %s318 = scalar_lea.vmem [#allocation0], 3592
    %319 = vst [vmem:[%s318] sm:%s4] %v317
    %s320 = smul.addr 2, 448
    %s321 = scalar_lea.vmem %s0, %s320
    %v322 = vld [vmem:[%s321] sm:%s4]
    %s323 = scalar_lea.vmem [#allocation0], 3584
    %324 = vst [vmem:[%s323] sm:%s4] %v322
    %s325 = smul.addr 2, 447
    %s326 = scalar_lea.vmem %s0, %s325
    %v327 = vld [vmem:[%s326] sm:%s4]
    %s328 = scalar_lea.vmem [#allocation0], 3576
    %329 = vst [vmem:[%s328] sm:%s4] %v327
    %s330 = smul.addr 2, 446
    %s331 = scalar_lea.vmem %s0, %s330
    %v332 = vld [vmem:[%s331] sm:%s4]
    %s333 = scalar_lea.vmem [#allocation0], 3568
    %334 = vst [vmem:[%s333] sm:%s4] %v332
    %s335 = smul.addr 2, 445
    %s336 = scalar_lea.vmem %s0, %s335
    %v337 = vld [vmem:[%s336] sm:%s4]
    %s338 = scalar_lea.vmem [#allocation0], 3560
    %339 = vst [vmem:[%s338] sm:%s4] %v337
    %s340 = smul.addr 2, 444
    %s341 = scalar_lea.vmem %s0, %s340
    %v342 = vld [vmem:[%s341] sm:%s4]
    %s343 = scalar_lea.vmem [#allocation0], 3552
    %344 = vst [vmem:[%s343] sm:%s4] %v342
    %s345 = smul.addr 2, 443
    %s346 = scalar_lea.vmem %s0, %s345
    %v347 = vld [vmem:[%s346] sm:%s4]
    %s348 = scalar_lea.vmem [#allocation0], 3544
    %349 = vst [vmem:[%s348] sm:%s4] %v347
    %s350 = smul.addr 2, 442
    %s351 = scalar_lea.vmem %s0, %s350
    %v352 = vld [vmem:[%s351] sm:%s4]
    %s353 = scalar_lea.vmem [#allocation0], 3536
    %354 = vst [vmem:[%s353] sm:%s4] %v352
    %s355 = smul.addr 2, 441
    %s356 = scalar_lea.vmem %s0, %s355
    %v357 = vld [vmem:[%s356] sm:%s4]
    %s358 = scalar_lea.vmem [#allocation0], 3528
    %359 = vst [vmem:[%s358] sm:%s4] %v357
    %s360 = smul.addr 2, 440
    %s361 = scalar_lea.vmem %s0, %s360
    %v362 = vld [vmem:[%s361] sm:%s4]
    %s363 = scalar_lea.vmem [#allocation0], 3520
    %364 = vst [vmem:[%s363] sm:%s4] %v362
    %s365 = smul.addr 2, 439
    %s366 = scalar_lea.vmem %s0, %s365
    %v367 = vld [vmem:[%s366] sm:%s4]
    %s368 = scalar_lea.vmem [#allocation0], 3512
    %369 = vst [vmem:[%s368] sm:%s4] %v367
    %s370 = smul.addr 2, 438
    %s371 = scalar_lea.vmem %s0, %s370
    %v372 = vld [vmem:[%s371] sm:%s4]
    %s373 = scalar_lea.vmem [#allocation0], 3504
    %374 = vst [vmem:[%s373] sm:%s4] %v372
    %s375 = smul.addr 2, 437
    %s376 = scalar_lea.vmem %s0, %s375
    %v377 = vld [vmem:[%s376] sm:%s4]
    %s378 = scalar_lea.vmem [#allocation0], 3496
    %379 = vst [vmem:[%s378] sm:%s4] %v377
    %s380 = smul.addr 2, 436
    %s381 = scalar_lea.vmem %s0, %s380
    %v382 = vld [vmem:[%s381] sm:%s4]
    %s383 = scalar_lea.vmem [#allocation0], 3488
    %384 = vst [vmem:[%s383] sm:%s4] %v382
    %s385 = smul.addr 2, 435
    %s386 = scalar_lea.vmem %s0, %s385
    %v387 = vld [vmem:[%s386] sm:%s4]
    %s388 = scalar_lea.vmem [#allocation0], 3480
    %389 = vst [vmem:[%s388] sm:%s4] %v387
    %s390 = smul.addr 2, 434
    %s391 = scalar_lea.vmem %s0, %s390
    %v392 = vld [vmem:[%s391] sm:%s4]
    %s393 = scalar_lea.vmem [#allocation0], 3472
    %394 = vst [vmem:[%s393] sm:%s4] %v392
    %s395 = smul.addr 2, 433
    %s396 = scalar_lea.vmem %s0, %s395
    %v397 = vld [vmem:[%s396] sm:%s4]
    %s398 = scalar_lea.vmem [#allocation0], 3464
    %399 = vst [vmem:[%s398] sm:%s4] %v397
    %s400 = smul.addr 2, 432
    %s401 = scalar_lea.vmem %s0, %s400
    %v402 = vld [vmem:[%s401] sm:%s4]
    %s403 = scalar_lea.vmem [#allocation0], 3456
    %404 = vst [vmem:[%s403] sm:%s4] %v402
    %s405 = smul.addr 2, 431
    %s406 = scalar_lea.vmem %s0, %s405
    %v407 = vld [vmem:[%s406] sm:%s4]
    %s408 = scalar_lea.vmem [#allocation0], 3448
    %409 = vst [vmem:[%s408] sm:%s4] %v407
    %s410 = smul.addr 2, 430
    %s411 = scalar_lea.vmem %s0, %s410
    %v412 = vld [vmem:[%s411] sm:%s4]
    %s413 = scalar_lea.vmem [#allocation0], 3440
    %414 = vst [vmem:[%s413] sm:%s4] %v412
    %s415 = smul.addr 2, 429
    %s416 = scalar_lea.vmem %s0, %s415
    %v417 = vld [vmem:[%s416] sm:%s4]
    %s418 = scalar_lea.vmem [#allocation0], 3432
    %419 = vst [vmem:[%s418] sm:%s4] %v417
    %s420 = smul.addr 2, 428
    %s421 = scalar_lea.vmem %s0, %s420
    %v422 = vld [vmem:[%s421] sm:%s4]
    %s423 = scalar_lea.vmem [#allocation0], 3424
    %424 = vst [vmem:[%s423] sm:%s4] %v422
    %s425 = smul.addr 2, 427
    %s426 = scalar_lea.vmem %s0, %s425
    %v427 = vld [vmem:[%s426] sm:%s4]
    %s428 = scalar_lea.vmem [#allocation0], 3416
    %429 = vst [vmem:[%s428] sm:%s4] %v427
    %s430 = smul.addr 2, 426
    %s431 = scalar_lea.vmem %s0, %s430
    %v432 = vld [vmem:[%s431] sm:%s4]
    %s433 = scalar_lea.vmem [#allocation0], 3408
    %434 = vst [vmem:[%s433] sm:%s4] %v432
    %s435 = smul.addr 2, 425
    %s436 = scalar_lea.vmem %s0, %s435
    %v437 = vld [vmem:[%s436] sm:%s4]
    %s438 = scalar_lea.vmem [#allocation0], 3400
    %439 = vst [vmem:[%s438] sm:%s4] %v437
    %s440 = smul.addr 2, 424
    %s441 = scalar_lea.vmem %s0, %s440
    %v442 = vld [vmem:[%s441] sm:%s4]
    %s443 = scalar_lea.vmem [#allocation0], 3392
    %444 = vst [vmem:[%s443] sm:%s4] %v442
    %s445 = smul.addr 2, 423
    %s446 = scalar_lea.vmem %s0, %s445
    %v447 = vld [vmem:[%s446] sm:%s4]
    %s448 = scalar_lea.vmem [#allocation0], 3384
    %449 = vst [vmem:[%s448] sm:%s4] %v447
    %s450 = smul.addr 2, 422
    %s451 = scalar_lea.vmem %s0, %s450
    %v452 = vld [vmem:[%s451] sm:%s4]
    %s453 = scalar_lea.vmem [#allocation0], 3376
    %454 = vst [vmem:[%s453] sm:%s4] %v452
    %s455 = smul.addr 2, 421
    %s456 = scalar_lea.vmem %s0, %s455
    %v457 = vld [vmem:[%s456] sm:%s4]
    %s458 = scalar_lea.vmem [#allocation0], 3368
    %459 = vst [vmem:[%s458] sm:%s4] %v457
    %s460 = smul.addr 2, 420
    %s461 = scalar_lea.vmem %s0, %s460
    %v462 = vld [vmem:[%s461] sm:%s4]
    %s463 = scalar_lea.vmem [#allocation0], 3360
    %464 = vst [vmem:[%s463] sm:%s4] %v462
    %s465 = smul.addr 2, 419
    %s466 = scalar_lea.vmem %s0, %s465
    %v467 = vld [vmem:[%s466] sm:%s4]
    %s468 = scalar_lea.vmem [#allocation0], 3352
    %469 = vst [vmem:[%s468] sm:%s4] %v467
    %s470 = smul.addr 2, 418
    %s471 = scalar_lea.vmem %s0, %s470
    %v472 = vld [vmem:[%s471] sm:%s4]
    %s473 = scalar_lea.vmem [#allocation0], 3344
    %474 = vst [vmem:[%s473] sm:%s4] %v472
    %s475 = smul.addr 2, 417
    %s476 = scalar_lea.vmem %s0, %s475
    %v477 = vld [vmem:[%s476] sm:%s4]
    %s478 = scalar_lea.vmem [#allocation0], 3336
    %479 = vst [vmem:[%s478] sm:%s4] %v477
    %s480 = smul.addr 2, 416
    %s481 = scalar_lea.vmem %s0, %s480
    %v482 = vld [vmem:[%s481] sm:%s4]
    %s483 = scalar_lea.vmem [#allocation0], 3328
    %484 = vst [vmem:[%s483] sm:%s4] %v482
    %s485 = smul.addr 2, 415
    %s486 = scalar_lea.vmem %s0, %s485
    %v487 = vld [vmem:[%s486] sm:%s4]
    %s488 = scalar_lea.vmem [#allocation0], 3320
    %489 = vst [vmem:[%s488] sm:%s4] %v487
    %s490 = smul.addr 2, 414
    %s491 = scalar_lea.vmem %s0, %s490
    %v492 = vld [vmem:[%s491] sm:%s4]
    %s493 = scalar_lea.vmem [#allocation0], 3312
    %494 = vst [vmem:[%s493] sm:%s4] %v492
    %s495 = smul.addr 2, 413
    %s496 = scalar_lea.vmem %s0, %s495
    %v497 = vld [vmem:[%s496] sm:%s4]
    %s498 = scalar_lea.vmem [#allocation0], 3304
    %499 = vst [vmem:[%s498] sm:%s4] %v497
    %s500 = smul.addr 2, 412
    %s501 = scalar_lea.vmem %s0, %s500
    %v502 = vld [vmem:[%s501] sm:%s4]
    %s503 = scalar_lea.vmem [#allocation0], 3296
    %504 = vst [vmem:[%s503] sm:%s4] %v502
    %s505 = smul.addr 2, 411
    %s506 = scalar_lea.vmem %s0, %s505
    %v507 = vld [vmem:[%s506] sm:%s4]
    %s508 = scalar_lea.vmem [#allocation0], 3288
    %509 = vst [vmem:[%s508] sm:%s4] %v507
    %s510 = smul.addr 2, 410
    %s511 = scalar_lea.vmem %s0, %s510
    %v512 = vld [vmem:[%s511] sm:%s4]
    %s513 = scalar_lea.vmem [#allocation0], 3280
    %514 = vst [vmem:[%s513] sm:%s4] %v512
    %s515 = smul.addr 2, 409
    %s516 = scalar_lea.vmem %s0, %s515
    %v517 = vld [vmem:[%s516] sm:%s4]
    %s518 = scalar_lea.vmem [#allocation0], 3272
    %519 = vst [vmem:[%s518] sm:%s4] %v517
    %s520 = smul.addr 2, 408
    %s521 = scalar_lea.vmem %s0, %s520
    %v522 = vld [vmem:[%s521] sm:%s4]
    %s523 = scalar_lea.vmem [#allocation0], 3264
    %524 = vst [vmem:[%s523] sm:%s4] %v522
    %s525 = smul.addr 2, 407
    %s526 = scalar_lea.vmem %s0, %s525
    %v527 = vld [vmem:[%s526] sm:%s4]
    %s528 = scalar_lea.vmem [#allocation0], 3256
    %529 = vst [vmem:[%s528] sm:%s4] %v527
    %s530 = smul.addr 2, 406
    %s531 = scalar_lea.vmem %s0, %s530
    %v532 = vld [vmem:[%s531] sm:%s4]
    %s533 = scalar_lea.vmem [#allocation0], 3248
    %534 = vst [vmem:[%s533] sm:%s4] %v532
    %s535 = smul.addr 2, 405
    %s536 = scalar_lea.vmem %s0, %s535
    %v537 = vld [vmem:[%s536] sm:%s4]
    %s538 = scalar_lea.vmem [#allocation0], 3240
    %539 = vst [vmem:[%s538] sm:%s4] %v537
    %s540 = smul.addr 2, 404
    %s541 = scalar_lea.vmem %s0, %s540
    %v542 = vld [vmem:[%s541] sm:%s4]
    %s543 = scalar_lea.vmem [#allocation0], 3232
    %544 = vst [vmem:[%s543] sm:%s4] %v542
    %s545 = smul.addr 2, 403
    %s546 = scalar_lea.vmem %s0, %s545
    %v547 = vld [vmem:[%s546] sm:%s4]
    %s548 = scalar_lea.vmem [#allocation0], 3224
    %549 = vst [vmem:[%s548] sm:%s4] %v547
    %s550 = smul.addr 2, 402
    %s551 = scalar_lea.vmem %s0, %s550
    %v552 = vld [vmem:[%s551] sm:%s4]
    %s553 = scalar_lea.vmem [#allocation0], 3216
    %554 = vst [vmem:[%s553] sm:%s4] %v552
    %s555 = smul.addr 2, 401
    %s556 = scalar_lea.vmem %s0, %s555
    %v557 = vld [vmem:[%s556] sm:%s4]
    %s558 = scalar_lea.vmem [#allocation0], 3208
    %559 = vst [vmem:[%s558] sm:%s4] %v557
    %s560 = smul.addr 2, 400
    %s561 = scalar_lea.vmem %s0, %s560
    %v562 = vld [vmem:[%s561] sm:%s4]
    %s563 = scalar_lea.vmem [#allocation0], 3200
    %564 = vst [vmem:[%s563] sm:%s4] %v562
    %s565 = smul.addr 2, 399
    %s566 = scalar_lea.vmem %s0, %s565
    %v567 = vld [vmem:[%s566] sm:%s4]
    %s568 = scalar_lea.vmem [#allocation0], 3192
    %569 = vst [vmem:[%s568] sm:%s4] %v567
    %s570 = smul.addr 2, 398
    %s571 = scalar_lea.vmem %s0, %s570
    %v572 = vld [vmem:[%s571] sm:%s4]
    %s573 = scalar_lea.vmem [#allocation0], 3184
    %574 = vst [vmem:[%s573] sm:%s4] %v572
    %s575 = smul.addr 2, 397
    %s576 = scalar_lea.vmem %s0, %s575
    %v577 = vld [vmem:[%s576] sm:%s4]
    %s578 = scalar_lea.vmem [#allocation0], 3176
    %579 = vst [vmem:[%s578] sm:%s4] %v577
    %s580 = smul.addr 2, 396
    %s581 = scalar_lea.vmem %s0, %s580
    %v582 = vld [vmem:[%s581] sm:%s4]
    %s583 = scalar_lea.vmem [#allocation0], 3168
    %584 = vst [vmem:[%s583] sm:%s4] %v582
    %s585 = smul.addr 2, 395
    %s586 = scalar_lea.vmem %s0, %s585
    %v587 = vld [vmem:[%s586] sm:%s4]
    %s588 = scalar_lea.vmem [#allocation0], 3160
    %589 = vst [vmem:[%s588] sm:%s4] %v587
    %s590 = smul.addr 2, 394
    %s591 = scalar_lea.vmem %s0, %s590
    %v592 = vld [vmem:[%s591] sm:%s4]
    %s593 = scalar_lea.vmem [#allocation0], 3152
    %594 = vst [vmem:[%s593] sm:%s4] %v592
    %s595 = smul.addr 2, 393
    %s596 = scalar_lea.vmem %s0, %s595
    %v597 = vld [vmem:[%s596] sm:%s4]
    %s598 = scalar_lea.vmem [#allocation0], 3144
    %599 = vst [vmem:[%s598] sm:%s4] %v597
    %s600 = smul.addr 2, 392
    %s601 = scalar_lea.vmem %s0, %s600
    %v602 = vld [vmem:[%s601] sm:%s4]
    %s603 = scalar_lea.vmem [#allocation0], 3136
    %604 = vst [vmem:[%s603] sm:%s4] %v602
    %s605 = smul.addr 2, 391
    %s606 = scalar_lea.vmem %s0, %s605
    %v607 = vld [vmem:[%s606] sm:%s4]
    %s608 = scalar_lea.vmem [#allocation0], 3128
    %609 = vst [vmem:[%s608] sm:%s4] %v607
    %s610 = smul.addr 2, 390
    %s611 = scalar_lea.vmem %s0, %s610
    %v612 = vld [vmem:[%s611] sm:%s4]
    %s613 = scalar_lea.vmem [#allocation0], 3120
    %614 = vst [vmem:[%s613] sm:%s4] %v612
    %s615 = smul.addr 2, 389
    %s616 = scalar_lea.vmem %s0, %s615
    %v617 = vld [vmem:[%s616] sm:%s4]
    %s618 = scalar_lea.vmem [#allocation0], 3112
    %619 = vst [vmem:[%s618] sm:%s4] %v617
    %s620 = smul.addr 2, 388
    %s621 = scalar_lea.vmem %s0, %s620
    %v622 = vld [vmem:[%s621] sm:%s4]
    %s623 = scalar_lea.vmem [#allocation0], 3104
    %624 = vst [vmem:[%s623] sm:%s4] %v622
    %s625 = smul.addr 2, 387
    %s626 = scalar_lea.vmem %s0, %s625
    %v627 = vld [vmem:[%s626] sm:%s4]
    %s628 = scalar_lea.vmem [#allocation0], 3096
    %629 = vst [vmem:[%s628] sm:%s4] %v627
    %s630 = smul.addr 2, 386
    %s631 = scalar_lea.vmem %s0, %s630
    %v632 = vld [vmem:[%s631] sm:%s4]
    %s633 = scalar_lea.vmem [#allocation0], 3088
    %634 = vst [vmem:[%s633] sm:%s4] %v632
    %s635 = smul.addr 2, 385
    %s636 = scalar_lea.vmem %s0, %s635
    %v637 = vld [vmem:[%s636] sm:%s4]
    %s638 = scalar_lea.vmem [#allocation0], 3080
    %639 = vst [vmem:[%s638] sm:%s4] %v637
    %s640 = smul.addr 2, 384
    %s641 = scalar_lea.vmem %s0, %s640
    %v642 = vld [vmem:[%s641] sm:%s4]
    %s643 = scalar_lea.vmem [#allocation0], 3072
    %644 = vst [vmem:[%s643] sm:%s4] %v642
    %s645 = smul.addr 2, 383
    %s646 = scalar_lea.vmem %s0, %s645
    %v647 = vld [vmem:[%s646] sm:%s4]
    %s648 = scalar_lea.vmem [#allocation0], 3064
    %649 = vst [vmem:[%s648] sm:%s4] %v647
    %s650 = smul.addr 2, 382
    %s651 = scalar_lea.vmem %s0, %s650
    %v652 = vld [vmem:[%s651] sm:%s4]
    %s653 = scalar_lea.vmem [#allocation0], 3056
    %654 = vst [vmem:[%s653] sm:%s4] %v652
    %s655 = smul.addr 2, 381
    %s656 = scalar_lea.vmem %s0, %s655
    %v657 = vld [vmem:[%s656] sm:%s4]
    %s658 = scalar_lea.vmem [#allocation0], 3048
    %659 = vst [vmem:[%s658] sm:%s4] %v657
    %s660 = smul.addr 2, 380
    %s661 = scalar_lea.vmem %s0, %s660
    %v662 = vld [vmem:[%s661] sm:%s4]
    %s663 = scalar_lea.vmem [#allocation0], 3040
    %664 = vst [vmem:[%s663] sm:%s4] %v662
    %s665 = smul.addr 2, 379
    %s666 = scalar_lea.vmem %s0, %s665
    %v667 = vld [vmem:[%s666] sm:%s4]
    %s668 = scalar_lea.vmem [#allocation0], 3032
    %669 = vst [vmem:[%s668] sm:%s4] %v667
    %s670 = smul.addr 2, 378
    %s671 = scalar_lea.vmem %s0, %s670
    %v672 = vld [vmem:[%s671] sm:%s4]
    %s673 = scalar_lea.vmem [#allocation0], 3024
    %674 = vst [vmem:[%s673] sm:%s4] %v672
    %s675 = smul.addr 2, 377
    %s676 = scalar_lea.vmem %s0, %s675
    %v677 = vld [vmem:[%s676] sm:%s4]
    %s678 = scalar_lea.vmem [#allocation0], 3016
    %679 = vst [vmem:[%s678] sm:%s4] %v677
    %s680 = smul.addr 2, 376
    %s681 = scalar_lea.vmem %s0, %s680
    %v682 = vld [vmem:[%s681] sm:%s4]
    %s683 = scalar_lea.vmem [#allocation0], 3008
    %684 = vst [vmem:[%s683] sm:%s4] %v682
    %s685 = smul.addr 2, 375
    %s686 = scalar_lea.vmem %s0, %s685
    %v687 = vld [vmem:[%s686] sm:%s4]
    %s688 = scalar_lea.vmem [#allocation0], 3000
    %689 = vst [vmem:[%s688] sm:%s4] %v687
    %s690 = smul.addr 2, 374
    %s691 = scalar_lea.vmem %s0, %s690
    %v692 = vld [vmem:[%s691] sm:%s4]
    %s693 = scalar_lea.vmem [#allocation0], 2992
    %694 = vst [vmem:[%s693] sm:%s4] %v692
    %s695 = smul.addr 2, 373
    %s696 = scalar_lea.vmem %s0, %s695
    %v697 = vld [vmem:[%s696] sm:%s4]
    %s698 = scalar_lea.vmem [#allocation0], 2984
    %699 = vst [vmem:[%s698] sm:%s4] %v697
    %s700 = smul.addr 2, 372
    %s701 = scalar_lea.vmem %s0, %s700
    %v702 = vld [vmem:[%s701] sm:%s4]
    %s703 = scalar_lea.vmem [#allocation0], 2976
    %704 = vst [vmem:[%s703] sm:%s4] %v702
    %s705 = smul.addr 2, 371
    %s706 = scalar_lea.vmem %s0, %s705
    %v707 = vld [vmem:[%s706] sm:%s4]
    %s708 = scalar_lea.vmem [#allocation0], 2968
    %709 = vst [vmem:[%s708] sm:%s4] %v707
    %s710 = smul.addr 2, 370
    %s711 = scalar_lea.vmem %s0, %s710
    %v712 = vld [vmem:[%s711] sm:%s4]
    %s713 = scalar_lea.vmem [#allocation0], 2960
    %714 = vst [vmem:[%s713] sm:%s4] %v712
    %s715 = smul.addr 2, 369
    %s716 = scalar_lea.vmem %s0, %s715
    %v717 = vld [vmem:[%s716] sm:%s4]
    %s718 = scalar_lea.vmem [#allocation0], 2952
    %719 = vst [vmem:[%s718] sm:%s4] %v717
    %s720 = smul.addr 2, 368
    %s721 = scalar_lea.vmem %s0, %s720
    %v722 = vld [vmem:[%s721] sm:%s4]
    %s723 = scalar_lea.vmem [#allocation0], 2944
    %724 = vst [vmem:[%s723] sm:%s4] %v722
    %s725 = smul.addr 2, 367
    %s726 = scalar_lea.vmem %s0, %s725
    %v727 = vld [vmem:[%s726] sm:%s4]
    %s728 = scalar_lea.vmem [#allocation0], 2936
    %729 = vst [vmem:[%s728] sm:%s4] %v727
    %s730 = smul.addr 2, 366
    %s731 = scalar_lea.vmem %s0, %s730
    %v732 = vld [vmem:[%s731] sm:%s4]
    %s733 = scalar_lea.vmem [#allocation0], 2928
    %734 = vst [vmem:[%s733] sm:%s4] %v732
    %s735 = smul.addr 2, 365
    %s736 = scalar_lea.vmem %s0, %s735
    %v737 = vld [vmem:[%s736] sm:%s4]
    %s738 = scalar_lea.vmem [#allocation0], 2920
    %739 = vst [vmem:[%s738] sm:%s4] %v737
    %s740 = smul.addr 2, 364
    %s741 = scalar_lea.vmem %s0, %s740
    %v742 = vld [vmem:[%s741] sm:%s4]
    %s743 = scalar_lea.vmem [#allocation0], 2912
    %744 = vst [vmem:[%s743] sm:%s4] %v742
    %s745 = smul.addr 2, 363
    %s746 = scalar_lea.vmem %s0, %s745
    %v747 = vld [vmem:[%s746] sm:%s4]
    %s748 = scalar_lea.vmem [#allocation0], 2904
    %749 = vst [vmem:[%s748] sm:%s4] %v747
    %s750 = smul.addr 2, 362
    %s751 = scalar_lea.vmem %s0, %s750
    %v752 = vld [vmem:[%s751] sm:%s4]
    %s753 = scalar_lea.vmem [#allocation0], 2896
    %754 = vst [vmem:[%s753] sm:%s4] %v752
    %s755 = smul.addr 2, 361
    %s756 = scalar_lea.vmem %s0, %s755
    %v757 = vld [vmem:[%s756] sm:%s4]
    %s758 = scalar_lea.vmem [#allocation0], 2888
    %759 = vst [vmem:[%s758] sm:%s4] %v757
    %s760 = smul.addr 2, 360
    %s761 = scalar_lea.vmem %s0, %s760
    %v762 = vld [vmem:[%s761] sm:%s4]
    %s763 = scalar_lea.vmem [#allocation0], 2880
    %764 = vst [vmem:[%s763] sm:%s4] %v762
    %s765 = smul.addr 2, 359
    %s766 = scalar_lea.vmem %s0, %s765
    %v767 = vld [vmem:[%s766] sm:%s4]
    %s768 = scalar_lea.vmem [#allocation0], 2872
    %769 = vst [vmem:[%s768] sm:%s4] %v767
    %s770 = smul.addr 2, 358
    %s771 = scalar_lea.vmem %s0, %s770
    %v772 = vld [vmem:[%s771] sm:%s4]
    %s773 = scalar_lea.vmem [#allocation0], 2864
    %774 = vst [vmem:[%s773] sm:%s4] %v772
    %s775 = smul.addr 2, 357
    %s776 = scalar_lea.vmem %s0, %s775
    %v777 = vld [vmem:[%s776] sm:%s4]
    %s778 = scalar_lea.vmem [#allocation0], 2856
    %779 = vst [vmem:[%s778] sm:%s4] %v777
    %s780 = smul.addr 2, 356
    %s781 = scalar_lea.vmem %s0, %s780
    %v782 = vld [vmem:[%s781] sm:%s4]
    %s783 = scalar_lea.vmem [#allocation0], 2848
    %784 = vst [vmem:[%s783] sm:%s4] %v782
    %s785 = smul.addr 2, 355
    %s786 = scalar_lea.vmem %s0, %s785
    %v787 = vld [vmem:[%s786] sm:%s4]
    %s788 = scalar_lea.vmem [#allocation0], 2840
    %789 = vst [vmem:[%s788] sm:%s4] %v787
    %s790 = smul.addr 2, 354
    %s791 = scalar_lea.vmem %s0, %s790
    %v792 = vld [vmem:[%s791] sm:%s4]
    %s793 = scalar_lea.vmem [#allocation0], 2832
    %794 = vst [vmem:[%s793] sm:%s4] %v792
    %s795 = smul.addr 2, 353
    %s796 = scalar_lea.vmem %s0, %s795
    %v797 = vld [vmem:[%s796] sm:%s4]
    %s798 = scalar_lea.vmem [#allocation0], 2824
    %799 = vst [vmem:[%s798] sm:%s4] %v797
    %s800 = smul.addr 2, 352
    %s801 = scalar_lea.vmem %s0, %s800
    %v802 = vld [vmem:[%s801] sm:%s4]
    %s803 = scalar_lea.vmem [#allocation0], 2816
    %804 = vst [vmem:[%s803] sm:%s4] %v802
    %s805 = smul.addr 2, 351
    %s806 = scalar_lea.vmem %s0, %s805
    %v807 = vld [vmem:[%s806] sm:%s4]
    %s808 = scalar_lea.vmem [#allocation0], 2808
    %809 = vst [vmem:[%s808] sm:%s4] %v807
    %s810 = smul.addr 2, 350
    %s811 = scalar_lea.vmem %s0, %s810
    %v812 = vld [vmem:[%s811] sm:%s4]
    %s813 = scalar_lea.vmem [#allocation0], 2800
    %814 = vst [vmem:[%s813] sm:%s4] %v812
    %s815 = smul.addr 2, 349
    %s816 = scalar_lea.vmem %s0, %s815
    %v817 = vld [vmem:[%s816] sm:%s4]
    %s818 = scalar_lea.vmem [#allocation0], 2792
    %819 = vst [vmem:[%s818] sm:%s4] %v817
    %s820 = smul.addr 2, 348
    %s821 = scalar_lea.vmem %s0, %s820
    %v822 = vld [vmem:[%s821] sm:%s4]
    %s823 = scalar_lea.vmem [#allocation0], 2784
    %824 = vst [vmem:[%s823] sm:%s4] %v822
    %s825 = smul.addr 2, 347
    %s826 = scalar_lea.vmem %s0, %s825
    %v827 = vld [vmem:[%s826] sm:%s4]
    %s828 = scalar_lea.vmem [#allocation0], 2776
    %829 = vst [vmem:[%s828] sm:%s4] %v827
    %s830 = smul.addr 2, 346
    %s831 = scalar_lea.vmem %s0, %s830
    %v832 = vld [vmem:[%s831] sm:%s4]
    %s833 = scalar_lea.vmem [#allocation0], 2768
    %834 = vst [vmem:[%s833] sm:%s4] %v832
    %s835 = smul.addr 2, 345
    %s836 = scalar_lea.vmem %s0, %s835
    %v837 = vld [vmem:[%s836] sm:%s4]
    %s838 = scalar_lea.vmem [#allocation0], 2760
    %839 = vst [vmem:[%s838] sm:%s4] %v837
    %s840 = smul.addr 2, 344
    %s841 = scalar_lea.vmem %s0, %s840
    %v842 = vld [vmem:[%s841] sm:%s4]
    %s843 = scalar_lea.vmem [#allocation0], 2752
    %844 = vst [vmem:[%s843] sm:%s4] %v842
    %s845 = smul.addr 2, 343
    %s846 = scalar_lea.vmem %s0, %s845
    %v847 = vld [vmem:[%s846] sm:%s4]
    %s848 = scalar_lea.vmem [#allocation0], 2744
    %849 = vst [vmem:[%s848] sm:%s4] %v847
    %s850 = smul.addr 2, 342
    %s851 = scalar_lea.vmem %s0, %s850
    %v852 = vld [vmem:[%s851] sm:%s4]
    %s853 = scalar_lea.vmem [#allocation0], 2736
    %854 = vst [vmem:[%s853] sm:%s4] %v852
    %s855 = smul.addr 2, 341
    %s856 = scalar_lea.vmem %s0, %s855
    %v857 = vld [vmem:[%s856] sm:%s4]
    %s858 = scalar_lea.vmem [#allocation0], 2728
    %859 = vst [vmem:[%s858] sm:%s4] %v857
    %s860 = smul.addr 2, 340
    %s861 = scalar_lea.vmem %s0, %s860
    %v862 = vld [vmem:[%s861] sm:%s4]
    %s863 = scalar_lea.vmem [#allocation0], 2720
    %864 = vst [vmem:[%s863] sm:%s4] %v862
    %s865 = smul.addr 2, 339
    %s866 = scalar_lea.vmem %s0, %s865
    %v867 = vld [vmem:[%s866] sm:%s4]
    %s868 = scalar_lea.vmem [#allocation0], 2712
    %869 = vst [vmem:[%s868] sm:%s4] %v867
    %s870 = smul.addr 2, 338
    %s871 = scalar_lea.vmem %s0, %s870
    %v872 = vld [vmem:[%s871] sm:%s4]
    %s873 = scalar_lea.vmem [#allocation0], 2704
    %874 = vst [vmem:[%s873] sm:%s4] %v872
    %s875 = smul.addr 2, 337
    %s876 = scalar_lea.vmem %s0, %s875
    %v877 = vld [vmem:[%s876] sm:%s4]
    %s878 = scalar_lea.vmem [#allocation0], 2696
    %879 = vst [vmem:[%s878] sm:%s4] %v877
    %s880 = smul.addr 2, 336
    %s881 = scalar_lea.vmem %s0, %s880
    %v882 = vld [vmem:[%s881] sm:%s4]
    %s883 = scalar_lea.vmem [#allocation0], 2688
    %884 = vst [vmem:[%s883] sm:%s4] %v882
    %s885 = smul.addr 2, 335
    %s886 = scalar_lea.vmem %s0, %s885
    %v887 = vld [vmem:[%s886] sm:%s4]
    %s888 = scalar_lea.vmem [#allocation0], 2680
    %889 = vst [vmem:[%s888] sm:%s4] %v887
    %s890 = smul.addr 2, 334
    %s891 = scalar_lea.vmem %s0, %s890
    %v892 = vld [vmem:[%s891] sm:%s4]
    %s893 = scalar_lea.vmem [#allocation0], 2672
    %894 = vst [vmem:[%s893] sm:%s4] %v892
    %s895 = smul.addr 2, 333
    %s896 = scalar_lea.vmem %s0, %s895
    %v897 = vld [vmem:[%s896] sm:%s4]
    %s898 = scalar_lea.vmem [#allocation0], 2664
    %899 = vst [vmem:[%s898] sm:%s4] %v897
    %s900 = smul.addr 2, 332
    %s901 = scalar_lea.vmem %s0, %s900
    %v902 = vld [vmem:[%s901] sm:%s4]
    %s903 = scalar_lea.vmem [#allocation0], 2656
    %904 = vst [vmem:[%s903] sm:%s4] %v902
    %s905 = smul.addr 2, 331
    %s906 = scalar_lea.vmem %s0, %s905
    %v907 = vld [vmem:[%s906] sm:%s4]
    %s908 = scalar_lea.vmem [#allocation0], 2648
    %909 = vst [vmem:[%s908] sm:%s4] %v907
    %s910 = smul.addr 2, 330
    %s911 = scalar_lea.vmem %s0, %s910
    %v912 = vld [vmem:[%s911] sm:%s4]
    %s913 = scalar_lea.vmem [#allocation0], 2640
    %914 = vst [vmem:[%s913] sm:%s4] %v912
    %s915 = smul.addr 2, 329
    %s916 = scalar_lea.vmem %s0, %s915
    %v917 = vld [vmem:[%s916] sm:%s4]
    %s918 = scalar_lea.vmem [#allocation0], 2632
    %919 = vst [vmem:[%s918] sm:%s4] %v917
    %s920 = smul.addr 2, 328
    %s921 = scalar_lea.vmem %s0, %s920
    %v922 = vld [vmem:[%s921] sm:%s4]
    %s923 = scalar_lea.vmem [#allocation0], 2624
    %924 = vst [vmem:[%s923] sm:%s4] %v922
    %s925 = smul.addr 2, 327
    %s926 = scalar_lea.vmem %s0, %s925
    %v927 = vld [vmem:[%s926] sm:%s4]
    %s928 = scalar_lea.vmem [#allocation0], 2616
    %929 = vst [vmem:[%s928] sm:%s4] %v927
    %s930 = smul.addr 2, 326
    %s931 = scalar_lea.vmem %s0, %s930
    %v932 = vld [vmem:[%s931] sm:%s4]
    %s933 = scalar_lea.vmem [#allocation0], 2608
    %934 = vst [vmem:[%s933] sm:%s4] %v932
    %s935 = smul.addr 2, 325
    %s936 = scalar_lea.vmem %s0, %s935
    %v937 = vld [vmem:[%s936] sm:%s4]
    %s938 = scalar_lea.vmem [#allocation0], 2600
    %939 = vst [vmem:[%s938] sm:%s4] %v937
    %s940 = smul.addr 2, 324
    %s941 = scalar_lea.vmem %s0, %s940
    %v942 = vld [vmem:[%s941] sm:%s4]
    %s943 = scalar_lea.vmem [#allocation0], 2592
    %944 = vst [vmem:[%s943] sm:%s4] %v942
    %s945 = smul.addr 2, 323
    %s946 = scalar_lea.vmem %s0, %s945
    %v947 = vld [vmem:[%s946] sm:%s4]
    %s948 = scalar_lea.vmem [#allocation0], 2584
    %949 = vst [vmem:[%s948] sm:%s4] %v947
    %s950 = smul.addr 2, 322
    %s951 = scalar_lea.vmem %s0, %s950
    %v952 = vld [vmem:[%s951] sm:%s4]
    %s953 = scalar_lea.vmem [#allocation0], 2576
    %954 = vst [vmem:[%s953] sm:%s4] %v952
    %s955 = smul.addr 2, 321
    %s956 = scalar_lea.vmem %s0, %s955
    %v957 = vld [vmem:[%s956] sm:%s4]
    %s958 = scalar_lea.vmem [#allocation0], 2568
    %959 = vst [vmem:[%s958] sm:%s4] %v957
    %s960 = smul.addr 2, 320
    %s961 = scalar_lea.vmem %s0, %s960
    %v962 = vld [vmem:[%s961] sm:%s4]
    %s963 = scalar_lea.vmem [#allocation0], 2560
    %964 = vst [vmem:[%s963] sm:%s4] %v962
    %s965 = smul.addr 2, 319
    %s966 = scalar_lea.vmem %s0, %s965
    %v967 = vld [vmem:[%s966] sm:%s4]
    %s968 = scalar_lea.vmem [#allocation0], 2552
    %969 = vst [vmem:[%s968] sm:%s4] %v967
    %s970 = smul.addr 2, 318
    %s971 = scalar_lea.vmem %s0, %s970
    %v972 = vld [vmem:[%s971] sm:%s4]
    %s973 = scalar_lea.vmem [#allocation0], 2544
    %974 = vst [vmem:[%s973] sm:%s4] %v972
    %s975 = smul.addr 2, 317
    %s976 = scalar_lea.vmem %s0, %s975
    %v977 = vld [vmem:[%s976] sm:%s4]
    %s978 = scalar_lea.vmem [#allocation0], 2536
    %979 = vst [vmem:[%s978] sm:%s4] %v977
    %s980 = smul.addr 2, 316
    %s981 = scalar_lea.vmem %s0, %s980
    %v982 = vld [vmem:[%s981] sm:%s4]
    %s983 = scalar_lea.vmem [#allocation0], 2528
    %984 = vst [vmem:[%s983] sm:%s4] %v982
    %s985 = smul.addr 2, 315
    %s986 = scalar_lea.vmem %s0, %s985
    %v987 = vld [vmem:[%s986] sm:%s4]
    %s988 = scalar_lea.vmem [#allocation0], 2520
    %989 = vst [vmem:[%s988] sm:%s4] %v987
    %s990 = smul.addr 2, 314
    %s991 = scalar_lea.vmem %s0, %s990
    %v992 = vld [vmem:[%s991] sm:%s4]
    %s993 = scalar_lea.vmem [#allocation0], 2512
    %994 = vst [vmem:[%s993] sm:%s4] %v992
    %s995 = smul.addr 2, 313
    %s996 = scalar_lea.vmem %s0, %s995
    %v997 = vld [vmem:[%s996] sm:%s4]
    %s998 = scalar_lea.vmem [#allocation0], 2504
    %999 = vst [vmem:[%s998] sm:%s4] %v997
    %s1000 = smul.addr 2, 312
    %s1001 = scalar_lea.vmem %s0, %s1000
    %v1002 = vld [vmem:[%s1001] sm:%s4]
    %s1003 = scalar_lea.vmem [#allocation0], 2496
    %1004 = vst [vmem:[%s1003] sm:%s4] %v1002
    %s1005 = smul.addr 2, 311
    %s1006 = scalar_lea.vmem %s0, %s1005
    %v1007 = vld [vmem:[%s1006] sm:%s4]
    %s1008 = scalar_lea.vmem [#allocation0], 2488
    %1009 = vst [vmem:[%s1008] sm:%s4] %v1007
    %s1010 = smul.addr 2, 310
    %s1011 = scalar_lea.vmem %s0, %s1010
    %v1012 = vld [vmem:[%s1011] sm:%s4]
    %s1013 = scalar_lea.vmem [#allocation0], 2480
    %1014 = vst [vmem:[%s1013] sm:%s4] %v1012
    %s1015 = smul.addr 2, 309
    %s1016 = scalar_lea.vmem %s0, %s1015
    %v1017 = vld [vmem:[%s1016] sm:%s4]
    %s1018 = scalar_lea.vmem [#allocation0], 2472
    %1019 = vst [vmem:[%s1018] sm:%s4] %v1017
    %s1020 = smul.addr 2, 308
    %s1021 = scalar_lea.vmem %s0, %s1020
    %v1022 = vld [vmem:[%s1021] sm:%s4]
    %s1023 = scalar_lea.vmem [#allocation0], 2464
    %1024 = vst [vmem:[%s1023] sm:%s4] %v1022
    %s1025 = smul.addr 2, 307
    %s1026 = scalar_lea.vmem %s0, %s1025
    %v1027 = vld [vmem:[%s1026] sm:%s4]
    %s1028 = scalar_lea.vmem [#allocation0], 2456
    %1029 = vst [vmem:[%s1028] sm:%s4] %v1027
    %s1030 = smul.addr 2, 306
    %s1031 = scalar_lea.vmem %s0, %s1030
    %v1032 = vld [vmem:[%s1031] sm:%s4]
    %s1033 = scalar_lea.vmem [#allocation0], 2448
    %1034 = vst [vmem:[%s1033] sm:%s4] %v1032
    %s1035 = smul.addr 2, 305
    %s1036 = scalar_lea.vmem %s0, %s1035
    %v1037 = vld [vmem:[%s1036] sm:%s4]
    %s1038 = scalar_lea.vmem [#allocation0], 2440
    %1039 = vst [vmem:[%s1038] sm:%s4] %v1037
    %s1040 = smul.addr 2, 304
    %s1041 = scalar_lea.vmem %s0, %s1040
    %v1042 = vld [vmem:[%s1041] sm:%s4]
    %s1043 = scalar_lea.vmem [#allocation0], 2432
    %1044 = vst [vmem:[%s1043] sm:%s4] %v1042
    %s1045 = smul.addr 2, 303
    %s1046 = scalar_lea.vmem %s0, %s1045
    %v1047 = vld [vmem:[%s1046] sm:%s4]
    %s1048 = scalar_lea.vmem [#allocation0], 2424
    %1049 = vst [vmem:[%s1048] sm:%s4] %v1047
    %s1050 = smul.addr 2, 302
    %s1051 = scalar_lea.vmem %s0, %s1050
    %v1052 = vld [vmem:[%s1051] sm:%s4]
    %s1053 = scalar_lea.vmem [#allocation0], 2416
    %1054 = vst [vmem:[%s1053] sm:%s4] %v1052
    %s1055 = smul.addr 2, 301
    %s1056 = scalar_lea.vmem %s0, %s1055
    %v1057 = vld [vmem:[%s1056] sm:%s4]
    %s1058 = scalar_lea.vmem [#allocation0], 2408
    %1059 = vst [vmem:[%s1058] sm:%s4] %v1057
    %s1060 = smul.addr 2, 300
    %s1061 = scalar_lea.vmem %s0, %s1060
    %v1062 = vld [vmem:[%s1061] sm:%s4]
    %s1063 = scalar_lea.vmem [#allocation0], 2400
    %1064 = vst [vmem:[%s1063] sm:%s4] %v1062
    %s1065 = smul.addr 2, 299
    %s1066 = scalar_lea.vmem %s0, %s1065
    %v1067 = vld [vmem:[%s1066] sm:%s4]
    %s1068 = scalar_lea.vmem [#allocation0], 2392
    %1069 = vst [vmem:[%s1068] sm:%s4] %v1067
    %s1070 = smul.addr 2, 298
    %s1071 = scalar_lea.vmem %s0, %s1070
    %v1072 = vld [vmem:[%s1071] sm:%s4]
    %s1073 = scalar_lea.vmem [#allocation0], 2384
    %1074 = vst [vmem:[%s1073] sm:%s4] %v1072
    %s1075 = smul.addr 2, 297
    %s1076 = scalar_lea.vmem %s0, %s1075
    %v1077 = vld [vmem:[%s1076] sm:%s4]
    %s1078 = scalar_lea.vmem [#allocation0], 2376
    %1079 = vst [vmem:[%s1078] sm:%s4] %v1077
    %s1080 = smul.addr 2, 296
    %s1081 = scalar_lea.vmem %s0, %s1080
    %v1082 = vld [vmem:[%s1081] sm:%s4]
    %s1083 = scalar_lea.vmem [#allocation0], 2368
    %1084 = vst [vmem:[%s1083] sm:%s4] %v1082
    %s1085 = smul.addr 2, 295
    %s1086 = scalar_lea.vmem %s0, %s1085
    %v1087 = vld [vmem:[%s1086] sm:%s4]
    %s1088 = scalar_lea.vmem [#allocation0], 2360
    %1089 = vst [vmem:[%s1088] sm:%s4] %v1087
    %s1090 = smul.addr 2, 294
    %s1091 = scalar_lea.vmem %s0, %s1090
    %v1092 = vld [vmem:[%s1091] sm:%s4]
    %s1093 = scalar_lea.vmem [#allocation0], 2352
    %1094 = vst [vmem:[%s1093] sm:%s4] %v1092
    %s1095 = smul.addr 2, 293
    %s1096 = scalar_lea.vmem %s0, %s1095
    %v1097 = vld [vmem:[%s1096] sm:%s4]
    %s1098 = scalar_lea.vmem [#allocation0], 2344
    %1099 = vst [vmem:[%s1098] sm:%s4] %v1097
    %s1100 = smul.addr 2, 292
    %s1101 = scalar_lea.vmem %s0, %s1100
    %v1102 = vld [vmem:[%s1101] sm:%s4]
    %s1103 = scalar_lea.vmem [#allocation0], 2336
    %1104 = vst [vmem:[%s1103] sm:%s4] %v1102
    %s1105 = smul.addr 2, 291
    %s1106 = scalar_lea.vmem %s0, %s1105
    %v1107 = vld [vmem:[%s1106] sm:%s4]
    %s1108 = scalar_lea.vmem [#allocation0], 2328
    %1109 = vst [vmem:[%s1108] sm:%s4] %v1107
    %s1110 = smul.addr 2, 290
    %s1111 = scalar_lea.vmem %s0, %s1110
    %v1112 = vld [vmem:[%s1111] sm:%s4]
    %s1113 = scalar_lea.vmem [#allocation0], 2320
    %1114 = vst [vmem:[%s1113] sm:%s4] %v1112
    %s1115 = smul.addr 2, 289
    %s1116 = scalar_lea.vmem %s0, %s1115
    %v1117 = vld [vmem:[%s1116] sm:%s4]
    %s1118 = scalar_lea.vmem [#allocation0], 2312
    %1119 = vst [vmem:[%s1118] sm:%s4] %v1117
    %s1120 = smul.addr 2, 288
    %s1121 = scalar_lea.vmem %s0, %s1120
    %v1122 = vld [vmem:[%s1121] sm:%s4]
    %s1123 = scalar_lea.vmem [#allocation0], 2304
    %1124 = vst [vmem:[%s1123] sm:%s4] %v1122
    %s1125 = smul.addr 2, 287
    %s1126 = scalar_lea.vmem %s0, %s1125
    %v1127 = vld [vmem:[%s1126] sm:%s4]
    %s1128 = scalar_lea.vmem [#allocation0], 2296
    %1129 = vst [vmem:[%s1128] sm:%s4] %v1127
    %s1130 = smul.addr 2, 286
    %s1131 = scalar_lea.vmem %s0, %s1130
    %v1132 = vld [vmem:[%s1131] sm:%s4]
    %s1133 = scalar_lea.vmem [#allocation0], 2288
    %1134 = vst [vmem:[%s1133] sm:%s4] %v1132
    %s1135 = smul.addr 2, 285
    %s1136 = scalar_lea.vmem %s0, %s1135
    %v1137 = vld [vmem:[%s1136] sm:%s4]
    %s1138 = scalar_lea.vmem [#allocation0], 2280
    %1139 = vst [vmem:[%s1138] sm:%s4] %v1137
    %s1140 = smul.addr 2, 284
    %s1141 = scalar_lea.vmem %s0, %s1140
    %v1142 = vld [vmem:[%s1141] sm:%s4]
    %s1143 = scalar_lea.vmem [#allocation0], 2272
    %1144 = vst [vmem:[%s1143] sm:%s4] %v1142
    %s1145 = smul.addr 2, 283
    %s1146 = scalar_lea.vmem %s0, %s1145
    %v1147 = vld [vmem:[%s1146] sm:%s4]
    %s1148 = scalar_lea.vmem [#allocation0], 2264
    %1149 = vst [vmem:[%s1148] sm:%s4] %v1147
    %s1150 = smul.addr 2, 282
    %s1151 = scalar_lea.vmem %s0, %s1150
    %v1152 = vld [vmem:[%s1151] sm:%s4]
    %s1153 = scalar_lea.vmem [#allocation0], 2256
    %1154 = vst [vmem:[%s1153] sm:%s4] %v1152
    %s1155 = smul.addr 2, 281
    %s1156 = scalar_lea.vmem %s0, %s1155
    %v1157 = vld [vmem:[%s1156] sm:%s4]
    %s1158 = scalar_lea.vmem [#allocation0], 2248
    %1159 = vst [vmem:[%s1158] sm:%s4] %v1157
    %s1160 = smul.addr 2, 280
    %s1161 = scalar_lea.vmem %s0, %s1160
    %v1162 = vld [vmem:[%s1161] sm:%s4]
    %s1163 = scalar_lea.vmem [#allocation0], 2240
    %1164 = vst [vmem:[%s1163] sm:%s4] %v1162
    %s1165 = smul.addr 2, 279
    %s1166 = scalar_lea.vmem %s0, %s1165
    %v1167 = vld [vmem:[%s1166] sm:%s4]
    %s1168 = scalar_lea.vmem [#allocation0], 2232
    %1169 = vst [vmem:[%s1168] sm:%s4] %v1167
    %s1170 = smul.addr 2, 278
    %s1171 = scalar_lea.vmem %s0, %s1170
    %v1172 = vld [vmem:[%s1171] sm:%s4]
    %s1173 = scalar_lea.vmem [#allocation0], 2224
    %1174 = vst [vmem:[%s1173] sm:%s4] %v1172
    %s1175 = smul.addr 2, 277
    %s1176 = scalar_lea.vmem %s0, %s1175
    %v1177 = vld [vmem:[%s1176] sm:%s4]
    %s1178 = scalar_lea.vmem [#allocation0], 2216
    %1179 = vst [vmem:[%s1178] sm:%s4] %v1177
    %s1180 = smul.addr 2, 276
    %s1181 = scalar_lea.vmem %s0, %s1180
    %v1182 = vld [vmem:[%s1181] sm:%s4]
    %s1183 = scalar_lea.vmem [#allocation0], 2208
    %1184 = vst [vmem:[%s1183] sm:%s4] %v1182
    %s1185 = smul.addr 2, 275
    %s1186 = scalar_lea.vmem %s0, %s1185
    %v1187 = vld [vmem:[%s1186] sm:%s4]
    %s1188 = scalar_lea.vmem [#allocation0], 2200
    %1189 = vst [vmem:[%s1188] sm:%s4] %v1187
    %s1190 = smul.addr 2, 274
    %s1191 = scalar_lea.vmem %s0, %s1190
    %v1192 = vld [vmem:[%s1191] sm:%s4]
    %s1193 = scalar_lea.vmem [#allocation0], 2192
    %1194 = vst [vmem:[%s1193] sm:%s4] %v1192
    %s1195 = smul.addr 2, 273
    %s1196 = scalar_lea.vmem %s0, %s1195
    %v1197 = vld [vmem:[%s1196] sm:%s4]
    %s1198 = scalar_lea.vmem [#allocation0], 2184
    %1199 = vst [vmem:[%s1198] sm:%s4] %v1197
    %s1200 = smul.addr 2, 272
    %s1201 = scalar_lea.vmem %s0, %s1200
    %v1202 = vld [vmem:[%s1201] sm:%s4]
    %s1203 = scalar_lea.vmem [#allocation0], 2176
    %1204 = vst [vmem:[%s1203] sm:%s4] %v1202
    %s1205 = smul.addr 2, 271
    %s1206 = scalar_lea.vmem %s0, %s1205
    %v1207 = vld [vmem:[%s1206] sm:%s4]
    %s1208 = scalar_lea.vmem [#allocation0], 2168
    %1209 = vst [vmem:[%s1208] sm:%s4] %v1207
    %s1210 = smul.addr 2, 270
    %s1211 = scalar_lea.vmem %s0, %s1210
    %v1212 = vld [vmem:[%s1211] sm:%s4]
    %s1213 = scalar_lea.vmem [#allocation0], 2160
    %1214 = vst [vmem:[%s1213] sm:%s4] %v1212
    %s1215 = smul.addr 2, 269
    %s1216 = scalar_lea.vmem %s0, %s1215
    %v1217 = vld [vmem:[%s1216] sm:%s4]
    %s1218 = scalar_lea.vmem [#allocation0], 2152
    %1219 = vst [vmem:[%s1218] sm:%s4] %v1217
    %s1220 = smul.addr 2, 268
    %s1221 = scalar_lea.vmem %s0, %s1220
    %v1222 = vld [vmem:[%s1221] sm:%s4]
    %s1223 = scalar_lea.vmem [#allocation0], 2144
    %1224 = vst [vmem:[%s1223] sm:%s4] %v1222
    %s1225 = smul.addr 2, 267
    %s1226 = scalar_lea.vmem %s0, %s1225
    %v1227 = vld [vmem:[%s1226] sm:%s4]
    %s1228 = scalar_lea.vmem [#allocation0], 2136
    %1229 = vst [vmem:[%s1228] sm:%s4] %v1227
    %s1230 = smul.addr 2, 266
    %s1231 = scalar_lea.vmem %s0, %s1230
    %v1232 = vld [vmem:[%s1231] sm:%s4]
    %s1233 = scalar_lea.vmem [#allocation0], 2128
    %1234 = vst [vmem:[%s1233] sm:%s4] %v1232
    %s1235 = smul.addr 2, 265
    %s1236 = scalar_lea.vmem %s0, %s1235
    %v1237 = vld [vmem:[%s1236] sm:%s4]
    %s1238 = scalar_lea.vmem [#allocation0], 2120
    %1239 = vst [vmem:[%s1238] sm:%s4] %v1237
    %s1240 = smul.addr 2, 264
    %s1241 = scalar_lea.vmem %s0, %s1240
    %v1242 = vld [vmem:[%s1241] sm:%s4]
    %s1243 = scalar_lea.vmem [#allocation0], 2112
    %1244 = vst [vmem:[%s1243] sm:%s4] %v1242
    %s1245 = smul.addr 2, 263
    %s1246 = scalar_lea.vmem %s0, %s1245
    %v1247 = vld [vmem:[%s1246] sm:%s4]
    %s1248 = scalar_lea.vmem [#allocation0], 2104
    %1249 = vst [vmem:[%s1248] sm:%s4] %v1247
    %s1250 = smul.addr 2, 262
    %s1251 = scalar_lea.vmem %s0, %s1250
    %v1252 = vld [vmem:[%s1251] sm:%s4]
    %s1253 = scalar_lea.vmem [#allocation0], 2096
    %1254 = vst [vmem:[%s1253] sm:%s4] %v1252
    %s1255 = smul.addr 2, 261
    %s1256 = scalar_lea.vmem %s0, %s1255
    %v1257 = vld [vmem:[%s1256] sm:%s4]
    %s1258 = scalar_lea.vmem [#allocation0], 2088
    %1259 = vst [vmem:[%s1258] sm:%s4] %v1257
    %s1260 = smul.addr 2, 260
    %s1261 = scalar_lea.vmem %s0, %s1260
    %v1262 = vld [vmem:[%s1261] sm:%s4]
    %s1263 = scalar_lea.vmem [#allocation0], 2080
    %1264 = vst [vmem:[%s1263] sm:%s4] %v1262
    %s1265 = smul.addr 2, 259
    %s1266 = scalar_lea.vmem %s0, %s1265
    %v1267 = vld [vmem:[%s1266] sm:%s4]
    %s1268 = scalar_lea.vmem [#allocation0], 2072
    %1269 = vst [vmem:[%s1268] sm:%s4] %v1267
    %s1270 = smul.addr 2, 258
    %s1271 = scalar_lea.vmem %s0, %s1270
    %v1272 = vld [vmem:[%s1271] sm:%s4]
    %s1273 = scalar_lea.vmem [#allocation0], 2064
    %1274 = vst [vmem:[%s1273] sm:%s4] %v1272
    %s1275 = smul.addr 2, 257
    %s1276 = scalar_lea.vmem %s0, %s1275
    %v1277 = vld [vmem:[%s1276] sm:%s4]
    %s1278 = scalar_lea.vmem [#allocation0], 2056
    %1279 = vst [vmem:[%s1278] sm:%s4] %v1277
    %s1280 = smul.addr 2, 256
    %s1281 = scalar_lea.vmem %s0, %s1280
    %v1282 = vld [vmem:[%s1281] sm:%s4]
    %s1283 = scalar_lea.vmem [#allocation0], 2048
    %1284 = vst [vmem:[%s1283] sm:%s4] %v1282
    %s1285 = smul.addr 2, 255
    %s1286 = scalar_lea.vmem %s0, %s1285
    %v1287 = vld [vmem:[%s1286] sm:%s4]
    %s1288 = scalar_lea.vmem [#allocation0], 2040
    %1289 = vst [vmem:[%s1288] sm:%s4] %v1287
    %s1290 = smul.addr 2, 254
    %s1291 = scalar_lea.vmem %s0, %s1290
    %v1292 = vld [vmem:[%s1291] sm:%s4]
    %s1293 = scalar_lea.vmem [#allocation0], 2032
    %1294 = vst [vmem:[%s1293] sm:%s4] %v1292
    %s1295 = smul.addr 2, 253
    %s1296 = scalar_lea.vmem %s0, %s1295
    %v1297 = vld [vmem:[%s1296] sm:%s4]
    %s1298 = scalar_lea.vmem [#allocation0], 2024
    %1299 = vst [vmem:[%s1298] sm:%s4] %v1297
    %s1300 = smul.addr 2, 252
    %s1301 = scalar_lea.vmem %s0, %s1300
    %v1302 = vld [vmem:[%s1301] sm:%s4]
    %s1303 = scalar_lea.vmem [#allocation0], 2016
    %1304 = vst [vmem:[%s1303] sm:%s4] %v1302
    %s1305 = smul.addr 2, 251
    %s1306 = scalar_lea.vmem %s0, %s1305
    %v1307 = vld [vmem:[%s1306] sm:%s4]
    %s1308 = scalar_lea.vmem [#allocation0], 2008
    %1309 = vst [vmem:[%s1308] sm:%s4] %v1307
    %s1310 = smul.addr 2, 250
    %s1311 = scalar_lea.vmem %s0, %s1310
    %v1312 = vld [vmem:[%s1311] sm:%s4]
    %s1313 = scalar_lea.vmem [#allocation0], 2000
    %1314 = vst [vmem:[%s1313] sm:%s4] %v1312
    %s1315 = smul.addr 2, 249
    %s1316 = scalar_lea.vmem %s0, %s1315
    %v1317 = vld [vmem:[%s1316] sm:%s4]
    %s1318 = scalar_lea.vmem [#allocation0], 1992
    %1319 = vst [vmem:[%s1318] sm:%s4] %v1317
    %s1320 = smul.addr 2, 248
    %s1321 = scalar_lea.vmem %s0, %s1320
    %v1322 = vld [vmem:[%s1321] sm:%s4]
    %s1323 = scalar_lea.vmem [#allocation0], 1984
    %1324 = vst [vmem:[%s1323] sm:%s4] %v1322
    %s1325 = smul.addr 2, 247
    %s1326 = scalar_lea.vmem %s0, %s1325
    %v1327 = vld [vmem:[%s1326] sm:%s4]
    %s1328 = scalar_lea.vmem [#allocation0], 1976
    %1329 = vst [vmem:[%s1328] sm:%s4] %v1327
    %s1330 = smul.addr 2, 246
    %s1331 = scalar_lea.vmem %s0, %s1330
    %v1332 = vld [vmem:[%s1331] sm:%s4]
    %s1333 = scalar_lea.vmem [#allocation0], 1968
    %1334 = vst [vmem:[%s1333] sm:%s4] %v1332
    %s1335 = smul.addr 2, 245
    %s1336 = scalar_lea.vmem %s0, %s1335
    %v1337 = vld [vmem:[%s1336] sm:%s4]
    %s1338 = scalar_lea.vmem [#allocation0], 1960
    %1339 = vst [vmem:[%s1338] sm:%s4] %v1337
    %s1340 = smul.addr 2, 244
    %s1341 = scalar_lea.vmem %s0, %s1340
    %v1342 = vld [vmem:[%s1341] sm:%s4]
    %s1343 = scalar_lea.vmem [#allocation0], 1952
    %1344 = vst [vmem:[%s1343] sm:%s4] %v1342
    %s1345 = smul.addr 2, 243
    %s1346 = scalar_lea.vmem %s0, %s1345
    %v1347 = vld [vmem:[%s1346] sm:%s4]
    %s1348 = scalar_lea.vmem [#allocation0], 1944
    %1349 = vst [vmem:[%s1348] sm:%s4] %v1347
    %s1350 = smul.addr 2, 242
    %s1351 = scalar_lea.vmem %s0, %s1350
    %v1352 = vld [vmem:[%s1351] sm:%s4]
    %s1353 = scalar_lea.vmem [#allocation0], 1936
    %1354 = vst [vmem:[%s1353] sm:%s4] %v1352
    %s1355 = smul.addr 2, 241
    %s1356 = scalar_lea.vmem %s0, %s1355
    %v1357 = vld [vmem:[%s1356] sm:%s4]
    %s1358 = scalar_lea.vmem [#allocation0], 1928
    %1359 = vst [vmem:[%s1358] sm:%s4] %v1357
    %s1360 = smul.addr 2, 240
    %s1361 = scalar_lea.vmem %s0, %s1360
    %v1362 = vld [vmem:[%s1361] sm:%s4]
    %s1363 = scalar_lea.vmem [#allocation0], 1920
    %1364 = vst [vmem:[%s1363] sm:%s4] %v1362
    %s1365 = smul.addr 2, 239
    %s1366 = scalar_lea.vmem %s0, %s1365
    %v1367 = vld [vmem:[%s1366] sm:%s4]
    %s1368 = scalar_lea.vmem [#allocation0], 1912
    %1369 = vst [vmem:[%s1368] sm:%s4] %v1367
    %s1370 = smul.addr 2, 238
    %s1371 = scalar_lea.vmem %s0, %s1370
    %v1372 = vld [vmem:[%s1371] sm:%s4]
    %s1373 = scalar_lea.vmem [#allocation0], 1904
    %1374 = vst [vmem:[%s1373] sm:%s4] %v1372
    %s1375 = smul.addr 2, 237
    %s1376 = scalar_lea.vmem %s0, %s1375
    %v1377 = vld [vmem:[%s1376] sm:%s4]
    %s1378 = scalar_lea.vmem [#allocation0], 1896
    %1379 = vst [vmem:[%s1378] sm:%s4] %v1377
    %s1380 = smul.addr 2, 236
    %s1381 = scalar_lea.vmem %s0, %s1380
    %v1382 = vld [vmem:[%s1381] sm:%s4]
    %s1383 = scalar_lea.vmem [#allocation0], 1888
    %1384 = vst [vmem:[%s1383] sm:%s4] %v1382
    %s1385 = smul.addr 2, 235
    %s1386 = scalar_lea.vmem %s0, %s1385
    %v1387 = vld [vmem:[%s1386] sm:%s4]
    %s1388 = scalar_lea.vmem [#allocation0], 1880
    %1389 = vst [vmem:[%s1388] sm:%s4] %v1387
    %s1390 = smul.addr 2, 234
    %s1391 = scalar_lea.vmem %s0, %s1390
    %v1392 = vld [vmem:[%s1391] sm:%s4]
    %s1393 = scalar_lea.vmem [#allocation0], 1872
    %1394 = vst [vmem:[%s1393] sm:%s4] %v1392
    %s1395 = smul.addr 2, 233
    %s1396 = scalar_lea.vmem %s0, %s1395
    %v1397 = vld [vmem:[%s1396] sm:%s4]
    %s1398 = scalar_lea.vmem [#allocation0], 1864
    %1399 = vst [vmem:[%s1398] sm:%s4] %v1397
    %s1400 = smul.addr 2, 232
    %s1401 = scalar_lea.vmem %s0, %s1400
    %v1402 = vld [vmem:[%s1401] sm:%s4]
    %s1403 = scalar_lea.vmem [#allocation0], 1856
    %1404 = vst [vmem:[%s1403] sm:%s4] %v1402
    %s1405 = smul.addr 2, 231
    %s1406 = scalar_lea.vmem %s0, %s1405
    %v1407 = vld [vmem:[%s1406] sm:%s4]
    %s1408 = scalar_lea.vmem [#allocation0], 1848
    %1409 = vst [vmem:[%s1408] sm:%s4] %v1407
    %s1410 = smul.addr 2, 230
    %s1411 = scalar_lea.vmem %s0, %s1410
    %v1412 = vld [vmem:[%s1411] sm:%s4]
    %s1413 = scalar_lea.vmem [#allocation0], 1840
    %1414 = vst [vmem:[%s1413] sm:%s4] %v1412
    %s1415 = smul.addr 2, 229
    %s1416 = scalar_lea.vmem %s0, %s1415
    %v1417 = vld [vmem:[%s1416] sm:%s4]
    %s1418 = scalar_lea.vmem [#allocation0], 1832
    %1419 = vst [vmem:[%s1418] sm:%s4] %v1417
    %s1420 = smul.addr 2, 228
    %s1421 = scalar_lea.vmem %s0, %s1420
    %v1422 = vld [vmem:[%s1421] sm:%s4]
    %s1423 = scalar_lea.vmem [#allocation0], 1824
    %1424 = vst [vmem:[%s1423] sm:%s4] %v1422
    %s1425 = smul.addr 2, 227
    %s1426 = scalar_lea.vmem %s0, %s1425
    %v1427 = vld [vmem:[%s1426] sm:%s4]
    %s1428 = scalar_lea.vmem [#allocation0], 1816
    %1429 = vst [vmem:[%s1428] sm:%s4] %v1427
    %s1430 = smul.addr 2, 226
    %s1431 = scalar_lea.vmem %s0, %s1430
    %v1432 = vld [vmem:[%s1431] sm:%s4]
    %s1433 = scalar_lea.vmem [#allocation0], 1808
    %1434 = vst [vmem:[%s1433] sm:%s4] %v1432
    %s1435 = smul.addr 2, 225
    %s1436 = scalar_lea.vmem %s0, %s1435
    %v1437 = vld [vmem:[%s1436] sm:%s4]
    %s1438 = scalar_lea.vmem [#allocation0], 1800
    %1439 = vst [vmem:[%s1438] sm:%s4] %v1437
    %s1440 = smul.addr 2, 224
    %s1441 = scalar_lea.vmem %s0, %s1440
    %v1442 = vld [vmem:[%s1441] sm:%s4]
    %s1443 = scalar_lea.vmem [#allocation0], 1792
    %1444 = vst [vmem:[%s1443] sm:%s4] %v1442
    %s1445 = smul.addr 2, 223
    %s1446 = scalar_lea.vmem %s0, %s1445
    %v1447 = vld [vmem:[%s1446] sm:%s4]
    %s1448 = scalar_lea.vmem [#allocation0], 1784
    %1449 = vst [vmem:[%s1448] sm:%s4] %v1447
    %s1450 = smul.addr 2, 222
    %s1451 = scalar_lea.vmem %s0, %s1450
    %v1452 = vld [vmem:[%s1451] sm:%s4]
    %s1453 = scalar_lea.vmem [#allocation0], 1776
    %1454 = vst [vmem:[%s1453] sm:%s4] %v1452
    %s1455 = smul.addr 2, 221
    %s1456 = scalar_lea.vmem %s0, %s1455
    %v1457 = vld [vmem:[%s1456] sm:%s4]
    %s1458 = scalar_lea.vmem [#allocation0], 1768
    %1459 = vst [vmem:[%s1458] sm:%s4] %v1457
    %s1460 = smul.addr 2, 220
    %s1461 = scalar_lea.vmem %s0, %s1460
    %v1462 = vld [vmem:[%s1461] sm:%s4]
    %s1463 = scalar_lea.vmem [#allocation0], 1760
    %1464 = vst [vmem:[%s1463] sm:%s4] %v1462
    %s1465 = smul.addr 2, 219
    %s1466 = scalar_lea.vmem %s0, %s1465
    %v1467 = vld [vmem:[%s1466] sm:%s4]
    %s1468 = scalar_lea.vmem [#allocation0], 1752
    %1469 = vst [vmem:[%s1468] sm:%s4] %v1467
    %s1470 = smul.addr 2, 218
    %s1471 = scalar_lea.vmem %s0, %s1470
    %v1472 = vld [vmem:[%s1471] sm:%s4]
    %s1473 = scalar_lea.vmem [#allocation0], 1744
    %1474 = vst [vmem:[%s1473] sm:%s4] %v1472
    %s1475 = smul.addr 2, 217
    %s1476 = scalar_lea.vmem %s0, %s1475
    %v1477 = vld [vmem:[%s1476] sm:%s4]
    %s1478 = scalar_lea.vmem [#allocation0], 1736
    %1479 = vst [vmem:[%s1478] sm:%s4] %v1477
    %s1480 = smul.addr 2, 216
    %s1481 = scalar_lea.vmem %s0, %s1480
    %v1482 = vld [vmem:[%s1481] sm:%s4]
    %s1483 = scalar_lea.vmem [#allocation0], 1728
    %1484 = vst [vmem:[%s1483] sm:%s4] %v1482
    %s1485 = smul.addr 2, 215
    %s1486 = scalar_lea.vmem %s0, %s1485
    %v1487 = vld [vmem:[%s1486] sm:%s4]
    %s1488 = scalar_lea.vmem [#allocation0], 1720
    %1489 = vst [vmem:[%s1488] sm:%s4] %v1487
    %s1490 = smul.addr 2, 214
    %s1491 = scalar_lea.vmem %s0, %s1490
    %v1492 = vld [vmem:[%s1491] sm:%s4]
    %s1493 = scalar_lea.vmem [#allocation0], 1712
    %1494 = vst [vmem:[%s1493] sm:%s4] %v1492
    %s1495 = smul.addr 2, 213
    %s1496 = scalar_lea.vmem %s0, %s1495
    %v1497 = vld [vmem:[%s1496] sm:%s4]
    %s1498 = scalar_lea.vmem [#allocation0], 1704
    %1499 = vst [vmem:[%s1498] sm:%s4] %v1497
    %s1500 = smul.addr 2, 212
    %s1501 = scalar_lea.vmem %s0, %s1500
    %v1502 = vld [vmem:[%s1501] sm:%s4]
    %s1503 = scalar_lea.vmem [#allocation0], 1696
    %1504 = vst [vmem:[%s1503] sm:%s4] %v1502
    %s1505 = smul.addr 2, 211
    %s1506 = scalar_lea.vmem %s0, %s1505
    %v1507 = vld [vmem:[%s1506] sm:%s4]
    %s1508 = scalar_lea.vmem [#allocation0], 1688
    %1509 = vst [vmem:[%s1508] sm:%s4] %v1507
    %s1510 = smul.addr 2, 210
    %s1511 = scalar_lea.vmem %s0, %s1510
    %v1512 = vld [vmem:[%s1511] sm:%s4]
    %s1513 = scalar_lea.vmem [#allocation0], 1680
    %1514 = vst [vmem:[%s1513] sm:%s4] %v1512
    %s1515 = smul.addr 2, 209
    %s1516 = scalar_lea.vmem %s0, %s1515
    %v1517 = vld [vmem:[%s1516] sm:%s4]
    %s1518 = scalar_lea.vmem [#allocation0], 1672
    %1519 = vst [vmem:[%s1518] sm:%s4] %v1517
    %s1520 = smul.addr 2, 208
    %s1521 = scalar_lea.vmem %s0, %s1520
    %v1522 = vld [vmem:[%s1521] sm:%s4]
    %s1523 = scalar_lea.vmem [#allocation0], 1664
    %1524 = vst [vmem:[%s1523] sm:%s4] %v1522
    %s1525 = smul.addr 2, 207
    %s1526 = scalar_lea.vmem %s0, %s1525
    %v1527 = vld [vmem:[%s1526] sm:%s4]
    %s1528 = scalar_lea.vmem [#allocation0], 1656
    %1529 = vst [vmem:[%s1528] sm:%s4] %v1527
    %s1530 = smul.addr 2, 206
    %s1531 = scalar_lea.vmem %s0, %s1530
    %v1532 = vld [vmem:[%s1531] sm:%s4]
    %s1533 = scalar_lea.vmem [#allocation0], 1648
    %1534 = vst [vmem:[%s1533] sm:%s4] %v1532
    %s1535 = smul.addr 2, 205
    %s1536 = scalar_lea.vmem %s0, %s1535
    %v1537 = vld [vmem:[%s1536] sm:%s4]
    %s1538 = scalar_lea.vmem [#allocation0], 1640
    %1539 = vst [vmem:[%s1538] sm:%s4] %v1537
    %s1540 = smul.addr 2, 204
    %s1541 = scalar_lea.vmem %s0, %s1540
    %v1542 = vld [vmem:[%s1541] sm:%s4]
    %s1543 = scalar_lea.vmem [#allocation0], 1632
    %1544 = vst [vmem:[%s1543] sm:%s4] %v1542
    %s1545 = smul.addr 2, 203
    %s1546 = scalar_lea.vmem %s0, %s1545
    %v1547 = vld [vmem:[%s1546] sm:%s4]
    %s1548 = scalar_lea.vmem [#allocation0], 1624
    %1549 = vst [vmem:[%s1548] sm:%s4] %v1547
    %s1550 = smul.addr 2, 202
    %s1551 = scalar_lea.vmem %s0, %s1550
    %v1552 = vld [vmem:[%s1551] sm:%s4]
    %s1553 = scalar_lea.vmem [#allocation0], 1616
    %1554 = vst [vmem:[%s1553] sm:%s4] %v1552
    %s1555 = smul.addr 2, 201
    %s1556 = scalar_lea.vmem %s0, %s1555
    %v1557 = vld [vmem:[%s1556] sm:%s4]
    %s1558 = scalar_lea.vmem [#allocation0], 1608
    %1559 = vst [vmem:[%s1558] sm:%s4] %v1557
    %s1560 = smul.addr 2, 200
    %s1561 = scalar_lea.vmem %s0, %s1560
    %v1562 = vld [vmem:[%s1561] sm:%s4]
    %s1563 = scalar_lea.vmem [#allocation0], 1600
    %1564 = vst [vmem:[%s1563] sm:%s4] %v1562
    %s1565 = smul.addr 2, 199
    %s1566 = scalar_lea.vmem %s0, %s1565
    %v1567 = vld [vmem:[%s1566] sm:%s4]
    %s1568 = scalar_lea.vmem [#allocation0], 1592
    %1569 = vst [vmem:[%s1568] sm:%s4] %v1567
    %s1570 = smul.addr 2, 198
    %s1571 = scalar_lea.vmem %s0, %s1570
    %v1572 = vld [vmem:[%s1571] sm:%s4]
    %s1573 = scalar_lea.vmem [#allocation0], 1584
    %1574 = vst [vmem:[%s1573] sm:%s4] %v1572
    %s1575 = smul.addr 2, 197
    %s1576 = scalar_lea.vmem %s0, %s1575
    %v1577 = vld [vmem:[%s1576] sm:%s4]
    %s1578 = scalar_lea.vmem [#allocation0], 1576
    %1579 = vst [vmem:[%s1578] sm:%s4] %v1577
    %s1580 = smul.addr 2, 196
    %s1581 = scalar_lea.vmem %s0, %s1580
    %v1582 = vld [vmem:[%s1581] sm:%s4]
    %s1583 = scalar_lea.vmem [#allocation0], 1568
    %1584 = vst [vmem:[%s1583] sm:%s4] %v1582
    %s1585 = smul.addr 2, 195
    %s1586 = scalar_lea.vmem %s0, %s1585
    %v1587 = vld [vmem:[%s1586] sm:%s4]
    %s1588 = scalar_lea.vmem [#allocation0], 1560
    %1589 = vst [vmem:[%s1588] sm:%s4] %v1587
    %s1590 = smul.addr 2, 194
    %s1591 = scalar_lea.vmem %s0, %s1590
    %v1592 = vld [vmem:[%s1591] sm:%s4]
    %s1593 = scalar_lea.vmem [#allocation0], 1552
    %1594 = vst [vmem:[%s1593] sm:%s4] %v1592
    %s1595 = smul.addr 2, 193
    %s1596 = scalar_lea.vmem %s0, %s1595
    %v1597 = vld [vmem:[%s1596] sm:%s4]
    %s1598 = scalar_lea.vmem [#allocation0], 1544
    %1599 = vst [vmem:[%s1598] sm:%s4] %v1597
    %s1600 = smul.addr 2, 192
    %s1601 = scalar_lea.vmem %s0, %s1600
    %v1602 = vld [vmem:[%s1601] sm:%s4]
    %s1603 = scalar_lea.vmem [#allocation0], 1536
    %1604 = vst [vmem:[%s1603] sm:%s4] %v1602
    %s1605 = smul.addr 2, 191
    %s1606 = scalar_lea.vmem %s0, %s1605
    %v1607 = vld [vmem:[%s1606] sm:%s4]
    %s1608 = scalar_lea.vmem [#allocation0], 1528
    %1609 = vst [vmem:[%s1608] sm:%s4] %v1607
    %s1610 = smul.addr 2, 190
    %s1611 = scalar_lea.vmem %s0, %s1610
    %v1612 = vld [vmem:[%s1611] sm:%s4]
    %s1613 = scalar_lea.vmem [#allocation0], 1520
    %1614 = vst [vmem:[%s1613] sm:%s4] %v1612
    %s1615 = smul.addr 2, 189
    %s1616 = scalar_lea.vmem %s0, %s1615
    %v1617 = vld [vmem:[%s1616] sm:%s4]
    %s1618 = scalar_lea.vmem [#allocation0], 1512
    %1619 = vst [vmem:[%s1618] sm:%s4] %v1617
    %s1620 = smul.addr 2, 188
    %s1621 = scalar_lea.vmem %s0, %s1620
    %v1622 = vld [vmem:[%s1621] sm:%s4]
    %s1623 = scalar_lea.vmem [#allocation0], 1504
    %1624 = vst [vmem:[%s1623] sm:%s4] %v1622
    %s1625 = smul.addr 2, 187
    %s1626 = scalar_lea.vmem %s0, %s1625
    %v1627 = vld [vmem:[%s1626] sm:%s4]
    %s1628 = scalar_lea.vmem [#allocation0], 1496
    %1629 = vst [vmem:[%s1628] sm:%s4] %v1627
    %s1630 = smul.addr 2, 186
    %s1631 = scalar_lea.vmem %s0, %s1630
    %v1632 = vld [vmem:[%s1631] sm:%s4]
    %s1633 = scalar_lea.vmem [#allocation0], 1488
    %1634 = vst [vmem:[%s1633] sm:%s4] %v1632
    %s1635 = smul.addr 2, 185
    %s1636 = scalar_lea.vmem %s0, %s1635
    %v1637 = vld [vmem:[%s1636] sm:%s4]
    %s1638 = scalar_lea.vmem [#allocation0], 1480
    %1639 = vst [vmem:[%s1638] sm:%s4] %v1637
    %s1640 = smul.addr 2, 184
    %s1641 = scalar_lea.vmem %s0, %s1640
    %v1642 = vld [vmem:[%s1641] sm:%s4]
    %s1643 = scalar_lea.vmem [#allocation0], 1472
    %1644 = vst [vmem:[%s1643] sm:%s4] %v1642
    %s1645 = smul.addr 2, 183
    %s1646 = scalar_lea.vmem %s0, %s1645
    %v1647 = vld [vmem:[%s1646] sm:%s4]
    %s1648 = scalar_lea.vmem [#allocation0], 1464
    %1649 = vst [vmem:[%s1648] sm:%s4] %v1647
    %s1650 = smul.addr 2, 182
    %s1651 = scalar_lea.vmem %s0, %s1650
    %v1652 = vld [vmem:[%s1651] sm:%s4]
    %s1653 = scalar_lea.vmem [#allocation0], 1456
    %1654 = vst [vmem:[%s1653] sm:%s4] %v1652
    %s1655 = smul.addr 2, 181
    %s1656 = scalar_lea.vmem %s0, %s1655
    %v1657 = vld [vmem:[%s1656] sm:%s4]
    %s1658 = scalar_lea.vmem [#allocation0], 1448
    %1659 = vst [vmem:[%s1658] sm:%s4] %v1657
    %s1660 = smul.addr 2, 180
    %s1661 = scalar_lea.vmem %s0, %s1660
    %v1662 = vld [vmem:[%s1661] sm:%s4]
    %s1663 = scalar_lea.vmem [#allocation0], 1440
    %1664 = vst [vmem:[%s1663] sm:%s4] %v1662
    %s1665 = smul.addr 2, 179
    %s1666 = scalar_lea.vmem %s0, %s1665
    %v1667 = vld [vmem:[%s1666] sm:%s4]
    %s1668 = scalar_lea.vmem [#allocation0], 1432
    %1669 = vst [vmem:[%s1668] sm:%s4] %v1667
    %s1670 = smul.addr 2, 178
    %s1671 = scalar_lea.vmem %s0, %s1670
    %v1672 = vld [vmem:[%s1671] sm:%s4]
    %s1673 = scalar_lea.vmem [#allocation0], 1424
    %1674 = vst [vmem:[%s1673] sm:%s4] %v1672
    %s1675 = smul.addr 2, 177
    %s1676 = scalar_lea.vmem %s0, %s1675
    %v1677 = vld [vmem:[%s1676] sm:%s4]
    %s1678 = scalar_lea.vmem [#allocation0], 1416
    %1679 = vst [vmem:[%s1678] sm:%s4] %v1677
    %s1680 = smul.addr 2, 176
    %s1681 = scalar_lea.vmem %s0, %s1680
    %v1682 = vld [vmem:[%s1681] sm:%s4]
    %s1683 = scalar_lea.vmem [#allocation0], 1408
    %1684 = vst [vmem:[%s1683] sm:%s4] %v1682
    %s1685 = smul.addr 2, 175
    %s1686 = scalar_lea.vmem %s0, %s1685
    %v1687 = vld [vmem:[%s1686] sm:%s4]
    %s1688 = scalar_lea.vmem [#allocation0], 1400
    %1689 = vst [vmem:[%s1688] sm:%s4] %v1687
    %s1690 = smul.addr 2, 174
    %s1691 = scalar_lea.vmem %s0, %s1690
    %v1692 = vld [vmem:[%s1691] sm:%s4]
    %s1693 = scalar_lea.vmem [#allocation0], 1392
    %1694 = vst [vmem:[%s1693] sm:%s4] %v1692
    %s1695 = smul.addr 2, 173
    %s1696 = scalar_lea.vmem %s0, %s1695
    %v1697 = vld [vmem:[%s1696] sm:%s4]
    %s1698 = scalar_lea.vmem [#allocation0], 1384
    %1699 = vst [vmem:[%s1698] sm:%s4] %v1697
    %s1700 = smul.addr 2, 172
    %s1701 = scalar_lea.vmem %s0, %s1700
    %v1702 = vld [vmem:[%s1701] sm:%s4]
    %s1703 = scalar_lea.vmem [#allocation0], 1376
    %1704 = vst [vmem:[%s1703] sm:%s4] %v1702
    %s1705 = smul.addr 2, 171
    %s1706 = scalar_lea.vmem %s0, %s1705
    %v1707 = vld [vmem:[%s1706] sm:%s4]
    %s1708 = scalar_lea.vmem [#allocation0], 1368
    %1709 = vst [vmem:[%s1708] sm:%s4] %v1707
    %s1710 = smul.addr 2, 170
    %s1711 = scalar_lea.vmem %s0, %s1710
    %v1712 = vld [vmem:[%s1711] sm:%s4]
    %s1713 = scalar_lea.vmem [#allocation0], 1360
    %1714 = vst [vmem:[%s1713] sm:%s4] %v1712
    %s1715 = smul.addr 2, 169
    %s1716 = scalar_lea.vmem %s0, %s1715
    %v1717 = vld [vmem:[%s1716] sm:%s4]
    %s1718 = scalar_lea.vmem [#allocation0], 1352
    %1719 = vst [vmem:[%s1718] sm:%s4] %v1717
    %s1720 = smul.addr 2, 168
    %s1721 = scalar_lea.vmem %s0, %s1720
    %v1722 = vld [vmem:[%s1721] sm:%s4]
    %s1723 = scalar_lea.vmem [#allocation0], 1344
    %1724 = vst [vmem:[%s1723] sm:%s4] %v1722
    %s1725 = smul.addr 2, 167
    %s1726 = scalar_lea.vmem %s0, %s1725
    %v1727 = vld [vmem:[%s1726] sm:%s4]
    %s1728 = scalar_lea.vmem [#allocation0], 1336
    %1729 = vst [vmem:[%s1728] sm:%s4] %v1727
    %s1730 = smul.addr 2, 166
    %s1731 = scalar_lea.vmem %s0, %s1730
    %v1732 = vld [vmem:[%s1731] sm:%s4]
    %s1733 = scalar_lea.vmem [#allocation0], 1328
    %1734 = vst [vmem:[%s1733] sm:%s4] %v1732
    %s1735 = smul.addr 2, 165
    %s1736 = scalar_lea.vmem %s0, %s1735
    %v1737 = vld [vmem:[%s1736] sm:%s4]
    %s1738 = scalar_lea.vmem [#allocation0], 1320
    %1739 = vst [vmem:[%s1738] sm:%s4] %v1737
    %s1740 = smul.addr 2, 164
    %s1741 = scalar_lea.vmem %s0, %s1740
    %v1742 = vld [vmem:[%s1741] sm:%s4]
    %s1743 = scalar_lea.vmem [#allocation0], 1312
    %1744 = vst [vmem:[%s1743] sm:%s4] %v1742
    %s1745 = smul.addr 2, 163
    %s1746 = scalar_lea.vmem %s0, %s1745
    %v1747 = vld [vmem:[%s1746] sm:%s4]
    %s1748 = scalar_lea.vmem [#allocation0], 1304
    %1749 = vst [vmem:[%s1748] sm:%s4] %v1747
    %s1750 = smul.addr 2, 162
    %s1751 = scalar_lea.vmem %s0, %s1750
    %v1752 = vld [vmem:[%s1751] sm:%s4]
    %s1753 = scalar_lea.vmem [#allocation0], 1296
    %1754 = vst [vmem:[%s1753] sm:%s4] %v1752
    %s1755 = smul.addr 2, 161
    %s1756 = scalar_lea.vmem %s0, %s1755
    %v1757 = vld [vmem:[%s1756] sm:%s4]
    %s1758 = scalar_lea.vmem [#allocation0], 1288
    %1759 = vst [vmem:[%s1758] sm:%s4] %v1757
    %s1760 = smul.addr 2, 160
    %s1761 = scalar_lea.vmem %s0, %s1760
    %v1762 = vld [vmem:[%s1761] sm:%s4]
    %s1763 = scalar_lea.vmem [#allocation0], 1280
    %1764 = vst [vmem:[%s1763] sm:%s4] %v1762
    %s1765 = smul.addr 2, 159
    %s1766 = scalar_lea.vmem %s0, %s1765
    %v1767 = vld [vmem:[%s1766] sm:%s4]
    %s1768 = scalar_lea.vmem [#allocation0], 1272
    %1769 = vst [vmem:[%s1768] sm:%s4] %v1767
    %s1770 = smul.addr 2, 158
    %s1771 = scalar_lea.vmem %s0, %s1770
    %v1772 = vld [vmem:[%s1771] sm:%s4]
    %s1773 = scalar_lea.vmem [#allocation0], 1264
    %1774 = vst [vmem:[%s1773] sm:%s4] %v1772
    %s1775 = smul.addr 2, 157
    %s1776 = scalar_lea.vmem %s0, %s1775
    %v1777 = vld [vmem:[%s1776] sm:%s4]
    %s1778 = scalar_lea.vmem [#allocation0], 1256
    %1779 = vst [vmem:[%s1778] sm:%s4] %v1777
    %s1780 = smul.addr 2, 156
    %s1781 = scalar_lea.vmem %s0, %s1780
    %v1782 = vld [vmem:[%s1781] sm:%s4]
    %s1783 = scalar_lea.vmem [#allocation0], 1248
    %1784 = vst [vmem:[%s1783] sm:%s4] %v1782
    %s1785 = smul.addr 2, 155
    %s1786 = scalar_lea.vmem %s0, %s1785
    %v1787 = vld [vmem:[%s1786] sm:%s4]
    %s1788 = scalar_lea.vmem [#allocation0], 1240
    %1789 = vst [vmem:[%s1788] sm:%s4] %v1787
    %s1790 = smul.addr 2, 154
    %s1791 = scalar_lea.vmem %s0, %s1790
    %v1792 = vld [vmem:[%s1791] sm:%s4]
    %s1793 = scalar_lea.vmem [#allocation0], 1232
    %1794 = vst [vmem:[%s1793] sm:%s4] %v1792
    %s1795 = smul.addr 2, 153
    %s1796 = scalar_lea.vmem %s0, %s1795
    %v1797 = vld [vmem:[%s1796] sm:%s4]
    %s1798 = scalar_lea.vmem [#allocation0], 1224
    %1799 = vst [vmem:[%s1798] sm:%s4] %v1797
    %s1800 = smul.addr 2, 152
    %s1801 = scalar_lea.vmem %s0, %s1800
    %v1802 = vld [vmem:[%s1801] sm:%s4]
    %s1803 = scalar_lea.vmem [#allocation0], 1216
    %1804 = vst [vmem:[%s1803] sm:%s4] %v1802
    %s1805 = smul.addr 2, 151
    %s1806 = scalar_lea.vmem %s0, %s1805
    %v1807 = vld [vmem:[%s1806] sm:%s4]
    %s1808 = scalar_lea.vmem [#allocation0], 1208
    %1809 = vst [vmem:[%s1808] sm:%s4] %v1807
    %s1810 = smul.addr 2, 150
    %s1811 = scalar_lea.vmem %s0, %s1810
    %v1812 = vld [vmem:[%s1811] sm:%s4]
    %s1813 = scalar_lea.vmem [#allocation0], 1200
    %1814 = vst [vmem:[%s1813] sm:%s4] %v1812
    %s1815 = smul.addr 2, 149
    %s1816 = scalar_lea.vmem %s0, %s1815
    %v1817 = vld [vmem:[%s1816] sm:%s4]
    %s1818 = scalar_lea.vmem [#allocation0], 1192
    %1819 = vst [vmem:[%s1818] sm:%s4] %v1817
    %s1820 = smul.addr 2, 148
    %s1821 = scalar_lea.vmem %s0, %s1820
    %v1822 = vld [vmem:[%s1821] sm:%s4]
    %s1823 = scalar_lea.vmem [#allocation0], 1184
    %1824 = vst [vmem:[%s1823] sm:%s4] %v1822
    %s1825 = smul.addr 2, 147
    %s1826 = scalar_lea.vmem %s0, %s1825
    %v1827 = vld [vmem:[%s1826] sm:%s4]
    %s1828 = scalar_lea.vmem [#allocation0], 1176
    %1829 = vst [vmem:[%s1828] sm:%s4] %v1827
    %s1830 = smul.addr 2, 146
    %s1831 = scalar_lea.vmem %s0, %s1830
    %v1832 = vld [vmem:[%s1831] sm:%s4]
    %s1833 = scalar_lea.vmem [#allocation0], 1168
    %1834 = vst [vmem:[%s1833] sm:%s4] %v1832
    %s1835 = smul.addr 2, 145
    %s1836 = scalar_lea.vmem %s0, %s1835
    %v1837 = vld [vmem:[%s1836] sm:%s4]
    %s1838 = scalar_lea.vmem [#allocation0], 1160
    %1839 = vst [vmem:[%s1838] sm:%s4] %v1837
    %s1840 = smul.addr 2, 144
    %s1841 = scalar_lea.vmem %s0, %s1840
    %v1842 = vld [vmem:[%s1841] sm:%s4]
    %s1843 = scalar_lea.vmem [#allocation0], 1152
    %1844 = vst [vmem:[%s1843] sm:%s4] %v1842
    %s1845 = smul.addr 2, 143
    %s1846 = scalar_lea.vmem %s0, %s1845
    %v1847 = vld [vmem:[%s1846] sm:%s4]
    %s1848 = scalar_lea.vmem [#allocation0], 1144
    %1849 = vst [vmem:[%s1848] sm:%s4] %v1847
    %s1850 = smul.addr 2, 142
    %s1851 = scalar_lea.vmem %s0, %s1850
    %v1852 = vld [vmem:[%s1851] sm:%s4]
    %s1853 = scalar_lea.vmem [#allocation0], 1136
    %1854 = vst [vmem:[%s1853] sm:%s4] %v1852
    %s1855 = smul.addr 2, 141
    %s1856 = scalar_lea.vmem %s0, %s1855
    %v1857 = vld [vmem:[%s1856] sm:%s4]
    %s1858 = scalar_lea.vmem [#allocation0], 1128
    %1859 = vst [vmem:[%s1858] sm:%s4] %v1857
    %s1860 = smul.addr 2, 140
    %s1861 = scalar_lea.vmem %s0, %s1860
    %v1862 = vld [vmem:[%s1861] sm:%s4]
    %s1863 = scalar_lea.vmem [#allocation0], 1120
    %1864 = vst [vmem:[%s1863] sm:%s4] %v1862
    %s1865 = smul.addr 2, 139
    %s1866 = scalar_lea.vmem %s0, %s1865
    %v1867 = vld [vmem:[%s1866] sm:%s4]
    %s1868 = scalar_lea.vmem [#allocation0], 1112
    %1869 = vst [vmem:[%s1868] sm:%s4] %v1867
    %s1870 = smul.addr 2, 138
    %s1871 = scalar_lea.vmem %s0, %s1870
    %v1872 = vld [vmem:[%s1871] sm:%s4]
    %s1873 = scalar_lea.vmem [#allocation0], 1104
    %1874 = vst [vmem:[%s1873] sm:%s4] %v1872
    %s1875 = smul.addr 2, 137
    %s1876 = scalar_lea.vmem %s0, %s1875
    %v1877 = vld [vmem:[%s1876] sm:%s4]
    %s1878 = scalar_lea.vmem [#allocation0], 1096
    %1879 = vst [vmem:[%s1878] sm:%s4] %v1877
    %s1880 = smul.addr 2, 136
    %s1881 = scalar_lea.vmem %s0, %s1880
    %v1882 = vld [vmem:[%s1881] sm:%s4]
    %s1883 = scalar_lea.vmem [#allocation0], 1088
    %1884 = vst [vmem:[%s1883] sm:%s4] %v1882
    %s1885 = smul.addr 2, 135
    %s1886 = scalar_lea.vmem %s0, %s1885
    %v1887 = vld [vmem:[%s1886] sm:%s4]
    %s1888 = scalar_lea.vmem [#allocation0], 1080
    %1889 = vst [vmem:[%s1888] sm:%s4] %v1887
    %s1890 = smul.addr 2, 134
    %s1891 = scalar_lea.vmem %s0, %s1890
    %v1892 = vld [vmem:[%s1891] sm:%s4]
    %s1893 = scalar_lea.vmem [#allocation0], 1072
    %1894 = vst [vmem:[%s1893] sm:%s4] %v1892
    %s1895 = smul.addr 2, 133
    %s1896 = scalar_lea.vmem %s0, %s1895
    %v1897 = vld [vmem:[%s1896] sm:%s4]
    %s1898 = scalar_lea.vmem [#allocation0], 1064
    %1899 = vst [vmem:[%s1898] sm:%s4] %v1897
    %s1900 = smul.addr 2, 132
    %s1901 = scalar_lea.vmem %s0, %s1900
    %v1902 = vld [vmem:[%s1901] sm:%s4]
    %s1903 = scalar_lea.vmem [#allocation0], 1056
    %1904 = vst [vmem:[%s1903] sm:%s4] %v1902
    %s1905 = smul.addr 2, 131
    %s1906 = scalar_lea.vmem %s0, %s1905
    %v1907 = vld [vmem:[%s1906] sm:%s4]
    %s1908 = scalar_lea.vmem [#allocation0], 1048
    %1909 = vst [vmem:[%s1908] sm:%s4] %v1907
    %s1910 = smul.addr 2, 130
    %s1911 = scalar_lea.vmem %s0, %s1910
    %v1912 = vld [vmem:[%s1911] sm:%s4]
    %s1913 = scalar_lea.vmem [#allocation0], 1040
    %1914 = vst [vmem:[%s1913] sm:%s4] %v1912
    %s1915 = smul.addr 2, 129
    %s1916 = scalar_lea.vmem %s0, %s1915
    %v1917 = vld [vmem:[%s1916] sm:%s4]
    %s1918 = scalar_lea.vmem [#allocation0], 1032
    %1919 = vst [vmem:[%s1918] sm:%s4] %v1917
    %s1920 = smul.addr 2, 128
    %s1921 = scalar_lea.vmem %s0, %s1920
    %v1922 = vld [vmem:[%s1921] sm:%s4]
    %s1923 = scalar_lea.vmem [#allocation0], 1024
    %1924 = vst [vmem:[%s1923] sm:%s4] %v1922
    %s1925 = smul.addr 2, 127
    %s1926 = scalar_lea.vmem %s0, %s1925
    %v1927 = vld [vmem:[%s1926] sm:%s4]
    %s1928 = scalar_lea.vmem [#allocation0], 1016
    %1929 = vst [vmem:[%s1928] sm:%s4] %v1927
    %s1930 = smul.addr 2, 126
    %s1931 = scalar_lea.vmem %s0, %s1930
    %v1932 = vld [vmem:[%s1931] sm:%s4]
    %s1933 = scalar_lea.vmem [#allocation0], 1008
    %1934 = vst [vmem:[%s1933] sm:%s4] %v1932
    %s1935 = smul.addr 2, 125
    %s1936 = scalar_lea.vmem %s0, %s1935
    %v1937 = vld [vmem:[%s1936] sm:%s4]
    %s1938 = scalar_lea.vmem [#allocation0], 1000
    %1939 = vst [vmem:[%s1938] sm:%s4] %v1937
    %s1940 = smul.addr 2, 124
    %s1941 = scalar_lea.vmem %s0, %s1940
    %v1942 = vld [vmem:[%s1941] sm:%s4]
    %s1943 = scalar_lea.vmem [#allocation0], 992
    %1944 = vst [vmem:[%s1943] sm:%s4] %v1942
    %s1945 = smul.addr 2, 123
    %s1946 = scalar_lea.vmem %s0, %s1945
    %v1947 = vld [vmem:[%s1946] sm:%s4]
    %s1948 = scalar_lea.vmem [#allocation0], 984
    %1949 = vst [vmem:[%s1948] sm:%s4] %v1947
    %s1950 = smul.addr 2, 122
    %s1951 = scalar_lea.vmem %s0, %s1950
    %v1952 = vld [vmem:[%s1951] sm:%s4]
    %s1953 = scalar_lea.vmem [#allocation0], 976
    %1954 = vst [vmem:[%s1953] sm:%s4] %v1952
    %s1955 = smul.addr 2, 121
    %s1956 = scalar_lea.vmem %s0, %s1955
    %v1957 = vld [vmem:[%s1956] sm:%s4]
    %s1958 = scalar_lea.vmem [#allocation0], 968
    %1959 = vst [vmem:[%s1958] sm:%s4] %v1957
    %s1960 = smul.addr 2, 120
    %s1961 = scalar_lea.vmem %s0, %s1960
    %v1962 = vld [vmem:[%s1961] sm:%s4]
    %s1963 = scalar_lea.vmem [#allocation0], 960
    %1964 = vst [vmem:[%s1963] sm:%s4] %v1962
    %s1965 = smul.addr 2, 119
    %s1966 = scalar_lea.vmem %s0, %s1965
    %v1967 = vld [vmem:[%s1966] sm:%s4]
    %s1968 = scalar_lea.vmem [#allocation0], 952
    %1969 = vst [vmem:[%s1968] sm:%s4] %v1967
    %s1970 = smul.addr 2, 118
    %s1971 = scalar_lea.vmem %s0, %s1970
    %v1972 = vld [vmem:[%s1971] sm:%s4]
    %s1973 = scalar_lea.vmem [#allocation0], 944
    %1974 = vst [vmem:[%s1973] sm:%s4] %v1972
    %s1975 = smul.addr 2, 117
    %s1976 = scalar_lea.vmem %s0, %s1975
    %v1977 = vld [vmem:[%s1976] sm:%s4]
    %s1978 = scalar_lea.vmem [#allocation0], 936
    %1979 = vst [vmem:[%s1978] sm:%s4] %v1977
    %s1980 = smul.addr 2, 116
    %s1981 = scalar_lea.vmem %s0, %s1980
    %v1982 = vld [vmem:[%s1981] sm:%s4]
    %s1983 = scalar_lea.vmem [#allocation0], 928
    %1984 = vst [vmem:[%s1983] sm:%s4] %v1982
    %s1985 = smul.addr 2, 115
    %s1986 = scalar_lea.vmem %s0, %s1985
    %v1987 = vld [vmem:[%s1986] sm:%s4]
    %s1988 = scalar_lea.vmem [#allocation0], 920
    %1989 = vst [vmem:[%s1988] sm:%s4] %v1987
    %s1990 = smul.addr 2, 114
    %s1991 = scalar_lea.vmem %s0, %s1990
    %v1992 = vld [vmem:[%s1991] sm:%s4]
    %s1993 = scalar_lea.vmem [#allocation0], 912
    %1994 = vst [vmem:[%s1993] sm:%s4] %v1992
    %s1995 = smul.addr 2, 113
    %s1996 = scalar_lea.vmem %s0, %s1995
    %v1997 = vld [vmem:[%s1996] sm:%s4]
    %s1998 = scalar_lea.vmem [#allocation0], 904
    %1999 = vst [vmem:[%s1998] sm:%s4] %v1997
    %s2000 = smul.addr 2, 112
    %s2001 = scalar_lea.vmem %s0, %s2000
    %v2002 = vld [vmem:[%s2001] sm:%s4]
    %s2003 = scalar_lea.vmem [#allocation0], 896
    %2004 = vst [vmem:[%s2003] sm:%s4] %v2002
    %s2005 = smul.addr 2, 111
    %s2006 = scalar_lea.vmem %s0, %s2005
    %v2007 = vld [vmem:[%s2006] sm:%s4]
    %s2008 = scalar_lea.vmem [#allocation0], 888
    %2009 = vst [vmem:[%s2008] sm:%s4] %v2007
    %s2010 = smul.addr 2, 110
    %s2011 = scalar_lea.vmem %s0, %s2010
    %v2012 = vld [vmem:[%s2011] sm:%s4]
    %s2013 = scalar_lea.vmem [#allocation0], 880
    %2014 = vst [vmem:[%s2013] sm:%s4] %v2012
    %s2015 = smul.addr 2, 109
    %s2016 = scalar_lea.vmem %s0, %s2015
    %v2017 = vld [vmem:[%s2016] sm:%s4]
    %s2018 = scalar_lea.vmem [#allocation0], 872
    %2019 = vst [vmem:[%s2018] sm:%s4] %v2017
    %s2020 = smul.addr 2, 108
    %s2021 = scalar_lea.vmem %s0, %s2020
    %v2022 = vld [vmem:[%s2021] sm:%s4]
    %s2023 = scalar_lea.vmem [#allocation0], 864
    %2024 = vst [vmem:[%s2023] sm:%s4] %v2022
    %s2025 = smul.addr 2, 107
    %s2026 = scalar_lea.vmem %s0, %s2025
    %v2027 = vld [vmem:[%s2026] sm:%s4]
    %s2028 = scalar_lea.vmem [#allocation0], 856
    %2029 = vst [vmem:[%s2028] sm:%s4] %v2027
    %s2030 = smul.addr 2, 106
    %s2031 = scalar_lea.vmem %s0, %s2030
    %v2032 = vld [vmem:[%s2031] sm:%s4]
    %s2033 = scalar_lea.vmem [#allocation0], 848
    %2034 = vst [vmem:[%s2033] sm:%s4] %v2032
    %s2035 = smul.addr 2, 105
    %s2036 = scalar_lea.vmem %s0, %s2035
    %v2037 = vld [vmem:[%s2036] sm:%s4]
    %s2038 = scalar_lea.vmem [#allocation0], 840
    %2039 = vst [vmem:[%s2038] sm:%s4] %v2037
    %s2040 = smul.addr 2, 104
    %s2041 = scalar_lea.vmem %s0, %s2040
    %v2042 = vld [vmem:[%s2041] sm:%s4]
    %s2043 = scalar_lea.vmem [#allocation0], 832
    %2044 = vst [vmem:[%s2043] sm:%s4] %v2042
    %s2045 = smul.addr 2, 103
    %s2046 = scalar_lea.vmem %s0, %s2045
    %v2047 = vld [vmem:[%s2046] sm:%s4]
    %s2048 = scalar_lea.vmem [#allocation0], 824
    %2049 = vst [vmem:[%s2048] sm:%s4] %v2047
    %s2050 = smul.addr 2, 102
    %s2051 = scalar_lea.vmem %s0, %s2050
    %v2052 = vld [vmem:[%s2051] sm:%s4]
    %s2053 = scalar_lea.vmem [#allocation0], 816
    %2054 = vst [vmem:[%s2053] sm:%s4] %v2052
    %s2055 = smul.addr 2, 101
    %s2056 = scalar_lea.vmem %s0, %s2055
    %v2057 = vld [vmem:[%s2056] sm:%s4]
    %s2058 = scalar_lea.vmem [#allocation0], 808
    %2059 = vst [vmem:[%s2058] sm:%s4] %v2057
    %s2060 = smul.addr 2, 100
    %s2061 = scalar_lea.vmem %s0, %s2060
    %v2062 = vld [vmem:[%s2061] sm:%s4]
    %s2063 = scalar_lea.vmem [#allocation0], 800
    %2064 = vst [vmem:[%s2063] sm:%s4] %v2062
    %s2065 = smul.addr 2, 99
    %s2066 = scalar_lea.vmem %s0, %s2065
    %v2067 = vld [vmem:[%s2066] sm:%s4]
    %s2068 = scalar_lea.vmem [#allocation0], 792
    %2069 = vst [vmem:[%s2068] sm:%s4] %v2067
    %s2070 = smul.addr 2, 98
    %s2071 = scalar_lea.vmem %s0, %s2070
    %v2072 = vld [vmem:[%s2071] sm:%s4]
    %s2073 = scalar_lea.vmem [#allocation0], 784
    %2074 = vst [vmem:[%s2073] sm:%s4] %v2072
    %s2075 = smul.addr 2, 97
    %s2076 = scalar_lea.vmem %s0, %s2075
    %v2077 = vld [vmem:[%s2076] sm:%s4]
    %s2078 = scalar_lea.vmem [#allocation0], 776
    %2079 = vst [vmem:[%s2078] sm:%s4] %v2077
    %s2080 = smul.addr 2, 96
    %s2081 = scalar_lea.vmem %s0, %s2080
    %v2082 = vld [vmem:[%s2081] sm:%s4]
    %s2083 = scalar_lea.vmem [#allocation0], 768
    %2084 = vst [vmem:[%s2083] sm:%s4] %v2082
    %s2085 = smul.addr 2, 95
    %s2086 = scalar_lea.vmem %s0, %s2085
    %v2087 = vld [vmem:[%s2086] sm:%s4]
    %s2088 = scalar_lea.vmem [#allocation0], 760
    %2089 = vst [vmem:[%s2088] sm:%s4] %v2087
    %s2090 = smul.addr 2, 94
    %s2091 = scalar_lea.vmem %s0, %s2090
    %v2092 = vld [vmem:[%s2091] sm:%s4]
    %s2093 = scalar_lea.vmem [#allocation0], 752
    %2094 = vst [vmem:[%s2093] sm:%s4] %v2092
    %s2095 = smul.addr 2, 93
    %s2096 = scalar_lea.vmem %s0, %s2095
    %v2097 = vld [vmem:[%s2096] sm:%s4]
    %s2098 = scalar_lea.vmem [#allocation0], 744
    %2099 = vst [vmem:[%s2098] sm:%s4] %v2097
    %s2100 = smul.addr 2, 92
    %s2101 = scalar_lea.vmem %s0, %s2100
    %v2102 = vld [vmem:[%s2101] sm:%s4]
    %s2103 = scalar_lea.vmem [#allocation0], 736
    %2104 = vst [vmem:[%s2103] sm:%s4] %v2102
    %s2105 = smul.addr 2, 91
    %s2106 = scalar_lea.vmem %s0, %s2105
    %v2107 = vld [vmem:[%s2106] sm:%s4]
    %s2108 = scalar_lea.vmem [#allocation0], 728
    %2109 = vst [vmem:[%s2108] sm:%s4] %v2107
    %s2110 = smul.addr 2, 90
    %s2111 = scalar_lea.vmem %s0, %s2110
    %v2112 = vld [vmem:[%s2111] sm:%s4]
    %s2113 = scalar_lea.vmem [#allocation0], 720
    %2114 = vst [vmem:[%s2113] sm:%s4] %v2112
    %s2115 = smul.addr 2, 89
    %s2116 = scalar_lea.vmem %s0, %s2115
    %v2117 = vld [vmem:[%s2116] sm:%s4]
    %s2118 = scalar_lea.vmem [#allocation0], 712
    %2119 = vst [vmem:[%s2118] sm:%s4] %v2117
    %s2120 = smul.addr 2, 88
    %s2121 = scalar_lea.vmem %s0, %s2120
    %v2122 = vld [vmem:[%s2121] sm:%s4]
    %s2123 = scalar_lea.vmem [#allocation0], 704
    %2124 = vst [vmem:[%s2123] sm:%s4] %v2122
    %s2125 = smul.addr 2, 87
    %s2126 = scalar_lea.vmem %s0, %s2125
    %v2127 = vld [vmem:[%s2126] sm:%s4]
    %s2128 = scalar_lea.vmem [#allocation0], 696
    %2129 = vst [vmem:[%s2128] sm:%s4] %v2127
    %s2130 = smul.addr 2, 86
    %s2131 = scalar_lea.vmem %s0, %s2130
    %v2132 = vld [vmem:[%s2131] sm:%s4]
    %s2133 = scalar_lea.vmem [#allocation0], 688
    %2134 = vst [vmem:[%s2133] sm:%s4] %v2132
    %s2135 = smul.addr 2, 85
    %s2136 = scalar_lea.vmem %s0, %s2135
    %v2137 = vld [vmem:[%s2136] sm:%s4]
    %s2138 = scalar_lea.vmem [#allocation0], 680
    %2139 = vst [vmem:[%s2138] sm:%s4] %v2137
    %s2140 = smul.addr 2, 84
    %s2141 = scalar_lea.vmem %s0, %s2140
    %v2142 = vld [vmem:[%s2141] sm:%s4]
    %s2143 = scalar_lea.vmem [#allocation0], 672
    %2144 = vst [vmem:[%s2143] sm:%s4] %v2142
    %s2145 = smul.addr 2, 83
    %s2146 = scalar_lea.vmem %s0, %s2145
    %v2147 = vld [vmem:[%s2146] sm:%s4]
    %s2148 = scalar_lea.vmem [#allocation0], 664
    %2149 = vst [vmem:[%s2148] sm:%s4] %v2147
    %s2150 = smul.addr 2, 82
    %s2151 = scalar_lea.vmem %s0, %s2150
    %v2152 = vld [vmem:[%s2151] sm:%s4]
    %s2153 = scalar_lea.vmem [#allocation0], 656
    %2154 = vst [vmem:[%s2153] sm:%s4] %v2152
    %s2155 = smul.addr 2, 81
    %s2156 = scalar_lea.vmem %s0, %s2155
    %v2157 = vld [vmem:[%s2156] sm:%s4]
    %s2158 = scalar_lea.vmem [#allocation0], 648
    %2159 = vst [vmem:[%s2158] sm:%s4] %v2157
    %s2160 = smul.addr 2, 80
    %s2161 = scalar_lea.vmem %s0, %s2160
    %v2162 = vld [vmem:[%s2161] sm:%s4]
    %s2163 = scalar_lea.vmem [#allocation0], 640
    %2164 = vst [vmem:[%s2163] sm:%s4] %v2162
    %s2165 = smul.addr 2, 79
    %s2166 = scalar_lea.vmem %s0, %s2165
    %v2167 = vld [vmem:[%s2166] sm:%s4]
    %s2168 = scalar_lea.vmem [#allocation0], 632
    %2169 = vst [vmem:[%s2168] sm:%s4] %v2167
    %s2170 = smul.addr 2, 78
    %s2171 = scalar_lea.vmem %s0, %s2170
    %v2172 = vld [vmem:[%s2171] sm:%s4]
    %s2173 = scalar_lea.vmem [#allocation0], 624
    %2174 = vst [vmem:[%s2173] sm:%s4] %v2172
    %s2175 = smul.addr 2, 77
    %s2176 = scalar_lea.vmem %s0, %s2175
    %v2177 = vld [vmem:[%s2176] sm:%s4]
    %s2178 = scalar_lea.vmem [#allocation0], 616
    %2179 = vst [vmem:[%s2178] sm:%s4] %v2177
    %s2180 = smul.addr 2, 76
    %s2181 = scalar_lea.vmem %s0, %s2180
    %v2182 = vld [vmem:[%s2181] sm:%s4]
    %s2183 = scalar_lea.vmem [#allocation0], 608
    %2184 = vst [vmem:[%s2183] sm:%s4] %v2182
    %s2185 = smul.addr 2, 75
    %s2186 = scalar_lea.vmem %s0, %s2185
    %v2187 = vld [vmem:[%s2186] sm:%s4]
    %s2188 = scalar_lea.vmem [#allocation0], 600
    %2189 = vst [vmem:[%s2188] sm:%s4] %v2187
    %s2190 = smul.addr 2, 74
    %s2191 = scalar_lea.vmem %s0, %s2190
    %v2192 = vld [vmem:[%s2191] sm:%s4]
    %s2193 = scalar_lea.vmem [#allocation0], 592
    %2194 = vst [vmem:[%s2193] sm:%s4] %v2192
    %s2195 = smul.addr 2, 73
    %s2196 = scalar_lea.vmem %s0, %s2195
    %v2197 = vld [vmem:[%s2196] sm:%s4]
    %s2198 = scalar_lea.vmem [#allocation0], 584
    %2199 = vst [vmem:[%s2198] sm:%s4] %v2197
    %s2200 = smul.addr 2, 72
    %s2201 = scalar_lea.vmem %s0, %s2200
    %v2202 = vld [vmem:[%s2201] sm:%s4]
    %s2203 = scalar_lea.vmem [#allocation0], 576
    %2204 = vst [vmem:[%s2203] sm:%s4] %v2202
    %s2205 = smul.addr 2, 71
    %s2206 = scalar_lea.vmem %s0, %s2205
    %v2207 = vld [vmem:[%s2206] sm:%s4]
    %s2208 = scalar_lea.vmem [#allocation0], 568
    %2209 = vst [vmem:[%s2208] sm:%s4] %v2207
    %s2210 = smul.addr 2, 70
    %s2211 = scalar_lea.vmem %s0, %s2210
    %v2212 = vld [vmem:[%s2211] sm:%s4]
    %s2213 = scalar_lea.vmem [#allocation0], 560
    %2214 = vst [vmem:[%s2213] sm:%s4] %v2212
    %s2215 = smul.addr 2, 69
    %s2216 = scalar_lea.vmem %s0, %s2215
    %v2217 = vld [vmem:[%s2216] sm:%s4]
    %s2218 = scalar_lea.vmem [#allocation0], 552
    %2219 = vst [vmem:[%s2218] sm:%s4] %v2217
    %s2220 = smul.addr 2, 68
    %s2221 = scalar_lea.vmem %s0, %s2220
    %v2222 = vld [vmem:[%s2221] sm:%s4]
    %s2223 = scalar_lea.vmem [#allocation0], 544
    %2224 = vst [vmem:[%s2223] sm:%s4] %v2222
    %s2225 = smul.addr 2, 67
    %s2226 = scalar_lea.vmem %s0, %s2225
    %v2227 = vld [vmem:[%s2226] sm:%s4]
    %s2228 = scalar_lea.vmem [#allocation0], 536
    %2229 = vst [vmem:[%s2228] sm:%s4] %v2227
    %s2230 = smul.addr 2, 66
    %s2231 = scalar_lea.vmem %s0, %s2230
    %v2232 = vld [vmem:[%s2231] sm:%s4]
    %s2233 = scalar_lea.vmem [#allocation0], 528
    %2234 = vst [vmem:[%s2233] sm:%s4] %v2232
    %s2235 = smul.addr 2, 65
    %s2236 = scalar_lea.vmem %s0, %s2235
    %v2237 = vld [vmem:[%s2236] sm:%s4]
    %s2238 = scalar_lea.vmem [#allocation0], 520
    %2239 = vst [vmem:[%s2238] sm:%s4] %v2237
    %s2240 = smul.addr 2, 64
    %s2241 = scalar_lea.vmem %s0, %s2240
    %v2242 = vld [vmem:[%s2241] sm:%s4]
    %s2243 = scalar_lea.vmem [#allocation0], 512
    %2244 = vst [vmem:[%s2243] sm:%s4] %v2242
    %s2245 = smul.addr 2, 63
    %s2246 = scalar_lea.vmem %s0, %s2245
    %v2247 = vld [vmem:[%s2246] sm:%s4]
    %s2248 = scalar_lea.vmem [#allocation0], 504
    %2249 = vst [vmem:[%s2248] sm:%s4] %v2247
    %s2250 = smul.addr 2, 62
    %s2251 = scalar_lea.vmem %s0, %s2250
    %v2252 = vld [vmem:[%s2251] sm:%s4]
    %s2253 = scalar_lea.vmem [#allocation0], 496
    %2254 = vst [vmem:[%s2253] sm:%s4] %v2252
    %s2255 = smul.addr 2, 61
    %s2256 = scalar_lea.vmem %s0, %s2255
    %v2257 = vld [vmem:[%s2256] sm:%s4]
    %s2258 = scalar_lea.vmem [#allocation0], 488
    %2259 = vst [vmem:[%s2258] sm:%s4] %v2257
    %s2260 = smul.addr 2, 60
    %s2261 = scalar_lea.vmem %s0, %s2260
    %v2262 = vld [vmem:[%s2261] sm:%s4]
    %s2263 = scalar_lea.vmem [#allocation0], 480
    %2264 = vst [vmem:[%s2263] sm:%s4] %v2262
    %s2265 = smul.addr 2, 59
    %s2266 = scalar_lea.vmem %s0, %s2265
    %v2267 = vld [vmem:[%s2266] sm:%s4]
    %s2268 = scalar_lea.vmem [#allocation0], 472
    %2269 = vst [vmem:[%s2268] sm:%s4] %v2267
    %s2270 = smul.addr 2, 58
    %s2271 = scalar_lea.vmem %s0, %s2270
    %v2272 = vld [vmem:[%s2271] sm:%s4]
    %s2273 = scalar_lea.vmem [#allocation0], 464
    %2274 = vst [vmem:[%s2273] sm:%s4] %v2272
    %s2275 = smul.addr 2, 57
    %s2276 = scalar_lea.vmem %s0, %s2275
    %v2277 = vld [vmem:[%s2276] sm:%s4]
    %s2278 = scalar_lea.vmem [#allocation0], 456
    %2279 = vst [vmem:[%s2278] sm:%s4] %v2277
    %s2280 = smul.addr 2, 56
    %s2281 = scalar_lea.vmem %s0, %s2280
    %v2282 = vld [vmem:[%s2281] sm:%s4]
    %s2283 = scalar_lea.vmem [#allocation0], 448
    %2284 = vst [vmem:[%s2283] sm:%s4] %v2282
    %s2285 = smul.addr 2, 55
    %s2286 = scalar_lea.vmem %s0, %s2285
    %v2287 = vld [vmem:[%s2286] sm:%s4]
    %s2288 = scalar_lea.vmem [#allocation0], 440
    %2289 = vst [vmem:[%s2288] sm:%s4] %v2287
    %s2290 = smul.addr 2, 54
    %s2291 = scalar_lea.vmem %s0, %s2290
    %v2292 = vld [vmem:[%s2291] sm:%s4]
    %s2293 = scalar_lea.vmem [#allocation0], 432
    %2294 = vst [vmem:[%s2293] sm:%s4] %v2292
    %s2295 = smul.addr 2, 53
    %s2296 = scalar_lea.vmem %s0, %s2295
    %v2297 = vld [vmem:[%s2296] sm:%s4]
    %s2298 = scalar_lea.vmem [#allocation0], 424
    %2299 = vst [vmem:[%s2298] sm:%s4] %v2297
    %s2300 = smul.addr 2, 52
    %s2301 = scalar_lea.vmem %s0, %s2300
    %v2302 = vld [vmem:[%s2301] sm:%s4]
    %s2303 = scalar_lea.vmem [#allocation0], 416
    %2304 = vst [vmem:[%s2303] sm:%s4] %v2302
    %s2305 = smul.addr 2, 51
    %s2306 = scalar_lea.vmem %s0, %s2305
    %v2307 = vld [vmem:[%s2306] sm:%s4]
    %s2308 = scalar_lea.vmem [#allocation0], 408
    %2309 = vst [vmem:[%s2308] sm:%s4] %v2307
    %s2310 = smul.addr 2, 50
    %s2311 = scalar_lea.vmem %s0, %s2310
    %v2312 = vld [vmem:[%s2311] sm:%s4]
    %s2313 = scalar_lea.vmem [#allocation0], 400
    %2314 = vst [vmem:[%s2313] sm:%s4] %v2312
    %s2315 = smul.addr 2, 49
    %s2316 = scalar_lea.vmem %s0, %s2315
    %v2317 = vld [vmem:[%s2316] sm:%s4]
    %s2318 = scalar_lea.vmem [#allocation0], 392
    %2319 = vst [vmem:[%s2318] sm:%s4] %v2317
    %s2320 = smul.addr 2, 48
    %s2321 = scalar_lea.vmem %s0, %s2320
    %v2322 = vld [vmem:[%s2321] sm:%s4]
    %s2323 = scalar_lea.vmem [#allocation0], 384
    %2324 = vst [vmem:[%s2323] sm:%s4] %v2322
    %s2325 = smul.addr 2, 47
    %s2326 = scalar_lea.vmem %s0, %s2325
    %v2327 = vld [vmem:[%s2326] sm:%s4]
    %s2328 = scalar_lea.vmem [#allocation0], 376
    %2329 = vst [vmem:[%s2328] sm:%s4] %v2327
    %s2330 = smul.addr 2, 46
    %s2331 = scalar_lea.vmem %s0, %s2330
    %v2332 = vld [vmem:[%s2331] sm:%s4]
    %s2333 = scalar_lea.vmem [#allocation0], 368
    %2334 = vst [vmem:[%s2333] sm:%s4] %v2332
    %s2335 = smul.addr 2, 45
    %s2336 = scalar_lea.vmem %s0, %s2335
    %v2337 = vld [vmem:[%s2336] sm:%s4]
    %s2338 = scalar_lea.vmem [#allocation0], 360
    %2339 = vst [vmem:[%s2338] sm:%s4] %v2337
    %s2340 = smul.addr 2, 44
    %s2341 = scalar_lea.vmem %s0, %s2340
    %v2342 = vld [vmem:[%s2341] sm:%s4]
    %s2343 = scalar_lea.vmem [#allocation0], 352
    %2344 = vst [vmem:[%s2343] sm:%s4] %v2342
    %s2345 = smul.addr 2, 43
    %s2346 = scalar_lea.vmem %s0, %s2345
    %v2347 = vld [vmem:[%s2346] sm:%s4]
    %s2348 = scalar_lea.vmem [#allocation0], 344
    %2349 = vst [vmem:[%s2348] sm:%s4] %v2347
    %s2350 = smul.addr 2, 42
    %s2351 = scalar_lea.vmem %s0, %s2350
    %v2352 = vld [vmem:[%s2351] sm:%s4]
    %s2353 = scalar_lea.vmem [#allocation0], 336
    %2354 = vst [vmem:[%s2353] sm:%s4] %v2352
    %s2355 = smul.addr 2, 41
    %s2356 = scalar_lea.vmem %s0, %s2355
    %v2357 = vld [vmem:[%s2356] sm:%s4]
    %s2358 = scalar_lea.vmem [#allocation0], 328
    %2359 = vst [vmem:[%s2358] sm:%s4] %v2357
    %s2360 = smul.addr 2, 40
    %s2361 = scalar_lea.vmem %s0, %s2360
    %v2362 = vld [vmem:[%s2361] sm:%s4]
    %s2363 = scalar_lea.vmem [#allocation0], 320
    %2364 = vst [vmem:[%s2363] sm:%s4] %v2362
    %s2365 = smul.addr 2, 39
    %s2366 = scalar_lea.vmem %s0, %s2365
    %v2367 = vld [vmem:[%s2366] sm:%s4]
    %s2368 = scalar_lea.vmem [#allocation0], 312
    %2369 = vst [vmem:[%s2368] sm:%s4] %v2367
    %s2370 = smul.addr 2, 38
    %s2371 = scalar_lea.vmem %s0, %s2370
    %v2372 = vld [vmem:[%s2371] sm:%s4]
    %s2373 = scalar_lea.vmem [#allocation0], 304
    %2374 = vst [vmem:[%s2373] sm:%s4] %v2372
    %s2375 = smul.addr 2, 37
    %s2376 = scalar_lea.vmem %s0, %s2375
    %v2377 = vld [vmem:[%s2376] sm:%s4]
    %s2378 = scalar_lea.vmem [#allocation0], 296
    %2379 = vst [vmem:[%s2378] sm:%s4] %v2377
    %s2380 = smul.addr 2, 36
    %s2381 = scalar_lea.vmem %s0, %s2380
    %v2382 = vld [vmem:[%s2381] sm:%s4]
    %s2383 = scalar_lea.vmem [#allocation0], 288
    %2384 = vst [vmem:[%s2383] sm:%s4] %v2382
    %s2385 = smul.addr 2, 35
    %s2386 = scalar_lea.vmem %s0, %s2385
    %v2387 = vld [vmem:[%s2386] sm:%s4]
    %s2388 = scalar_lea.vmem [#allocation0], 280
    %2389 = vst [vmem:[%s2388] sm:%s4] %v2387
    %s2390 = smul.addr 2, 34
    %s2391 = scalar_lea.vmem %s0, %s2390
    %v2392 = vld [vmem:[%s2391] sm:%s4]
    %s2393 = scalar_lea.vmem [#allocation0], 272
    %2394 = vst [vmem:[%s2393] sm:%s4] %v2392
    %s2395 = smul.addr 2, 33
    %s2396 = scalar_lea.vmem %s0, %s2395
    %v2397 = vld [vmem:[%s2396] sm:%s4]
    %s2398 = scalar_lea.vmem [#allocation0], 264
    %2399 = vst [vmem:[%s2398] sm:%s4] %v2397
    %s2400 = smul.addr 2, 32
    %s2401 = scalar_lea.vmem %s0, %s2400
    %v2402 = vld [vmem:[%s2401] sm:%s4]
    %s2403 = scalar_lea.vmem [#allocation0], 256
    %2404 = vst [vmem:[%s2403] sm:%s4] %v2402
    %s2405 = smul.addr 2, 31
    %s2406 = scalar_lea.vmem %s0, %s2405
    %v2407 = vld [vmem:[%s2406] sm:%s4]
    %s2408 = scalar_lea.vmem [#allocation0], 248
    %2409 = vst [vmem:[%s2408] sm:%s4] %v2407
    %s2410 = smul.addr 2, 30
    %s2411 = scalar_lea.vmem %s0, %s2410
    %v2412 = vld [vmem:[%s2411] sm:%s4]
    %s2413 = scalar_lea.vmem [#allocation0], 240
    %2414 = vst [vmem:[%s2413] sm:%s4] %v2412
    %s2415 = smul.addr 2, 29
    %s2416 = scalar_lea.vmem %s0, %s2415
    %v2417 = vld [vmem:[%s2416] sm:%s4]
    %s2418 = scalar_lea.vmem [#allocation0], 232
    %2419 = vst [vmem:[%s2418] sm:%s4] %v2417
    %s2420 = smul.addr 2, 28
    %s2421 = scalar_lea.vmem %s0, %s2420
    %v2422 = vld [vmem:[%s2421] sm:%s4]
    %s2423 = scalar_lea.vmem [#allocation0], 224
    %2424 = vst [vmem:[%s2423] sm:%s4] %v2422
    %s2425 = smul.addr 2, 27
    %s2426 = scalar_lea.vmem %s0, %s2425
    %v2427 = vld [vmem:[%s2426] sm:%s4]
    %s2428 = scalar_lea.vmem [#allocation0], 216
    %2429 = vst [vmem:[%s2428] sm:%s4] %v2427
    %s2430 = smul.addr 2, 26
    %s2431 = scalar_lea.vmem %s0, %s2430
    %v2432 = vld [vmem:[%s2431] sm:%s4]
    %s2433 = scalar_lea.vmem [#allocation0], 208
    %2434 = vst [vmem:[%s2433] sm:%s4] %v2432
    %s2435 = smul.addr 2, 25
    %s2436 = scalar_lea.vmem %s0, %s2435
    %v2437 = vld [vmem:[%s2436] sm:%s4]
    %s2438 = scalar_lea.vmem [#allocation0], 200
    %2439 = vst [vmem:[%s2438] sm:%s4] %v2437
    %s2440 = smul.addr 2, 24
    %s2441 = scalar_lea.vmem %s0, %s2440
    %v2442 = vld [vmem:[%s2441] sm:%s4]
    %s2443 = scalar_lea.vmem [#allocation0], 192
    %2444 = vst [vmem:[%s2443] sm:%s4] %v2442
    %s2445 = smul.addr 2, 23
    %s2446 = scalar_lea.vmem %s0, %s2445
    %v2447 = vld [vmem:[%s2446] sm:%s4]
    %s2448 = scalar_lea.vmem [#allocation0], 184
    %2449 = vst [vmem:[%s2448] sm:%s4] %v2447
    %s2450 = smul.addr 2, 22
    %s2451 = scalar_lea.vmem %s0, %s2450
    %v2452 = vld [vmem:[%s2451] sm:%s4]
    %s2453 = scalar_lea.vmem [#allocation0], 176
    %2454 = vst [vmem:[%s2453] sm:%s4] %v2452
    %s2455 = smul.addr 2, 21
    %s2456 = scalar_lea.vmem %s0, %s2455
    %v2457 = vld [vmem:[%s2456] sm:%s4]
    %s2458 = scalar_lea.vmem [#allocation0], 168
    %2459 = vst [vmem:[%s2458] sm:%s4] %v2457
    %s2460 = smul.addr 2, 20
    %s2461 = scalar_lea.vmem %s0, %s2460
    %v2462 = vld [vmem:[%s2461] sm:%s4]
    %s2463 = scalar_lea.vmem [#allocation0], 160
    %2464 = vst [vmem:[%s2463] sm:%s4] %v2462
    %s2465 = smul.addr 2, 19
    %s2466 = scalar_lea.vmem %s0, %s2465
    %v2467 = vld [vmem:[%s2466] sm:%s4]
    %s2468 = scalar_lea.vmem [#allocation0], 152
    %2469 = vst [vmem:[%s2468] sm:%s4] %v2467
    %s2470 = smul.addr 2, 18
    %s2471 = scalar_lea.vmem %s0, %s2470
    %v2472 = vld [vmem:[%s2471] sm:%s4]
    %s2473 = scalar_lea.vmem [#allocation0], 144
    %2474 = vst [vmem:[%s2473] sm:%s4] %v2472
    %s2475 = smul.addr 2, 17
    %s2476 = scalar_lea.vmem %s0, %s2475
    %v2477 = vld [vmem:[%s2476] sm:%s4]
    %s2478 = scalar_lea.vmem [#allocation0], 136
    %2479 = vst [vmem:[%s2478] sm:%s4] %v2477
    %s2480 = smul.addr 2, 16
    %s2481 = scalar_lea.vmem %s0, %s2480
    %v2482 = vld [vmem:[%s2481] sm:%s4]
    %s2483 = scalar_lea.vmem [#allocation0], 128
    %2484 = vst [vmem:[%s2483] sm:%s4] %v2482
    %s2485 = smul.addr 2, 15
    %s2486 = scalar_lea.vmem %s0, %s2485
    %v2487 = vld [vmem:[%s2486] sm:%s4]
    %s2488 = scalar_lea.vmem [#allocation0], 120
    %2489 = vst [vmem:[%s2488] sm:%s4] %v2487
    %s2490 = smul.addr 2, 14
    %s2491 = scalar_lea.vmem %s0, %s2490
    %v2492 = vld [vmem:[%s2491] sm:%s4]
    %s2493 = scalar_lea.vmem [#allocation0], 112
    %2494 = vst [vmem:[%s2493] sm:%s4] %v2492
    %s2495 = smul.addr 2, 13
    %s2496 = scalar_lea.vmem %s0, %s2495
    %v2497 = vld [vmem:[%s2496] sm:%s4]
    %s2498 = scalar_lea.vmem [#allocation0], 104
    %2499 = vst [vmem:[%s2498] sm:%s4] %v2497
    %s2500 = smul.addr 2, 12
    %s2501 = scalar_lea.vmem %s0, %s2500
    %v2502 = vld [vmem:[%s2501] sm:%s4]
    %s2503 = scalar_lea.vmem [#allocation0], 96
    %2504 = vst [vmem:[%s2503] sm:%s4] %v2502
    %s2505 = smul.addr 2, 11
    %s2506 = scalar_lea.vmem %s0, %s2505
    %v2507 = vld [vmem:[%s2506] sm:%s4]
    %s2508 = scalar_lea.vmem [#allocation0], 88
    %2509 = vst [vmem:[%s2508] sm:%s4] %v2507
    %s2510 = smul.addr 2, 10
    %s2511 = scalar_lea.vmem %s0, %s2510
    %v2512 = vld [vmem:[%s2511] sm:%s4]
    %s2513 = scalar_lea.vmem [#allocation0], 80
    %2514 = vst [vmem:[%s2513] sm:%s4] %v2512
    %s2515 = smul.addr 2, 9
    %s2516 = scalar_lea.vmem %s0, %s2515
    %v2517 = vld [vmem:[%s2516] sm:%s4]
    %s2518 = scalar_lea.vmem [#allocation0], 72
    %2519 = vst [vmem:[%s2518] sm:%s4] %v2517
    %s2520 = smul.addr 2, 8
    %s2521 = scalar_lea.vmem %s0, %s2520
    %v2522 = vld [vmem:[%s2521] sm:%s4]
    %s2523 = scalar_lea.vmem [#allocation0], 64
    %2524 = vst [vmem:[%s2523] sm:%s4] %v2522
    %s2525 = smul.addr 2, 7
    %s2526 = scalar_lea.vmem %s0, %s2525
    %v2527 = vld [vmem:[%s2526] sm:%s4]
    %s2528 = scalar_lea.vmem [#allocation0], 56
    %2529 = vst [vmem:[%s2528] sm:%s4] %v2527
    %s2530 = smul.addr 2, 6
    %s2531 = scalar_lea.vmem %s0, %s2530
    %v2532 = vld [vmem:[%s2531] sm:%s4]
    %s2533 = scalar_lea.vmem [#allocation0], 48
    %2534 = vst [vmem:[%s2533] sm:%s4] %v2532
    %s2535 = smul.addr 2, 5
    %s2536 = scalar_lea.vmem %s0, %s2535
    %v2537 = vld [vmem:[%s2536] sm:%s4]
    %s2538 = scalar_lea.vmem [#allocation0], 40
    %2539 = vst [vmem:[%s2538] sm:%s4] %v2537
    %s2540 = smul.addr 2, 4
    %s2541 = scalar_lea.vmem %s0, %s2540
    %v2542 = vld [vmem:[%s2541] sm:%s4]
    %s2543 = scalar_lea.vmem [#allocation0], 32
    %2544 = vst [vmem:[%s2543] sm:%s4] %v2542
    %s2545 = smul.addr 2, 3
    %s2546 = scalar_lea.vmem %s0, %s2545
    %v2547 = vld [vmem:[%s2546] sm:%s4]
    %s2548 = scalar_lea.vmem [#allocation0], 24
    %2549 = vst [vmem:[%s2548] sm:%s4] %v2547
    %s2550 = smul.addr 2, 2
    %s2551 = scalar_lea.vmem %s0, %s2550
    %v2552 = vld [vmem:[%s2551] sm:%s4]
    %s2553 = scalar_lea.vmem [#allocation0], 16
    %2554 = vst [vmem:[%s2553] sm:%s4] %v2552
    %s2555 = scalar_lea.vmem %s0, 2
    %v2556 = vld [vmem:[%s2555] sm:%s4]
    %s2557 = scalar_lea.vmem [#allocation0], 8
    %2558 = vst [vmem:[%s2557] sm:%s4] %v2556
    %v2559 = vld [vmem:[%s0] sm:%s4]
    %2560 = vst [vmem:[#allocation0] sm:%s4] %v2559
    %v2561 = vld [vmem:[#allocation0] sm:$0x1]
    %s2562 = scalar_lea.vmem [#allocation0], 63
    %v2563 = vld [vmem:[%s2562] sm:$0x2]
    %vm2564 = vcmask 1041409
    %v2565 = vsel %vm2564, %v2563, %v2561
    %s2566 = scalar_lea.vmem [#allocation0], 126
    %v2567 = vld [vmem:[%s2566] sm:$0x4]
    %vm2568 = vcmask 1042434
    %v2569 = vsel %vm2568, %v2567, %v2565
    %s2570 = scalar_lea.vmem [#allocation0], 189
    %v2571 = vld [vmem:[%s2570] sm:$0x8]
    %vm2572 = vcmask 1043459
    %v2573 = vsel %vm2572, %v2571, %v2569
    %s2574 = scalar_lea.vmem [#allocation0], 252
    %v2575 = vld [vmem:[%s2574] sm:$0x10]
    %vm2576 = vcmask 1044484
    %v2577 = vsel %vm2576, %v2575, %v2573
    %s2578 = scalar_lea.vmem [#allocation0], 315
    %v2579 = vld [vmem:[%s2578] sm:$0x20]
    %vm2580 = vcmask 1045509
    %v2581 = vsel %vm2580, %v2579, %v2577
    %s2582 = scalar_lea.vmem [#allocation0], 378
    %v2583 = vld [vmem:[%s2582] sm:$0x40]
    %vm2584 = vcmask 1046534
    %v2585 = vsel %vm2584, %v2583, %v2581
    %s2586 = scalar_lea.vmem [#allocation0], 441
    %v2587 = vld [vmem:[%s2586] sm:$0x80]
    %vm2588 = vcmask 1047559
    %v2589 = vsel %vm2588, %v2587, %v2585
    %vm2590 = vcmask 56320
    %2591 = vst.msk [vmem:[%s1] sm:$0xff] %vm2590, %v2589
    %s2592 = scalar_lea.vmem [#allocation0], 512
    %v2593 = vld [vmem:[%s2592] sm:$0x1]
    %s2594 = scalar_lea.vmem [#allocation0], 575
    %v2595 = vld [vmem:[%s2594] sm:$0x2]
    %vm2596 = vcmask 1041409
    %v2597 = vsel %vm2596, %v2595, %v2593
    %s2598 = scalar_lea.vmem [#allocation0], 638
    %v2599 = vld [vmem:[%s2598] sm:$0x4]
    %vm2600 = vcmask 1042434
    %v2601 = vsel %vm2600, %v2599, %v2597
    %s2602 = scalar_lea.vmem [#allocation0], 701
    %v2603 = vld [vmem:[%s2602] sm:$0x8]
    %vm2604 = vcmask 1043459
    %v2605 = vsel %vm2604, %v2603, %v2601
    %s2606 = scalar_lea.vmem [#allocation0], 764
    %v2607 = vld [vmem:[%s2606] sm:$0x10]
    %vm2608 = vcmask 1044484
    %v2609 = vsel %vm2608, %v2607, %v2605
    %s2610 = scalar_lea.vmem [#allocation0], 827
    %v2611 = vld [vmem:[%s2610] sm:$0x20]
    %vm2612 = vcmask 1045509
    %v2613 = vsel %vm2612, %v2611, %v2609
    %s2614 = scalar_lea.vmem [#allocation0], 890
    %v2615 = vld [vmem:[%s2614] sm:$0x40]
    %vm2616 = vcmask 1046534
    %v2617 = vsel %vm2616, %v2615, %v2613
    %s2618 = scalar_lea.vmem [#allocation0], 953
    %v2619 = vld [vmem:[%s2618] sm:$0x80]
    %vm2620 = vcmask 1047559
    %v2621 = vsel %vm2620, %v2619, %v2617
    %vm2622 = vcmask 56320
    %s2623 = scalar_lea.vmem %s1, 8
    %2624 = vst.msk [vmem:[%s2623] sm:$0xff] %vm2622, %v2621
    %s2625 = scalar_lea.vmem [#allocation0], 1024
    %v2626 = vld [vmem:[%s2625] sm:$0x1]
    %s2627 = scalar_lea.vmem [#allocation0], 1087
    %v2628 = vld [vmem:[%s2627] sm:$0x2]
    %vm2629 = vcmask 1041409
    %v2630 = vsel %vm2629, %v2628, %v2626
    %s2631 = scalar_lea.vmem [#allocation0], 1150
    %v2632 = vld [vmem:[%s2631] sm:$0x4]
    %vm2633 = vcmask 1042434
    %v2634 = vsel %vm2633, %v2632, %v2630
    %s2635 = scalar_lea.vmem [#allocation0], 1213
    %v2636 = vld [vmem:[%s2635] sm:$0x8]
    %vm2637 = vcmask 1043459
    %v2638 = vsel %vm2637, %v2636, %v2634
    %s2639 = scalar_lea.vmem [#allocation0], 1276
    %v2640 = vld [vmem:[%s2639] sm:$0x10]
    %vm2641 = vcmask 1044484
    %v2642 = vsel %vm2641, %v2640, %v2638
    %s2643 = scalar_lea.vmem [#allocation0], 1339
    %v2644 = vld [vmem:[%s2643] sm:$0x20]
    %vm2645 = vcmask 1045509
    %v2646 = vsel %vm2645, %v2644, %v2642
    %s2647 = scalar_lea.vmem [#allocation0], 1402
    %v2648 = vld [vmem:[%s2647] sm:$0x40]
    %vm2649 = vcmask 1046534
    %v2650 = vsel %vm2649, %v2648, %v2646
    %s2651 = scalar_lea.vmem [#allocation0], 1465
    %v2652 = vld [vmem:[%s2651] sm:$0x80]
    %vm2653 = vcmask 1047559
    %v2654 = vsel %vm2653, %v2652, %v2650
    %vm2655 = vcmask 56320
    %s2656 = scalar_lea.vmem %s1, 16
    %2657 = vst.msk [vmem:[%s2656] sm:$0xff] %vm2655, %v2654
    %s2658 = scalar_lea.vmem [#allocation0], 1536
    %v2659 = vld [vmem:[%s2658] sm:$0x1]
    %s2660 = scalar_lea.vmem [#allocation0], 1599
    %v2661 = vld [vmem:[%s2660] sm:$0x2]
    %vm2662 = vcmask 1041409
    %v2663 = vsel %vm2662, %v2661, %v2659
    %s2664 = scalar_lea.vmem [#allocation0], 1662
    %v2665 = vld [vmem:[%s2664] sm:$0x4]
    %vm2666 = vcmask 1042434
    %v2667 = vsel %vm2666, %v2665, %v2663
    %s2668 = scalar_lea.vmem [#allocation0], 1725
    %v2669 = vld [vmem:[%s2668] sm:$0x8]
    %vm2670 = vcmask 1043459
    %v2671 = vsel %vm2670, %v2669, %v2667
    %s2672 = scalar_lea.vmem [#allocation0], 1788
    %v2673 = vld [vmem:[%s2672] sm:$0x10]
    %vm2674 = vcmask 1044484
    %v2675 = vsel %vm2674, %v2673, %v2671
    %s2676 = scalar_lea.vmem [#allocation0], 1851
    %v2677 = vld [vmem:[%s2676] sm:$0x20]
    %vm2678 = vcmask 1045509
    %v2679 = vsel %vm2678, %v2677, %v2675
    %s2680 = scalar_lea.vmem [#allocation0], 1914
    %v2681 = vld [vmem:[%s2680] sm:$0x40]
    %vm2682 = vcmask 1046534
    %v2683 = vsel %vm2682, %v2681, %v2679
    %s2684 = scalar_lea.vmem [#allocation0], 1977
    %v2685 = vld [vmem:[%s2684] sm:$0x80]
    %vm2686 = vcmask 1047559
    %v2687 = vsel %vm2686, %v2685, %v2683
    %vm2688 = vcmask 56320
    %s2689 = scalar_lea.vmem %s1, 24
    %2690 = vst.msk [vmem:[%s2689] sm:$0xff] %vm2688, %v2687
    %s2691 = scalar_lea.vmem [#allocation0], 2048
    %v2692 = vld [vmem:[%s2691] sm:$0x1]
    %s2693 = scalar_lea.vmem [#allocation0], 2111
    %v2694 = vld [vmem:[%s2693] sm:$0x2]
    %vm2695 = vcmask 1041409
    %v2696 = vsel %vm2695, %v2694, %v2692
    %s2697 = scalar_lea.vmem [#allocation0], 2174
    %v2698 = vld [vmem:[%s2697] sm:$0x4]
    %vm2699 = vcmask 1042434
    %v2700 = vsel %vm2699, %v2698, %v2696
    %s2701 = scalar_lea.vmem [#allocation0], 2237
    %v2702 = vld [vmem:[%s2701] sm:$0x8]
    %vm2703 = vcmask 1043459
    %v2704 = vsel %vm2703, %v2702, %v2700
    %s2705 = scalar_lea.vmem [#allocation0], 2300
    %v2706 = vld [vmem:[%s2705] sm:$0x10]
    %vm2707 = vcmask 1044484
    %v2708 = vsel %vm2707, %v2706, %v2704
    %s2709 = scalar_lea.vmem [#allocation0], 2363
    %v2710 = vld [vmem:[%s2709] sm:$0x20]
    %vm2711 = vcmask 1045509
    %v2712 = vsel %vm2711, %v2710, %v2708
    %s2713 = scalar_lea.vmem [#allocation0], 2426
    %v2714 = vld [vmem:[%s2713] sm:$0x40]
    %vm2715 = vcmask 1046534
    %v2716 = vsel %vm2715, %v2714, %v2712
    %s2717 = scalar_lea.vmem [#allocation0], 2489
    %v2718 = vld [vmem:[%s2717] sm:$0x80]
    %vm2719 = vcmask 1047559
    %v2720 = vsel %vm2719, %v2718, %v2716
    %vm2721 = vcmask 56320
    %s2722 = scalar_lea.vmem %s1, 32
    %2723 = vst.msk [vmem:[%s2722] sm:$0xff] %vm2721, %v2720
    %s2724 = scalar_lea.vmem [#allocation0], 2560
    %v2725 = vld [vmem:[%s2724] sm:$0x1]
    %s2726 = scalar_lea.vmem [#allocation0], 2623
    %v2727 = vld [vmem:[%s2726] sm:$0x2]
    %vm2728 = vcmask 1041409
    %v2729 = vsel %vm2728, %v2727, %v2725
    %s2730 = scalar_lea.vmem [#allocation0], 2686
    %v2731 = vld [vmem:[%s2730] sm:$0x4]
    %vm2732 = vcmask 1042434
    %v2733 = vsel %vm2732, %v2731, %v2729
    %s2734 = scalar_lea.vmem [#allocation0], 2749
    %v2735 = vld [vmem:[%s2734] sm:$0x8]
    %vm2736 = vcmask 1043459
    %v2737 = vsel %vm2736, %v2735, %v2733
    %s2738 = scalar_lea.vmem [#allocation0], 2812
    %v2739 = vld [vmem:[%s2738] sm:$0x10]
    %vm2740 = vcmask 1044484
    %v2741 = vsel %vm2740, %v2739, %v2737
    %s2742 = scalar_lea.vmem [#allocation0], 2875
    %v2743 = vld [vmem:[%s2742] sm:$0x20]
    %vm2744 = vcmask 1045509
    %v2745 = vsel %vm2744, %v2743, %v2741
    %s2746 = scalar_lea.vmem [#allocation0], 2938
    %v2747 = vld [vmem:[%s2746] sm:$0x40]
    %vm2748 = vcmask 1046534
    %v2749 = vsel %vm2748, %v2747, %v2745
    %s2750 = scalar_lea.vmem [#allocation0], 3001
    %v2751 = vld [vmem:[%s2750] sm:$0x80]
    %vm2752 = vcmask 1047559
    %v2753 = vsel %vm2752, %v2751, %v2749
    %vm2754 = vcmask 56320
    %s2755 = scalar_lea.vmem %s1, 40
    %2756 = vst.msk [vmem:[%s2755] sm:$0xff] %vm2754, %v2753
    %s2757 = scalar_lea.vmem [#allocation0], 3072
    %v2758 = vld [vmem:[%s2757] sm:$0x1]
    %s2759 = scalar_lea.vmem [#allocation0], 3135
    %v2760 = vld [vmem:[%s2759] sm:$0x2]
    %vm2761 = vcmask 1041409
    %v2762 = vsel %vm2761, %v2760, %v2758
    %s2763 = scalar_lea.vmem [#allocation0], 3198
    %v2764 = vld [vmem:[%s2763] sm:$0x4]
    %vm2765 = vcmask 1042434
    %v2766 = vsel %vm2765, %v2764, %v2762
    %s2767 = scalar_lea.vmem [#allocation0], 3261
    %v2768 = vld [vmem:[%s2767] sm:$0x8]
    %vm2769 = vcmask 1043459
    %v2770 = vsel %vm2769, %v2768, %v2766
    %s2771 = scalar_lea.vmem [#allocation0], 3324
    %v2772 = vld [vmem:[%s2771] sm:$0x10]
    %vm2773 = vcmask 1044484
    %v2774 = vsel %vm2773, %v2772, %v2770
    %s2775 = scalar_lea.vmem [#allocation0], 3387
    %v2776 = vld [vmem:[%s2775] sm:$0x20]
    %vm2777 = vcmask 1045509
    %v2778 = vsel %vm2777, %v2776, %v2774
    %s2779 = scalar_lea.vmem [#allocation0], 3450
    %v2780 = vld [vmem:[%s2779] sm:$0x40]
    %vm2781 = vcmask 1046534
    %v2782 = vsel %vm2781, %v2780, %v2778
    %s2783 = scalar_lea.vmem [#allocation0], 3513
    %v2784 = vld [vmem:[%s2783] sm:$0x80]
    %vm2785 = vcmask 1047559
    %v2786 = vsel %vm2785, %v2784, %v2782
    %vm2787 = vcmask 56320
    %s2788 = scalar_lea.vmem %s1, 48
    %2789 = vst.msk [vmem:[%s2788] sm:$0xff] %vm2787, %v2786
    %s2790 = scalar_lea.vmem [#allocation0], 3584
    %v2791 = vld [vmem:[%s2790] sm:$0x1]
    %s2792 = scalar_lea.vmem [#allocation0], 3647
    %v2793 = vld [vmem:[%s2792] sm:$0x2]
    %vm2794 = vcmask 1041409
    %v2795 = vsel %vm2794, %v2793, %v2791
    %s2796 = scalar_lea.vmem [#allocation0], 3710
    %v2797 = vld [vmem:[%s2796] sm:$0x4]
    %vm2798 = vcmask 1042434
    %v2799 = vsel %vm2798, %v2797, %v2795
    %s2800 = scalar_lea.vmem [#allocation0], 3773
    %v2801 = vld [vmem:[%s2800] sm:$0x8]
    %vm2802 = vcmask 1043459
    %v2803 = vsel %vm2802, %v2801, %v2799
    %s2804 = scalar_lea.vmem [#allocation0], 3836
    %v2805 = vld [vmem:[%s2804] sm:$0x10]
    %vm2806 = vcmask 1044484
    %v2807 = vsel %vm2806, %v2805, %v2803
    %s2808 = scalar_lea.vmem [#allocation0], 3899
    %v2809 = vld [vmem:[%s2808] sm:$0x20]
    %vm2810 = vcmask 1045509
    %v2811 = vsel %vm2810, %v2809, %v2807
    %s2812 = scalar_lea.vmem [#allocation0], 3962
    %v2813 = vld [vmem:[%s2812] sm:$0x40]
    %vm2814 = vcmask 1046534
    %v2815 = vsel %vm2814, %v2813, %v2811
    %s2816 = scalar_lea.vmem [#allocation0], 4025
    %v2817 = vld [vmem:[%s2816] sm:$0x80]
    %vm2818 = vcmask 1047559
    %v2819 = vsel %vm2818, %v2817, %v2815
    %vm2820 = vcmask 56320
    %s2821 = scalar_lea.vmem %s1, 56
    %2822 = vst.msk [vmem:[%s2821] sm:$0xff] %vm2820, %v2819
    %s2823 = scalar_lea.vmem [#allocation0], 57
    %v2824 = vld [vmem:[%s2823] sm:$0x1]
    %s2825 = scalar_lea.vmem [#allocation0], 120
    %v2826 = vld [vmem:[%s2825] sm:$0x2]
    %vm2827 = vcmask 1041409
    %v2828 = vsel %vm2827, %v2826, %v2824
    %s2829 = scalar_lea.vmem [#allocation0], 183
    %v2830 = vld [vmem:[%s2829] sm:$0x4]
    %vm2831 = vcmask 1042434
    %v2832 = vsel %vm2831, %v2830, %v2828
    %s2833 = scalar_lea.vmem [#allocation0], 246
    %v2834 = vld [vmem:[%s2833] sm:$0x8]
    %vm2835 = vcmask 1043459
    %v2836 = vsel %vm2835, %v2834, %v2832
    %s2837 = scalar_lea.vmem [#allocation0], 309
    %v2838 = vld [vmem:[%s2837] sm:$0x10]
    %vm2839 = vcmask 1044484
    %v2840 = vsel %vm2839, %v2838, %v2836
    %s2841 = scalar_lea.vmem [#allocation0], 372
    %v2842 = vld [vmem:[%s2841] sm:$0x20]
    %vm2843 = vcmask 1045509
    %v2844 = vsel %vm2843, %v2842, %v2840
    %s2845 = scalar_lea.vmem [#allocation0], 435
    %v2846 = vld [vmem:[%s2845] sm:$0x40]
    %vm2847 = vcmask 1046534
    %v2848 = vsel %vm2847, %v2846, %v2844
    %s2849 = scalar_lea.vmem [#allocation0], 498
    %v2850 = vld [vmem:[%s2849] sm:$0x80]
    %vm2851 = vcmask 1047559
    %v2852 = vsel %vm2851, %v2850, %v2848
    %2853 = vrot.lane.b32.xlu0 %v2852, 105
    %v2854 = vpop.permute.xlu0 %2853
    %vm2855 = vcmask 917320
    %2856 = vst.msk [vmem:[%s1] sm:$0xff] %vm2855, %v2854
    %s2857 = scalar_lea.vmem [#allocation0], 2105
    %v2858 = vld [vmem:[%s2857] sm:$0x1]
    %s2859 = scalar_lea.vmem [#allocation0], 2168
    %v2860 = vld [vmem:[%s2859] sm:$0x2]
    %vm2861 = vcmask 1041409
    %v2862 = vsel %vm2861, %v2860, %v2858
    %s2863 = scalar_lea.vmem [#allocation0], 2231
    %v2864 = vld [vmem:[%s2863] sm:$0x4]
    %vm2865 = vcmask 1042434
    %v2866 = vsel %vm2865, %v2864, %v2862
    %s2867 = scalar_lea.vmem [#allocation0], 2294
    %v2868 = vld [vmem:[%s2867] sm:$0x8]
    %vm2869 = vcmask 1043459
    %v2870 = vsel %vm2869, %v2868, %v2866
    %s2871 = scalar_lea.vmem [#allocation0], 2357
    %v2872 = vld [vmem:[%s2871] sm:$0x10]
    %vm2873 = vcmask 1044484
    %v2874 = vsel %vm2873, %v2872, %v2870
    %s2875 = scalar_lea.vmem [#allocation0], 2420
    %v2876 = vld [vmem:[%s2875] sm:$0x20]
    %vm2877 = vcmask 1045509
    %v2878 = vsel %vm2877, %v2876, %v2874
    %s2879 = scalar_lea.vmem [#allocation0], 2483
    %v2880 = vld [vmem:[%s2879] sm:$0x40]
    %vm2881 = vcmask 1046534
    %v2882 = vsel %vm2881, %v2880, %v2878
    %s2883 = scalar_lea.vmem [#allocation0], 2546
    %v2884 = vld [vmem:[%s2883] sm:$0x80]
    %vm2885 = vcmask 1047559
    %v2886 = vsel %vm2885, %v2884, %v2882
    %2887 = vrot.lane.b32.xlu0 %v2886, 105
    %v2888 = vpop.permute.xlu0 %2887
    %vm2889 = vcmask 917320
    %s2890 = scalar_lea.vmem %s1, 32
    %2891 = vst.msk [vmem:[%s2890] sm:$0xff] %vm2889, %v2888
    %s2892 = scalar_lea.vmem [#allocation0], 569
    %v2893 = vld [vmem:[%s2892] sm:$0x1]
    %s2894 = scalar_lea.vmem [#allocation0], 632
    %v2895 = vld [vmem:[%s2894] sm:$0x2]
    %vm2896 = vcmask 1041409
    %v2897 = vsel %vm2896, %v2895, %v2893
    %s2898 = scalar_lea.vmem [#allocation0], 695
    %v2899 = vld [vmem:[%s2898] sm:$0x4]
    %vm2900 = vcmask 1042434
    %v2901 = vsel %vm2900, %v2899, %v2897
    %s2902 = scalar_lea.vmem [#allocation0], 758
    %v2903 = vld [vmem:[%s2902] sm:$0x8]
    %vm2904 = vcmask 1043459
    %v2905 = vsel %vm2904, %v2903, %v2901
    %s2906 = scalar_lea.vmem [#allocation0], 821
    %v2907 = vld [vmem:[%s2906] sm:$0x10]
    %vm2908 = vcmask 1044484
    %v2909 = vsel %vm2908, %v2907, %v2905
    %s2910 = scalar_lea.vmem [#allocation0], 884
    %v2911 = vld [vmem:[%s2910] sm:$0x20]
    %vm2912 = vcmask 1045509
    %v2913 = vsel %vm2912, %v2911, %v2909
    %s2914 = scalar_lea.vmem [#allocation0], 947
    %v2915 = vld [vmem:[%s2914] sm:$0x40]
    %vm2916 = vcmask 1046534
    %v2917 = vsel %vm2916, %v2915, %v2913
    %s2918 = scalar_lea.vmem [#allocation0], 1010
    %v2919 = vld [vmem:[%s2918] sm:$0x80]
    %vm2920 = vcmask 1047559
    %v2921 = vsel %vm2920, %v2919, %v2917
    %2922 = vrot.lane.b32.xlu0 %v2921, 105
    %v2923 = vpop.permute.xlu0 %2922
    %vm2924 = vcmask 917320
    %s2925 = scalar_lea.vmem %s1, 8
    %2926 = vst.msk [vmem:[%s2925] sm:$0xff] %vm2924, %v2923
    %s2927 = scalar_lea.vmem [#allocation0], 2617
    %v2928 = vld [vmem:[%s2927] sm:$0x1]
    %s2929 = scalar_lea.vmem [#allocation0], 2680
    %v2930 = vld [vmem:[%s2929] sm:$0x2]
    %vm2931 = vcmask 1041409
    %v2932 = vsel %vm2931, %v2930, %v2928
    %s2933 = scalar_lea.vmem [#allocation0], 2743
    %v2934 = vld [vmem:[%s2933] sm:$0x4]
    %vm2935 = vcmask 1042434
    %v2936 = vsel %vm2935, %v2934, %v2932
    %s2937 = scalar_lea.vmem [#allocation0], 2806
    %v2938 = vld [vmem:[%s2937] sm:$0x8]
    %vm2939 = vcmask 1043459
    %v2940 = vsel %vm2939, %v2938, %v2936
    %s2941 = scalar_lea.vmem [#allocation0], 2869
    %v2942 = vld [vmem:[%s2941] sm:$0x10]
    %vm2943 = vcmask 1044484
    %v2944 = vsel %vm2943, %v2942, %v2940
    %s2945 = scalar_lea.vmem [#allocation0], 2932
    %v2946 = vld [vmem:[%s2945] sm:$0x20]
    %vm2947 = vcmask 1045509
    %v2948 = vsel %vm2947, %v2946, %v2944
    %s2949 = scalar_lea.vmem [#allocation0], 2995
    %v2950 = vld [vmem:[%s2949] sm:$0x40]
    %vm2951 = vcmask 1046534
    %v2952 = vsel %vm2951, %v2950, %v2948
    %s2953 = scalar_lea.vmem [#allocation0], 3058
    %v2954 = vld [vmem:[%s2953] sm:$0x80]
    %vm2955 = vcmask 1047559
    %v2956 = vsel %vm2955, %v2954, %v2952
    %2957 = vrot.lane.b32.xlu0 %v2956, 105
    %v2958 = vpop.permute.xlu0 %2957
    %vm2959 = vcmask 917320
    %s2960 = scalar_lea.vmem %s1, 40
    %2961 = vst.msk [vmem:[%s2960] sm:$0xff] %vm2959, %v2958
    %s2962 = scalar_lea.vmem [#allocation0], 1081
    %v2963 = vld [vmem:[%s2962] sm:$0x1]
    %s2964 = scalar_lea.vmem [#allocation0], 1144
    %v2965 = vld [vmem:[%s2964] sm:$0x2]
    %vm2966 = vcmask 1041409
    %v2967 = vsel %vm2966, %v2965, %v2963
    %s2968 = scalar_lea.vmem [#allocation0], 1207
    %v2969 = vld [vmem:[%s2968] sm:$0x4]
    %vm2970 = vcmask 1042434
    %v2971 = vsel %vm2970, %v2969, %v2967
    %s2972 = scalar_lea.vmem [#allocation0], 1270
    %v2973 = vld [vmem:[%s2972] sm:$0x8]
    %vm2974 = vcmask 1043459
    %v2975 = vsel %vm2974, %v2973, %v2971
    %s2976 = scalar_lea.vmem [#allocation0], 1333
    %v2977 = vld [vmem:[%s2976] sm:$0x10]
    %vm2978 = vcmask 1044484
    %v2979 = vsel %vm2978, %v2977, %v2975
    %s2980 = scalar_lea.vmem [#allocation0], 1396
    %v2981 = vld [vmem:[%s2980] sm:$0x20]
    %vm2982 = vcmask 1045509
    %v2983 = vsel %vm2982, %v2981, %v2979
    %s2984 = scalar_lea.vmem [#allocation0], 1459
    %v2985 = vld [vmem:[%s2984] sm:$0x40]
    %vm2986 = vcmask 1046534
    %v2987 = vsel %vm2986, %v2985, %v2983
    %s2988 = scalar_lea.vmem [#allocation0], 1522
    %v2989 = vld [vmem:[%s2988] sm:$0x80]
    %vm2990 = vcmask 1047559
    %v2991 = vsel %vm2990, %v2989, %v2987
    %2992 = vrot.lane.b32.xlu0 %v2991, 105
    %v2993 = vpop.permute.xlu0 %2992
    %vm2994 = vcmask 917320
    %s2995 = scalar_lea.vmem %s1, 16
    %2996 = vst.msk [vmem:[%s2995] sm:$0xff] %vm2994, %v2993
    %s2997 = scalar_lea.vmem [#allocation0], 3129
    %v2998 = vld [vmem:[%s2997] sm:$0x1]
    %s2999 = scalar_lea.vmem [#allocation0], 3192
    %v3000 = vld [vmem:[%s2999] sm:$0x2]
    %vm3001 = vcmask 1041409
    %v3002 = vsel %vm3001, %v3000, %v2998
    %s3003 = scalar_lea.vmem [#allocation0], 3255
    %v3004 = vld [vmem:[%s3003] sm:$0x4]
    %vm3005 = vcmask 1042434
    %v3006 = vsel %vm3005, %v3004, %v3002
    %s3007 = scalar_lea.vmem [#allocation0], 3318
    %v3008 = vld [vmem:[%s3007] sm:$0x8]
    %vm3009 = vcmask 1043459
    %v3010 = vsel %vm3009, %v3008, %v3006
    %s3011 = scalar_lea.vmem [#allocation0], 3381
    %v3012 = vld [vmem:[%s3011] sm:$0x10]
    %vm3013 = vcmask 1044484
    %v3014 = vsel %vm3013, %v3012, %v3010
    %s3015 = scalar_lea.vmem [#allocation0], 3444
    %v3016 = vld [vmem:[%s3015] sm:$0x20]
    %vm3017 = vcmask 1045509
    %v3018 = vsel %vm3017, %v3016, %v3014
    %s3019 = scalar_lea.vmem [#allocation0], 3507
    %v3020 = vld [vmem:[%s3019] sm:$0x40]
    %vm3021 = vcmask 1046534
    %v3022 = vsel %vm3021, %v3020, %v3018
    %s3023 = scalar_lea.vmem [#allocation0], 3570
    %v3024 = vld [vmem:[%s3023] sm:$0x80]
    %vm3025 = vcmask 1047559
    %v3026 = vsel %vm3025, %v3024, %v3022
    %3027 = vrot.lane.b32.xlu0 %v3026, 105
    %v3028 = vpop.permute.xlu0 %3027
    %vm3029 = vcmask 917320
    %s3030 = scalar_lea.vmem %s1, 48
    %3031 = vst.msk [vmem:[%s3030] sm:$0xff] %vm3029, %v3028
    %s3032 = scalar_lea.vmem [#allocation0], 1593
    %v3033 = vld [vmem:[%s3032] sm:$0x1]
    %s3034 = scalar_lea.vmem [#allocation0], 1656
    %v3035 = vld [vmem:[%s3034] sm:$0x2]
    %vm3036 = vcmask 1041409
    %v3037 = vsel %vm3036, %v3035, %v3033
    %s3038 = scalar_lea.vmem [#allocation0], 1719
    %v3039 = vld [vmem:[%s3038] sm:$0x4]
    %vm3040 = vcmask 1042434
    %v3041 = vsel %vm3040, %v3039, %v3037
    %s3042 = scalar_lea.vmem [#allocation0], 1782
    %v3043 = vld [vmem:[%s3042] sm:$0x8]
    %vm3044 = vcmask 1043459
    %v3045 = vsel %vm3044, %v3043, %v3041
    %s3046 = scalar_lea.vmem [#allocation0], 1845
    %v3047 = vld [vmem:[%s3046] sm:$0x10]
    %vm3048 = vcmask 1044484
    %v3049 = vsel %vm3048, %v3047, %v3045
    %s3050 = scalar_lea.vmem [#allocation0], 1908
    %v3051 = vld [vmem:[%s3050] sm:$0x20]
    %vm3052 = vcmask 1045509
    %v3053 = vsel %vm3052, %v3051, %v3049
    %s3054 = scalar_lea.vmem [#allocation0], 1971
    %v3055 = vld [vmem:[%s3054] sm:$0x40]
    %vm3056 = vcmask 1046534
    %v3057 = vsel %vm3056, %v3055, %v3053
    %s3058 = scalar_lea.vmem [#allocation0], 2034
    %v3059 = vld [vmem:[%s3058] sm:$0x80]
    %vm3060 = vcmask 1047559
    %v3061 = vsel %vm3060, %v3059, %v3057
    %3062 = vrot.lane.b32.xlu0 %v3061, 105
    %v3063 = vpop.permute.xlu0 %3062
    %vm3064 = vcmask 917320
    %s3065 = scalar_lea.vmem %s1, 24
    %3066 = vst.msk [vmem:[%s3065] sm:$0xff] %vm3064, %v3063
    %s3067 = scalar_lea.vmem [#allocation0], 3641
    %v3068 = vld [vmem:[%s3067] sm:$0x1]
    %s3069 = scalar_lea.vmem [#allocation0], 3704
    %v3070 = vld [vmem:[%s3069] sm:$0x2]
    %vm3071 = vcmask 1041409
    %v3072 = vsel %vm3071, %v3070, %v3068
    %s3073 = scalar_lea.vmem [#allocation0], 3767
    %v3074 = vld [vmem:[%s3073] sm:$0x4]
    %vm3075 = vcmask 1042434
    %v3076 = vsel %vm3075, %v3074, %v3072
    %s3077 = scalar_lea.vmem [#allocation0], 3830
    %v3078 = vld [vmem:[%s3077] sm:$0x8]
    %vm3079 = vcmask 1043459
    %v3080 = vsel %vm3079, %v3078, %v3076
    %s3081 = scalar_lea.vmem [#allocation0], 3893
    %v3082 = vld [vmem:[%s3081] sm:$0x10]
    %vm3083 = vcmask 1044484
    %v3084 = vsel %vm3083, %v3082, %v3080
    %s3085 = scalar_lea.vmem [#allocation0], 3956
    %v3086 = vld [vmem:[%s3085] sm:$0x20]
    %vm3087 = vcmask 1045509
    %v3088 = vsel %vm3087, %v3086, %v3084
    %s3089 = scalar_lea.vmem [#allocation0], 4019
    %v3090 = vld [vmem:[%s3089] sm:$0x40]
    %vm3091 = vcmask 1046534
    %v3092 = vsel %vm3091, %v3090, %v3088
    %s3093 = scalar_lea.vmem [#allocation0], 4082
    %v3094 = vld [vmem:[%s3093] sm:$0x80]
    %vm3095 = vcmask 1047559
    %v3096 = vsel %vm3095, %v3094, %v3092
    %3097 = vrot.lane.b32.xlu0 %v3096, 105
    %v3098 = vpop.permute.xlu0 %3097
    %vm3099 = vcmask 917320
    %s3100 = scalar_lea.vmem %s1, 56
    %3101 = vst.msk [vmem:[%s3100] sm:$0xff] %vm3099, %v3098
    %s3102 = scalar_lea.vmem [#allocation0], 56
    %v3103 = vld [vmem:[%s3102] sm:$0x1]
    %s3104 = scalar_lea.vmem [#allocation0], 119
    %v3105 = vld [vmem:[%s3104] sm:$0x2]
    %vm3106 = vcmask 1041409
    %v3107 = vsel %vm3106, %v3105, %v3103
    %s3108 = scalar_lea.vmem [#allocation0], 182
    %v3109 = vld [vmem:[%s3108] sm:$0x4]
    %vm3110 = vcmask 1042434
    %v3111 = vsel %vm3110, %v3109, %v3107
    %s3112 = scalar_lea.vmem [#allocation0], 245
    %v3113 = vld [vmem:[%s3112] sm:$0x8]
    %vm3114 = vcmask 1043459
    %v3115 = vsel %vm3114, %v3113, %v3111
    %s3116 = scalar_lea.vmem [#allocation0], 308
    %v3117 = vld [vmem:[%s3116] sm:$0x10]
    %vm3118 = vcmask 1044484
    %v3119 = vsel %vm3118, %v3117, %v3115
    %s3120 = scalar_lea.vmem [#allocation0], 371
    %v3121 = vld [vmem:[%s3120] sm:$0x20]
    %vm3122 = vcmask 1045509
    %v3123 = vsel %vm3122, %v3121, %v3119
    %s3124 = scalar_lea.vmem [#allocation0], 434
    %v3125 = vld [vmem:[%s3124] sm:$0x40]
    %vm3126 = vcmask 1046534
    %v3127 = vsel %vm3126, %v3125, %v3123
    %s3128 = scalar_lea.vmem [#allocation0], 497
    %v3129 = vld [vmem:[%s3128] sm:$0x80]
    %vm3130 = vcmask 1047559
    %v3131 = vsel %vm3130, %v3129, %v3127
    %3132 = vrot.lane.b32.xlu0 %v3131, 98
    %v3133 = vpop.permute.xlu0 %3132
    %vm3134 = vcmask 859920
    %3135 = vst.msk [vmem:[%s1] sm:$0xff] %vm3134, %v3133
    %s3136 = scalar_lea.vmem [#allocation0], 2104
    %v3137 = vld [vmem:[%s3136] sm:$0x1]
    %s3138 = scalar_lea.vmem [#allocation0], 2167
    %v3139 = vld [vmem:[%s3138] sm:$0x2]
    %vm3140 = vcmask 1041409
    %v3141 = vsel %vm3140, %v3139, %v3137
    %s3142 = scalar_lea.vmem [#allocation0], 2230
    %v3143 = vld [vmem:[%s3142] sm:$0x4]
    %vm3144 = vcmask 1042434
    %v3145 = vsel %vm3144, %v3143, %v3141
    %s3146 = scalar_lea.vmem [#allocation0], 2293
    %v3147 = vld [vmem:[%s3146] sm:$0x8]
    %vm3148 = vcmask 1043459
    %v3149 = vsel %vm3148, %v3147, %v3145
    %s3150 = scalar_lea.vmem [#allocation0], 2356
    %v3151 = vld [vmem:[%s3150] sm:$0x10]
    %vm3152 = vcmask 1044484
    %v3153 = vsel %vm3152, %v3151, %v3149
    %s3154 = scalar_lea.vmem [#allocation0], 2419
    %v3155 = vld [vmem:[%s3154] sm:$0x20]
    %vm3156 = vcmask 1045509
    %v3157 = vsel %vm3156, %v3155, %v3153
    %s3158 = scalar_lea.vmem [#allocation0], 2482
    %v3159 = vld [vmem:[%s3158] sm:$0x40]
    %vm3160 = vcmask 1046534
    %v3161 = vsel %vm3160, %v3159, %v3157
    %s3162 = scalar_lea.vmem [#allocation0], 2545
    %v3163 = vld [vmem:[%s3162] sm:$0x80]
    %vm3164 = vcmask 1047559
    %v3165 = vsel %vm3164, %v3163, %v3161
    %3166 = vrot.lane.b32.xlu0 %v3165, 98
    %v3167 = vpop.permute.xlu0 %3166
    %vm3168 = vcmask 859920
    %s3169 = scalar_lea.vmem %s1, 32
    %3170 = vst.msk [vmem:[%s3169] sm:$0xff] %vm3168, %v3167
    %s3171 = scalar_lea.vmem [#allocation0], 568
    %v3172 = vld [vmem:[%s3171] sm:$0x1]
    %s3173 = scalar_lea.vmem [#allocation0], 631
    %v3174 = vld [vmem:[%s3173] sm:$0x2]
    %vm3175 = vcmask 1041409
    %v3176 = vsel %vm3175, %v3174, %v3172
    %s3177 = scalar_lea.vmem [#allocation0], 694
    %v3178 = vld [vmem:[%s3177] sm:$0x4]
    %vm3179 = vcmask 1042434
    %v3180 = vsel %vm3179, %v3178, %v3176
    %s3181 = scalar_lea.vmem [#allocation0], 757
    %v3182 = vld [vmem:[%s3181] sm:$0x8]
    %vm3183 = vcmask 1043459
    %v3184 = vsel %vm3183, %v3182, %v3180
    %s3185 = scalar_lea.vmem [#allocation0], 820
    %v3186 = vld [vmem:[%s3185] sm:$0x10]
    %vm3187 = vcmask 1044484
    %v3188 = vsel %vm3187, %v3186, %v3184
    %s3189 = scalar_lea.vmem [#allocation0], 883
    %v3190 = vld [vmem:[%s3189] sm:$0x20]
    %vm3191 = vcmask 1045509
    %v3192 = vsel %vm3191, %v3190, %v3188
    %s3193 = scalar_lea.vmem [#allocation0], 946
    %v3194 = vld [vmem:[%s3193] sm:$0x40]
    %vm3195 = vcmask 1046534
    %v3196 = vsel %vm3195, %v3194, %v3192
    %s3197 = scalar_lea.vmem [#allocation0], 1009
    %v3198 = vld [vmem:[%s3197] sm:$0x80]
    %vm3199 = vcmask 1047559
    %v3200 = vsel %vm3199, %v3198, %v3196
    %3201 = vrot.lane.b32.xlu0 %v3200, 98
    %v3202 = vpop.permute.xlu0 %3201
    %vm3203 = vcmask 859920
    %s3204 = scalar_lea.vmem %s1, 8
    %3205 = vst.msk [vmem:[%s3204] sm:$0xff] %vm3203, %v3202
    %s3206 = scalar_lea.vmem [#allocation0], 2616
    %v3207 = vld [vmem:[%s3206] sm:$0x1]
    %s3208 = scalar_lea.vmem [#allocation0], 2679
    %v3209 = vld [vmem:[%s3208] sm:$0x2]
    %vm3210 = vcmask 1041409
    %v3211 = vsel %vm3210, %v3209, %v3207
    %s3212 = scalar_lea.vmem [#allocation0], 2742
    %v3213 = vld [vmem:[%s3212] sm:$0x4]
    %vm3214 = vcmask 1042434
    %v3215 = vsel %vm3214, %v3213, %v3211
    %s3216 = scalar_lea.vmem [#allocation0], 2805
    %v3217 = vld [vmem:[%s3216] sm:$0x8]
    %vm3218 = vcmask 1043459
    %v3219 = vsel %vm3218, %v3217, %v3215
    %s3220 = scalar_lea.vmem [#allocation0], 2868
    %v3221 = vld [vmem:[%s3220] sm:$0x10]
    %vm3222 = vcmask 1044484
    %v3223 = vsel %vm3222, %v3221, %v3219
    %s3224 = scalar_lea.vmem [#allocation0], 2931
    %v3225 = vld [vmem:[%s3224] sm:$0x20]
    %vm3226 = vcmask 1045509
    %v3227 = vsel %vm3226, %v3225, %v3223
    %s3228 = scalar_lea.vmem [#allocation0], 2994
    %v3229 = vld [vmem:[%s3228] sm:$0x40]
    %vm3230 = vcmask 1046534
    %v3231 = vsel %vm3230, %v3229, %v3227
    %s3232 = scalar_lea.vmem [#allocation0], 3057
    %v3233 = vld [vmem:[%s3232] sm:$0x80]
    %vm3234 = vcmask 1047559
    %v3235 = vsel %vm3234, %v3233, %v3231
    %3236 = vrot.lane.b32.xlu0 %v3235, 98
    %v3237 = vpop.permute.xlu0 %3236
    %vm3238 = vcmask 859920
    %s3239 = scalar_lea.vmem %s1, 40
    %3240 = vst.msk [vmem:[%s3239] sm:$0xff] %vm3238, %v3237
    %s3241 = scalar_lea.vmem [#allocation0], 1080
    %v3242 = vld [vmem:[%s3241] sm:$0x1]
    %s3243 = scalar_lea.vmem [#allocation0], 1143
    %v3244 = vld [vmem:[%s3243] sm:$0x2]
    %vm3245 = vcmask 1041409
    %v3246 = vsel %vm3245, %v3244, %v3242
    %s3247 = scalar_lea.vmem [#allocation0], 1206
    %v3248 = vld [vmem:[%s3247] sm:$0x4]
    %vm3249 = vcmask 1042434
    %v3250 = vsel %vm3249, %v3248, %v3246
    %s3251 = scalar_lea.vmem [#allocation0], 1269
    %v3252 = vld [vmem:[%s3251] sm:$0x8]
    %vm3253 = vcmask 1043459
    %v3254 = vsel %vm3253, %v3252, %v3250
    %s3255 = scalar_lea.vmem [#allocation0], 1332
    %v3256 = vld [vmem:[%s3255] sm:$0x10]
    %vm3257 = vcmask 1044484
    %v3258 = vsel %vm3257, %v3256, %v3254
    %s3259 = scalar_lea.vmem [#allocation0], 1395
    %v3260 = vld [vmem:[%s3259] sm:$0x20]
    %vm3261 = vcmask 1045509
    %v3262 = vsel %vm3261, %v3260, %v3258
    %s3263 = scalar_lea.vmem [#allocation0], 1458
    %v3264 = vld [vmem:[%s3263] sm:$0x40]
    %vm3265 = vcmask 1046534
    %v3266 = vsel %vm3265, %v3264, %v3262
    %s3267 = scalar_lea.vmem [#allocation0], 1521
    %v3268 = vld [vmem:[%s3267] sm:$0x80]
    %vm3269 = vcmask 1047559
    %v3270 = vsel %vm3269, %v3268, %v3266
    %3271 = vrot.lane.b32.xlu0 %v3270, 98
    %v3272 = vpop.permute.xlu0 %3271
    %vm3273 = vcmask 859920
    %s3274 = scalar_lea.vmem %s1, 16
    %3275 = vst.msk [vmem:[%s3274] sm:$0xff] %vm3273, %v3272
    %s3276 = scalar_lea.vmem [#allocation0], 3128
    %v3277 = vld [vmem:[%s3276] sm:$0x1]
    %s3278 = scalar_lea.vmem [#allocation0], 3191
    %v3279 = vld [vmem:[%s3278] sm:$0x2]
    %vm3280 = vcmask 1041409
    %v3281 = vsel %vm3280, %v3279, %v3277
    %s3282 = scalar_lea.vmem [#allocation0], 3254
    %v3283 = vld [vmem:[%s3282] sm:$0x4]
    %vm3284 = vcmask 1042434
    %v3285 = vsel %vm3284, %v3283, %v3281
    %s3286 = scalar_lea.vmem [#allocation0], 3317
    %v3287 = vld [vmem:[%s3286] sm:$0x8]
    %vm3288 = vcmask 1043459
    %v3289 = vsel %vm3288, %v3287, %v3285
    %s3290 = scalar_lea.vmem [#allocation0], 3380
    %v3291 = vld [vmem:[%s3290] sm:$0x10]
    %vm3292 = vcmask 1044484
    %v3293 = vsel %vm3292, %v3291, %v3289
    %s3294 = scalar_lea.vmem [#allocation0], 3443
    %v3295 = vld [vmem:[%s3294] sm:$0x20]
    %vm3296 = vcmask 1045509
    %v3297 = vsel %vm3296, %v3295, %v3293
    %s3298 = scalar_lea.vmem [#allocation0], 3506
    %v3299 = vld [vmem:[%s3298] sm:$0x40]
    %vm3300 = vcmask 1046534
    %v3301 = vsel %vm3300, %v3299, %v3297
    %s3302 = scalar_lea.vmem [#allocation0], 3569
    %v3303 = vld [vmem:[%s3302] sm:$0x80]
    %vm3304 = vcmask 1047559
    %v3305 = vsel %vm3304, %v3303, %v3301
    %3306 = vrot.lane.b32.xlu0 %v3305, 98
    %v3307 = vpop.permute.xlu0 %3306
    %vm3308 = vcmask 859920
    %s3309 = scalar_lea.vmem %s1, 48
    %3310 = vst.msk [vmem:[%s3309] sm:$0xff] %vm3308, %v3307
    %s3311 = scalar_lea.vmem [#allocation0], 1592
    %v3312 = vld [vmem:[%s3311] sm:$0x1]
    %s3313 = scalar_lea.vmem [#allocation0], 1655
    %v3314 = vld [vmem:[%s3313] sm:$0x2]
    %vm3315 = vcmask 1041409
    %v3316 = vsel %vm3315, %v3314, %v3312
    %s3317 = scalar_lea.vmem [#allocation0], 1718
    %v3318 = vld [vmem:[%s3317] sm:$0x4]
    %vm3319 = vcmask 1042434
    %v3320 = vsel %vm3319, %v3318, %v3316
    %s3321 = scalar_lea.vmem [#allocation0], 1781
    %v3322 = vld [vmem:[%s3321] sm:$0x8]
    %vm3323 = vcmask 1043459
    %v3324 = vsel %vm3323, %v3322, %v3320
    %s3325 = scalar_lea.vmem [#allocation0], 1844
    %v3326 = vld [vmem:[%s3325] sm:$0x10]
    %vm3327 = vcmask 1044484
    %v3328 = vsel %vm3327, %v3326, %v3324
    %s3329 = scalar_lea.vmem [#allocation0], 1907
    %v3330 = vld [vmem:[%s3329] sm:$0x20]
    %vm3331 = vcmask 1045509
    %v3332 = vsel %vm3331, %v3330, %v3328
    %s3333 = scalar_lea.vmem [#allocation0], 1970
    %v3334 = vld [vmem:[%s3333] sm:$0x40]
    %vm3335 = vcmask 1046534
    %v3336 = vsel %vm3335, %v3334, %v3332
    %s3337 = scalar_lea.vmem [#allocation0], 2033
    %v3338 = vld [vmem:[%s3337] sm:$0x80]
    %vm3339 = vcmask 1047559
    %v3340 = vsel %vm3339, %v3338, %v3336
    %3341 = vrot.lane.b32.xlu0 %v3340, 98
    %v3342 = vpop.permute.xlu0 %3341
    %vm3343 = vcmask 859920
    %s3344 = scalar_lea.vmem %s1, 24
    %3345 = vst.msk [vmem:[%s3344] sm:$0xff] %vm3343, %v3342
    %s3346 = scalar_lea.vmem [#allocation0], 3640
    %v3347 = vld [vmem:[%s3346] sm:$0x1]
    %s3348 = scalar_lea.vmem [#allocation0], 3703
    %v3349 = vld [vmem:[%s3348] sm:$0x2]
    %vm3350 = vcmask 1041409
    %v3351 = vsel %vm3350, %v3349, %v3347
    %s3352 = scalar_lea.vmem [#allocation0], 3766
    %v3353 = vld [vmem:[%s3352] sm:$0x4]
    %vm3354 = vcmask 1042434
    %v3355 = vsel %vm3354, %v3353, %v3351
    %s3356 = scalar_lea.vmem [#allocation0], 3829
    %v3357 = vld [vmem:[%s3356] sm:$0x8]
    %vm3358 = vcmask 1043459
    %v3359 = vsel %vm3358, %v3357, %v3355
    %s3360 = scalar_lea.vmem [#allocation0], 3892
    %v3361 = vld [vmem:[%s3360] sm:$0x10]
    %vm3362 = vcmask 1044484
    %v3363 = vsel %vm3362, %v3361, %v3359
    %s3364 = scalar_lea.vmem [#allocation0], 3955
    %v3365 = vld [vmem:[%s3364] sm:$0x20]
    %vm3366 = vcmask 1045509
    %v3367 = vsel %vm3366, %v3365, %v3363
    %s3368 = scalar_lea.vmem [#allocation0], 4018
    %v3369 = vld [vmem:[%s3368] sm:$0x40]
    %vm3370 = vcmask 1046534
    %v3371 = vsel %vm3370, %v3369, %v3367
    %s3372 = scalar_lea.vmem [#allocation0], 4081
    %v3373 = vld [vmem:[%s3372] sm:$0x80]
    %vm3374 = vcmask 1047559
    %v3375 = vsel %vm3374, %v3373, %v3371
    %3376 = vrot.lane.b32.xlu0 %v3375, 98
    %v3377 = vpop.permute.xlu0 %3376
    %vm3378 = vcmask 859920
    %s3379 = scalar_lea.vmem %s1, 56
    %3380 = vst.msk [vmem:[%s3379] sm:$0xff] %vm3378, %v3377
    %s3381 = scalar_lea.vmem [#allocation0], 49
    %v3382 = vld [vmem:[%s3381] sm:$0x1]
    %s3383 = scalar_lea.vmem [#allocation0], 112
    %v3384 = vld [vmem:[%s3383] sm:$0x2]
    %vm3385 = vcmask 1041409
    %v3386 = vsel %vm3385, %v3384, %v3382
    %s3387 = scalar_lea.vmem [#allocation0], 175
    %v3388 = vld [vmem:[%s3387] sm:$0x4]
    %vm3389 = vcmask 1042434
    %v3390 = vsel %vm3389, %v3388, %v3386
    %s3391 = scalar_lea.vmem [#allocation0], 238
    %v3392 = vld [vmem:[%s3391] sm:$0x8]
    %vm3393 = vcmask 1043459
    %v3394 = vsel %vm3393, %v3392, %v3390
    %s3395 = scalar_lea.vmem [#allocation0], 301
    %v3396 = vld [vmem:[%s3395] sm:$0x10]
    %vm3397 = vcmask 1044484
    %v3398 = vsel %vm3397, %v3396, %v3394
    %s3399 = scalar_lea.vmem [#allocation0], 364
    %v3400 = vld [vmem:[%s3399] sm:$0x20]
    %vm3401 = vcmask 1045509
    %v3402 = vsel %vm3401, %v3400, %v3398
    %s3403 = scalar_lea.vmem [#allocation0], 427
    %v3404 = vld [vmem:[%s3403] sm:$0x40]
    %vm3405 = vcmask 1046534
    %v3406 = vsel %vm3405, %v3404, %v3402
    %s3407 = scalar_lea.vmem [#allocation0], 490
    %v3408 = vld [vmem:[%s3407] sm:$0x80]
    %vm3409 = vcmask 1047559
    %v3410 = vsel %vm3409, %v3408, %v3406
    %3411 = vrot.lane.b32.xlu0 %v3410, 91
    %v3412 = vpop.permute.xlu0 %3411
    %vm3413 = vcmask 802520
    %3414 = vst.msk [vmem:[%s1] sm:$0xff] %vm3413, %v3412
    %s3415 = scalar_lea.vmem [#allocation0], 2097
    %v3416 = vld [vmem:[%s3415] sm:$0x1]
    %s3417 = scalar_lea.vmem [#allocation0], 2160
    %v3418 = vld [vmem:[%s3417] sm:$0x2]
    %vm3419 = vcmask 1041409
    %v3420 = vsel %vm3419, %v3418, %v3416
    %s3421 = scalar_lea.vmem [#allocation0], 2223
    %v3422 = vld [vmem:[%s3421] sm:$0x4]
    %vm3423 = vcmask 1042434
    %v3424 = vsel %vm3423, %v3422, %v3420
    %s3425 = scalar_lea.vmem [#allocation0], 2286
    %v3426 = vld [vmem:[%s3425] sm:$0x8]
    %vm3427 = vcmask 1043459
    %v3428 = vsel %vm3427, %v3426, %v3424
    %s3429 = scalar_lea.vmem [#allocation0], 2349
    %v3430 = vld [vmem:[%s3429] sm:$0x10]
    %vm3431 = vcmask 1044484
    %v3432 = vsel %vm3431, %v3430, %v3428
    %s3433 = scalar_lea.vmem [#allocation0], 2412
    %v3434 = vld [vmem:[%s3433] sm:$0x20]
    %vm3435 = vcmask 1045509
    %v3436 = vsel %vm3435, %v3434, %v3432
    %s3437 = scalar_lea.vmem [#allocation0], 2475
    %v3438 = vld [vmem:[%s3437] sm:$0x40]
    %vm3439 = vcmask 1046534
    %v3440 = vsel %vm3439, %v3438, %v3436
    %s3441 = scalar_lea.vmem [#allocation0], 2538
    %v3442 = vld [vmem:[%s3441] sm:$0x80]
    %vm3443 = vcmask 1047559
    %v3444 = vsel %vm3443, %v3442, %v3440
    %3445 = vrot.lane.b32.xlu0 %v3444, 91
    %v3446 = vpop.permute.xlu0 %3445
    %vm3447 = vcmask 802520
    %s3448 = scalar_lea.vmem %s1, 32
    %3449 = vst.msk [vmem:[%s3448] sm:$0xff] %vm3447, %v3446
    %s3450 = scalar_lea.vmem [#allocation0], 561
    %v3451 = vld [vmem:[%s3450] sm:$0x1]
    %s3452 = scalar_lea.vmem [#allocation0], 624
    %v3453 = vld [vmem:[%s3452] sm:$0x2]
    %vm3454 = vcmask 1041409
    %v3455 = vsel %vm3454, %v3453, %v3451
    %s3456 = scalar_lea.vmem [#allocation0], 687
    %v3457 = vld [vmem:[%s3456] sm:$0x4]
    %vm3458 = vcmask 1042434
    %v3459 = vsel %vm3458, %v3457, %v3455
    %s3460 = scalar_lea.vmem [#allocation0], 750
    %v3461 = vld [vmem:[%s3460] sm:$0x8]
    %vm3462 = vcmask 1043459
    %v3463 = vsel %vm3462, %v3461, %v3459
    %s3464 = scalar_lea.vmem [#allocation0], 813
    %v3465 = vld [vmem:[%s3464] sm:$0x10]
    %vm3466 = vcmask 1044484
    %v3467 = vsel %vm3466, %v3465, %v3463
    %s3468 = scalar_lea.vmem [#allocation0], 876
    %v3469 = vld [vmem:[%s3468] sm:$0x20]
    %vm3470 = vcmask 1045509
    %v3471 = vsel %vm3470, %v3469, %v3467
    %s3472 = scalar_lea.vmem [#allocation0], 939
    %v3473 = vld [vmem:[%s3472] sm:$0x40]
    %vm3474 = vcmask 1046534
    %v3475 = vsel %vm3474, %v3473, %v3471
    %s3476 = scalar_lea.vmem [#allocation0], 1002
    %v3477 = vld [vmem:[%s3476] sm:$0x80]
    %vm3478 = vcmask 1047559
    %v3479 = vsel %vm3478, %v3477, %v3475
    %3480 = vrot.lane.b32.xlu0 %v3479, 91
    %v3481 = vpop.permute.xlu0 %3480
    %vm3482 = vcmask 802520
    %s3483 = scalar_lea.vmem %s1, 8
    %3484 = vst.msk [vmem:[%s3483] sm:$0xff] %vm3482, %v3481
    %s3485 = scalar_lea.vmem [#allocation0], 2609
    %v3486 = vld [vmem:[%s3485] sm:$0x1]
    %s3487 = scalar_lea.vmem [#allocation0], 2672
    %v3488 = vld [vmem:[%s3487] sm:$0x2]
    %vm3489 = vcmask 1041409
    %v3490 = vsel %vm3489, %v3488, %v3486
    %s3491 = scalar_lea.vmem [#allocation0], 2735
    %v3492 = vld [vmem:[%s3491] sm:$0x4]
    %vm3493 = vcmask 1042434
    %v3494 = vsel %vm3493, %v3492, %v3490
    %s3495 = scalar_lea.vmem [#allocation0], 2798
    %v3496 = vld [vmem:[%s3495] sm:$0x8]
    %vm3497 = vcmask 1043459
    %v3498 = vsel %vm3497, %v3496, %v3494
    %s3499 = scalar_lea.vmem [#allocation0], 2861
    %v3500 = vld [vmem:[%s3499] sm:$0x10]
    %vm3501 = vcmask 1044484
    %v3502 = vsel %vm3501, %v3500, %v3498
    %s3503 = scalar_lea.vmem [#allocation0], 2924
    %v3504 = vld [vmem:[%s3503] sm:$0x20]
    %vm3505 = vcmask 1045509
    %v3506 = vsel %vm3505, %v3504, %v3502
    %s3507 = scalar_lea.vmem [#allocation0], 2987
    %v3508 = vld [vmem:[%s3507] sm:$0x40]
    %vm3509 = vcmask 1046534
    %v3510 = vsel %vm3509, %v3508, %v3506
    %s3511 = scalar_lea.vmem [#allocation0], 3050
    %v3512 = vld [vmem:[%s3511] sm:$0x80]
    %vm3513 = vcmask 1047559
    %v3514 = vsel %vm3513, %v3512, %v3510
    %3515 = vrot.lane.b32.xlu0 %v3514, 91
    %v3516 = vpop.permute.xlu0 %3515
    %vm3517 = vcmask 802520
    %s3518 = scalar_lea.vmem %s1, 40
    %3519 = vst.msk [vmem:[%s3518] sm:$0xff] %vm3517, %v3516
    %s3520 = scalar_lea.vmem [#allocation0], 1073
    %v3521 = vld [vmem:[%s3520] sm:$0x1]
    %s3522 = scalar_lea.vmem [#allocation0], 1136
    %v3523 = vld [vmem:[%s3522] sm:$0x2]
    %vm3524 = vcmask 1041409
    %v3525 = vsel %vm3524, %v3523, %v3521
    %s3526 = scalar_lea.vmem [#allocation0], 1199
    %v3527 = vld [vmem:[%s3526] sm:$0x4]
    %vm3528 = vcmask 1042434
    %v3529 = vsel %vm3528, %v3527, %v3525
    %s3530 = scalar_lea.vmem [#allocation0], 1262
    %v3531 = vld [vmem:[%s3530] sm:$0x8]
    %vm3532 = vcmask 1043459
    %v3533 = vsel %vm3532, %v3531, %v3529
    %s3534 = scalar_lea.vmem [#allocation0], 1325
    %v3535 = vld [vmem:[%s3534] sm:$0x10]
    %vm3536 = vcmask 1044484
    %v3537 = vsel %vm3536, %v3535, %v3533
    %s3538 = scalar_lea.vmem [#allocation0], 1388
    %v3539 = vld [vmem:[%s3538] sm:$0x20]
    %vm3540 = vcmask 1045509
    %v3541 = vsel %vm3540, %v3539, %v3537
    %s3542 = scalar_lea.vmem [#allocation0], 1451
    %v3543 = vld [vmem:[%s3542] sm:$0x40]
    %vm3544 = vcmask 1046534
    %v3545 = vsel %vm3544, %v3543, %v3541
    %s3546 = scalar_lea.vmem [#allocation0], 1514
    %v3547 = vld [vmem:[%s3546] sm:$0x80]
    %vm3548 = vcmask 1047559
    %v3549 = vsel %vm3548, %v3547, %v3545
    %3550 = vrot.lane.b32.xlu0 %v3549, 91
    %v3551 = vpop.permute.xlu0 %3550
    %vm3552 = vcmask 802520
    %s3553 = scalar_lea.vmem %s1, 16
    %3554 = vst.msk [vmem:[%s3553] sm:$0xff] %vm3552, %v3551
    %s3555 = scalar_lea.vmem [#allocation0], 3121
    %v3556 = vld [vmem:[%s3555] sm:$0x1]
    %s3557 = scalar_lea.vmem [#allocation0], 3184
    %v3558 = vld [vmem:[%s3557] sm:$0x2]
    %vm3559 = vcmask 1041409
    %v3560 = vsel %vm3559, %v3558, %v3556
    %s3561 = scalar_lea.vmem [#allocation0], 3247
    %v3562 = vld [vmem:[%s3561] sm:$0x4]
    %vm3563 = vcmask 1042434
    %v3564 = vsel %vm3563, %v3562, %v3560
    %s3565 = scalar_lea.vmem [#allocation0], 3310
    %v3566 = vld [vmem:[%s3565] sm:$0x8]
    %vm3567 = vcmask 1043459
    %v3568 = vsel %vm3567, %v3566, %v3564
    %s3569 = scalar_lea.vmem [#allocation0], 3373
    %v3570 = vld [vmem:[%s3569] sm:$0x10]
    %vm3571 = vcmask 1044484
    %v3572 = vsel %vm3571, %v3570, %v3568
    %s3573 = scalar_lea.vmem [#allocation0], 3436
    %v3574 = vld [vmem:[%s3573] sm:$0x20]
    %vm3575 = vcmask 1045509
    %v3576 = vsel %vm3575, %v3574, %v3572
    %s3577 = scalar_lea.vmem [#allocation0], 3499
    %v3578 = vld [vmem:[%s3577] sm:$0x40]
    %vm3579 = vcmask 1046534
    %v3580 = vsel %vm3579, %v3578, %v3576
    %s3581 = scalar_lea.vmem [#allocation0], 3562
    %v3582 = vld [vmem:[%s3581] sm:$0x80]
    %vm3583 = vcmask 1047559
    %v3584 = vsel %vm3583, %v3582, %v3580
    %3585 = vrot.lane.b32.xlu0 %v3584, 91
    %v3586 = vpop.permute.xlu0 %3585
    %vm3587 = vcmask 802520
    %s3588 = scalar_lea.vmem %s1, 48
    %3589 = vst.msk [vmem:[%s3588] sm:$0xff] %vm3587, %v3586
    %s3590 = scalar_lea.vmem [#allocation0], 1585
    %v3591 = vld [vmem:[%s3590] sm:$0x1]
    %s3592 = scalar_lea.vmem [#allocation0], 1648
    %v3593 = vld [vmem:[%s3592] sm:$0x2]
    %vm3594 = vcmask 1041409
    %v3595 = vsel %vm3594, %v3593, %v3591
    %s3596 = scalar_lea.vmem [#allocation0], 1711
    %v3597 = vld [vmem:[%s3596] sm:$0x4]
    %vm3598 = vcmask 1042434
    %v3599 = vsel %vm3598, %v3597, %v3595
    %s3600 = scalar_lea.vmem [#allocation0], 1774
    %v3601 = vld [vmem:[%s3600] sm:$0x8]
    %vm3602 = vcmask 1043459
    %v3603 = vsel %vm3602, %v3601, %v3599
    %s3604 = scalar_lea.vmem [#allocation0], 1837
    %v3605 = vld [vmem:[%s3604] sm:$0x10]
    %vm3606 = vcmask 1044484
    %v3607 = vsel %vm3606, %v3605, %v3603
    %s3608 = scalar_lea.vmem [#allocation0], 1900
    %v3609 = vld [vmem:[%s3608] sm:$0x20]
    %vm3610 = vcmask 1045509
    %v3611 = vsel %vm3610, %v3609, %v3607
    %s3612 = scalar_lea.vmem [#allocation0], 1963
    %v3613 = vld [vmem:[%s3612] sm:$0x40]
    %vm3614 = vcmask 1046534
    %v3615 = vsel %vm3614, %v3613, %v3611
    %s3616 = scalar_lea.vmem [#allocation0], 2026
    %v3617 = vld [vmem:[%s3616] sm:$0x80]
    %vm3618 = vcmask 1047559
    %v3619 = vsel %vm3618, %v3617, %v3615
    %3620 = vrot.lane.b32.xlu0 %v3619, 91
    %v3621 = vpop.permute.xlu0 %3620
    %vm3622 = vcmask 802520
    %s3623 = scalar_lea.vmem %s1, 24
    %3624 = vst.msk [vmem:[%s3623] sm:$0xff] %vm3622, %v3621
    %s3625 = scalar_lea.vmem [#allocation0], 3633
    %v3626 = vld [vmem:[%s3625] sm:$0x1]
    %s3627 = scalar_lea.vmem [#allocation0], 3696
    %v3628 = vld [vmem:[%s3627] sm:$0x2]
    %vm3629 = vcmask 1041409
    %v3630 = vsel %vm3629, %v3628, %v3626
    %s3631 = scalar_lea.vmem [#allocation0], 3759
    %v3632 = vld [vmem:[%s3631] sm:$0x4]
    %vm3633 = vcmask 1042434
    %v3634 = vsel %vm3633, %v3632, %v3630
    %s3635 = scalar_lea.vmem [#allocation0], 3822
    %v3636 = vld [vmem:[%s3635] sm:$0x8]
    %vm3637 = vcmask 1043459
    %v3638 = vsel %vm3637, %v3636, %v3634
    %s3639 = scalar_lea.vmem [#allocation0], 3885
    %v3640 = vld [vmem:[%s3639] sm:$0x10]
    %vm3641 = vcmask 1044484
    %v3642 = vsel %vm3641, %v3640, %v3638
    %s3643 = scalar_lea.vmem [#allocation0], 3948
    %v3644 = vld [vmem:[%s3643] sm:$0x20]
    %vm3645 = vcmask 1045509
    %v3646 = vsel %vm3645, %v3644, %v3642
    %s3647 = scalar_lea.vmem [#allocation0], 4011
    %v3648 = vld [vmem:[%s3647] sm:$0x40]
    %vm3649 = vcmask 1046534
    %v3650 = vsel %vm3649, %v3648, %v3646
    %s3651 = scalar_lea.vmem [#allocation0], 4074
    %v3652 = vld [vmem:[%s3651] sm:$0x80]
    %vm3653 = vcmask 1047559
    %v3654 = vsel %vm3653, %v3652, %v3650
    %3655 = vrot.lane.b32.xlu0 %v3654, 91
    %v3656 = vpop.permute.xlu0 %3655
    %vm3657 = vcmask 802520
    %s3658 = scalar_lea.vmem %s1, 56
    %3659 = vst.msk [vmem:[%s3658] sm:$0xff] %vm3657, %v3656
    %s3660 = scalar_lea.vmem [#allocation0], 48
    %v3661 = vld [vmem:[%s3660] sm:$0x1]
    %s3662 = scalar_lea.vmem [#allocation0], 111
    %v3663 = vld [vmem:[%s3662] sm:$0x2]
    %vm3664 = vcmask 1041409
    %v3665 = vsel %vm3664, %v3663, %v3661
    %s3666 = scalar_lea.vmem [#allocation0], 174
    %v3667 = vld [vmem:[%s3666] sm:$0x4]
    %vm3668 = vcmask 1042434
    %v3669 = vsel %vm3668, %v3667, %v3665
    %s3670 = scalar_lea.vmem [#allocation0], 237
    %v3671 = vld [vmem:[%s3670] sm:$0x8]
    %vm3672 = vcmask 1043459
    %v3673 = vsel %vm3672, %v3671, %v3669
    %s3674 = scalar_lea.vmem [#allocation0], 300
    %v3675 = vld [vmem:[%s3674] sm:$0x10]
    %vm3676 = vcmask 1044484
    %v3677 = vsel %vm3676, %v3675, %v3673
    %s3678 = scalar_lea.vmem [#allocation0], 363
    %v3679 = vld [vmem:[%s3678] sm:$0x20]
    %vm3680 = vcmask 1045509
    %v3681 = vsel %vm3680, %v3679, %v3677
    %s3682 = scalar_lea.vmem [#allocation0], 426
    %v3683 = vld [vmem:[%s3682] sm:$0x40]
    %vm3684 = vcmask 1046534
    %v3685 = vsel %vm3684, %v3683, %v3681
    %s3686 = scalar_lea.vmem [#allocation0], 489
    %v3687 = vld [vmem:[%s3686] sm:$0x80]
    %vm3688 = vcmask 1047559
    %v3689 = vsel %vm3688, %v3687, %v3685
    %3690 = vrot.lane.b32.xlu0 %v3689, 84
    %v3691 = vpop.permute.xlu0 %3690
    %vm3692 = vcmask 745120
    %3693 = vst.msk [vmem:[%s1] sm:$0xff] %vm3692, %v3691
    %s3694 = scalar_lea.vmem [#allocation0], 2096
    %v3695 = vld [vmem:[%s3694] sm:$0x1]
    %s3696 = scalar_lea.vmem [#allocation0], 2159
    %v3697 = vld [vmem:[%s3696] sm:$0x2]
    %vm3698 = vcmask 1041409
    %v3699 = vsel %vm3698, %v3697, %v3695
    %s3700 = scalar_lea.vmem [#allocation0], 2222
    %v3701 = vld [vmem:[%s3700] sm:$0x4]
    %vm3702 = vcmask 1042434
    %v3703 = vsel %vm3702, %v3701, %v3699
    %s3704 = scalar_lea.vmem [#allocation0], 2285
    %v3705 = vld [vmem:[%s3704] sm:$0x8]
    %vm3706 = vcmask 1043459
    %v3707 = vsel %vm3706, %v3705, %v3703
    %s3708 = scalar_lea.vmem [#allocation0], 2348
    %v3709 = vld [vmem:[%s3708] sm:$0x10]
    %vm3710 = vcmask 1044484
    %v3711 = vsel %vm3710, %v3709, %v3707
    %s3712 = scalar_lea.vmem [#allocation0], 2411
    %v3713 = vld [vmem:[%s3712] sm:$0x20]
    %vm3714 = vcmask 1045509
    %v3715 = vsel %vm3714, %v3713, %v3711
    %s3716 = scalar_lea.vmem [#allocation0], 2474
    %v3717 = vld [vmem:[%s3716] sm:$0x40]
    %vm3718 = vcmask 1046534
    %v3719 = vsel %vm3718, %v3717, %v3715
    %s3720 = scalar_lea.vmem [#allocation0], 2537
    %v3721 = vld [vmem:[%s3720] sm:$0x80]
    %vm3722 = vcmask 1047559
    %v3723 = vsel %vm3722, %v3721, %v3719
    %3724 = vrot.lane.b32.xlu0 %v3723, 84
    %v3725 = vpop.permute.xlu0 %3724
    %vm3726 = vcmask 745120
    %s3727 = scalar_lea.vmem %s1, 32
    %3728 = vst.msk [vmem:[%s3727] sm:$0xff] %vm3726, %v3725
    %s3729 = scalar_lea.vmem [#allocation0], 560
    %v3730 = vld [vmem:[%s3729] sm:$0x1]
    %s3731 = scalar_lea.vmem [#allocation0], 623
    %v3732 = vld [vmem:[%s3731] sm:$0x2]
    %vm3733 = vcmask 1041409
    %v3734 = vsel %vm3733, %v3732, %v3730
    %s3735 = scalar_lea.vmem [#allocation0], 686
    %v3736 = vld [vmem:[%s3735] sm:$0x4]
    %vm3737 = vcmask 1042434
    %v3738 = vsel %vm3737, %v3736, %v3734
    %s3739 = scalar_lea.vmem [#allocation0], 749
    %v3740 = vld [vmem:[%s3739] sm:$0x8]
    %vm3741 = vcmask 1043459
    %v3742 = vsel %vm3741, %v3740, %v3738
    %s3743 = scalar_lea.vmem [#allocation0], 812
    %v3744 = vld [vmem:[%s3743] sm:$0x10]
    %vm3745 = vcmask 1044484
    %v3746 = vsel %vm3745, %v3744, %v3742
    %s3747 = scalar_lea.vmem [#allocation0], 875
    %v3748 = vld [vmem:[%s3747] sm:$0x20]
    %vm3749 = vcmask 1045509
    %v3750 = vsel %vm3749, %v3748, %v3746
    %s3751 = scalar_lea.vmem [#allocation0], 938
    %v3752 = vld [vmem:[%s3751] sm:$0x40]
    %vm3753 = vcmask 1046534
    %v3754 = vsel %vm3753, %v3752, %v3750
    %s3755 = scalar_lea.vmem [#allocation0], 1001
    %v3756 = vld [vmem:[%s3755] sm:$0x80]
    %vm3757 = vcmask 1047559
    %v3758 = vsel %vm3757, %v3756, %v3754
    %3759 = vrot.lane.b32.xlu0 %v3758, 84
    %v3760 = vpop.permute.xlu0 %3759
    %vm3761 = vcmask 745120
    %s3762 = scalar_lea.vmem %s1, 8
    %3763 = vst.msk [vmem:[%s3762] sm:$0xff] %vm3761, %v3760
    %s3764 = scalar_lea.vmem [#allocation0], 2608
    %v3765 = vld [vmem:[%s3764] sm:$0x1]
    %s3766 = scalar_lea.vmem [#allocation0], 2671
    %v3767 = vld [vmem:[%s3766] sm:$0x2]
    %vm3768 = vcmask 1041409
    %v3769 = vsel %vm3768, %v3767, %v3765
    %s3770 = scalar_lea.vmem [#allocation0], 2734
    %v3771 = vld [vmem:[%s3770] sm:$0x4]
    %vm3772 = vcmask 1042434
    %v3773 = vsel %vm3772, %v3771, %v3769
    %s3774 = scalar_lea.vmem [#allocation0], 2797
    %v3775 = vld [vmem:[%s3774] sm:$0x8]
    %vm3776 = vcmask 1043459
    %v3777 = vsel %vm3776, %v3775, %v3773
    %s3778 = scalar_lea.vmem [#allocation0], 2860
    %v3779 = vld [vmem:[%s3778] sm:$0x10]
    %vm3780 = vcmask 1044484
    %v3781 = vsel %vm3780, %v3779, %v3777
    %s3782 = scalar_lea.vmem [#allocation0], 2923
    %v3783 = vld [vmem:[%s3782] sm:$0x20]
    %vm3784 = vcmask 1045509
    %v3785 = vsel %vm3784, %v3783, %v3781
    %s3786 = scalar_lea.vmem [#allocation0], 2986
    %v3787 = vld [vmem:[%s3786] sm:$0x40]
    %vm3788 = vcmask 1046534
    %v3789 = vsel %vm3788, %v3787, %v3785
    %s3790 = scalar_lea.vmem [#allocation0], 3049
    %v3791 = vld [vmem:[%s3790] sm:$0x80]
    %vm3792 = vcmask 1047559
    %v3793 = vsel %vm3792, %v3791, %v3789
    %3794 = vrot.lane.b32.xlu0 %v3793, 84
    %v3795 = vpop.permute.xlu0 %3794
    %vm3796 = vcmask 745120
    %s3797 = scalar_lea.vmem %s1, 40
    %3798 = vst.msk [vmem:[%s3797] sm:$0xff] %vm3796, %v3795
    %s3799 = scalar_lea.vmem [#allocation0], 1072
    %v3800 = vld [vmem:[%s3799] sm:$0x1]
    %s3801 = scalar_lea.vmem [#allocation0], 1135
    %v3802 = vld [vmem:[%s3801] sm:$0x2]
    %vm3803 = vcmask 1041409
    %v3804 = vsel %vm3803, %v3802, %v3800
    %s3805 = scalar_lea.vmem [#allocation0], 1198
    %v3806 = vld [vmem:[%s3805] sm:$0x4]
    %vm3807 = vcmask 1042434
    %v3808 = vsel %vm3807, %v3806, %v3804
    %s3809 = scalar_lea.vmem [#allocation0], 1261
    %v3810 = vld [vmem:[%s3809] sm:$0x8]
    %vm3811 = vcmask 1043459
    %v3812 = vsel %vm3811, %v3810, %v3808
    %s3813 = scalar_lea.vmem [#allocation0], 1324
    %v3814 = vld [vmem:[%s3813] sm:$0x10]
    %vm3815 = vcmask 1044484
    %v3816 = vsel %vm3815, %v3814, %v3812
    %s3817 = scalar_lea.vmem [#allocation0], 1387
    %v3818 = vld [vmem:[%s3817] sm:$0x20]
    %vm3819 = vcmask 1045509
    %v3820 = vsel %vm3819, %v3818, %v3816
    %s3821 = scalar_lea.vmem [#allocation0], 1450
    %v3822 = vld [vmem:[%s3821] sm:$0x40]
    %vm3823 = vcmask 1046534
    %v3824 = vsel %vm3823, %v3822, %v3820
    %s3825 = scalar_lea.vmem [#allocation0], 1513
    %v3826 = vld [vmem:[%s3825] sm:$0x80]
    %vm3827 = vcmask 1047559
    %v3828 = vsel %vm3827, %v3826, %v3824
    %3829 = vrot.lane.b32.xlu0 %v3828, 84
    %v3830 = vpop.permute.xlu0 %3829
    %vm3831 = vcmask 745120
    %s3832 = scalar_lea.vmem %s1, 16
    %3833 = vst.msk [vmem:[%s3832] sm:$0xff] %vm3831, %v3830
    %s3834 = scalar_lea.vmem [#allocation0], 3120
    %v3835 = vld [vmem:[%s3834] sm:$0x1]
    %s3836 = scalar_lea.vmem [#allocation0], 3183
    %v3837 = vld [vmem:[%s3836] sm:$0x2]
    %vm3838 = vcmask 1041409
    %v3839 = vsel %vm3838, %v3837, %v3835
    %s3840 = scalar_lea.vmem [#allocation0], 3246
    %v3841 = vld [vmem:[%s3840] sm:$0x4]
    %vm3842 = vcmask 1042434
    %v3843 = vsel %vm3842, %v3841, %v3839
    %s3844 = scalar_lea.vmem [#allocation0], 3309
    %v3845 = vld [vmem:[%s3844] sm:$0x8]
    %vm3846 = vcmask 1043459
    %v3847 = vsel %vm3846, %v3845, %v3843
    %s3848 = scalar_lea.vmem [#allocation0], 3372
    %v3849 = vld [vmem:[%s3848] sm:$0x10]
    %vm3850 = vcmask 1044484
    %v3851 = vsel %vm3850, %v3849, %v3847
    %s3852 = scalar_lea.vmem [#allocation0], 3435
    %v3853 = vld [vmem:[%s3852] sm:$0x20]
    %vm3854 = vcmask 1045509
    %v3855 = vsel %vm3854, %v3853, %v3851
    %s3856 = scalar_lea.vmem [#allocation0], 3498
    %v3857 = vld [vmem:[%s3856] sm:$0x40]
    %vm3858 = vcmask 1046534
    %v3859 = vsel %vm3858, %v3857, %v3855
    %s3860 = scalar_lea.vmem [#allocation0], 3561
    %v3861 = vld [vmem:[%s3860] sm:$0x80]
    %vm3862 = vcmask 1047559
    %v3863 = vsel %vm3862, %v3861, %v3859
    %3864 = vrot.lane.b32.xlu0 %v3863, 84
    %v3865 = vpop.permute.xlu0 %3864
    %vm3866 = vcmask 745120
    %s3867 = scalar_lea.vmem %s1, 48
    %3868 = vst.msk [vmem:[%s3867] sm:$0xff] %vm3866, %v3865
    %s3869 = scalar_lea.vmem [#allocation0], 1584
    %v3870 = vld [vmem:[%s3869] sm:$0x1]
    %s3871 = scalar_lea.vmem [#allocation0], 1647
    %v3872 = vld [vmem:[%s3871] sm:$0x2]
    %vm3873 = vcmask 1041409
    %v3874 = vsel %vm3873, %v3872, %v3870
    %s3875 = scalar_lea.vmem [#allocation0], 1710
    %v3876 = vld [vmem:[%s3875] sm:$0x4]
    %vm3877 = vcmask 1042434
    %v3878 = vsel %vm3877, %v3876, %v3874
    %s3879 = scalar_lea.vmem [#allocation0], 1773
    %v3880 = vld [vmem:[%s3879] sm:$0x8]
    %vm3881 = vcmask 1043459
    %v3882 = vsel %vm3881, %v3880, %v3878
    %s3883 = scalar_lea.vmem [#allocation0], 1836
    %v3884 = vld [vmem:[%s3883] sm:$0x10]
    %vm3885 = vcmask 1044484
    %v3886 = vsel %vm3885, %v3884, %v3882
    %s3887 = scalar_lea.vmem [#allocation0], 1899
    %v3888 = vld [vmem:[%s3887] sm:$0x20]
    %vm3889 = vcmask 1045509
    %v3890 = vsel %vm3889, %v3888, %v3886
    %s3891 = scalar_lea.vmem [#allocation0], 1962
    %v3892 = vld [vmem:[%s3891] sm:$0x40]
    %vm3893 = vcmask 1046534
    %v3894 = vsel %vm3893, %v3892, %v3890
    %s3895 = scalar_lea.vmem [#allocation0], 2025
    %v3896 = vld [vmem:[%s3895] sm:$0x80]
    %vm3897 = vcmask 1047559
    %v3898 = vsel %vm3897, %v3896, %v3894
    %3899 = vrot.lane.b32.xlu0 %v3898, 84
    %v3900 = vpop.permute.xlu0 %3899
    %vm3901 = vcmask 745120
    %s3902 = scalar_lea.vmem %s1, 24
    %3903 = vst.msk [vmem:[%s3902] sm:$0xff] %vm3901, %v3900
    %s3904 = scalar_lea.vmem [#allocation0], 3632
    %v3905 = vld [vmem:[%s3904] sm:$0x1]
    %s3906 = scalar_lea.vmem [#allocation0], 3695
    %v3907 = vld [vmem:[%s3906] sm:$0x2]
    %vm3908 = vcmask 1041409
    %v3909 = vsel %vm3908, %v3907, %v3905
    %s3910 = scalar_lea.vmem [#allocation0], 3758
    %v3911 = vld [vmem:[%s3910] sm:$0x4]
    %vm3912 = vcmask 1042434
    %v3913 = vsel %vm3912, %v3911, %v3909
    %s3914 = scalar_lea.vmem [#allocation0], 3821
    %v3915 = vld [vmem:[%s3914] sm:$0x8]
    %vm3916 = vcmask 1043459
    %v3917 = vsel %vm3916, %v3915, %v3913
    %s3918 = scalar_lea.vmem [#allocation0], 3884
    %v3919 = vld [vmem:[%s3918] sm:$0x10]
    %vm3920 = vcmask 1044484
    %v3921 = vsel %vm3920, %v3919, %v3917
    %s3922 = scalar_lea.vmem [#allocation0], 3947
    %v3923 = vld [vmem:[%s3922] sm:$0x20]
    %vm3924 = vcmask 1045509
    %v3925 = vsel %vm3924, %v3923, %v3921
    %s3926 = scalar_lea.vmem [#allocation0], 4010
    %v3927 = vld [vmem:[%s3926] sm:$0x40]
    %vm3928 = vcmask 1046534
    %v3929 = vsel %vm3928, %v3927, %v3925
    %s3930 = scalar_lea.vmem [#allocation0], 4073
    %v3931 = vld [vmem:[%s3930] sm:$0x80]
    %vm3932 = vcmask 1047559
    %v3933 = vsel %vm3932, %v3931, %v3929
    %3934 = vrot.lane.b32.xlu0 %v3933, 84
    %v3935 = vpop.permute.xlu0 %3934
    %vm3936 = vcmask 745120
    %s3937 = scalar_lea.vmem %s1, 56
    %3938 = vst.msk [vmem:[%s3937] sm:$0xff] %vm3936, %v3935
    %s3939 = scalar_lea.vmem [#allocation0], 41
    %v3940 = vld [vmem:[%s3939] sm:$0x1]
    %s3941 = scalar_lea.vmem [#allocation0], 104
    %v3942 = vld [vmem:[%s3941] sm:$0x2]
    %vm3943 = vcmask 1041409
    %v3944 = vsel %vm3943, %v3942, %v3940
    %s3945 = scalar_lea.vmem [#allocation0], 167
    %v3946 = vld [vmem:[%s3945] sm:$0x4]
    %vm3947 = vcmask 1042434
    %v3948 = vsel %vm3947, %v3946, %v3944
    %s3949 = scalar_lea.vmem [#allocation0], 230
    %v3950 = vld [vmem:[%s3949] sm:$0x8]
    %vm3951 = vcmask 1043459
    %v3952 = vsel %vm3951, %v3950, %v3948
    %s3953 = scalar_lea.vmem [#allocation0], 293
    %v3954 = vld [vmem:[%s3953] sm:$0x10]
    %vm3955 = vcmask 1044484
    %v3956 = vsel %vm3955, %v3954, %v3952
    %s3957 = scalar_lea.vmem [#allocation0], 356
    %v3958 = vld [vmem:[%s3957] sm:$0x20]
    %vm3959 = vcmask 1045509
    %v3960 = vsel %vm3959, %v3958, %v3956
    %s3961 = scalar_lea.vmem [#allocation0], 419
    %v3962 = vld [vmem:[%s3961] sm:$0x40]
    %vm3963 = vcmask 1046534
    %v3964 = vsel %vm3963, %v3962, %v3960
    %s3965 = scalar_lea.vmem [#allocation0], 482
    %v3966 = vld [vmem:[%s3965] sm:$0x80]
    %vm3967 = vcmask 1047559
    %v3968 = vsel %vm3967, %v3966, %v3964
    %3969 = vrot.lane.b32.xlu0 %v3968, 77
    %v3970 = vpop.permute.xlu0 %3969
    %vm3971 = vcmask 687720
    %3972 = vst.msk [vmem:[%s1] sm:$0xff] %vm3971, %v3970
    %s3973 = scalar_lea.vmem [#allocation0], 2089
    %v3974 = vld [vmem:[%s3973] sm:$0x1]
    %s3975 = scalar_lea.vmem [#allocation0], 2152
    %v3976 = vld [vmem:[%s3975] sm:$0x2]
    %vm3977 = vcmask 1041409
    %v3978 = vsel %vm3977, %v3976, %v3974
    %s3979 = scalar_lea.vmem [#allocation0], 2215
    %v3980 = vld [vmem:[%s3979] sm:$0x4]
    %vm3981 = vcmask 1042434
    %v3982 = vsel %vm3981, %v3980, %v3978
    %s3983 = scalar_lea.vmem [#allocation0], 2278
    %v3984 = vld [vmem:[%s3983] sm:$0x8]
    %vm3985 = vcmask 1043459
    %v3986 = vsel %vm3985, %v3984, %v3982
    %s3987 = scalar_lea.vmem [#allocation0], 2341
    %v3988 = vld [vmem:[%s3987] sm:$0x10]
    %vm3989 = vcmask 1044484
    %v3990 = vsel %vm3989, %v3988, %v3986
    %s3991 = scalar_lea.vmem [#allocation0], 2404
    %v3992 = vld [vmem:[%s3991] sm:$0x20]
    %vm3993 = vcmask 1045509
    %v3994 = vsel %vm3993, %v3992, %v3990
    %s3995 = scalar_lea.vmem [#allocation0], 2467
    %v3996 = vld [vmem:[%s3995] sm:$0x40]
    %vm3997 = vcmask 1046534
    %v3998 = vsel %vm3997, %v3996, %v3994
    %s3999 = scalar_lea.vmem [#allocation0], 2530
    %v4000 = vld [vmem:[%s3999] sm:$0x80]
    %vm4001 = vcmask 1047559
    %v4002 = vsel %vm4001, %v4000, %v3998
    %4003 = vrot.lane.b32.xlu0 %v4002, 77
    %v4004 = vpop.permute.xlu0 %4003
    %vm4005 = vcmask 687720
    %s4006 = scalar_lea.vmem %s1, 32
    %4007 = vst.msk [vmem:[%s4006] sm:$0xff] %vm4005, %v4004
    %s4008 = scalar_lea.vmem [#allocation0], 553
    %v4009 = vld [vmem:[%s4008] sm:$0x1]
    %s4010 = scalar_lea.vmem [#allocation0], 616
    %v4011 = vld [vmem:[%s4010] sm:$0x2]
    %vm4012 = vcmask 1041409
    %v4013 = vsel %vm4012, %v4011, %v4009
    %s4014 = scalar_lea.vmem [#allocation0], 679
    %v4015 = vld [vmem:[%s4014] sm:$0x4]
    %vm4016 = vcmask 1042434
    %v4017 = vsel %vm4016, %v4015, %v4013
    %s4018 = scalar_lea.vmem [#allocation0], 742
    %v4019 = vld [vmem:[%s4018] sm:$0x8]
    %vm4020 = vcmask 1043459
    %v4021 = vsel %vm4020, %v4019, %v4017
    %s4022 = scalar_lea.vmem [#allocation0], 805
    %v4023 = vld [vmem:[%s4022] sm:$0x10]
    %vm4024 = vcmask 1044484
    %v4025 = vsel %vm4024, %v4023, %v4021
    %s4026 = scalar_lea.vmem [#allocation0], 868
    %v4027 = vld [vmem:[%s4026] sm:$0x20]
    %vm4028 = vcmask 1045509
    %v4029 = vsel %vm4028, %v4027, %v4025
    %s4030 = scalar_lea.vmem [#allocation0], 931
    %v4031 = vld [vmem:[%s4030] sm:$0x40]
    %vm4032 = vcmask 1046534
    %v4033 = vsel %vm4032, %v4031, %v4029
    %s4034 = scalar_lea.vmem [#allocation0], 994
    %v4035 = vld [vmem:[%s4034] sm:$0x80]
    %vm4036 = vcmask 1047559
    %v4037 = vsel %vm4036, %v4035, %v4033
    %4038 = vrot.lane.b32.xlu0 %v4037, 77
    %v4039 = vpop.permute.xlu0 %4038
    %vm4040 = vcmask 687720
    %s4041 = scalar_lea.vmem %s1, 8
    %4042 = vst.msk [vmem:[%s4041] sm:$0xff] %vm4040, %v4039
    %s4043 = scalar_lea.vmem [#allocation0], 2601
    %v4044 = vld [vmem:[%s4043] sm:$0x1]
    %s4045 = scalar_lea.vmem [#allocation0], 2664
    %v4046 = vld [vmem:[%s4045] sm:$0x2]
    %vm4047 = vcmask 1041409
    %v4048 = vsel %vm4047, %v4046, %v4044
    %s4049 = scalar_lea.vmem [#allocation0], 2727
    %v4050 = vld [vmem:[%s4049] sm:$0x4]
    %vm4051 = vcmask 1042434
    %v4052 = vsel %vm4051, %v4050, %v4048
    %s4053 = scalar_lea.vmem [#allocation0], 2790
    %v4054 = vld [vmem:[%s4053] sm:$0x8]
    %vm4055 = vcmask 1043459
    %v4056 = vsel %vm4055, %v4054, %v4052
    %s4057 = scalar_lea.vmem [#allocation0], 2853
    %v4058 = vld [vmem:[%s4057] sm:$0x10]
    %vm4059 = vcmask 1044484
    %v4060 = vsel %vm4059, %v4058, %v4056
    %s4061 = scalar_lea.vmem [#allocation0], 2916
    %v4062 = vld [vmem:[%s4061] sm:$0x20]
    %vm4063 = vcmask 1045509
    %v4064 = vsel %vm4063, %v4062, %v4060
    %s4065 = scalar_lea.vmem [#allocation0], 2979
    %v4066 = vld [vmem:[%s4065] sm:$0x40]
    %vm4067 = vcmask 1046534
    %v4068 = vsel %vm4067, %v4066, %v4064
    %s4069 = scalar_lea.vmem [#allocation0], 3042
    %v4070 = vld [vmem:[%s4069] sm:$0x80]
    %vm4071 = vcmask 1047559
    %v4072 = vsel %vm4071, %v4070, %v4068
    %4073 = vrot.lane.b32.xlu0 %v4072, 77
    %v4074 = vpop.permute.xlu0 %4073
    %vm4075 = vcmask 687720
    %s4076 = scalar_lea.vmem %s1, 40
    %4077 = vst.msk [vmem:[%s4076] sm:$0xff] %vm4075, %v4074
    %s4078 = scalar_lea.vmem [#allocation0], 1065
    %v4079 = vld [vmem:[%s4078] sm:$0x1]
    %s4080 = scalar_lea.vmem [#allocation0], 1128
    %v4081 = vld [vmem:[%s4080] sm:$0x2]
    %vm4082 = vcmask 1041409
    %v4083 = vsel %vm4082, %v4081, %v4079
    %s4084 = scalar_lea.vmem [#allocation0], 1191
    %v4085 = vld [vmem:[%s4084] sm:$0x4]
    %vm4086 = vcmask 1042434
    %v4087 = vsel %vm4086, %v4085, %v4083
    %s4088 = scalar_lea.vmem [#allocation0], 1254
    %v4089 = vld [vmem:[%s4088] sm:$0x8]
    %vm4090 = vcmask 1043459
    %v4091 = vsel %vm4090, %v4089, %v4087
    %s4092 = scalar_lea.vmem [#allocation0], 1317
    %v4093 = vld [vmem:[%s4092] sm:$0x10]
    %vm4094 = vcmask 1044484
    %v4095 = vsel %vm4094, %v4093, %v4091
    %s4096 = scalar_lea.vmem [#allocation0], 1380
    %v4097 = vld [vmem:[%s4096] sm:$0x20]
    %vm4098 = vcmask 1045509
    %v4099 = vsel %vm4098, %v4097, %v4095
    %s4100 = scalar_lea.vmem [#allocation0], 1443
    %v4101 = vld [vmem:[%s4100] sm:$0x40]
    %vm4102 = vcmask 1046534
    %v4103 = vsel %vm4102, %v4101, %v4099
    %s4104 = scalar_lea.vmem [#allocation0], 1506
    %v4105 = vld [vmem:[%s4104] sm:$0x80]
    %vm4106 = vcmask 1047559
    %v4107 = vsel %vm4106, %v4105, %v4103
    %4108 = vrot.lane.b32.xlu0 %v4107, 77
    %v4109 = vpop.permute.xlu0 %4108
    %vm4110 = vcmask 687720
    %s4111 = scalar_lea.vmem %s1, 16
    %4112 = vst.msk [vmem:[%s4111] sm:$0xff] %vm4110, %v4109
    %s4113 = scalar_lea.vmem [#allocation0], 3113
    %v4114 = vld [vmem:[%s4113] sm:$0x1]
    %s4115 = scalar_lea.vmem [#allocation0], 3176
    %v4116 = vld [vmem:[%s4115] sm:$0x2]
    %vm4117 = vcmask 1041409
    %v4118 = vsel %vm4117, %v4116, %v4114
    %s4119 = scalar_lea.vmem [#allocation0], 3239
    %v4120 = vld [vmem:[%s4119] sm:$0x4]
    %vm4121 = vcmask 1042434
    %v4122 = vsel %vm4121, %v4120, %v4118
    %s4123 = scalar_lea.vmem [#allocation0], 3302
    %v4124 = vld [vmem:[%s4123] sm:$0x8]
    %vm4125 = vcmask 1043459
    %v4126 = vsel %vm4125, %v4124, %v4122
    %s4127 = scalar_lea.vmem [#allocation0], 3365
    %v4128 = vld [vmem:[%s4127] sm:$0x10]
    %vm4129 = vcmask 1044484
    %v4130 = vsel %vm4129, %v4128, %v4126
    %s4131 = scalar_lea.vmem [#allocation0], 3428
    %v4132 = vld [vmem:[%s4131] sm:$0x20]
    %vm4133 = vcmask 1045509
    %v4134 = vsel %vm4133, %v4132, %v4130
    %s4135 = scalar_lea.vmem [#allocation0], 3491
    %v4136 = vld [vmem:[%s4135] sm:$0x40]
    %vm4137 = vcmask 1046534
    %v4138 = vsel %vm4137, %v4136, %v4134
    %s4139 = scalar_lea.vmem [#allocation0], 3554
    %v4140 = vld [vmem:[%s4139] sm:$0x80]
    %vm4141 = vcmask 1047559
    %v4142 = vsel %vm4141, %v4140, %v4138
    %4143 = vrot.lane.b32.xlu0 %v4142, 77
    %v4144 = vpop.permute.xlu0 %4143
    %vm4145 = vcmask 687720
    %s4146 = scalar_lea.vmem %s1, 48
    %4147 = vst.msk [vmem:[%s4146] sm:$0xff] %vm4145, %v4144
    %s4148 = scalar_lea.vmem [#allocation0], 1577
    %v4149 = vld [vmem:[%s4148] sm:$0x1]
    %s4150 = scalar_lea.vmem [#allocation0], 1640
    %v4151 = vld [vmem:[%s4150] sm:$0x2]
    %vm4152 = vcmask 1041409
    %v4153 = vsel %vm4152, %v4151, %v4149
    %s4154 = scalar_lea.vmem [#allocation0], 1703
    %v4155 = vld [vmem:[%s4154] sm:$0x4]
    %vm4156 = vcmask 1042434
    %v4157 = vsel %vm4156, %v4155, %v4153
    %s4158 = scalar_lea.vmem [#allocation0], 1766
    %v4159 = vld [vmem:[%s4158] sm:$0x8]
    %vm4160 = vcmask 1043459
    %v4161 = vsel %vm4160, %v4159, %v4157
    %s4162 = scalar_lea.vmem [#allocation0], 1829
    %v4163 = vld [vmem:[%s4162] sm:$0x10]
    %vm4164 = vcmask 1044484
    %v4165 = vsel %vm4164, %v4163, %v4161
    %s4166 = scalar_lea.vmem [#allocation0], 1892
    %v4167 = vld [vmem:[%s4166] sm:$0x20]
    %vm4168 = vcmask 1045509
    %v4169 = vsel %vm4168, %v4167, %v4165
    %s4170 = scalar_lea.vmem [#allocation0], 1955
    %v4171 = vld [vmem:[%s4170] sm:$0x40]
    %vm4172 = vcmask 1046534
    %v4173 = vsel %vm4172, %v4171, %v4169
    %s4174 = scalar_lea.vmem [#allocation0], 2018
    %v4175 = vld [vmem:[%s4174] sm:$0x80]
    %vm4176 = vcmask 1047559
    %v4177 = vsel %vm4176, %v4175, %v4173
    %4178 = vrot.lane.b32.xlu0 %v4177, 77
    %v4179 = vpop.permute.xlu0 %4178
    %vm4180 = vcmask 687720
    %s4181 = scalar_lea.vmem %s1, 24
    %4182 = vst.msk [vmem:[%s4181] sm:$0xff] %vm4180, %v4179
    %s4183 = scalar_lea.vmem [#allocation0], 3625
    %v4184 = vld [vmem:[%s4183] sm:$0x1]
    %s4185 = scalar_lea.vmem [#allocation0], 3688
    %v4186 = vld [vmem:[%s4185] sm:$0x2]
    %vm4187 = vcmask 1041409
    %v4188 = vsel %vm4187, %v4186, %v4184
    %s4189 = scalar_lea.vmem [#allocation0], 3751
    %v4190 = vld [vmem:[%s4189] sm:$0x4]
    %vm4191 = vcmask 1042434
    %v4192 = vsel %vm4191, %v4190, %v4188
    %s4193 = scalar_lea.vmem [#allocation0], 3814
    %v4194 = vld [vmem:[%s4193] sm:$0x8]
    %vm4195 = vcmask 1043459
    %v4196 = vsel %vm4195, %v4194, %v4192
    %s4197 = scalar_lea.vmem [#allocation0], 3877
    %v4198 = vld [vmem:[%s4197] sm:$0x10]
    %vm4199 = vcmask 1044484
    %v4200 = vsel %vm4199, %v4198, %v4196
    %s4201 = scalar_lea.vmem [#allocation0], 3940
    %v4202 = vld [vmem:[%s4201] sm:$0x20]
    %vm4203 = vcmask 1045509
    %v4204 = vsel %vm4203, %v4202, %v4200
    %s4205 = scalar_lea.vmem [#allocation0], 4003
    %v4206 = vld [vmem:[%s4205] sm:$0x40]
    %vm4207 = vcmask 1046534
    %v4208 = vsel %vm4207, %v4206, %v4204
    %s4209 = scalar_lea.vmem [#allocation0], 4066
    %v4210 = vld [vmem:[%s4209] sm:$0x80]
    %vm4211 = vcmask 1047559
    %v4212 = vsel %vm4211, %v4210, %v4208
    %4213 = vrot.lane.b32.xlu0 %v4212, 77
    %v4214 = vpop.permute.xlu0 %4213
    %vm4215 = vcmask 687720
    %s4216 = scalar_lea.vmem %s1, 56
    %4217 = vst.msk [vmem:[%s4216] sm:$0xff] %vm4215, %v4214
    %s4218 = scalar_lea.vmem [#allocation0], 40
    %v4219 = vld [vmem:[%s4218] sm:$0x1]
    %s4220 = scalar_lea.vmem [#allocation0], 103
    %v4221 = vld [vmem:[%s4220] sm:$0x2]
    %vm4222 = vcmask 1041409
    %v4223 = vsel %vm4222, %v4221, %v4219
    %s4224 = scalar_lea.vmem [#allocation0], 166
    %v4225 = vld [vmem:[%s4224] sm:$0x4]
    %vm4226 = vcmask 1042434
    %v4227 = vsel %vm4226, %v4225, %v4223
    %s4228 = scalar_lea.vmem [#allocation0], 229
    %v4229 = vld [vmem:[%s4228] sm:$0x8]
    %vm4230 = vcmask 1043459
    %v4231 = vsel %vm4230, %v4229, %v4227
    %s4232 = scalar_lea.vmem [#allocation0], 292
    %v4233 = vld [vmem:[%s4232] sm:$0x10]
    %vm4234 = vcmask 1044484
    %v4235 = vsel %vm4234, %v4233, %v4231
    %s4236 = scalar_lea.vmem [#allocation0], 355
    %v4237 = vld [vmem:[%s4236] sm:$0x20]
    %vm4238 = vcmask 1045509
    %v4239 = vsel %vm4238, %v4237, %v4235
    %s4240 = scalar_lea.vmem [#allocation0], 418
    %v4241 = vld [vmem:[%s4240] sm:$0x40]
    %vm4242 = vcmask 1046534
    %v4243 = vsel %vm4242, %v4241, %v4239
    %s4244 = scalar_lea.vmem [#allocation0], 481
    %v4245 = vld [vmem:[%s4244] sm:$0x80]
    %vm4246 = vcmask 1047559
    %v4247 = vsel %vm4246, %v4245, %v4243
    %4248 = vrot.lane.b32.xlu0 %v4247, 70
    %v4249 = vpop.permute.xlu0 %4248
    %vm4250 = vcmask 630320
    %4251 = vst.msk [vmem:[%s1] sm:$0xff] %vm4250, %v4249
    %s4252 = scalar_lea.vmem [#allocation0], 2088
    %v4253 = vld [vmem:[%s4252] sm:$0x1]
    %s4254 = scalar_lea.vmem [#allocation0], 2151
    %v4255 = vld [vmem:[%s4254] sm:$0x2]
    %vm4256 = vcmask 1041409
    %v4257 = vsel %vm4256, %v4255, %v4253
    %s4258 = scalar_lea.vmem [#allocation0], 2214
    %v4259 = vld [vmem:[%s4258] sm:$0x4]
    %vm4260 = vcmask 1042434
    %v4261 = vsel %vm4260, %v4259, %v4257
    %s4262 = scalar_lea.vmem [#allocation0], 2277
    %v4263 = vld [vmem:[%s4262] sm:$0x8]
    %vm4264 = vcmask 1043459
    %v4265 = vsel %vm4264, %v4263, %v4261
    %s4266 = scalar_lea.vmem [#allocation0], 2340
    %v4267 = vld [vmem:[%s4266] sm:$0x10]
    %vm4268 = vcmask 1044484
    %v4269 = vsel %vm4268, %v4267, %v4265
    %s4270 = scalar_lea.vmem [#allocation0], 2403
    %v4271 = vld [vmem:[%s4270] sm:$0x20]
    %vm4272 = vcmask 1045509
    %v4273 = vsel %vm4272, %v4271, %v4269
    %s4274 = scalar_lea.vmem [#allocation0], 2466
    %v4275 = vld [vmem:[%s4274] sm:$0x40]
    %vm4276 = vcmask 1046534
    %v4277 = vsel %vm4276, %v4275, %v4273
    %s4278 = scalar_lea.vmem [#allocation0], 2529
    %v4279 = vld [vmem:[%s4278] sm:$0x80]
    %vm4280 = vcmask 1047559
    %v4281 = vsel %vm4280, %v4279, %v4277
    %4282 = vrot.lane.b32.xlu0 %v4281, 70
    %v4283 = vpop.permute.xlu0 %4282
    %vm4284 = vcmask 630320
    %s4285 = scalar_lea.vmem %s1, 32
    %4286 = vst.msk [vmem:[%s4285] sm:$0xff] %vm4284, %v4283
    %s4287 = scalar_lea.vmem [#allocation0], 552
    %v4288 = vld [vmem:[%s4287] sm:$0x1]
    %s4289 = scalar_lea.vmem [#allocation0], 615
    %v4290 = vld [vmem:[%s4289] sm:$0x2]
    %vm4291 = vcmask 1041409
    %v4292 = vsel %vm4291, %v4290, %v4288
    %s4293 = scalar_lea.vmem [#allocation0], 678
    %v4294 = vld [vmem:[%s4293] sm:$0x4]
    %vm4295 = vcmask 1042434
    %v4296 = vsel %vm4295, %v4294, %v4292
    %s4297 = scalar_lea.vmem [#allocation0], 741
    %v4298 = vld [vmem:[%s4297] sm:$0x8]
    %vm4299 = vcmask 1043459
    %v4300 = vsel %vm4299, %v4298, %v4296
    %s4301 = scalar_lea.vmem [#allocation0], 804
    %v4302 = vld [vmem:[%s4301] sm:$0x10]
    %vm4303 = vcmask 1044484
    %v4304 = vsel %vm4303, %v4302, %v4300
    %s4305 = scalar_lea.vmem [#allocation0], 867
    %v4306 = vld [vmem:[%s4305] sm:$0x20]
    %vm4307 = vcmask 1045509
    %v4308 = vsel %vm4307, %v4306, %v4304
    %s4309 = scalar_lea.vmem [#allocation0], 930
    %v4310 = vld [vmem:[%s4309] sm:$0x40]
    %vm4311 = vcmask 1046534
    %v4312 = vsel %vm4311, %v4310, %v4308
    %s4313 = scalar_lea.vmem [#allocation0], 993
    %v4314 = vld [vmem:[%s4313] sm:$0x80]
    %vm4315 = vcmask 1047559
    %v4316 = vsel %vm4315, %v4314, %v4312
    %4317 = vrot.lane.b32.xlu0 %v4316, 70
    %v4318 = vpop.permute.xlu0 %4317
    %vm4319 = vcmask 630320
    %s4320 = scalar_lea.vmem %s1, 8
    %4321 = vst.msk [vmem:[%s4320] sm:$0xff] %vm4319, %v4318
    %s4322 = scalar_lea.vmem [#allocation0], 2600
    %v4323 = vld [vmem:[%s4322] sm:$0x1]
    %s4324 = scalar_lea.vmem [#allocation0], 2663
    %v4325 = vld [vmem:[%s4324] sm:$0x2]
    %vm4326 = vcmask 1041409
    %v4327 = vsel %vm4326, %v4325, %v4323
    %s4328 = scalar_lea.vmem [#allocation0], 2726
    %v4329 = vld [vmem:[%s4328] sm:$0x4]
    %vm4330 = vcmask 1042434
    %v4331 = vsel %vm4330, %v4329, %v4327
    %s4332 = scalar_lea.vmem [#allocation0], 2789
    %v4333 = vld [vmem:[%s4332] sm:$0x8]
    %vm4334 = vcmask 1043459
    %v4335 = vsel %vm4334, %v4333, %v4331
    %s4336 = scalar_lea.vmem [#allocation0], 2852
    %v4337 = vld [vmem:[%s4336] sm:$0x10]
    %vm4338 = vcmask 1044484
    %v4339 = vsel %vm4338, %v4337, %v4335
    %s4340 = scalar_lea.vmem [#allocation0], 2915
    %v4341 = vld [vmem:[%s4340] sm:$0x20]
    %vm4342 = vcmask 1045509
    %v4343 = vsel %vm4342, %v4341, %v4339
    %s4344 = scalar_lea.vmem [#allocation0], 2978
    %v4345 = vld [vmem:[%s4344] sm:$0x40]
    %vm4346 = vcmask 1046534
    %v4347 = vsel %vm4346, %v4345, %v4343
    %s4348 = scalar_lea.vmem [#allocation0], 3041
    %v4349 = vld [vmem:[%s4348] sm:$0x80]
    %vm4350 = vcmask 1047559
    %v4351 = vsel %vm4350, %v4349, %v4347
    %4352 = vrot.lane.b32.xlu0 %v4351, 70
    %v4353 = vpop.permute.xlu0 %4352
    %vm4354 = vcmask 630320
    %s4355 = scalar_lea.vmem %s1, 40
    %4356 = vst.msk [vmem:[%s4355] sm:$0xff] %vm4354, %v4353
    %s4357 = scalar_lea.vmem [#allocation0], 1064
    %v4358 = vld [vmem:[%s4357] sm:$0x1]
    %s4359 = scalar_lea.vmem [#allocation0], 1127
    %v4360 = vld [vmem:[%s4359] sm:$0x2]
    %vm4361 = vcmask 1041409
    %v4362 = vsel %vm4361, %v4360, %v4358
    %s4363 = scalar_lea.vmem [#allocation0], 1190
    %v4364 = vld [vmem:[%s4363] sm:$0x4]
    %vm4365 = vcmask 1042434
    %v4366 = vsel %vm4365, %v4364, %v4362
    %s4367 = scalar_lea.vmem [#allocation0], 1253
    %v4368 = vld [vmem:[%s4367] sm:$0x8]
    %vm4369 = vcmask 1043459
    %v4370 = vsel %vm4369, %v4368, %v4366
    %s4371 = scalar_lea.vmem [#allocation0], 1316
    %v4372 = vld [vmem:[%s4371] sm:$0x10]
    %vm4373 = vcmask 1044484
    %v4374 = vsel %vm4373, %v4372, %v4370
    %s4375 = scalar_lea.vmem [#allocation0], 1379
    %v4376 = vld [vmem:[%s4375] sm:$0x20]
    %vm4377 = vcmask 1045509
    %v4378 = vsel %vm4377, %v4376, %v4374
    %s4379 = scalar_lea.vmem [#allocation0], 1442
    %v4380 = vld [vmem:[%s4379] sm:$0x40]
    %vm4381 = vcmask 1046534
    %v4382 = vsel %vm4381, %v4380, %v4378
    %s4383 = scalar_lea.vmem [#allocation0], 1505
    %v4384 = vld [vmem:[%s4383] sm:$0x80]
    %vm4385 = vcmask 1047559
    %v4386 = vsel %vm4385, %v4384, %v4382
    %4387 = vrot.lane.b32.xlu0 %v4386, 70
    %v4388 = vpop.permute.xlu0 %4387
    %vm4389 = vcmask 630320
    %s4390 = scalar_lea.vmem %s1, 16
    %4391 = vst.msk [vmem:[%s4390] sm:$0xff] %vm4389, %v4388
    %s4392 = scalar_lea.vmem [#allocation0], 3112
    %v4393 = vld [vmem:[%s4392] sm:$0x1]
    %s4394 = scalar_lea.vmem [#allocation0], 3175
    %v4395 = vld [vmem:[%s4394] sm:$0x2]
    %vm4396 = vcmask 1041409
    %v4397 = vsel %vm4396, %v4395, %v4393
    %s4398 = scalar_lea.vmem [#allocation0], 3238
    %v4399 = vld [vmem:[%s4398] sm:$0x4]
    %vm4400 = vcmask 1042434
    %v4401 = vsel %vm4400, %v4399, %v4397
    %s4402 = scalar_lea.vmem [#allocation0], 3301
    %v4403 = vld [vmem:[%s4402] sm:$0x8]
    %vm4404 = vcmask 1043459
    %v4405 = vsel %vm4404, %v4403, %v4401
    %s4406 = scalar_lea.vmem [#allocation0], 3364
    %v4407 = vld [vmem:[%s4406] sm:$0x10]
    %vm4408 = vcmask 1044484
    %v4409 = vsel %vm4408, %v4407, %v4405
    %s4410 = scalar_lea.vmem [#allocation0], 3427
    %v4411 = vld [vmem:[%s4410] sm:$0x20]
    %vm4412 = vcmask 1045509
    %v4413 = vsel %vm4412, %v4411, %v4409
    %s4414 = scalar_lea.vmem [#allocation0], 3490
    %v4415 = vld [vmem:[%s4414] sm:$0x40]
    %vm4416 = vcmask 1046534
    %v4417 = vsel %vm4416, %v4415, %v4413
    %s4418 = scalar_lea.vmem [#allocation0], 3553
    %v4419 = vld [vmem:[%s4418] sm:$0x80]
    %vm4420 = vcmask 1047559
    %v4421 = vsel %vm4420, %v4419, %v4417
    %4422 = vrot.lane.b32.xlu0 %v4421, 70
    %v4423 = vpop.permute.xlu0 %4422
    %vm4424 = vcmask 630320
    %s4425 = scalar_lea.vmem %s1, 48
    %4426 = vst.msk [vmem:[%s4425] sm:$0xff] %vm4424, %v4423
    %s4427 = scalar_lea.vmem [#allocation0], 1576
    %v4428 = vld [vmem:[%s4427] sm:$0x1]
    %s4429 = scalar_lea.vmem [#allocation0], 1639
    %v4430 = vld [vmem:[%s4429] sm:$0x2]
    %vm4431 = vcmask 1041409
    %v4432 = vsel %vm4431, %v4430, %v4428
    %s4433 = scalar_lea.vmem [#allocation0], 1702
    %v4434 = vld [vmem:[%s4433] sm:$0x4]
    %vm4435 = vcmask 1042434
    %v4436 = vsel %vm4435, %v4434, %v4432
    %s4437 = scalar_lea.vmem [#allocation0], 1765
    %v4438 = vld [vmem:[%s4437] sm:$0x8]
    %vm4439 = vcmask 1043459
    %v4440 = vsel %vm4439, %v4438, %v4436
    %s4441 = scalar_lea.vmem [#allocation0], 1828
    %v4442 = vld [vmem:[%s4441] sm:$0x10]
    %vm4443 = vcmask 1044484
    %v4444 = vsel %vm4443, %v4442, %v4440
    %s4445 = scalar_lea.vmem [#allocation0], 1891
    %v4446 = vld [vmem:[%s4445] sm:$0x20]
    %vm4447 = vcmask 1045509
    %v4448 = vsel %vm4447, %v4446, %v4444
    %s4449 = scalar_lea.vmem [#allocation0], 1954
    %v4450 = vld [vmem:[%s4449] sm:$0x40]
    %vm4451 = vcmask 1046534
    %v4452 = vsel %vm4451, %v4450, %v4448
    %s4453 = scalar_lea.vmem [#allocation0], 2017
    %v4454 = vld [vmem:[%s4453] sm:$0x80]
    %vm4455 = vcmask 1047559
    %v4456 = vsel %vm4455, %v4454, %v4452
    %4457 = vrot.lane.b32.xlu0 %v4456, 70
    %v4458 = vpop.permute.xlu0 %4457
    %vm4459 = vcmask 630320
    %s4460 = scalar_lea.vmem %s1, 24
    %4461 = vst.msk [vmem:[%s4460] sm:$0xff] %vm4459, %v4458
    %s4462 = scalar_lea.vmem [#allocation0], 3624
    %v4463 = vld [vmem:[%s4462] sm:$0x1]
    %s4464 = scalar_lea.vmem [#allocation0], 3687
    %v4465 = vld [vmem:[%s4464] sm:$0x2]
    %vm4466 = vcmask 1041409
    %v4467 = vsel %vm4466, %v4465, %v4463
    %s4468 = scalar_lea.vmem [#allocation0], 3750
    %v4469 = vld [vmem:[%s4468] sm:$0x4]
    %vm4470 = vcmask 1042434
    %v4471 = vsel %vm4470, %v4469, %v4467
    %s4472 = scalar_lea.vmem [#allocation0], 3813
    %v4473 = vld [vmem:[%s4472] sm:$0x8]
    %vm4474 = vcmask 1043459
    %v4475 = vsel %vm4474, %v4473, %v4471
    %s4476 = scalar_lea.vmem [#allocation0], 3876
    %v4477 = vld [vmem:[%s4476] sm:$0x10]
    %vm4478 = vcmask 1044484
    %v4479 = vsel %vm4478, %v4477, %v4475
    %s4480 = scalar_lea.vmem [#allocation0], 3939
    %v4481 = vld [vmem:[%s4480] sm:$0x20]
    %vm4482 = vcmask 1045509
    %v4483 = vsel %vm4482, %v4481, %v4479
    %s4484 = scalar_lea.vmem [#allocation0], 4002
    %v4485 = vld [vmem:[%s4484] sm:$0x40]
    %vm4486 = vcmask 1046534
    %v4487 = vsel %vm4486, %v4485, %v4483
    %s4488 = scalar_lea.vmem [#allocation0], 4065
    %v4489 = vld [vmem:[%s4488] sm:$0x80]
    %vm4490 = vcmask 1047559
    %v4491 = vsel %vm4490, %v4489, %v4487
    %4492 = vrot.lane.b32.xlu0 %v4491, 70
    %v4493 = vpop.permute.xlu0 %4492
    %vm4494 = vcmask 630320
    %s4495 = scalar_lea.vmem %s1, 56
    %4496 = vst.msk [vmem:[%s4495] sm:$0xff] %vm4494, %v4493
    %s4497 = scalar_lea.vmem [#allocation0], 33
    %v4498 = vld [vmem:[%s4497] sm:$0x1]
    %s4499 = scalar_lea.vmem [#allocation0], 96
    %v4500 = vld [vmem:[%s4499] sm:$0x2]
    %vm4501 = vcmask 1041409
    %v4502 = vsel %vm4501, %v4500, %v4498
    %s4503 = scalar_lea.vmem [#allocation0], 159
    %v4504 = vld [vmem:[%s4503] sm:$0x4]
    %vm4505 = vcmask 1042434
    %v4506 = vsel %vm4505, %v4504, %v4502
    %s4507 = scalar_lea.vmem [#allocation0], 222
    %v4508 = vld [vmem:[%s4507] sm:$0x8]
    %vm4509 = vcmask 1043459
    %v4510 = vsel %vm4509, %v4508, %v4506
    %s4511 = scalar_lea.vmem [#allocation0], 285
    %v4512 = vld [vmem:[%s4511] sm:$0x10]
    %vm4513 = vcmask 1044484
    %v4514 = vsel %vm4513, %v4512, %v4510
    %s4515 = scalar_lea.vmem [#allocation0], 348
    %v4516 = vld [vmem:[%s4515] sm:$0x20]
    %vm4517 = vcmask 1045509
    %v4518 = vsel %vm4517, %v4516, %v4514
    %s4519 = scalar_lea.vmem [#allocation0], 411
    %v4520 = vld [vmem:[%s4519] sm:$0x40]
    %vm4521 = vcmask 1046534
    %v4522 = vsel %vm4521, %v4520, %v4518
    %s4523 = scalar_lea.vmem [#allocation0], 474
    %v4524 = vld [vmem:[%s4523] sm:$0x80]
    %vm4525 = vcmask 1047559
    %v4526 = vsel %vm4525, %v4524, %v4522
    %4527 = vrot.lane.b32.xlu0 %v4526, 63
    %v4528 = vpop.permute.xlu0 %4527
    %vm4529 = vcmask 572920
    %4530 = vst.msk [vmem:[%s1] sm:$0xff] %vm4529, %v4528
    %s4531 = scalar_lea.vmem [#allocation0], 2081
    %v4532 = vld [vmem:[%s4531] sm:$0x1]
    %s4533 = scalar_lea.vmem [#allocation0], 2144
    %v4534 = vld [vmem:[%s4533] sm:$0x2]
    %vm4535 = vcmask 1041409
    %v4536 = vsel %vm4535, %v4534, %v4532
    %s4537 = scalar_lea.vmem [#allocation0], 2207
    %v4538 = vld [vmem:[%s4537] sm:$0x4]
    %vm4539 = vcmask 1042434
    %v4540 = vsel %vm4539, %v4538, %v4536
    %s4541 = scalar_lea.vmem [#allocation0], 2270
    %v4542 = vld [vmem:[%s4541] sm:$0x8]
    %vm4543 = vcmask 1043459
    %v4544 = vsel %vm4543, %v4542, %v4540
    %s4545 = scalar_lea.vmem [#allocation0], 2333
    %v4546 = vld [vmem:[%s4545] sm:$0x10]
    %vm4547 = vcmask 1044484
    %v4548 = vsel %vm4547, %v4546, %v4544
    %s4549 = scalar_lea.vmem [#allocation0], 2396
    %v4550 = vld [vmem:[%s4549] sm:$0x20]
    %vm4551 = vcmask 1045509
    %v4552 = vsel %vm4551, %v4550, %v4548
    %s4553 = scalar_lea.vmem [#allocation0], 2459
    %v4554 = vld [vmem:[%s4553] sm:$0x40]
    %vm4555 = vcmask 1046534
    %v4556 = vsel %vm4555, %v4554, %v4552
    %s4557 = scalar_lea.vmem [#allocation0], 2522
    %v4558 = vld [vmem:[%s4557] sm:$0x80]
    %vm4559 = vcmask 1047559
    %v4560 = vsel %vm4559, %v4558, %v4556
    %4561 = vrot.lane.b32.xlu0 %v4560, 63
    %v4562 = vpop.permute.xlu0 %4561
    %vm4563 = vcmask 572920
    %s4564 = scalar_lea.vmem %s1, 32
    %4565 = vst.msk [vmem:[%s4564] sm:$0xff] %vm4563, %v4562
    %s4566 = scalar_lea.vmem [#allocation0], 545
    %v4567 = vld [vmem:[%s4566] sm:$0x1]
    %s4568 = scalar_lea.vmem [#allocation0], 608
    %v4569 = vld [vmem:[%s4568] sm:$0x2]
    %vm4570 = vcmask 1041409
    %v4571 = vsel %vm4570, %v4569, %v4567
    %s4572 = scalar_lea.vmem [#allocation0], 671
    %v4573 = vld [vmem:[%s4572] sm:$0x4]
    %vm4574 = vcmask 1042434
    %v4575 = vsel %vm4574, %v4573, %v4571
    %s4576 = scalar_lea.vmem [#allocation0], 734
    %v4577 = vld [vmem:[%s4576] sm:$0x8]
    %vm4578 = vcmask 1043459
    %v4579 = vsel %vm4578, %v4577, %v4575
    %s4580 = scalar_lea.vmem [#allocation0], 797
    %v4581 = vld [vmem:[%s4580] sm:$0x10]
    %vm4582 = vcmask 1044484
    %v4583 = vsel %vm4582, %v4581, %v4579
    %s4584 = scalar_lea.vmem [#allocation0], 860
    %v4585 = vld [vmem:[%s4584] sm:$0x20]
    %vm4586 = vcmask 1045509
    %v4587 = vsel %vm4586, %v4585, %v4583
    %s4588 = scalar_lea.vmem [#allocation0], 923
    %v4589 = vld [vmem:[%s4588] sm:$0x40]
    %vm4590 = vcmask 1046534
    %v4591 = vsel %vm4590, %v4589, %v4587
    %s4592 = scalar_lea.vmem [#allocation0], 986
    %v4593 = vld [vmem:[%s4592] sm:$0x80]
    %vm4594 = vcmask 1047559
    %v4595 = vsel %vm4594, %v4593, %v4591
    %4596 = vrot.lane.b32.xlu0 %v4595, 63
    %v4597 = vpop.permute.xlu0 %4596
    %vm4598 = vcmask 572920
    %s4599 = scalar_lea.vmem %s1, 8
    %4600 = vst.msk [vmem:[%s4599] sm:$0xff] %vm4598, %v4597
    %s4601 = scalar_lea.vmem [#allocation0], 2593
    %v4602 = vld [vmem:[%s4601] sm:$0x1]
    %s4603 = scalar_lea.vmem [#allocation0], 2656
    %v4604 = vld [vmem:[%s4603] sm:$0x2]
    %vm4605 = vcmask 1041409
    %v4606 = vsel %vm4605, %v4604, %v4602
    %s4607 = scalar_lea.vmem [#allocation0], 2719
    %v4608 = vld [vmem:[%s4607] sm:$0x4]
    %vm4609 = vcmask 1042434
    %v4610 = vsel %vm4609, %v4608, %v4606
    %s4611 = scalar_lea.vmem [#allocation0], 2782
    %v4612 = vld [vmem:[%s4611] sm:$0x8]
    %vm4613 = vcmask 1043459
    %v4614 = vsel %vm4613, %v4612, %v4610
    %s4615 = scalar_lea.vmem [#allocation0], 2845
    %v4616 = vld [vmem:[%s4615] sm:$0x10]
    %vm4617 = vcmask 1044484
    %v4618 = vsel %vm4617, %v4616, %v4614
    %s4619 = scalar_lea.vmem [#allocation0], 2908
    %v4620 = vld [vmem:[%s4619] sm:$0x20]
    %vm4621 = vcmask 1045509
    %v4622 = vsel %vm4621, %v4620, %v4618
    %s4623 = scalar_lea.vmem [#allocation0], 2971
    %v4624 = vld [vmem:[%s4623] sm:$0x40]
    %vm4625 = vcmask 1046534
    %v4626 = vsel %vm4625, %v4624, %v4622
    %s4627 = scalar_lea.vmem [#allocation0], 3034
    %v4628 = vld [vmem:[%s4627] sm:$0x80]
    %vm4629 = vcmask 1047559
    %v4630 = vsel %vm4629, %v4628, %v4626
    %4631 = vrot.lane.b32.xlu0 %v4630, 63
    %v4632 = vpop.permute.xlu0 %4631
    %vm4633 = vcmask 572920
    %s4634 = scalar_lea.vmem %s1, 40
    %4635 = vst.msk [vmem:[%s4634] sm:$0xff] %vm4633, %v4632
    %s4636 = scalar_lea.vmem [#allocation0], 1057
    %v4637 = vld [vmem:[%s4636] sm:$0x1]
    %s4638 = scalar_lea.vmem [#allocation0], 1120
    %v4639 = vld [vmem:[%s4638] sm:$0x2]
    %vm4640 = vcmask 1041409
    %v4641 = vsel %vm4640, %v4639, %v4637
    %s4642 = scalar_lea.vmem [#allocation0], 1183
    %v4643 = vld [vmem:[%s4642] sm:$0x4]
    %vm4644 = vcmask 1042434
    %v4645 = vsel %vm4644, %v4643, %v4641
    %s4646 = scalar_lea.vmem [#allocation0], 1246
    %v4647 = vld [vmem:[%s4646] sm:$0x8]
    %vm4648 = vcmask 1043459
    %v4649 = vsel %vm4648, %v4647, %v4645
    %s4650 = scalar_lea.vmem [#allocation0], 1309
    %v4651 = vld [vmem:[%s4650] sm:$0x10]
    %vm4652 = vcmask 1044484
    %v4653 = vsel %vm4652, %v4651, %v4649
    %s4654 = scalar_lea.vmem [#allocation0], 1372
    %v4655 = vld [vmem:[%s4654] sm:$0x20]
    %vm4656 = vcmask 1045509
    %v4657 = vsel %vm4656, %v4655, %v4653
    %s4658 = scalar_lea.vmem [#allocation0], 1435
    %v4659 = vld [vmem:[%s4658] sm:$0x40]
    %vm4660 = vcmask 1046534
    %v4661 = vsel %vm4660, %v4659, %v4657
    %s4662 = scalar_lea.vmem [#allocation0], 1498
    %v4663 = vld [vmem:[%s4662] sm:$0x80]
    %vm4664 = vcmask 1047559
    %v4665 = vsel %vm4664, %v4663, %v4661
    %4666 = vrot.lane.b32.xlu0 %v4665, 63
    %v4667 = vpop.permute.xlu0 %4666
    %vm4668 = vcmask 572920
    %s4669 = scalar_lea.vmem %s1, 16
    %4670 = vst.msk [vmem:[%s4669] sm:$0xff] %vm4668, %v4667
    %s4671 = scalar_lea.vmem [#allocation0], 3105
    %v4672 = vld [vmem:[%s4671] sm:$0x1]
    %s4673 = scalar_lea.vmem [#allocation0], 3168
    %v4674 = vld [vmem:[%s4673] sm:$0x2]
    %vm4675 = vcmask 1041409
    %v4676 = vsel %vm4675, %v4674, %v4672
    %s4677 = scalar_lea.vmem [#allocation0], 3231
    %v4678 = vld [vmem:[%s4677] sm:$0x4]
    %vm4679 = vcmask 1042434
    %v4680 = vsel %vm4679, %v4678, %v4676
    %s4681 = scalar_lea.vmem [#allocation0], 3294
    %v4682 = vld [vmem:[%s4681] sm:$0x8]
    %vm4683 = vcmask 1043459
    %v4684 = vsel %vm4683, %v4682, %v4680
    %s4685 = scalar_lea.vmem [#allocation0], 3357
    %v4686 = vld [vmem:[%s4685] sm:$0x10]
    %vm4687 = vcmask 1044484
    %v4688 = vsel %vm4687, %v4686, %v4684
    %s4689 = scalar_lea.vmem [#allocation0], 3420
    %v4690 = vld [vmem:[%s4689] sm:$0x20]
    %vm4691 = vcmask 1045509
    %v4692 = vsel %vm4691, %v4690, %v4688
    %s4693 = scalar_lea.vmem [#allocation0], 3483
    %v4694 = vld [vmem:[%s4693] sm:$0x40]
    %vm4695 = vcmask 1046534
    %v4696 = vsel %vm4695, %v4694, %v4692
    %s4697 = scalar_lea.vmem [#allocation0], 3546
    %v4698 = vld [vmem:[%s4697] sm:$0x80]
    %vm4699 = vcmask 1047559
    %v4700 = vsel %vm4699, %v4698, %v4696
    %4701 = vrot.lane.b32.xlu0 %v4700, 63
    %v4702 = vpop.permute.xlu0 %4701
    %vm4703 = vcmask 572920
    %s4704 = scalar_lea.vmem %s1, 48
    %4705 = vst.msk [vmem:[%s4704] sm:$0xff] %vm4703, %v4702
    %s4706 = scalar_lea.vmem [#allocation0], 1569
    %v4707 = vld [vmem:[%s4706] sm:$0x1]
    %s4708 = scalar_lea.vmem [#allocation0], 1632
    %v4709 = vld [vmem:[%s4708] sm:$0x2]
    %vm4710 = vcmask 1041409
    %v4711 = vsel %vm4710, %v4709, %v4707
    %s4712 = scalar_lea.vmem [#allocation0], 1695
    %v4713 = vld [vmem:[%s4712] sm:$0x4]
    %vm4714 = vcmask 1042434
    %v4715 = vsel %vm4714, %v4713, %v4711
    %s4716 = scalar_lea.vmem [#allocation0], 1758
    %v4717 = vld [vmem:[%s4716] sm:$0x8]
    %vm4718 = vcmask 1043459
    %v4719 = vsel %vm4718, %v4717, %v4715
    %s4720 = scalar_lea.vmem [#allocation0], 1821
    %v4721 = vld [vmem:[%s4720] sm:$0x10]
    %vm4722 = vcmask 1044484
    %v4723 = vsel %vm4722, %v4721, %v4719
    %s4724 = scalar_lea.vmem [#allocation0], 1884
    %v4725 = vld [vmem:[%s4724] sm:$0x20]
    %vm4726 = vcmask 1045509
    %v4727 = vsel %vm4726, %v4725, %v4723
    %s4728 = scalar_lea.vmem [#allocation0], 1947
    %v4729 = vld [vmem:[%s4728] sm:$0x40]
    %vm4730 = vcmask 1046534
    %v4731 = vsel %vm4730, %v4729, %v4727
    %s4732 = scalar_lea.vmem [#allocation0], 2010
    %v4733 = vld [vmem:[%s4732] sm:$0x80]
    %vm4734 = vcmask 1047559
    %v4735 = vsel %vm4734, %v4733, %v4731
    %4736 = vrot.lane.b32.xlu0 %v4735, 63
    %v4737 = vpop.permute.xlu0 %4736
    %vm4738 = vcmask 572920
    %s4739 = scalar_lea.vmem %s1, 24
    %4740 = vst.msk [vmem:[%s4739] sm:$0xff] %vm4738, %v4737
    %s4741 = scalar_lea.vmem [#allocation0], 3617
    %v4742 = vld [vmem:[%s4741] sm:$0x1]
    %s4743 = scalar_lea.vmem [#allocation0], 3680
    %v4744 = vld [vmem:[%s4743] sm:$0x2]
    %vm4745 = vcmask 1041409
    %v4746 = vsel %vm4745, %v4744, %v4742
    %s4747 = scalar_lea.vmem [#allocation0], 3743
    %v4748 = vld [vmem:[%s4747] sm:$0x4]
    %vm4749 = vcmask 1042434
    %v4750 = vsel %vm4749, %v4748, %v4746
    %s4751 = scalar_lea.vmem [#allocation0], 3806
    %v4752 = vld [vmem:[%s4751] sm:$0x8]
    %vm4753 = vcmask 1043459
    %v4754 = vsel %vm4753, %v4752, %v4750
    %s4755 = scalar_lea.vmem [#allocation0], 3869
    %v4756 = vld [vmem:[%s4755] sm:$0x10]
    %vm4757 = vcmask 1044484
    %v4758 = vsel %vm4757, %v4756, %v4754
    %s4759 = scalar_lea.vmem [#allocation0], 3932
    %v4760 = vld [vmem:[%s4759] sm:$0x20]
    %vm4761 = vcmask 1045509
    %v4762 = vsel %vm4761, %v4760, %v4758
    %s4763 = scalar_lea.vmem [#allocation0], 3995
    %v4764 = vld [vmem:[%s4763] sm:$0x40]
    %vm4765 = vcmask 1046534
    %v4766 = vsel %vm4765, %v4764, %v4762
    %s4767 = scalar_lea.vmem [#allocation0], 4058
    %v4768 = vld [vmem:[%s4767] sm:$0x80]
    %vm4769 = vcmask 1047559
    %v4770 = vsel %vm4769, %v4768, %v4766
    %4771 = vrot.lane.b32.xlu0 %v4770, 63
    %v4772 = vpop.permute.xlu0 %4771
    %vm4773 = vcmask 572920
    %s4774 = scalar_lea.vmem %s1, 56
    %4775 = vst.msk [vmem:[%s4774] sm:$0xff] %vm4773, %v4772
    %s4776 = scalar_lea.vmem [#allocation0], 32
    %v4777 = vld [vmem:[%s4776] sm:$0x1]
    %s4778 = scalar_lea.vmem [#allocation0], 95
    %v4779 = vld [vmem:[%s4778] sm:$0x2]
    %vm4780 = vcmask 1041409
    %v4781 = vsel %vm4780, %v4779, %v4777
    %s4782 = scalar_lea.vmem [#allocation0], 158
    %v4783 = vld [vmem:[%s4782] sm:$0x4]
    %vm4784 = vcmask 1042434
    %v4785 = vsel %vm4784, %v4783, %v4781
    %s4786 = scalar_lea.vmem [#allocation0], 221
    %v4787 = vld [vmem:[%s4786] sm:$0x8]
    %vm4788 = vcmask 1043459
    %v4789 = vsel %vm4788, %v4787, %v4785
    %s4790 = scalar_lea.vmem [#allocation0], 284
    %v4791 = vld [vmem:[%s4790] sm:$0x10]
    %vm4792 = vcmask 1044484
    %v4793 = vsel %vm4792, %v4791, %v4789
    %s4794 = scalar_lea.vmem [#allocation0], 347
    %v4795 = vld [vmem:[%s4794] sm:$0x20]
    %vm4796 = vcmask 1045509
    %v4797 = vsel %vm4796, %v4795, %v4793
    %s4798 = scalar_lea.vmem [#allocation0], 410
    %v4799 = vld [vmem:[%s4798] sm:$0x40]
    %vm4800 = vcmask 1046534
    %v4801 = vsel %vm4800, %v4799, %v4797
    %s4802 = scalar_lea.vmem [#allocation0], 473
    %v4803 = vld [vmem:[%s4802] sm:$0x80]
    %vm4804 = vcmask 1047559
    %v4805 = vsel %vm4804, %v4803, %v4801
    %4806 = vrot.lane.b32.xlu0 %v4805, 56
    %v4807 = vpop.permute.xlu0 %4806
    %vm4808 = vcmask 515520
    %4809 = vst.msk [vmem:[%s1] sm:$0xff] %vm4808, %v4807
    %s4810 = scalar_lea.vmem [#allocation0], 2080
    %v4811 = vld [vmem:[%s4810] sm:$0x1]
    %s4812 = scalar_lea.vmem [#allocation0], 2143
    %v4813 = vld [vmem:[%s4812] sm:$0x2]
    %vm4814 = vcmask 1041409
    %v4815 = vsel %vm4814, %v4813, %v4811
    %s4816 = scalar_lea.vmem [#allocation0], 2206
    %v4817 = vld [vmem:[%s4816] sm:$0x4]
    %vm4818 = vcmask 1042434
    %v4819 = vsel %vm4818, %v4817, %v4815
    %s4820 = scalar_lea.vmem [#allocation0], 2269
    %v4821 = vld [vmem:[%s4820] sm:$0x8]
    %vm4822 = vcmask 1043459
    %v4823 = vsel %vm4822, %v4821, %v4819
    %s4824 = scalar_lea.vmem [#allocation0], 2332
    %v4825 = vld [vmem:[%s4824] sm:$0x10]
    %vm4826 = vcmask 1044484
    %v4827 = vsel %vm4826, %v4825, %v4823
    %s4828 = scalar_lea.vmem [#allocation0], 2395
    %v4829 = vld [vmem:[%s4828] sm:$0x20]
    %vm4830 = vcmask 1045509
    %v4831 = vsel %vm4830, %v4829, %v4827
    %s4832 = scalar_lea.vmem [#allocation0], 2458
    %v4833 = vld [vmem:[%s4832] sm:$0x40]
    %vm4834 = vcmask 1046534
    %v4835 = vsel %vm4834, %v4833, %v4831
    %s4836 = scalar_lea.vmem [#allocation0], 2521
    %v4837 = vld [vmem:[%s4836] sm:$0x80]
    %vm4838 = vcmask 1047559
    %v4839 = vsel %vm4838, %v4837, %v4835
    %4840 = vrot.lane.b32.xlu0 %v4839, 56
    %v4841 = vpop.permute.xlu0 %4840
    %vm4842 = vcmask 515520
    %s4843 = scalar_lea.vmem %s1, 32
    %4844 = vst.msk [vmem:[%s4843] sm:$0xff] %vm4842, %v4841
    %s4845 = scalar_lea.vmem [#allocation0], 544
    %v4846 = vld [vmem:[%s4845] sm:$0x1]
    %s4847 = scalar_lea.vmem [#allocation0], 607
    %v4848 = vld [vmem:[%s4847] sm:$0x2]
    %vm4849 = vcmask 1041409
    %v4850 = vsel %vm4849, %v4848, %v4846
    %s4851 = scalar_lea.vmem [#allocation0], 670
    %v4852 = vld [vmem:[%s4851] sm:$0x4]
    %vm4853 = vcmask 1042434
    %v4854 = vsel %vm4853, %v4852, %v4850
    %s4855 = scalar_lea.vmem [#allocation0], 733
    %v4856 = vld [vmem:[%s4855] sm:$0x8]
    %vm4857 = vcmask 1043459
    %v4858 = vsel %vm4857, %v4856, %v4854
    %s4859 = scalar_lea.vmem [#allocation0], 796
    %v4860 = vld [vmem:[%s4859] sm:$0x10]
    %vm4861 = vcmask 1044484
    %v4862 = vsel %vm4861, %v4860, %v4858
    %s4863 = scalar_lea.vmem [#allocation0], 859
    %v4864 = vld [vmem:[%s4863] sm:$0x20]
    %vm4865 = vcmask 1045509
    %v4866 = vsel %vm4865, %v4864, %v4862
    %s4867 = scalar_lea.vmem [#allocation0], 922
    %v4868 = vld [vmem:[%s4867] sm:$0x40]
    %vm4869 = vcmask 1046534
    %v4870 = vsel %vm4869, %v4868, %v4866
    %s4871 = scalar_lea.vmem [#allocation0], 985
    %v4872 = vld [vmem:[%s4871] sm:$0x80]
    %vm4873 = vcmask 1047559
    %v4874 = vsel %vm4873, %v4872, %v4870
    %4875 = vrot.lane.b32.xlu0 %v4874, 56
    %v4876 = vpop.permute.xlu0 %4875
    %vm4877 = vcmask 515520
    %s4878 = scalar_lea.vmem %s1, 8
    %4879 = vst.msk [vmem:[%s4878] sm:$0xff] %vm4877, %v4876
    %s4880 = scalar_lea.vmem [#allocation0], 2592
    %v4881 = vld [vmem:[%s4880] sm:$0x1]
    %s4882 = scalar_lea.vmem [#allocation0], 2655
    %v4883 = vld [vmem:[%s4882] sm:$0x2]
    %vm4884 = vcmask 1041409
    %v4885 = vsel %vm4884, %v4883, %v4881
    %s4886 = scalar_lea.vmem [#allocation0], 2718
    %v4887 = vld [vmem:[%s4886] sm:$0x4]
    %vm4888 = vcmask 1042434
    %v4889 = vsel %vm4888, %v4887, %v4885
    %s4890 = scalar_lea.vmem [#allocation0], 2781
    %v4891 = vld [vmem:[%s4890] sm:$0x8]
    %vm4892 = vcmask 1043459
    %v4893 = vsel %vm4892, %v4891, %v4889
    %s4894 = scalar_lea.vmem [#allocation0], 2844
    %v4895 = vld [vmem:[%s4894] sm:$0x10]
    %vm4896 = vcmask 1044484
    %v4897 = vsel %vm4896, %v4895, %v4893
    %s4898 = scalar_lea.vmem [#allocation0], 2907
    %v4899 = vld [vmem:[%s4898] sm:$0x20]
    %vm4900 = vcmask 1045509
    %v4901 = vsel %vm4900, %v4899, %v4897
    %s4902 = scalar_lea.vmem [#allocation0], 2970
    %v4903 = vld [vmem:[%s4902] sm:$0x40]
    %vm4904 = vcmask 1046534
    %v4905 = vsel %vm4904, %v4903, %v4901
    %s4906 = scalar_lea.vmem [#allocation0], 3033
    %v4907 = vld [vmem:[%s4906] sm:$0x80]
    %vm4908 = vcmask 1047559
    %v4909 = vsel %vm4908, %v4907, %v4905
    %4910 = vrot.lane.b32.xlu0 %v4909, 56
    %v4911 = vpop.permute.xlu0 %4910
    %vm4912 = vcmask 515520
    %s4913 = scalar_lea.vmem %s1, 40
    %4914 = vst.msk [vmem:[%s4913] sm:$0xff] %vm4912, %v4911
    %s4915 = scalar_lea.vmem [#allocation0], 1056
    %v4916 = vld [vmem:[%s4915] sm:$0x1]
    %s4917 = scalar_lea.vmem [#allocation0], 1119
    %v4918 = vld [vmem:[%s4917] sm:$0x2]
    %vm4919 = vcmask 1041409
    %v4920 = vsel %vm4919, %v4918, %v4916
    %s4921 = scalar_lea.vmem [#allocation0], 1182
    %v4922 = vld [vmem:[%s4921] sm:$0x4]
    %vm4923 = vcmask 1042434
    %v4924 = vsel %vm4923, %v4922, %v4920
    %s4925 = scalar_lea.vmem [#allocation0], 1245
    %v4926 = vld [vmem:[%s4925] sm:$0x8]
    %vm4927 = vcmask 1043459
    %v4928 = vsel %vm4927, %v4926, %v4924
    %s4929 = scalar_lea.vmem [#allocation0], 1308
    %v4930 = vld [vmem:[%s4929] sm:$0x10]
    %vm4931 = vcmask 1044484
    %v4932 = vsel %vm4931, %v4930, %v4928
    %s4933 = scalar_lea.vmem [#allocation0], 1371
    %v4934 = vld [vmem:[%s4933] sm:$0x20]
    %vm4935 = vcmask 1045509
    %v4936 = vsel %vm4935, %v4934, %v4932
    %s4937 = scalar_lea.vmem [#allocation0], 1434
    %v4938 = vld [vmem:[%s4937] sm:$0x40]
    %vm4939 = vcmask 1046534
    %v4940 = vsel %vm4939, %v4938, %v4936
    %s4941 = scalar_lea.vmem [#allocation0], 1497
    %v4942 = vld [vmem:[%s4941] sm:$0x80]
    %vm4943 = vcmask 1047559
    %v4944 = vsel %vm4943, %v4942, %v4940
    %4945 = vrot.lane.b32.xlu0 %v4944, 56
    %v4946 = vpop.permute.xlu0 %4945
    %vm4947 = vcmask 515520
    %s4948 = scalar_lea.vmem %s1, 16
    %4949 = vst.msk [vmem:[%s4948] sm:$0xff] %vm4947, %v4946
    %s4950 = scalar_lea.vmem [#allocation0], 3104
    %v4951 = vld [vmem:[%s4950] sm:$0x1]
    %s4952 = scalar_lea.vmem [#allocation0], 3167
    %v4953 = vld [vmem:[%s4952] sm:$0x2]
    %vm4954 = vcmask 1041409
    %v4955 = vsel %vm4954, %v4953, %v4951
    %s4956 = scalar_lea.vmem [#allocation0], 3230
    %v4957 = vld [vmem:[%s4956] sm:$0x4]
    %vm4958 = vcmask 1042434
    %v4959 = vsel %vm4958, %v4957, %v4955
    %s4960 = scalar_lea.vmem [#allocation0], 3293
    %v4961 = vld [vmem:[%s4960] sm:$0x8]
    %vm4962 = vcmask 1043459
    %v4963 = vsel %vm4962, %v4961, %v4959
    %s4964 = scalar_lea.vmem [#allocation0], 3356
    %v4965 = vld [vmem:[%s4964] sm:$0x10]
    %vm4966 = vcmask 1044484
    %v4967 = vsel %vm4966, %v4965, %v4963
    %s4968 = scalar_lea.vmem [#allocation0], 3419
    %v4969 = vld [vmem:[%s4968] sm:$0x20]
    %vm4970 = vcmask 1045509
    %v4971 = vsel %vm4970, %v4969, %v4967
    %s4972 = scalar_lea.vmem [#allocation0], 3482
    %v4973 = vld [vmem:[%s4972] sm:$0x40]
    %vm4974 = vcmask 1046534
    %v4975 = vsel %vm4974, %v4973, %v4971
    %s4976 = scalar_lea.vmem [#allocation0], 3545
    %v4977 = vld [vmem:[%s4976] sm:$0x80]
    %vm4978 = vcmask 1047559
    %v4979 = vsel %vm4978, %v4977, %v4975
    %4980 = vrot.lane.b32.xlu0 %v4979, 56
    %v4981 = vpop.permute.xlu0 %4980
    %vm4982 = vcmask 515520
    %s4983 = scalar_lea.vmem %s1, 48
    %4984 = vst.msk [vmem:[%s4983] sm:$0xff] %vm4982, %v4981
    %s4985 = scalar_lea.vmem [#allocation0], 1568
    %v4986 = vld [vmem:[%s4985] sm:$0x1]
    %s4987 = scalar_lea.vmem [#allocation0], 1631
    %v4988 = vld [vmem:[%s4987] sm:$0x2]
    %vm4989 = vcmask 1041409
    %v4990 = vsel %vm4989, %v4988, %v4986
    %s4991 = scalar_lea.vmem [#allocation0], 1694
    %v4992 = vld [vmem:[%s4991] sm:$0x4]
    %vm4993 = vcmask 1042434
    %v4994 = vsel %vm4993, %v4992, %v4990
    %s4995 = scalar_lea.vmem [#allocation0], 1757
    %v4996 = vld [vmem:[%s4995] sm:$0x8]
    %vm4997 = vcmask 1043459
    %v4998 = vsel %vm4997, %v4996, %v4994
    %s4999 = scalar_lea.vmem [#allocation0], 1820
    %v5000 = vld [vmem:[%s4999] sm:$0x10]
    %vm5001 = vcmask 1044484
    %v5002 = vsel %vm5001, %v5000, %v4998
    %s5003 = scalar_lea.vmem [#allocation0], 1883
    %v5004 = vld [vmem:[%s5003] sm:$0x20]
    %vm5005 = vcmask 1045509
    %v5006 = vsel %vm5005, %v5004, %v5002
    %s5007 = scalar_lea.vmem [#allocation0], 1946
    %v5008 = vld [vmem:[%s5007] sm:$0x40]
    %vm5009 = vcmask 1046534
    %v5010 = vsel %vm5009, %v5008, %v5006
    %s5011 = scalar_lea.vmem [#allocation0], 2009
    %v5012 = vld [vmem:[%s5011] sm:$0x80]
    %vm5013 = vcmask 1047559
    %v5014 = vsel %vm5013, %v5012, %v5010
    %5015 = vrot.lane.b32.xlu0 %v5014, 56
    %v5016 = vpop.permute.xlu0 %5015
    %vm5017 = vcmask 515520
    %s5018 = scalar_lea.vmem %s1, 24
    %5019 = vst.msk [vmem:[%s5018] sm:$0xff] %vm5017, %v5016
    %s5020 = scalar_lea.vmem [#allocation0], 3616
    %v5021 = vld [vmem:[%s5020] sm:$0x1]
    %s5022 = scalar_lea.vmem [#allocation0], 3679
    %v5023 = vld [vmem:[%s5022] sm:$0x2]
    %vm5024 = vcmask 1041409
    %v5025 = vsel %vm5024, %v5023, %v5021
    %s5026 = scalar_lea.vmem [#allocation0], 3742
    %v5027 = vld [vmem:[%s5026] sm:$0x4]
    %vm5028 = vcmask 1042434
    %v5029 = vsel %vm5028, %v5027, %v5025
    %s5030 = scalar_lea.vmem [#allocation0], 3805
    %v5031 = vld [vmem:[%s5030] sm:$0x8]
    %vm5032 = vcmask 1043459
    %v5033 = vsel %vm5032, %v5031, %v5029
    %s5034 = scalar_lea.vmem [#allocation0], 3868
    %v5035 = vld [vmem:[%s5034] sm:$0x10]
    %vm5036 = vcmask 1044484
    %v5037 = vsel %vm5036, %v5035, %v5033
    %s5038 = scalar_lea.vmem [#allocation0], 3931
    %v5039 = vld [vmem:[%s5038] sm:$0x20]
    %vm5040 = vcmask 1045509
    %v5041 = vsel %vm5040, %v5039, %v5037
    %s5042 = scalar_lea.vmem [#allocation0], 3994
    %v5043 = vld [vmem:[%s5042] sm:$0x40]
    %vm5044 = vcmask 1046534
    %v5045 = vsel %vm5044, %v5043, %v5041
    %s5046 = scalar_lea.vmem [#allocation0], 4057
    %v5047 = vld [vmem:[%s5046] sm:$0x80]
    %vm5048 = vcmask 1047559
    %v5049 = vsel %vm5048, %v5047, %v5045
    %5050 = vrot.lane.b32.xlu0 %v5049, 56
    %v5051 = vpop.permute.xlu0 %5050
    %vm5052 = vcmask 515520
    %s5053 = scalar_lea.vmem %s1, 56
    %5054 = vst.msk [vmem:[%s5053] sm:$0xff] %vm5052, %v5051
    %s5055 = scalar_lea.vmem [#allocation0], 25
    %v5056 = vld [vmem:[%s5055] sm:$0x1]
    %s5057 = scalar_lea.vmem [#allocation0], 88
    %v5058 = vld [vmem:[%s5057] sm:$0x2]
    %vm5059 = vcmask 1041409
    %v5060 = vsel %vm5059, %v5058, %v5056
    %s5061 = scalar_lea.vmem [#allocation0], 151
    %v5062 = vld [vmem:[%s5061] sm:$0x4]
    %vm5063 = vcmask 1042434
    %v5064 = vsel %vm5063, %v5062, %v5060
    %s5065 = scalar_lea.vmem [#allocation0], 214
    %v5066 = vld [vmem:[%s5065] sm:$0x8]
    %vm5067 = vcmask 1043459
    %v5068 = vsel %vm5067, %v5066, %v5064
    %s5069 = scalar_lea.vmem [#allocation0], 277
    %v5070 = vld [vmem:[%s5069] sm:$0x10]
    %vm5071 = vcmask 1044484
    %v5072 = vsel %vm5071, %v5070, %v5068
    %s5073 = scalar_lea.vmem [#allocation0], 340
    %v5074 = vld [vmem:[%s5073] sm:$0x20]
    %vm5075 = vcmask 1045509
    %v5076 = vsel %vm5075, %v5074, %v5072
    %s5077 = scalar_lea.vmem [#allocation0], 403
    %v5078 = vld [vmem:[%s5077] sm:$0x40]
    %vm5079 = vcmask 1046534
    %v5080 = vsel %vm5079, %v5078, %v5076
    %s5081 = scalar_lea.vmem [#allocation0], 466
    %v5082 = vld [vmem:[%s5081] sm:$0x80]
    %vm5083 = vcmask 1047559
    %v5084 = vsel %vm5083, %v5082, %v5080
    %5085 = vrot.lane.b32.xlu0 %v5084, 49
    %v5086 = vpop.permute.xlu0 %5085
    %vm5087 = vcmask 458120
    %5088 = vst.msk [vmem:[%s1] sm:$0xff] %vm5087, %v5086
    %s5089 = scalar_lea.vmem [#allocation0], 2073
    %v5090 = vld [vmem:[%s5089] sm:$0x1]
    %s5091 = scalar_lea.vmem [#allocation0], 2136
    %v5092 = vld [vmem:[%s5091] sm:$0x2]
    %vm5093 = vcmask 1041409
    %v5094 = vsel %vm5093, %v5092, %v5090
    %s5095 = scalar_lea.vmem [#allocation0], 2199
    %v5096 = vld [vmem:[%s5095] sm:$0x4]
    %vm5097 = vcmask 1042434
    %v5098 = vsel %vm5097, %v5096, %v5094
    %s5099 = scalar_lea.vmem [#allocation0], 2262
    %v5100 = vld [vmem:[%s5099] sm:$0x8]
    %vm5101 = vcmask 1043459
    %v5102 = vsel %vm5101, %v5100, %v5098
    %s5103 = scalar_lea.vmem [#allocation0], 2325
    %v5104 = vld [vmem:[%s5103] sm:$0x10]
    %vm5105 = vcmask 1044484
    %v5106 = vsel %vm5105, %v5104, %v5102
    %s5107 = scalar_lea.vmem [#allocation0], 2388
    %v5108 = vld [vmem:[%s5107] sm:$0x20]
    %vm5109 = vcmask 1045509
    %v5110 = vsel %vm5109, %v5108, %v5106
    %s5111 = scalar_lea.vmem [#allocation0], 2451
    %v5112 = vld [vmem:[%s5111] sm:$0x40]
    %vm5113 = vcmask 1046534
    %v5114 = vsel %vm5113, %v5112, %v5110
    %s5115 = scalar_lea.vmem [#allocation0], 2514
    %v5116 = vld [vmem:[%s5115] sm:$0x80]
    %vm5117 = vcmask 1047559
    %v5118 = vsel %vm5117, %v5116, %v5114
    %5119 = vrot.lane.b32.xlu0 %v5118, 49
    %v5120 = vpop.permute.xlu0 %5119
    %vm5121 = vcmask 458120
    %s5122 = scalar_lea.vmem %s1, 32
    %5123 = vst.msk [vmem:[%s5122] sm:$0xff] %vm5121, %v5120
    %s5124 = scalar_lea.vmem [#allocation0], 537
    %v5125 = vld [vmem:[%s5124] sm:$0x1]
    %s5126 = scalar_lea.vmem [#allocation0], 600
    %v5127 = vld [vmem:[%s5126] sm:$0x2]
    %vm5128 = vcmask 1041409
    %v5129 = vsel %vm5128, %v5127, %v5125
    %s5130 = scalar_lea.vmem [#allocation0], 663
    %v5131 = vld [vmem:[%s5130] sm:$0x4]
    %vm5132 = vcmask 1042434
    %v5133 = vsel %vm5132, %v5131, %v5129
    %s5134 = scalar_lea.vmem [#allocation0], 726
    %v5135 = vld [vmem:[%s5134] sm:$0x8]
    %vm5136 = vcmask 1043459
    %v5137 = vsel %vm5136, %v5135, %v5133
    %s5138 = scalar_lea.vmem [#allocation0], 789
    %v5139 = vld [vmem:[%s5138] sm:$0x10]
    %vm5140 = vcmask 1044484
    %v5141 = vsel %vm5140, %v5139, %v5137
    %s5142 = scalar_lea.vmem [#allocation0], 852
    %v5143 = vld [vmem:[%s5142] sm:$0x20]
    %vm5144 = vcmask 1045509
    %v5145 = vsel %vm5144, %v5143, %v5141
    %s5146 = scalar_lea.vmem [#allocation0], 915
    %v5147 = vld [vmem:[%s5146] sm:$0x40]
    %vm5148 = vcmask 1046534
    %v5149 = vsel %vm5148, %v5147, %v5145
    %s5150 = scalar_lea.vmem [#allocation0], 978
    %v5151 = vld [vmem:[%s5150] sm:$0x80]
    %vm5152 = vcmask 1047559
    %v5153 = vsel %vm5152, %v5151, %v5149
    %5154 = vrot.lane.b32.xlu0 %v5153, 49
    %v5155 = vpop.permute.xlu0 %5154
    %vm5156 = vcmask 458120
    %s5157 = scalar_lea.vmem %s1, 8
    %5158 = vst.msk [vmem:[%s5157] sm:$0xff] %vm5156, %v5155
    %s5159 = scalar_lea.vmem [#allocation0], 2585
    %v5160 = vld [vmem:[%s5159] sm:$0x1]
    %s5161 = scalar_lea.vmem [#allocation0], 2648
    %v5162 = vld [vmem:[%s5161] sm:$0x2]
    %vm5163 = vcmask 1041409
    %v5164 = vsel %vm5163, %v5162, %v5160
    %s5165 = scalar_lea.vmem [#allocation0], 2711
    %v5166 = vld [vmem:[%s5165] sm:$0x4]
    %vm5167 = vcmask 1042434
    %v5168 = vsel %vm5167, %v5166, %v5164
    %s5169 = scalar_lea.vmem [#allocation0], 2774
    %v5170 = vld [vmem:[%s5169] sm:$0x8]
    %vm5171 = vcmask 1043459
    %v5172 = vsel %vm5171, %v5170, %v5168
    %s5173 = scalar_lea.vmem [#allocation0], 2837
    %v5174 = vld [vmem:[%s5173] sm:$0x10]
    %vm5175 = vcmask 1044484
    %v5176 = vsel %vm5175, %v5174, %v5172
    %s5177 = scalar_lea.vmem [#allocation0], 2900
    %v5178 = vld [vmem:[%s5177] sm:$0x20]
    %vm5179 = vcmask 1045509
    %v5180 = vsel %vm5179, %v5178, %v5176
    %s5181 = scalar_lea.vmem [#allocation0], 2963
    %v5182 = vld [vmem:[%s5181] sm:$0x40]
    %vm5183 = vcmask 1046534
    %v5184 = vsel %vm5183, %v5182, %v5180
    %s5185 = scalar_lea.vmem [#allocation0], 3026
    %v5186 = vld [vmem:[%s5185] sm:$0x80]
    %vm5187 = vcmask 1047559
    %v5188 = vsel %vm5187, %v5186, %v5184
    %5189 = vrot.lane.b32.xlu0 %v5188, 49
    %v5190 = vpop.permute.xlu0 %5189
    %vm5191 = vcmask 458120
    %s5192 = scalar_lea.vmem %s1, 40
    %5193 = vst.msk [vmem:[%s5192] sm:$0xff] %vm5191, %v5190
    %s5194 = scalar_lea.vmem [#allocation0], 1049
    %v5195 = vld [vmem:[%s5194] sm:$0x1]
    %s5196 = scalar_lea.vmem [#allocation0], 1112
    %v5197 = vld [vmem:[%s5196] sm:$0x2]
    %vm5198 = vcmask 1041409
    %v5199 = vsel %vm5198, %v5197, %v5195
    %s5200 = scalar_lea.vmem [#allocation0], 1175
    %v5201 = vld [vmem:[%s5200] sm:$0x4]
    %vm5202 = vcmask 1042434
    %v5203 = vsel %vm5202, %v5201, %v5199
    %s5204 = scalar_lea.vmem [#allocation0], 1238
    %v5205 = vld [vmem:[%s5204] sm:$0x8]
    %vm5206 = vcmask 1043459
    %v5207 = vsel %vm5206, %v5205, %v5203
    %s5208 = scalar_lea.vmem [#allocation0], 1301
    %v5209 = vld [vmem:[%s5208] sm:$0x10]
    %vm5210 = vcmask 1044484
    %v5211 = vsel %vm5210, %v5209, %v5207
    %s5212 = scalar_lea.vmem [#allocation0], 1364
    %v5213 = vld [vmem:[%s5212] sm:$0x20]
    %vm5214 = vcmask 1045509
    %v5215 = vsel %vm5214, %v5213, %v5211
    %s5216 = scalar_lea.vmem [#allocation0], 1427
    %v5217 = vld [vmem:[%s5216] sm:$0x40]
    %vm5218 = vcmask 1046534
    %v5219 = vsel %vm5218, %v5217, %v5215
    %s5220 = scalar_lea.vmem [#allocation0], 1490
    %v5221 = vld [vmem:[%s5220] sm:$0x80]
    %vm5222 = vcmask 1047559
    %v5223 = vsel %vm5222, %v5221, %v5219
    %5224 = vrot.lane.b32.xlu0 %v5223, 49
    %v5225 = vpop.permute.xlu0 %5224
    %vm5226 = vcmask 458120
    %s5227 = scalar_lea.vmem %s1, 16
    %5228 = vst.msk [vmem:[%s5227] sm:$0xff] %vm5226, %v5225
    %s5229 = scalar_lea.vmem [#allocation0], 3097
    %v5230 = vld [vmem:[%s5229] sm:$0x1]
    %s5231 = scalar_lea.vmem [#allocation0], 3160
    %v5232 = vld [vmem:[%s5231] sm:$0x2]
    %vm5233 = vcmask 1041409
    %v5234 = vsel %vm5233, %v5232, %v5230
    %s5235 = scalar_lea.vmem [#allocation0], 3223
    %v5236 = vld [vmem:[%s5235] sm:$0x4]
    %vm5237 = vcmask 1042434
    %v5238 = vsel %vm5237, %v5236, %v5234
    %s5239 = scalar_lea.vmem [#allocation0], 3286
    %v5240 = vld [vmem:[%s5239] sm:$0x8]
    %vm5241 = vcmask 1043459
    %v5242 = vsel %vm5241, %v5240, %v5238
    %s5243 = scalar_lea.vmem [#allocation0], 3349
    %v5244 = vld [vmem:[%s5243] sm:$0x10]
    %vm5245 = vcmask 1044484
    %v5246 = vsel %vm5245, %v5244, %v5242
    %s5247 = scalar_lea.vmem [#allocation0], 3412
    %v5248 = vld [vmem:[%s5247] sm:$0x20]
    %vm5249 = vcmask 1045509
    %v5250 = vsel %vm5249, %v5248, %v5246
    %s5251 = scalar_lea.vmem [#allocation0], 3475
    %v5252 = vld [vmem:[%s5251] sm:$0x40]
    %vm5253 = vcmask 1046534
    %v5254 = vsel %vm5253, %v5252, %v5250
    %s5255 = scalar_lea.vmem [#allocation0], 3538
    %v5256 = vld [vmem:[%s5255] sm:$0x80]
    %vm5257 = vcmask 1047559
    %v5258 = vsel %vm5257, %v5256, %v5254
    %5259 = vrot.lane.b32.xlu0 %v5258, 49
    %v5260 = vpop.permute.xlu0 %5259
    %vm5261 = vcmask 458120
    %s5262 = scalar_lea.vmem %s1, 48
    %5263 = vst.msk [vmem:[%s5262] sm:$0xff] %vm5261, %v5260
    %s5264 = scalar_lea.vmem [#allocation0], 1561
    %v5265 = vld [vmem:[%s5264] sm:$0x1]
    %s5266 = scalar_lea.vmem [#allocation0], 1624
    %v5267 = vld [vmem:[%s5266] sm:$0x2]
    %vm5268 = vcmask 1041409
    %v5269 = vsel %vm5268, %v5267, %v5265
    %s5270 = scalar_lea.vmem [#allocation0], 1687
    %v5271 = vld [vmem:[%s5270] sm:$0x4]
    %vm5272 = vcmask 1042434
    %v5273 = vsel %vm5272, %v5271, %v5269
    %s5274 = scalar_lea.vmem [#allocation0], 1750
    %v5275 = vld [vmem:[%s5274] sm:$0x8]
    %vm5276 = vcmask 1043459
    %v5277 = vsel %vm5276, %v5275, %v5273
    %s5278 = scalar_lea.vmem [#allocation0], 1813
    %v5279 = vld [vmem:[%s5278] sm:$0x10]
    %vm5280 = vcmask 1044484
    %v5281 = vsel %vm5280, %v5279, %v5277
    %s5282 = scalar_lea.vmem [#allocation0], 1876
    %v5283 = vld [vmem:[%s5282] sm:$0x20]
    %vm5284 = vcmask 1045509
    %v5285 = vsel %vm5284, %v5283, %v5281
    %s5286 = scalar_lea.vmem [#allocation0], 1939
    %v5287 = vld [vmem:[%s5286] sm:$0x40]
    %vm5288 = vcmask 1046534
    %v5289 = vsel %vm5288, %v5287, %v5285
    %s5290 = scalar_lea.vmem [#allocation0], 2002
    %v5291 = vld [vmem:[%s5290] sm:$0x80]
    %vm5292 = vcmask 1047559
    %v5293 = vsel %vm5292, %v5291, %v5289
    %5294 = vrot.lane.b32.xlu0 %v5293, 49
    %v5295 = vpop.permute.xlu0 %5294
    %vm5296 = vcmask 458120
    %s5297 = scalar_lea.vmem %s1, 24
    %5298 = vst.msk [vmem:[%s5297] sm:$0xff] %vm5296, %v5295
    %s5299 = scalar_lea.vmem [#allocation0], 3609
    %v5300 = vld [vmem:[%s5299] sm:$0x1]
    %s5301 = scalar_lea.vmem [#allocation0], 3672
    %v5302 = vld [vmem:[%s5301] sm:$0x2]
    %vm5303 = vcmask 1041409
    %v5304 = vsel %vm5303, %v5302, %v5300
    %s5305 = scalar_lea.vmem [#allocation0], 3735
    %v5306 = vld [vmem:[%s5305] sm:$0x4]
    %vm5307 = vcmask 1042434
    %v5308 = vsel %vm5307, %v5306, %v5304
    %s5309 = scalar_lea.vmem [#allocation0], 3798
    %v5310 = vld [vmem:[%s5309] sm:$0x8]
    %vm5311 = vcmask 1043459
    %v5312 = vsel %vm5311, %v5310, %v5308
    %s5313 = scalar_lea.vmem [#allocation0], 3861
    %v5314 = vld [vmem:[%s5313] sm:$0x10]
    %vm5315 = vcmask 1044484
    %v5316 = vsel %vm5315, %v5314, %v5312
    %s5317 = scalar_lea.vmem [#allocation0], 3924
    %v5318 = vld [vmem:[%s5317] sm:$0x20]
    %vm5319 = vcmask 1045509
    %v5320 = vsel %vm5319, %v5318, %v5316
    %s5321 = scalar_lea.vmem [#allocation0], 3987
    %v5322 = vld [vmem:[%s5321] sm:$0x40]
    %vm5323 = vcmask 1046534
    %v5324 = vsel %vm5323, %v5322, %v5320
    %s5325 = scalar_lea.vmem [#allocation0], 4050
    %v5326 = vld [vmem:[%s5325] sm:$0x80]
    %vm5327 = vcmask 1047559
    %v5328 = vsel %vm5327, %v5326, %v5324
    %5329 = vrot.lane.b32.xlu0 %v5328, 49
    %v5330 = vpop.permute.xlu0 %5329
    %vm5331 = vcmask 458120
    %s5332 = scalar_lea.vmem %s1, 56
    %5333 = vst.msk [vmem:[%s5332] sm:$0xff] %vm5331, %v5330
    %s5334 = scalar_lea.vmem [#allocation0], 24
    %v5335 = vld [vmem:[%s5334] sm:$0x1]
    %s5336 = scalar_lea.vmem [#allocation0], 87
    %v5337 = vld [vmem:[%s5336] sm:$0x2]
    %vm5338 = vcmask 1041409
    %v5339 = vsel %vm5338, %v5337, %v5335
    %s5340 = scalar_lea.vmem [#allocation0], 150
    %v5341 = vld [vmem:[%s5340] sm:$0x4]
    %vm5342 = vcmask 1042434
    %v5343 = vsel %vm5342, %v5341, %v5339
    %s5344 = scalar_lea.vmem [#allocation0], 213
    %v5345 = vld [vmem:[%s5344] sm:$0x8]
    %vm5346 = vcmask 1043459
    %v5347 = vsel %vm5346, %v5345, %v5343
    %s5348 = scalar_lea.vmem [#allocation0], 276
    %v5349 = vld [vmem:[%s5348] sm:$0x10]
    %vm5350 = vcmask 1044484
    %v5351 = vsel %vm5350, %v5349, %v5347
    %s5352 = scalar_lea.vmem [#allocation0], 339
    %v5353 = vld [vmem:[%s5352] sm:$0x20]
    %vm5354 = vcmask 1045509
    %v5355 = vsel %vm5354, %v5353, %v5351
    %s5356 = scalar_lea.vmem [#allocation0], 402
    %v5357 = vld [vmem:[%s5356] sm:$0x40]
    %vm5358 = vcmask 1046534
    %v5359 = vsel %vm5358, %v5357, %v5355
    %s5360 = scalar_lea.vmem [#allocation0], 465
    %v5361 = vld [vmem:[%s5360] sm:$0x80]
    %vm5362 = vcmask 1047559
    %v5363 = vsel %vm5362, %v5361, %v5359
    %5364 = vrot.lane.b32.xlu0 %v5363, 42
    %v5365 = vpop.permute.xlu0 %5364
    %vm5366 = vcmask 400720
    %5367 = vst.msk [vmem:[%s1] sm:$0xff] %vm5366, %v5365
    %s5368 = scalar_lea.vmem [#allocation0], 2072
    %v5369 = vld [vmem:[%s5368] sm:$0x1]
    %s5370 = scalar_lea.vmem [#allocation0], 2135
    %v5371 = vld [vmem:[%s5370] sm:$0x2]
    %vm5372 = vcmask 1041409
    %v5373 = vsel %vm5372, %v5371, %v5369
    %s5374 = scalar_lea.vmem [#allocation0], 2198
    %v5375 = vld [vmem:[%s5374] sm:$0x4]
    %vm5376 = vcmask 1042434
    %v5377 = vsel %vm5376, %v5375, %v5373
    %s5378 = scalar_lea.vmem [#allocation0], 2261
    %v5379 = vld [vmem:[%s5378] sm:$0x8]
    %vm5380 = vcmask 1043459
    %v5381 = vsel %vm5380, %v5379, %v5377
    %s5382 = scalar_lea.vmem [#allocation0], 2324
    %v5383 = vld [vmem:[%s5382] sm:$0x10]
    %vm5384 = vcmask 1044484
    %v5385 = vsel %vm5384, %v5383, %v5381
    %s5386 = scalar_lea.vmem [#allocation0], 2387
    %v5387 = vld [vmem:[%s5386] sm:$0x20]
    %vm5388 = vcmask 1045509
    %v5389 = vsel %vm5388, %v5387, %v5385
    %s5390 = scalar_lea.vmem [#allocation0], 2450
    %v5391 = vld [vmem:[%s5390] sm:$0x40]
    %vm5392 = vcmask 1046534
    %v5393 = vsel %vm5392, %v5391, %v5389
    %s5394 = scalar_lea.vmem [#allocation0], 2513
    %v5395 = vld [vmem:[%s5394] sm:$0x80]
    %vm5396 = vcmask 1047559
    %v5397 = vsel %vm5396, %v5395, %v5393
    %5398 = vrot.lane.b32.xlu0 %v5397, 42
    %v5399 = vpop.permute.xlu0 %5398
    %vm5400 = vcmask 400720
    %s5401 = scalar_lea.vmem %s1, 32
    %5402 = vst.msk [vmem:[%s5401] sm:$0xff] %vm5400, %v5399
    %s5403 = scalar_lea.vmem [#allocation0], 536
    %v5404 = vld [vmem:[%s5403] sm:$0x1]
    %s5405 = scalar_lea.vmem [#allocation0], 599
    %v5406 = vld [vmem:[%s5405] sm:$0x2]
    %vm5407 = vcmask 1041409
    %v5408 = vsel %vm5407, %v5406, %v5404
    %s5409 = scalar_lea.vmem [#allocation0], 662
    %v5410 = vld [vmem:[%s5409] sm:$0x4]
    %vm5411 = vcmask 1042434
    %v5412 = vsel %vm5411, %v5410, %v5408
    %s5413 = scalar_lea.vmem [#allocation0], 725
    %v5414 = vld [vmem:[%s5413] sm:$0x8]
    %vm5415 = vcmask 1043459
    %v5416 = vsel %vm5415, %v5414, %v5412
    %s5417 = scalar_lea.vmem [#allocation0], 788
    %v5418 = vld [vmem:[%s5417] sm:$0x10]
    %vm5419 = vcmask 1044484
    %v5420 = vsel %vm5419, %v5418, %v5416
    %s5421 = scalar_lea.vmem [#allocation0], 851
    %v5422 = vld [vmem:[%s5421] sm:$0x20]
    %vm5423 = vcmask 1045509
    %v5424 = vsel %vm5423, %v5422, %v5420
    %s5425 = scalar_lea.vmem [#allocation0], 914
    %v5426 = vld [vmem:[%s5425] sm:$0x40]
    %vm5427 = vcmask 1046534
    %v5428 = vsel %vm5427, %v5426, %v5424
    %s5429 = scalar_lea.vmem [#allocation0], 977
    %v5430 = vld [vmem:[%s5429] sm:$0x80]
    %vm5431 = vcmask 1047559
    %v5432 = vsel %vm5431, %v5430, %v5428
    %5433 = vrot.lane.b32.xlu0 %v5432, 42
    %v5434 = vpop.permute.xlu0 %5433
    %vm5435 = vcmask 400720
    %s5436 = scalar_lea.vmem %s1, 8
    %5437 = vst.msk [vmem:[%s5436] sm:$0xff] %vm5435, %v5434
    %s5438 = scalar_lea.vmem [#allocation0], 2584
    %v5439 = vld [vmem:[%s5438] sm:$0x1]
    %s5440 = scalar_lea.vmem [#allocation0], 2647
    %v5441 = vld [vmem:[%s5440] sm:$0x2]
    %vm5442 = vcmask 1041409
    %v5443 = vsel %vm5442, %v5441, %v5439
    %s5444 = scalar_lea.vmem [#allocation0], 2710
    %v5445 = vld [vmem:[%s5444] sm:$0x4]
    %vm5446 = vcmask 1042434
    %v5447 = vsel %vm5446, %v5445, %v5443
    %s5448 = scalar_lea.vmem [#allocation0], 2773
    %v5449 = vld [vmem:[%s5448] sm:$0x8]
    %vm5450 = vcmask 1043459
    %v5451 = vsel %vm5450, %v5449, %v5447
    %s5452 = scalar_lea.vmem [#allocation0], 2836
    %v5453 = vld [vmem:[%s5452] sm:$0x10]
    %vm5454 = vcmask 1044484
    %v5455 = vsel %vm5454, %v5453, %v5451
    %s5456 = scalar_lea.vmem [#allocation0], 2899
    %v5457 = vld [vmem:[%s5456] sm:$0x20]
    %vm5458 = vcmask 1045509
    %v5459 = vsel %vm5458, %v5457, %v5455
    %s5460 = scalar_lea.vmem [#allocation0], 2962
    %v5461 = vld [vmem:[%s5460] sm:$0x40]
    %vm5462 = vcmask 1046534
    %v5463 = vsel %vm5462, %v5461, %v5459
    %s5464 = scalar_lea.vmem [#allocation0], 3025
    %v5465 = vld [vmem:[%s5464] sm:$0x80]
    %vm5466 = vcmask 1047559
    %v5467 = vsel %vm5466, %v5465, %v5463
    %5468 = vrot.lane.b32.xlu0 %v5467, 42
    %v5469 = vpop.permute.xlu0 %5468
    %vm5470 = vcmask 400720
    %s5471 = scalar_lea.vmem %s1, 40
    %5472 = vst.msk [vmem:[%s5471] sm:$0xff] %vm5470, %v5469
    %s5473 = scalar_lea.vmem [#allocation0], 1048
    %v5474 = vld [vmem:[%s5473] sm:$0x1]
    %s5475 = scalar_lea.vmem [#allocation0], 1111
    %v5476 = vld [vmem:[%s5475] sm:$0x2]
    %vm5477 = vcmask 1041409
    %v5478 = vsel %vm5477, %v5476, %v5474
    %s5479 = scalar_lea.vmem [#allocation0], 1174
    %v5480 = vld [vmem:[%s5479] sm:$0x4]
    %vm5481 = vcmask 1042434
    %v5482 = vsel %vm5481, %v5480, %v5478
    %s5483 = scalar_lea.vmem [#allocation0], 1237
    %v5484 = vld [vmem:[%s5483] sm:$0x8]
    %vm5485 = vcmask 1043459
    %v5486 = vsel %vm5485, %v5484, %v5482
    %s5487 = scalar_lea.vmem [#allocation0], 1300
    %v5488 = vld [vmem:[%s5487] sm:$0x10]
    %vm5489 = vcmask 1044484
    %v5490 = vsel %vm5489, %v5488, %v5486
    %s5491 = scalar_lea.vmem [#allocation0], 1363
    %v5492 = vld [vmem:[%s5491] sm:$0x20]
    %vm5493 = vcmask 1045509
    %v5494 = vsel %vm5493, %v5492, %v5490
    %s5495 = scalar_lea.vmem [#allocation0], 1426
    %v5496 = vld [vmem:[%s5495] sm:$0x40]
    %vm5497 = vcmask 1046534
    %v5498 = vsel %vm5497, %v5496, %v5494
    %s5499 = scalar_lea.vmem [#allocation0], 1489
    %v5500 = vld [vmem:[%s5499] sm:$0x80]
    %vm5501 = vcmask 1047559
    %v5502 = vsel %vm5501, %v5500, %v5498
    %5503 = vrot.lane.b32.xlu0 %v5502, 42
    %v5504 = vpop.permute.xlu0 %5503
    %vm5505 = vcmask 400720
    %s5506 = scalar_lea.vmem %s1, 16
    %5507 = vst.msk [vmem:[%s5506] sm:$0xff] %vm5505, %v5504
    %s5508 = scalar_lea.vmem [#allocation0], 3096
    %v5509 = vld [vmem:[%s5508] sm:$0x1]
    %s5510 = scalar_lea.vmem [#allocation0], 3159
    %v5511 = vld [vmem:[%s5510] sm:$0x2]
    %vm5512 = vcmask 1041409
    %v5513 = vsel %vm5512, %v5511, %v5509
    %s5514 = scalar_lea.vmem [#allocation0], 3222
    %v5515 = vld [vmem:[%s5514] sm:$0x4]
    %vm5516 = vcmask 1042434
    %v5517 = vsel %vm5516, %v5515, %v5513
    %s5518 = scalar_lea.vmem [#allocation0], 3285
    %v5519 = vld [vmem:[%s5518] sm:$0x8]
    %vm5520 = vcmask 1043459
    %v5521 = vsel %vm5520, %v5519, %v5517
    %s5522 = scalar_lea.vmem [#allocation0], 3348
    %v5523 = vld [vmem:[%s5522] sm:$0x10]
    %vm5524 = vcmask 1044484
    %v5525 = vsel %vm5524, %v5523, %v5521
    %s5526 = scalar_lea.vmem [#allocation0], 3411
    %v5527 = vld [vmem:[%s5526] sm:$0x20]
    %vm5528 = vcmask 1045509
    %v5529 = vsel %vm5528, %v5527, %v5525
    %s5530 = scalar_lea.vmem [#allocation0], 3474
    %v5531 = vld [vmem:[%s5530] sm:$0x40]
    %vm5532 = vcmask 1046534
    %v5533 = vsel %vm5532, %v5531, %v5529
    %s5534 = scalar_lea.vmem [#allocation0], 3537
    %v5535 = vld [vmem:[%s5534] sm:$0x80]
    %vm5536 = vcmask 1047559
    %v5537 = vsel %vm5536, %v5535, %v5533
    %5538 = vrot.lane.b32.xlu0 %v5537, 42
    %v5539 = vpop.permute.xlu0 %5538
    %vm5540 = vcmask 400720
    %s5541 = scalar_lea.vmem %s1, 48
    %5542 = vst.msk [vmem:[%s5541] sm:$0xff] %vm5540, %v5539
    %s5543 = scalar_lea.vmem [#allocation0], 1560
    %v5544 = vld [vmem:[%s5543] sm:$0x1]
    %s5545 = scalar_lea.vmem [#allocation0], 1623
    %v5546 = vld [vmem:[%s5545] sm:$0x2]
    %vm5547 = vcmask 1041409
    %v5548 = vsel %vm5547, %v5546, %v5544
    %s5549 = scalar_lea.vmem [#allocation0], 1686
    %v5550 = vld [vmem:[%s5549] sm:$0x4]
    %vm5551 = vcmask 1042434
    %v5552 = vsel %vm5551, %v5550, %v5548
    %s5553 = scalar_lea.vmem [#allocation0], 1749
    %v5554 = vld [vmem:[%s5553] sm:$0x8]
    %vm5555 = vcmask 1043459
    %v5556 = vsel %vm5555, %v5554, %v5552
    %s5557 = scalar_lea.vmem [#allocation0], 1812
    %v5558 = vld [vmem:[%s5557] sm:$0x10]
    %vm5559 = vcmask 1044484
    %v5560 = vsel %vm5559, %v5558, %v5556
    %s5561 = scalar_lea.vmem [#allocation0], 1875
    %v5562 = vld [vmem:[%s5561] sm:$0x20]
    %vm5563 = vcmask 1045509
    %v5564 = vsel %vm5563, %v5562, %v5560
    %s5565 = scalar_lea.vmem [#allocation0], 1938
    %v5566 = vld [vmem:[%s5565] sm:$0x40]
    %vm5567 = vcmask 1046534
    %v5568 = vsel %vm5567, %v5566, %v5564
    %s5569 = scalar_lea.vmem [#allocation0], 2001
    %v5570 = vld [vmem:[%s5569] sm:$0x80]
    %vm5571 = vcmask 1047559
    %v5572 = vsel %vm5571, %v5570, %v5568
    %5573 = vrot.lane.b32.xlu0 %v5572, 42
    %v5574 = vpop.permute.xlu0 %5573
    %vm5575 = vcmask 400720
    %s5576 = scalar_lea.vmem %s1, 24
    %5577 = vst.msk [vmem:[%s5576] sm:$0xff] %vm5575, %v5574
    %s5578 = scalar_lea.vmem [#allocation0], 3608
    %v5579 = vld [vmem:[%s5578] sm:$0x1]
    %s5580 = scalar_lea.vmem [#allocation0], 3671
    %v5581 = vld [vmem:[%s5580] sm:$0x2]
    %vm5582 = vcmask 1041409
    %v5583 = vsel %vm5582, %v5581, %v5579
    %s5584 = scalar_lea.vmem [#allocation0], 3734
    %v5585 = vld [vmem:[%s5584] sm:$0x4]
    %vm5586 = vcmask 1042434
    %v5587 = vsel %vm5586, %v5585, %v5583
    %s5588 = scalar_lea.vmem [#allocation0], 3797
    %v5589 = vld [vmem:[%s5588] sm:$0x8]
    %vm5590 = vcmask 1043459
    %v5591 = vsel %vm5590, %v5589, %v5587
    %s5592 = scalar_lea.vmem [#allocation0], 3860
    %v5593 = vld [vmem:[%s5592] sm:$0x10]
    %vm5594 = vcmask 1044484
    %v5595 = vsel %vm5594, %v5593, %v5591
    %s5596 = scalar_lea.vmem [#allocation0], 3923
    %v5597 = vld [vmem:[%s5596] sm:$0x20]
    %vm5598 = vcmask 1045509
    %v5599 = vsel %vm5598, %v5597, %v5595
    %s5600 = scalar_lea.vmem [#allocation0], 3986
    %v5601 = vld [vmem:[%s5600] sm:$0x40]
    %vm5602 = vcmask 1046534
    %v5603 = vsel %vm5602, %v5601, %v5599
    %s5604 = scalar_lea.vmem [#allocation0], 4049
    %v5605 = vld [vmem:[%s5604] sm:$0x80]
    %vm5606 = vcmask 1047559
    %v5607 = vsel %vm5606, %v5605, %v5603
    %5608 = vrot.lane.b32.xlu0 %v5607, 42
    %v5609 = vpop.permute.xlu0 %5608
    %vm5610 = vcmask 400720
    %s5611 = scalar_lea.vmem %s1, 56
    %5612 = vst.msk [vmem:[%s5611] sm:$0xff] %vm5610, %v5609
    %s5613 = scalar_lea.vmem [#allocation0], 17
    %v5614 = vld [vmem:[%s5613] sm:$0x1]
    %s5615 = scalar_lea.vmem [#allocation0], 80
    %v5616 = vld [vmem:[%s5615] sm:$0x2]
    %vm5617 = vcmask 1041409
    %v5618 = vsel %vm5617, %v5616, %v5614
    %s5619 = scalar_lea.vmem [#allocation0], 143
    %v5620 = vld [vmem:[%s5619] sm:$0x4]
    %vm5621 = vcmask 1042434
    %v5622 = vsel %vm5621, %v5620, %v5618
    %s5623 = scalar_lea.vmem [#allocation0], 206
    %v5624 = vld [vmem:[%s5623] sm:$0x8]
    %vm5625 = vcmask 1043459
    %v5626 = vsel %vm5625, %v5624, %v5622
    %s5627 = scalar_lea.vmem [#allocation0], 269
    %v5628 = vld [vmem:[%s5627] sm:$0x10]
    %vm5629 = vcmask 1044484
    %v5630 = vsel %vm5629, %v5628, %v5626
    %s5631 = scalar_lea.vmem [#allocation0], 332
    %v5632 = vld [vmem:[%s5631] sm:$0x20]
    %vm5633 = vcmask 1045509
    %v5634 = vsel %vm5633, %v5632, %v5630
    %s5635 = scalar_lea.vmem [#allocation0], 395
    %v5636 = vld [vmem:[%s5635] sm:$0x40]
    %vm5637 = vcmask 1046534
    %v5638 = vsel %vm5637, %v5636, %v5634
    %s5639 = scalar_lea.vmem [#allocation0], 458
    %v5640 = vld [vmem:[%s5639] sm:$0x80]
    %vm5641 = vcmask 1047559
    %v5642 = vsel %vm5641, %v5640, %v5638
    %5643 = vrot.lane.b32.xlu0 %v5642, 35
    %v5644 = vpop.permute.xlu0 %5643
    %vm5645 = vcmask 343320
    %5646 = vst.msk [vmem:[%s1] sm:$0xff] %vm5645, %v5644
    %s5647 = scalar_lea.vmem [#allocation0], 2065
    %v5648 = vld [vmem:[%s5647] sm:$0x1]
    %s5649 = scalar_lea.vmem [#allocation0], 2128
    %v5650 = vld [vmem:[%s5649] sm:$0x2]
    %vm5651 = vcmask 1041409
    %v5652 = vsel %vm5651, %v5650, %v5648
    %s5653 = scalar_lea.vmem [#allocation0], 2191
    %v5654 = vld [vmem:[%s5653] sm:$0x4]
    %vm5655 = vcmask 1042434
    %v5656 = vsel %vm5655, %v5654, %v5652
    %s5657 = scalar_lea.vmem [#allocation0], 2254
    %v5658 = vld [vmem:[%s5657] sm:$0x8]
    %vm5659 = vcmask 1043459
    %v5660 = vsel %vm5659, %v5658, %v5656
    %s5661 = scalar_lea.vmem [#allocation0], 2317
    %v5662 = vld [vmem:[%s5661] sm:$0x10]
    %vm5663 = vcmask 1044484
    %v5664 = vsel %vm5663, %v5662, %v5660
    %s5665 = scalar_lea.vmem [#allocation0], 2380
    %v5666 = vld [vmem:[%s5665] sm:$0x20]
    %vm5667 = vcmask 1045509
    %v5668 = vsel %vm5667, %v5666, %v5664
    %s5669 = scalar_lea.vmem [#allocation0], 2443
    %v5670 = vld [vmem:[%s5669] sm:$0x40]
    %vm5671 = vcmask 1046534
    %v5672 = vsel %vm5671, %v5670, %v5668
    %s5673 = scalar_lea.vmem [#allocation0], 2506
    %v5674 = vld [vmem:[%s5673] sm:$0x80]
    %vm5675 = vcmask 1047559
    %v5676 = vsel %vm5675, %v5674, %v5672
    %5677 = vrot.lane.b32.xlu0 %v5676, 35
    %v5678 = vpop.permute.xlu0 %5677
    %vm5679 = vcmask 343320
    %s5680 = scalar_lea.vmem %s1, 32
    %5681 = vst.msk [vmem:[%s5680] sm:$0xff] %vm5679, %v5678
    %s5682 = scalar_lea.vmem [#allocation0], 529
    %v5683 = vld [vmem:[%s5682] sm:$0x1]
    %s5684 = scalar_lea.vmem [#allocation0], 592
    %v5685 = vld [vmem:[%s5684] sm:$0x2]
    %vm5686 = vcmask 1041409
    %v5687 = vsel %vm5686, %v5685, %v5683
    %s5688 = scalar_lea.vmem [#allocation0], 655
    %v5689 = vld [vmem:[%s5688] sm:$0x4]
    %vm5690 = vcmask 1042434
    %v5691 = vsel %vm5690, %v5689, %v5687
    %s5692 = scalar_lea.vmem [#allocation0], 718
    %v5693 = vld [vmem:[%s5692] sm:$0x8]
    %vm5694 = vcmask 1043459
    %v5695 = vsel %vm5694, %v5693, %v5691
    %s5696 = scalar_lea.vmem [#allocation0], 781
    %v5697 = vld [vmem:[%s5696] sm:$0x10]
    %vm5698 = vcmask 1044484
    %v5699 = vsel %vm5698, %v5697, %v5695
    %s5700 = scalar_lea.vmem [#allocation0], 844
    %v5701 = vld [vmem:[%s5700] sm:$0x20]
    %vm5702 = vcmask 1045509
    %v5703 = vsel %vm5702, %v5701, %v5699
    %s5704 = scalar_lea.vmem [#allocation0], 907
    %v5705 = vld [vmem:[%s5704] sm:$0x40]
    %vm5706 = vcmask 1046534
    %v5707 = vsel %vm5706, %v5705, %v5703
    %s5708 = scalar_lea.vmem [#allocation0], 970
    %v5709 = vld [vmem:[%s5708] sm:$0x80]
    %vm5710 = vcmask 1047559
    %v5711 = vsel %vm5710, %v5709, %v5707
    %5712 = vrot.lane.b32.xlu0 %v5711, 35
    %v5713 = vpop.permute.xlu0 %5712
    %vm5714 = vcmask 343320
    %s5715 = scalar_lea.vmem %s1, 8
    %5716 = vst.msk [vmem:[%s5715] sm:$0xff] %vm5714, %v5713
    %s5717 = scalar_lea.vmem [#allocation0], 2577
    %v5718 = vld [vmem:[%s5717] sm:$0x1]
    %s5719 = scalar_lea.vmem [#allocation0], 2640
    %v5720 = vld [vmem:[%s5719] sm:$0x2]
    %vm5721 = vcmask 1041409
    %v5722 = vsel %vm5721, %v5720, %v5718
    %s5723 = scalar_lea.vmem [#allocation0], 2703
    %v5724 = vld [vmem:[%s5723] sm:$0x4]
    %vm5725 = vcmask 1042434
    %v5726 = vsel %vm5725, %v5724, %v5722
    %s5727 = scalar_lea.vmem [#allocation0], 2766
    %v5728 = vld [vmem:[%s5727] sm:$0x8]
    %vm5729 = vcmask 1043459
    %v5730 = vsel %vm5729, %v5728, %v5726
    %s5731 = scalar_lea.vmem [#allocation0], 2829
    %v5732 = vld [vmem:[%s5731] sm:$0x10]
    %vm5733 = vcmask 1044484
    %v5734 = vsel %vm5733, %v5732, %v5730
    %s5735 = scalar_lea.vmem [#allocation0], 2892
    %v5736 = vld [vmem:[%s5735] sm:$0x20]
    %vm5737 = vcmask 1045509
    %v5738 = vsel %vm5737, %v5736, %v5734
    %s5739 = scalar_lea.vmem [#allocation0], 2955
    %v5740 = vld [vmem:[%s5739] sm:$0x40]
    %vm5741 = vcmask 1046534
    %v5742 = vsel %vm5741, %v5740, %v5738
    %s5743 = scalar_lea.vmem [#allocation0], 3018
    %v5744 = vld [vmem:[%s5743] sm:$0x80]
    %vm5745 = vcmask 1047559
    %v5746 = vsel %vm5745, %v5744, %v5742
    %5747 = vrot.lane.b32.xlu0 %v5746, 35
    %v5748 = vpop.permute.xlu0 %5747
    %vm5749 = vcmask 343320
    %s5750 = scalar_lea.vmem %s1, 40
    %5751 = vst.msk [vmem:[%s5750] sm:$0xff] %vm5749, %v5748
    %s5752 = scalar_lea.vmem [#allocation0], 1041
    %v5753 = vld [vmem:[%s5752] sm:$0x1]
    %s5754 = scalar_lea.vmem [#allocation0], 1104
    %v5755 = vld [vmem:[%s5754] sm:$0x2]
    %vm5756 = vcmask 1041409
    %v5757 = vsel %vm5756, %v5755, %v5753
    %s5758 = scalar_lea.vmem [#allocation0], 1167
    %v5759 = vld [vmem:[%s5758] sm:$0x4]
    %vm5760 = vcmask 1042434
    %v5761 = vsel %vm5760, %v5759, %v5757
    %s5762 = scalar_lea.vmem [#allocation0], 1230
    %v5763 = vld [vmem:[%s5762] sm:$0x8]
    %vm5764 = vcmask 1043459
    %v5765 = vsel %vm5764, %v5763, %v5761
    %s5766 = scalar_lea.vmem [#allocation0], 1293
    %v5767 = vld [vmem:[%s5766] sm:$0x10]
    %vm5768 = vcmask 1044484
    %v5769 = vsel %vm5768, %v5767, %v5765
    %s5770 = scalar_lea.vmem [#allocation0], 1356
    %v5771 = vld [vmem:[%s5770] sm:$0x20]
    %vm5772 = vcmask 1045509
    %v5773 = vsel %vm5772, %v5771, %v5769
    %s5774 = scalar_lea.vmem [#allocation0], 1419
    %v5775 = vld [vmem:[%s5774] sm:$0x40]
    %vm5776 = vcmask 1046534
    %v5777 = vsel %vm5776, %v5775, %v5773
    %s5778 = scalar_lea.vmem [#allocation0], 1482
    %v5779 = vld [vmem:[%s5778] sm:$0x80]
    %vm5780 = vcmask 1047559
    %v5781 = vsel %vm5780, %v5779, %v5777
    %5782 = vrot.lane.b32.xlu0 %v5781, 35
    %v5783 = vpop.permute.xlu0 %5782
    %vm5784 = vcmask 343320
    %s5785 = scalar_lea.vmem %s1, 16
    %5786 = vst.msk [vmem:[%s5785] sm:$0xff] %vm5784, %v5783
    %s5787 = scalar_lea.vmem [#allocation0], 3089
    %v5788 = vld [vmem:[%s5787] sm:$0x1]
    %s5789 = scalar_lea.vmem [#allocation0], 3152
    %v5790 = vld [vmem:[%s5789] sm:$0x2]
    %vm5791 = vcmask 1041409
    %v5792 = vsel %vm5791, %v5790, %v5788
    %s5793 = scalar_lea.vmem [#allocation0], 3215
    %v5794 = vld [vmem:[%s5793] sm:$0x4]
    %vm5795 = vcmask 1042434
    %v5796 = vsel %vm5795, %v5794, %v5792
    %s5797 = scalar_lea.vmem [#allocation0], 3278
    %v5798 = vld [vmem:[%s5797] sm:$0x8]
    %vm5799 = vcmask 1043459
    %v5800 = vsel %vm5799, %v5798, %v5796
    %s5801 = scalar_lea.vmem [#allocation0], 3341
    %v5802 = vld [vmem:[%s5801] sm:$0x10]
    %vm5803 = vcmask 1044484
    %v5804 = vsel %vm5803, %v5802, %v5800
    %s5805 = scalar_lea.vmem [#allocation0], 3404
    %v5806 = vld [vmem:[%s5805] sm:$0x20]
    %vm5807 = vcmask 1045509
    %v5808 = vsel %vm5807, %v5806, %v5804
    %s5809 = scalar_lea.vmem [#allocation0], 3467
    %v5810 = vld [vmem:[%s5809] sm:$0x40]
    %vm5811 = vcmask 1046534
    %v5812 = vsel %vm5811, %v5810, %v5808
    %s5813 = scalar_lea.vmem [#allocation0], 3530
    %v5814 = vld [vmem:[%s5813] sm:$0x80]
    %vm5815 = vcmask 1047559
    %v5816 = vsel %vm5815, %v5814, %v5812
    %5817 = vrot.lane.b32.xlu0 %v5816, 35
    %v5818 = vpop.permute.xlu0 %5817
    %vm5819 = vcmask 343320
    %s5820 = scalar_lea.vmem %s1, 48
    %5821 = vst.msk [vmem:[%s5820] sm:$0xff] %vm5819, %v5818
    %s5822 = scalar_lea.vmem [#allocation0], 1553
    %v5823 = vld [vmem:[%s5822] sm:$0x1]
    %s5824 = scalar_lea.vmem [#allocation0], 1616
    %v5825 = vld [vmem:[%s5824] sm:$0x2]
    %vm5826 = vcmask 1041409
    %v5827 = vsel %vm5826, %v5825, %v5823
    %s5828 = scalar_lea.vmem [#allocation0], 1679
    %v5829 = vld [vmem:[%s5828] sm:$0x4]
    %vm5830 = vcmask 1042434
    %v5831 = vsel %vm5830, %v5829, %v5827
    %s5832 = scalar_lea.vmem [#allocation0], 1742
    %v5833 = vld [vmem:[%s5832] sm:$0x8]
    %vm5834 = vcmask 1043459
    %v5835 = vsel %vm5834, %v5833, %v5831
    %s5836 = scalar_lea.vmem [#allocation0], 1805
    %v5837 = vld [vmem:[%s5836] sm:$0x10]
    %vm5838 = vcmask 1044484
    %v5839 = vsel %vm5838, %v5837, %v5835
    %s5840 = scalar_lea.vmem [#allocation0], 1868
    %v5841 = vld [vmem:[%s5840] sm:$0x20]
    %vm5842 = vcmask 1045509
    %v5843 = vsel %vm5842, %v5841, %v5839
    %s5844 = scalar_lea.vmem [#allocation0], 1931
    %v5845 = vld [vmem:[%s5844] sm:$0x40]
    %vm5846 = vcmask 1046534
    %v5847 = vsel %vm5846, %v5845, %v5843
    %s5848 = scalar_lea.vmem [#allocation0], 1994
    %v5849 = vld [vmem:[%s5848] sm:$0x80]
    %vm5850 = vcmask 1047559
    %v5851 = vsel %vm5850, %v5849, %v5847
    %5852 = vrot.lane.b32.xlu0 %v5851, 35
    %v5853 = vpop.permute.xlu0 %5852
    %vm5854 = vcmask 343320
    %s5855 = scalar_lea.vmem %s1, 24
    %5856 = vst.msk [vmem:[%s5855] sm:$0xff] %vm5854, %v5853
    %s5857 = scalar_lea.vmem [#allocation0], 3601
    %v5858 = vld [vmem:[%s5857] sm:$0x1]
    %s5859 = scalar_lea.vmem [#allocation0], 3664
    %v5860 = vld [vmem:[%s5859] sm:$0x2]
    %vm5861 = vcmask 1041409
    %v5862 = vsel %vm5861, %v5860, %v5858
    %s5863 = scalar_lea.vmem [#allocation0], 3727
    %v5864 = vld [vmem:[%s5863] sm:$0x4]
    %vm5865 = vcmask 1042434
    %v5866 = vsel %vm5865, %v5864, %v5862
    %s5867 = scalar_lea.vmem [#allocation0], 3790
    %v5868 = vld [vmem:[%s5867] sm:$0x8]
    %vm5869 = vcmask 1043459
    %v5870 = vsel %vm5869, %v5868, %v5866
    %s5871 = scalar_lea.vmem [#allocation0], 3853
    %v5872 = vld [vmem:[%s5871] sm:$0x10]
    %vm5873 = vcmask 1044484
    %v5874 = vsel %vm5873, %v5872, %v5870
    %s5875 = scalar_lea.vmem [#allocation0], 3916
    %v5876 = vld [vmem:[%s5875] sm:$0x20]
    %vm5877 = vcmask 1045509
    %v5878 = vsel %vm5877, %v5876, %v5874
    %s5879 = scalar_lea.vmem [#allocation0], 3979
    %v5880 = vld [vmem:[%s5879] sm:$0x40]
    %vm5881 = vcmask 1046534
    %v5882 = vsel %vm5881, %v5880, %v5878
    %s5883 = scalar_lea.vmem [#allocation0], 4042
    %v5884 = vld [vmem:[%s5883] sm:$0x80]
    %vm5885 = vcmask 1047559
    %v5886 = vsel %vm5885, %v5884, %v5882
    %5887 = vrot.lane.b32.xlu0 %v5886, 35
    %v5888 = vpop.permute.xlu0 %5887
    %vm5889 = vcmask 343320
    %s5890 = scalar_lea.vmem %s1, 56
    %5891 = vst.msk [vmem:[%s5890] sm:$0xff] %vm5889, %v5888
    %s5892 = scalar_lea.vmem [#allocation0], 16
    %v5893 = vld [vmem:[%s5892] sm:$0x1]
    %s5894 = scalar_lea.vmem [#allocation0], 79
    %v5895 = vld [vmem:[%s5894] sm:$0x2]
    %vm5896 = vcmask 1041409
    %v5897 = vsel %vm5896, %v5895, %v5893
    %s5898 = scalar_lea.vmem [#allocation0], 142
    %v5899 = vld [vmem:[%s5898] sm:$0x4]
    %vm5900 = vcmask 1042434
    %v5901 = vsel %vm5900, %v5899, %v5897
    %s5902 = scalar_lea.vmem [#allocation0], 205
    %v5903 = vld [vmem:[%s5902] sm:$0x8]
    %vm5904 = vcmask 1043459
    %v5905 = vsel %vm5904, %v5903, %v5901
    %s5906 = scalar_lea.vmem [#allocation0], 268
    %v5907 = vld [vmem:[%s5906] sm:$0x10]
    %vm5908 = vcmask 1044484
    %v5909 = vsel %vm5908, %v5907, %v5905
    %s5910 = scalar_lea.vmem [#allocation0], 331
    %v5911 = vld [vmem:[%s5910] sm:$0x20]
    %vm5912 = vcmask 1045509
    %v5913 = vsel %vm5912, %v5911, %v5909
    %s5914 = scalar_lea.vmem [#allocation0], 394
    %v5915 = vld [vmem:[%s5914] sm:$0x40]
    %vm5916 = vcmask 1046534
    %v5917 = vsel %vm5916, %v5915, %v5913
    %s5918 = scalar_lea.vmem [#allocation0], 457
    %v5919 = vld [vmem:[%s5918] sm:$0x80]
    %vm5920 = vcmask 1047559
    %v5921 = vsel %vm5920, %v5919, %v5917
    %5922 = vrot.lane.b32.xlu0 %v5921, 28
    %v5923 = vpop.permute.xlu0 %5922
    %vm5924 = vcmask 285920
    %5925 = vst.msk [vmem:[%s1] sm:$0xff] %vm5924, %v5923
    %s5926 = scalar_lea.vmem [#allocation0], 2064
    %v5927 = vld [vmem:[%s5926] sm:$0x1]
    %s5928 = scalar_lea.vmem [#allocation0], 2127
    %v5929 = vld [vmem:[%s5928] sm:$0x2]
    %vm5930 = vcmask 1041409
    %v5931 = vsel %vm5930, %v5929, %v5927
    %s5932 = scalar_lea.vmem [#allocation0], 2190
    %v5933 = vld [vmem:[%s5932] sm:$0x4]
    %vm5934 = vcmask 1042434
    %v5935 = vsel %vm5934, %v5933, %v5931
    %s5936 = scalar_lea.vmem [#allocation0], 2253
    %v5937 = vld [vmem:[%s5936] sm:$0x8]
    %vm5938 = vcmask 1043459
    %v5939 = vsel %vm5938, %v5937, %v5935
    %s5940 = scalar_lea.vmem [#allocation0], 2316
    %v5941 = vld [vmem:[%s5940] sm:$0x10]
    %vm5942 = vcmask 1044484
    %v5943 = vsel %vm5942, %v5941, %v5939
    %s5944 = scalar_lea.vmem [#allocation0], 2379
    %v5945 = vld [vmem:[%s5944] sm:$0x20]
    %vm5946 = vcmask 1045509
    %v5947 = vsel %vm5946, %v5945, %v5943
    %s5948 = scalar_lea.vmem [#allocation0], 2442
    %v5949 = vld [vmem:[%s5948] sm:$0x40]
    %vm5950 = vcmask 1046534
    %v5951 = vsel %vm5950, %v5949, %v5947
    %s5952 = scalar_lea.vmem [#allocation0], 2505
    %v5953 = vld [vmem:[%s5952] sm:$0x80]
    %vm5954 = vcmask 1047559
    %v5955 = vsel %vm5954, %v5953, %v5951
    %5956 = vrot.lane.b32.xlu0 %v5955, 28
    %v5957 = vpop.permute.xlu0 %5956
    %vm5958 = vcmask 285920
    %s5959 = scalar_lea.vmem %s1, 32
    %5960 = vst.msk [vmem:[%s5959] sm:$0xff] %vm5958, %v5957
    %s5961 = scalar_lea.vmem [#allocation0], 528
    %v5962 = vld [vmem:[%s5961] sm:$0x1]
    %s5963 = scalar_lea.vmem [#allocation0], 591
    %v5964 = vld [vmem:[%s5963] sm:$0x2]
    %vm5965 = vcmask 1041409
    %v5966 = vsel %vm5965, %v5964, %v5962
    %s5967 = scalar_lea.vmem [#allocation0], 654
    %v5968 = vld [vmem:[%s5967] sm:$0x4]
    %vm5969 = vcmask 1042434
    %v5970 = vsel %vm5969, %v5968, %v5966
    %s5971 = scalar_lea.vmem [#allocation0], 717
    %v5972 = vld [vmem:[%s5971] sm:$0x8]
    %vm5973 = vcmask 1043459
    %v5974 = vsel %vm5973, %v5972, %v5970
    %s5975 = scalar_lea.vmem [#allocation0], 780
    %v5976 = vld [vmem:[%s5975] sm:$0x10]
    %vm5977 = vcmask 1044484
    %v5978 = vsel %vm5977, %v5976, %v5974
    %s5979 = scalar_lea.vmem [#allocation0], 843
    %v5980 = vld [vmem:[%s5979] sm:$0x20]
    %vm5981 = vcmask 1045509
    %v5982 = vsel %vm5981, %v5980, %v5978
    %s5983 = scalar_lea.vmem [#allocation0], 906
    %v5984 = vld [vmem:[%s5983] sm:$0x40]
    %vm5985 = vcmask 1046534
    %v5986 = vsel %vm5985, %v5984, %v5982
    %s5987 = scalar_lea.vmem [#allocation0], 969
    %v5988 = vld [vmem:[%s5987] sm:$0x80]
    %vm5989 = vcmask 1047559
    %v5990 = vsel %vm5989, %v5988, %v5986
    %5991 = vrot.lane.b32.xlu0 %v5990, 28
    %v5992 = vpop.permute.xlu0 %5991
    %vm5993 = vcmask 285920
    %s5994 = scalar_lea.vmem %s1, 8
    %5995 = vst.msk [vmem:[%s5994] sm:$0xff] %vm5993, %v5992
    %s5996 = scalar_lea.vmem [#allocation0], 2576
    %v5997 = vld [vmem:[%s5996] sm:$0x1]
    %s5998 = scalar_lea.vmem [#allocation0], 2639
    %v5999 = vld [vmem:[%s5998] sm:$0x2]
    %vm6000 = vcmask 1041409
    %v6001 = vsel %vm6000, %v5999, %v5997
    %s6002 = scalar_lea.vmem [#allocation0], 2702
    %v6003 = vld [vmem:[%s6002] sm:$0x4]
    %vm6004 = vcmask 1042434
    %v6005 = vsel %vm6004, %v6003, %v6001
    %s6006 = scalar_lea.vmem [#allocation0], 2765
    %v6007 = vld [vmem:[%s6006] sm:$0x8]
    %vm6008 = vcmask 1043459
    %v6009 = vsel %vm6008, %v6007, %v6005
    %s6010 = scalar_lea.vmem [#allocation0], 2828
    %v6011 = vld [vmem:[%s6010] sm:$0x10]
    %vm6012 = vcmask 1044484
    %v6013 = vsel %vm6012, %v6011, %v6009
    %s6014 = scalar_lea.vmem [#allocation0], 2891
    %v6015 = vld [vmem:[%s6014] sm:$0x20]
    %vm6016 = vcmask 1045509
    %v6017 = vsel %vm6016, %v6015, %v6013
    %s6018 = scalar_lea.vmem [#allocation0], 2954
    %v6019 = vld [vmem:[%s6018] sm:$0x40]
    %vm6020 = vcmask 1046534
    %v6021 = vsel %vm6020, %v6019, %v6017
    %s6022 = scalar_lea.vmem [#allocation0], 3017
    %v6023 = vld [vmem:[%s6022] sm:$0x80]
    %vm6024 = vcmask 1047559
    %v6025 = vsel %vm6024, %v6023, %v6021
    %6026 = vrot.lane.b32.xlu0 %v6025, 28
    %v6027 = vpop.permute.xlu0 %6026
    %vm6028 = vcmask 285920
    %s6029 = scalar_lea.vmem %s1, 40
    %6030 = vst.msk [vmem:[%s6029] sm:$0xff] %vm6028, %v6027
    %s6031 = scalar_lea.vmem [#allocation0], 1040
    %v6032 = vld [vmem:[%s6031] sm:$0x1]
    %s6033 = scalar_lea.vmem [#allocation0], 1103
    %v6034 = vld [vmem:[%s6033] sm:$0x2]
    %vm6035 = vcmask 1041409
    %v6036 = vsel %vm6035, %v6034, %v6032
    %s6037 = scalar_lea.vmem [#allocation0], 1166
    %v6038 = vld [vmem:[%s6037] sm:$0x4]
    %vm6039 = vcmask 1042434
    %v6040 = vsel %vm6039, %v6038, %v6036
    %s6041 = scalar_lea.vmem [#allocation0], 1229
    %v6042 = vld [vmem:[%s6041] sm:$0x8]
    %vm6043 = vcmask 1043459
    %v6044 = vsel %vm6043, %v6042, %v6040
    %s6045 = scalar_lea.vmem [#allocation0], 1292
    %v6046 = vld [vmem:[%s6045] sm:$0x10]
    %vm6047 = vcmask 1044484
    %v6048 = vsel %vm6047, %v6046, %v6044
    %s6049 = scalar_lea.vmem [#allocation0], 1355
    %v6050 = vld [vmem:[%s6049] sm:$0x20]
    %vm6051 = vcmask 1045509
    %v6052 = vsel %vm6051, %v6050, %v6048
    %s6053 = scalar_lea.vmem [#allocation0], 1418
    %v6054 = vld [vmem:[%s6053] sm:$0x40]
    %vm6055 = vcmask 1046534
    %v6056 = vsel %vm6055, %v6054, %v6052
    %s6057 = scalar_lea.vmem [#allocation0], 1481
    %v6058 = vld [vmem:[%s6057] sm:$0x80]
    %vm6059 = vcmask 1047559
    %v6060 = vsel %vm6059, %v6058, %v6056
    %6061 = vrot.lane.b32.xlu0 %v6060, 28
    %v6062 = vpop.permute.xlu0 %6061
    %vm6063 = vcmask 285920
    %s6064 = scalar_lea.vmem %s1, 16
    %6065 = vst.msk [vmem:[%s6064] sm:$0xff] %vm6063, %v6062
    %s6066 = scalar_lea.vmem [#allocation0], 3088
    %v6067 = vld [vmem:[%s6066] sm:$0x1]
    %s6068 = scalar_lea.vmem [#allocation0], 3151
    %v6069 = vld [vmem:[%s6068] sm:$0x2]
    %vm6070 = vcmask 1041409
    %v6071 = vsel %vm6070, %v6069, %v6067
    %s6072 = scalar_lea.vmem [#allocation0], 3214
    %v6073 = vld [vmem:[%s6072] sm:$0x4]
    %vm6074 = vcmask 1042434
    %v6075 = vsel %vm6074, %v6073, %v6071
    %s6076 = scalar_lea.vmem [#allocation0], 3277
    %v6077 = vld [vmem:[%s6076] sm:$0x8]
    %vm6078 = vcmask 1043459
    %v6079 = vsel %vm6078, %v6077, %v6075
    %s6080 = scalar_lea.vmem [#allocation0], 3340
    %v6081 = vld [vmem:[%s6080] sm:$0x10]
    %vm6082 = vcmask 1044484
    %v6083 = vsel %vm6082, %v6081, %v6079
    %s6084 = scalar_lea.vmem [#allocation0], 3403
    %v6085 = vld [vmem:[%s6084] sm:$0x20]
    %vm6086 = vcmask 1045509
    %v6087 = vsel %vm6086, %v6085, %v6083
    %s6088 = scalar_lea.vmem [#allocation0], 3466
    %v6089 = vld [vmem:[%s6088] sm:$0x40]
    %vm6090 = vcmask 1046534
    %v6091 = vsel %vm6090, %v6089, %v6087
    %s6092 = scalar_lea.vmem [#allocation0], 3529
    %v6093 = vld [vmem:[%s6092] sm:$0x80]
    %vm6094 = vcmask 1047559
    %v6095 = vsel %vm6094, %v6093, %v6091
    %6096 = vrot.lane.b32.xlu0 %v6095, 28
    %v6097 = vpop.permute.xlu0 %6096
    %vm6098 = vcmask 285920
    %s6099 = scalar_lea.vmem %s1, 48
    %6100 = vst.msk [vmem:[%s6099] sm:$0xff] %vm6098, %v6097
    %s6101 = scalar_lea.vmem [#allocation0], 1552
    %v6102 = vld [vmem:[%s6101] sm:$0x1]
    %s6103 = scalar_lea.vmem [#allocation0], 1615
    %v6104 = vld [vmem:[%s6103] sm:$0x2]
    %vm6105 = vcmask 1041409
    %v6106 = vsel %vm6105, %v6104, %v6102
    %s6107 = scalar_lea.vmem [#allocation0], 1678
    %v6108 = vld [vmem:[%s6107] sm:$0x4]
    %vm6109 = vcmask 1042434
    %v6110 = vsel %vm6109, %v6108, %v6106
    %s6111 = scalar_lea.vmem [#allocation0], 1741
    %v6112 = vld [vmem:[%s6111] sm:$0x8]
    %vm6113 = vcmask 1043459
    %v6114 = vsel %vm6113, %v6112, %v6110
    %s6115 = scalar_lea.vmem [#allocation0], 1804
    %v6116 = vld [vmem:[%s6115] sm:$0x10]
    %vm6117 = vcmask 1044484
    %v6118 = vsel %vm6117, %v6116, %v6114
    %s6119 = scalar_lea.vmem [#allocation0], 1867
    %v6120 = vld [vmem:[%s6119] sm:$0x20]
    %vm6121 = vcmask 1045509
    %v6122 = vsel %vm6121, %v6120, %v6118
    %s6123 = scalar_lea.vmem [#allocation0], 1930
    %v6124 = vld [vmem:[%s6123] sm:$0x40]
    %vm6125 = vcmask 1046534
    %v6126 = vsel %vm6125, %v6124, %v6122
    %s6127 = scalar_lea.vmem [#allocation0], 1993
    %v6128 = vld [vmem:[%s6127] sm:$0x80]
    %vm6129 = vcmask 1047559
    %v6130 = vsel %vm6129, %v6128, %v6126
    %6131 = vrot.lane.b32.xlu0 %v6130, 28
    %v6132 = vpop.permute.xlu0 %6131
    %vm6133 = vcmask 285920
    %s6134 = scalar_lea.vmem %s1, 24
    %6135 = vst.msk [vmem:[%s6134] sm:$0xff] %vm6133, %v6132
    %s6136 = scalar_lea.vmem [#allocation0], 3600
    %v6137 = vld [vmem:[%s6136] sm:$0x1]
    %s6138 = scalar_lea.vmem [#allocation0], 3663
    %v6139 = vld [vmem:[%s6138] sm:$0x2]
    %vm6140 = vcmask 1041409
    %v6141 = vsel %vm6140, %v6139, %v6137
    %s6142 = scalar_lea.vmem [#allocation0], 3726
    %v6143 = vld [vmem:[%s6142] sm:$0x4]
    %vm6144 = vcmask 1042434
    %v6145 = vsel %vm6144, %v6143, %v6141
    %s6146 = scalar_lea.vmem [#allocation0], 3789
    %v6147 = vld [vmem:[%s6146] sm:$0x8]
    %vm6148 = vcmask 1043459
    %v6149 = vsel %vm6148, %v6147, %v6145
    %s6150 = scalar_lea.vmem [#allocation0], 3852
    %v6151 = vld [vmem:[%s6150] sm:$0x10]
    %vm6152 = vcmask 1044484
    %v6153 = vsel %vm6152, %v6151, %v6149
    %s6154 = scalar_lea.vmem [#allocation0], 3915
    %v6155 = vld [vmem:[%s6154] sm:$0x20]
    %vm6156 = vcmask 1045509
    %v6157 = vsel %vm6156, %v6155, %v6153
    %s6158 = scalar_lea.vmem [#allocation0], 3978
    %v6159 = vld [vmem:[%s6158] sm:$0x40]
    %vm6160 = vcmask 1046534
    %v6161 = vsel %vm6160, %v6159, %v6157
    %s6162 = scalar_lea.vmem [#allocation0], 4041
    %v6163 = vld [vmem:[%s6162] sm:$0x80]
    %vm6164 = vcmask 1047559
    %v6165 = vsel %vm6164, %v6163, %v6161
    %6166 = vrot.lane.b32.xlu0 %v6165, 28
    %v6167 = vpop.permute.xlu0 %6166
    %vm6168 = vcmask 285920
    %s6169 = scalar_lea.vmem %s1, 56
    %6170 = vst.msk [vmem:[%s6169] sm:$0xff] %vm6168, %v6167
    %s6171 = scalar_lea.vmem [#allocation0], 9
    %v6172 = vld [vmem:[%s6171] sm:$0x1]
    %s6173 = scalar_lea.vmem [#allocation0], 72
    %v6174 = vld [vmem:[%s6173] sm:$0x2]
    %vm6175 = vcmask 1041409
    %v6176 = vsel %vm6175, %v6174, %v6172
    %s6177 = scalar_lea.vmem [#allocation0], 135
    %v6178 = vld [vmem:[%s6177] sm:$0x4]
    %vm6179 = vcmask 1042434
    %v6180 = vsel %vm6179, %v6178, %v6176
    %s6181 = scalar_lea.vmem [#allocation0], 198
    %v6182 = vld [vmem:[%s6181] sm:$0x8]
    %vm6183 = vcmask 1043459
    %v6184 = vsel %vm6183, %v6182, %v6180
    %s6185 = scalar_lea.vmem [#allocation0], 261
    %v6186 = vld [vmem:[%s6185] sm:$0x10]
    %vm6187 = vcmask 1044484
    %v6188 = vsel %vm6187, %v6186, %v6184
    %s6189 = scalar_lea.vmem [#allocation0], 324
    %v6190 = vld [vmem:[%s6189] sm:$0x20]
    %vm6191 = vcmask 1045509
    %v6192 = vsel %vm6191, %v6190, %v6188
    %s6193 = scalar_lea.vmem [#allocation0], 387
    %v6194 = vld [vmem:[%s6193] sm:$0x40]
    %vm6195 = vcmask 1046534
    %v6196 = vsel %vm6195, %v6194, %v6192
    %s6197 = scalar_lea.vmem [#allocation0], 450
    %v6198 = vld [vmem:[%s6197] sm:$0x80]
    %vm6199 = vcmask 1047559
    %v6200 = vsel %vm6199, %v6198, %v6196
    %6201 = vrot.lane.b32.xlu0 %v6200, 21
    %v6202 = vpop.permute.xlu0 %6201
    %vm6203 = vcmask 228520
    %6204 = vst.msk [vmem:[%s1] sm:$0xff] %vm6203, %v6202
    %s6205 = scalar_lea.vmem [#allocation0], 2057
    %v6206 = vld [vmem:[%s6205] sm:$0x1]
    %s6207 = scalar_lea.vmem [#allocation0], 2120
    %v6208 = vld [vmem:[%s6207] sm:$0x2]
    %vm6209 = vcmask 1041409
    %v6210 = vsel %vm6209, %v6208, %v6206
    %s6211 = scalar_lea.vmem [#allocation0], 2183
    %v6212 = vld [vmem:[%s6211] sm:$0x4]
    %vm6213 = vcmask 1042434
    %v6214 = vsel %vm6213, %v6212, %v6210
    %s6215 = scalar_lea.vmem [#allocation0], 2246
    %v6216 = vld [vmem:[%s6215] sm:$0x8]
    %vm6217 = vcmask 1043459
    %v6218 = vsel %vm6217, %v6216, %v6214
    %s6219 = scalar_lea.vmem [#allocation0], 2309
    %v6220 = vld [vmem:[%s6219] sm:$0x10]
    %vm6221 = vcmask 1044484
    %v6222 = vsel %vm6221, %v6220, %v6218
    %s6223 = scalar_lea.vmem [#allocation0], 2372
    %v6224 = vld [vmem:[%s6223] sm:$0x20]
    %vm6225 = vcmask 1045509
    %v6226 = vsel %vm6225, %v6224, %v6222
    %s6227 = scalar_lea.vmem [#allocation0], 2435
    %v6228 = vld [vmem:[%s6227] sm:$0x40]
    %vm6229 = vcmask 1046534
    %v6230 = vsel %vm6229, %v6228, %v6226
    %s6231 = scalar_lea.vmem [#allocation0], 2498
    %v6232 = vld [vmem:[%s6231] sm:$0x80]
    %vm6233 = vcmask 1047559
    %v6234 = vsel %vm6233, %v6232, %v6230
    %6235 = vrot.lane.b32.xlu0 %v6234, 21
    %v6236 = vpop.permute.xlu0 %6235
    %vm6237 = vcmask 228520
    %s6238 = scalar_lea.vmem %s1, 32
    %6239 = vst.msk [vmem:[%s6238] sm:$0xff] %vm6237, %v6236
    %s6240 = scalar_lea.vmem [#allocation0], 521
    %v6241 = vld [vmem:[%s6240] sm:$0x1]
    %s6242 = scalar_lea.vmem [#allocation0], 584
    %v6243 = vld [vmem:[%s6242] sm:$0x2]
    %vm6244 = vcmask 1041409
    %v6245 = vsel %vm6244, %v6243, %v6241
    %s6246 = scalar_lea.vmem [#allocation0], 647
    %v6247 = vld [vmem:[%s6246] sm:$0x4]
    %vm6248 = vcmask 1042434
    %v6249 = vsel %vm6248, %v6247, %v6245
    %s6250 = scalar_lea.vmem [#allocation0], 710
    %v6251 = vld [vmem:[%s6250] sm:$0x8]
    %vm6252 = vcmask 1043459
    %v6253 = vsel %vm6252, %v6251, %v6249
    %s6254 = scalar_lea.vmem [#allocation0], 773
    %v6255 = vld [vmem:[%s6254] sm:$0x10]
    %vm6256 = vcmask 1044484
    %v6257 = vsel %vm6256, %v6255, %v6253
    %s6258 = scalar_lea.vmem [#allocation0], 836
    %v6259 = vld [vmem:[%s6258] sm:$0x20]
    %vm6260 = vcmask 1045509
    %v6261 = vsel %vm6260, %v6259, %v6257
    %s6262 = scalar_lea.vmem [#allocation0], 899
    %v6263 = vld [vmem:[%s6262] sm:$0x40]
    %vm6264 = vcmask 1046534
    %v6265 = vsel %vm6264, %v6263, %v6261
    %s6266 = scalar_lea.vmem [#allocation0], 962
    %v6267 = vld [vmem:[%s6266] sm:$0x80]
    %vm6268 = vcmask 1047559
    %v6269 = vsel %vm6268, %v6267, %v6265
    %6270 = vrot.lane.b32.xlu0 %v6269, 21
    %v6271 = vpop.permute.xlu0 %6270
    %vm6272 = vcmask 228520
    %s6273 = scalar_lea.vmem %s1, 8
    %6274 = vst.msk [vmem:[%s6273] sm:$0xff] %vm6272, %v6271
    %s6275 = scalar_lea.vmem [#allocation0], 2569
    %v6276 = vld [vmem:[%s6275] sm:$0x1]
    %s6277 = scalar_lea.vmem [#allocation0], 2632
    %v6278 = vld [vmem:[%s6277] sm:$0x2]
    %vm6279 = vcmask 1041409
    %v6280 = vsel %vm6279, %v6278, %v6276
    %s6281 = scalar_lea.vmem [#allocation0], 2695
    %v6282 = vld [vmem:[%s6281] sm:$0x4]
    %vm6283 = vcmask 1042434
    %v6284 = vsel %vm6283, %v6282, %v6280
    %s6285 = scalar_lea.vmem [#allocation0], 2758
    %v6286 = vld [vmem:[%s6285] sm:$0x8]
    %vm6287 = vcmask 1043459
    %v6288 = vsel %vm6287, %v6286, %v6284
    %s6289 = scalar_lea.vmem [#allocation0], 2821
    %v6290 = vld [vmem:[%s6289] sm:$0x10]
    %vm6291 = vcmask 1044484
    %v6292 = vsel %vm6291, %v6290, %v6288
    %s6293 = scalar_lea.vmem [#allocation0], 2884
    %v6294 = vld [vmem:[%s6293] sm:$0x20]
    %vm6295 = vcmask 1045509
    %v6296 = vsel %vm6295, %v6294, %v6292
    %s6297 = scalar_lea.vmem [#allocation0], 2947
    %v6298 = vld [vmem:[%s6297] sm:$0x40]
    %vm6299 = vcmask 1046534
    %v6300 = vsel %vm6299, %v6298, %v6296
    %s6301 = scalar_lea.vmem [#allocation0], 3010
    %v6302 = vld [vmem:[%s6301] sm:$0x80]
    %vm6303 = vcmask 1047559
    %v6304 = vsel %vm6303, %v6302, %v6300
    %6305 = vrot.lane.b32.xlu0 %v6304, 21
    %v6306 = vpop.permute.xlu0 %6305
    %vm6307 = vcmask 228520
    %s6308 = scalar_lea.vmem %s1, 40
    %6309 = vst.msk [vmem:[%s6308] sm:$0xff] %vm6307, %v6306
    %s6310 = scalar_lea.vmem [#allocation0], 1033
    %v6311 = vld [vmem:[%s6310] sm:$0x1]
    %s6312 = scalar_lea.vmem [#allocation0], 1096
    %v6313 = vld [vmem:[%s6312] sm:$0x2]
    %vm6314 = vcmask 1041409
    %v6315 = vsel %vm6314, %v6313, %v6311
    %s6316 = scalar_lea.vmem [#allocation0], 1159
    %v6317 = vld [vmem:[%s6316] sm:$0x4]
    %vm6318 = vcmask 1042434
    %v6319 = vsel %vm6318, %v6317, %v6315
    %s6320 = scalar_lea.vmem [#allocation0], 1222
    %v6321 = vld [vmem:[%s6320] sm:$0x8]
    %vm6322 = vcmask 1043459
    %v6323 = vsel %vm6322, %v6321, %v6319
    %s6324 = scalar_lea.vmem [#allocation0], 1285
    %v6325 = vld [vmem:[%s6324] sm:$0x10]
    %vm6326 = vcmask 1044484
    %v6327 = vsel %vm6326, %v6325, %v6323
    %s6328 = scalar_lea.vmem [#allocation0], 1348
    %v6329 = vld [vmem:[%s6328] sm:$0x20]
    %vm6330 = vcmask 1045509
    %v6331 = vsel %vm6330, %v6329, %v6327
    %s6332 = scalar_lea.vmem [#allocation0], 1411
    %v6333 = vld [vmem:[%s6332] sm:$0x40]
    %vm6334 = vcmask 1046534
    %v6335 = vsel %vm6334, %v6333, %v6331
    %s6336 = scalar_lea.vmem [#allocation0], 1474
    %v6337 = vld [vmem:[%s6336] sm:$0x80]
    %vm6338 = vcmask 1047559
    %v6339 = vsel %vm6338, %v6337, %v6335
    %6340 = vrot.lane.b32.xlu0 %v6339, 21
    %v6341 = vpop.permute.xlu0 %6340
    %vm6342 = vcmask 228520
    %s6343 = scalar_lea.vmem %s1, 16
    %6344 = vst.msk [vmem:[%s6343] sm:$0xff] %vm6342, %v6341
    %s6345 = scalar_lea.vmem [#allocation0], 3081
    %v6346 = vld [vmem:[%s6345] sm:$0x1]
    %s6347 = scalar_lea.vmem [#allocation0], 3144
    %v6348 = vld [vmem:[%s6347] sm:$0x2]
    %vm6349 = vcmask 1041409
    %v6350 = vsel %vm6349, %v6348, %v6346
    %s6351 = scalar_lea.vmem [#allocation0], 3207
    %v6352 = vld [vmem:[%s6351] sm:$0x4]
    %vm6353 = vcmask 1042434
    %v6354 = vsel %vm6353, %v6352, %v6350
    %s6355 = scalar_lea.vmem [#allocation0], 3270
    %v6356 = vld [vmem:[%s6355] sm:$0x8]
    %vm6357 = vcmask 1043459
    %v6358 = vsel %vm6357, %v6356, %v6354
    %s6359 = scalar_lea.vmem [#allocation0], 3333
    %v6360 = vld [vmem:[%s6359] sm:$0x10]
    %vm6361 = vcmask 1044484
    %v6362 = vsel %vm6361, %v6360, %v6358
    %s6363 = scalar_lea.vmem [#allocation0], 3396
    %v6364 = vld [vmem:[%s6363] sm:$0x20]
    %vm6365 = vcmask 1045509
    %v6366 = vsel %vm6365, %v6364, %v6362
    %s6367 = scalar_lea.vmem [#allocation0], 3459
    %v6368 = vld [vmem:[%s6367] sm:$0x40]
    %vm6369 = vcmask 1046534
    %v6370 = vsel %vm6369, %v6368, %v6366
    %s6371 = scalar_lea.vmem [#allocation0], 3522
    %v6372 = vld [vmem:[%s6371] sm:$0x80]
    %vm6373 = vcmask 1047559
    %v6374 = vsel %vm6373, %v6372, %v6370
    %6375 = vrot.lane.b32.xlu0 %v6374, 21
    %v6376 = vpop.permute.xlu0 %6375
    %vm6377 = vcmask 228520
    %s6378 = scalar_lea.vmem %s1, 48
    %6379 = vst.msk [vmem:[%s6378] sm:$0xff] %vm6377, %v6376
    %s6380 = scalar_lea.vmem [#allocation0], 1545
    %v6381 = vld [vmem:[%s6380] sm:$0x1]
    %s6382 = scalar_lea.vmem [#allocation0], 1608
    %v6383 = vld [vmem:[%s6382] sm:$0x2]
    %vm6384 = vcmask 1041409
    %v6385 = vsel %vm6384, %v6383, %v6381
    %s6386 = scalar_lea.vmem [#allocation0], 1671
    %v6387 = vld [vmem:[%s6386] sm:$0x4]
    %vm6388 = vcmask 1042434
    %v6389 = vsel %vm6388, %v6387, %v6385
    %s6390 = scalar_lea.vmem [#allocation0], 1734
    %v6391 = vld [vmem:[%s6390] sm:$0x8]
    %vm6392 = vcmask 1043459
    %v6393 = vsel %vm6392, %v6391, %v6389
    %s6394 = scalar_lea.vmem [#allocation0], 1797
    %v6395 = vld [vmem:[%s6394] sm:$0x10]
    %vm6396 = vcmask 1044484
    %v6397 = vsel %vm6396, %v6395, %v6393
    %s6398 = scalar_lea.vmem [#allocation0], 1860
    %v6399 = vld [vmem:[%s6398] sm:$0x20]
    %vm6400 = vcmask 1045509
    %v6401 = vsel %vm6400, %v6399, %v6397
    %s6402 = scalar_lea.vmem [#allocation0], 1923
    %v6403 = vld [vmem:[%s6402] sm:$0x40]
    %vm6404 = vcmask 1046534
    %v6405 = vsel %vm6404, %v6403, %v6401
    %s6406 = scalar_lea.vmem [#allocation0], 1986
    %v6407 = vld [vmem:[%s6406] sm:$0x80]
    %vm6408 = vcmask 1047559
    %v6409 = vsel %vm6408, %v6407, %v6405
    %6410 = vrot.lane.b32.xlu0 %v6409, 21
    %v6411 = vpop.permute.xlu0 %6410
    %vm6412 = vcmask 228520
    %s6413 = scalar_lea.vmem %s1, 24
    %6414 = vst.msk [vmem:[%s6413] sm:$0xff] %vm6412, %v6411
    %s6415 = scalar_lea.vmem [#allocation0], 3593
    %v6416 = vld [vmem:[%s6415] sm:$0x1]
    %s6417 = scalar_lea.vmem [#allocation0], 3656
    %v6418 = vld [vmem:[%s6417] sm:$0x2]
    %vm6419 = vcmask 1041409
    %v6420 = vsel %vm6419, %v6418, %v6416
    %s6421 = scalar_lea.vmem [#allocation0], 3719
    %v6422 = vld [vmem:[%s6421] sm:$0x4]
    %vm6423 = vcmask 1042434
    %v6424 = vsel %vm6423, %v6422, %v6420
    %s6425 = scalar_lea.vmem [#allocation0], 3782
    %v6426 = vld [vmem:[%s6425] sm:$0x8]
    %vm6427 = vcmask 1043459
    %v6428 = vsel %vm6427, %v6426, %v6424
    %s6429 = scalar_lea.vmem [#allocation0], 3845
    %v6430 = vld [vmem:[%s6429] sm:$0x10]
    %vm6431 = vcmask 1044484
    %v6432 = vsel %vm6431, %v6430, %v6428
    %s6433 = scalar_lea.vmem [#allocation0], 3908
    %v6434 = vld [vmem:[%s6433] sm:$0x20]
    %vm6435 = vcmask 1045509
    %v6436 = vsel %vm6435, %v6434, %v6432
    %s6437 = scalar_lea.vmem [#allocation0], 3971
    %v6438 = vld [vmem:[%s6437] sm:$0x40]
    %vm6439 = vcmask 1046534
    %v6440 = vsel %vm6439, %v6438, %v6436
    %s6441 = scalar_lea.vmem [#allocation0], 4034
    %v6442 = vld [vmem:[%s6441] sm:$0x80]
    %vm6443 = vcmask 1047559
    %v6444 = vsel %vm6443, %v6442, %v6440
    %6445 = vrot.lane.b32.xlu0 %v6444, 21
    %v6446 = vpop.permute.xlu0 %6445
    %vm6447 = vcmask 228520
    %s6448 = scalar_lea.vmem %s1, 56
    %6449 = vst.msk [vmem:[%s6448] sm:$0xff] %vm6447, %v6446
    %s6450 = scalar_lea.vmem [#allocation0], 8
    %v6451 = vld [vmem:[%s6450] sm:$0x1]
    %s6452 = scalar_lea.vmem [#allocation0], 71
    %v6453 = vld [vmem:[%s6452] sm:$0x2]
    %vm6454 = vcmask 1041409
    %v6455 = vsel %vm6454, %v6453, %v6451
    %s6456 = scalar_lea.vmem [#allocation0], 134
    %v6457 = vld [vmem:[%s6456] sm:$0x4]
    %vm6458 = vcmask 1042434
    %v6459 = vsel %vm6458, %v6457, %v6455
    %s6460 = scalar_lea.vmem [#allocation0], 197
    %v6461 = vld [vmem:[%s6460] sm:$0x8]
    %vm6462 = vcmask 1043459
    %v6463 = vsel %vm6462, %v6461, %v6459
    %s6464 = scalar_lea.vmem [#allocation0], 260
    %v6465 = vld [vmem:[%s6464] sm:$0x10]
    %vm6466 = vcmask 1044484
    %v6467 = vsel %vm6466, %v6465, %v6463
    %s6468 = scalar_lea.vmem [#allocation0], 323
    %v6469 = vld [vmem:[%s6468] sm:$0x20]
    %vm6470 = vcmask 1045509
    %v6471 = vsel %vm6470, %v6469, %v6467
    %s6472 = scalar_lea.vmem [#allocation0], 386
    %v6473 = vld [vmem:[%s6472] sm:$0x40]
    %vm6474 = vcmask 1046534
    %v6475 = vsel %vm6474, %v6473, %v6471
    %s6476 = scalar_lea.vmem [#allocation0], 449
    %v6477 = vld [vmem:[%s6476] sm:$0x80]
    %vm6478 = vcmask 1047559
    %v6479 = vsel %vm6478, %v6477, %v6475
    %6480 = vrot.lane.b32.xlu0 %v6479, 14
    %v6481 = vpop.permute.xlu0 %6480
    %vm6482 = vcmask 171120
    %6483 = vst.msk [vmem:[%s1] sm:$0xff] %vm6482, %v6481
    %s6484 = scalar_lea.vmem [#allocation0], 2056
    %v6485 = vld [vmem:[%s6484] sm:$0x1]
    %s6486 = scalar_lea.vmem [#allocation0], 2119
    %v6487 = vld [vmem:[%s6486] sm:$0x2]
    %vm6488 = vcmask 1041409
    %v6489 = vsel %vm6488, %v6487, %v6485
    %s6490 = scalar_lea.vmem [#allocation0], 2182
    %v6491 = vld [vmem:[%s6490] sm:$0x4]
    %vm6492 = vcmask 1042434
    %v6493 = vsel %vm6492, %v6491, %v6489
    %s6494 = scalar_lea.vmem [#allocation0], 2245
    %v6495 = vld [vmem:[%s6494] sm:$0x8]
    %vm6496 = vcmask 1043459
    %v6497 = vsel %vm6496, %v6495, %v6493
    %s6498 = scalar_lea.vmem [#allocation0], 2308
    %v6499 = vld [vmem:[%s6498] sm:$0x10]
    %vm6500 = vcmask 1044484
    %v6501 = vsel %vm6500, %v6499, %v6497
    %s6502 = scalar_lea.vmem [#allocation0], 2371
    %v6503 = vld [vmem:[%s6502] sm:$0x20]
    %vm6504 = vcmask 1045509
    %v6505 = vsel %vm6504, %v6503, %v6501
    %s6506 = scalar_lea.vmem [#allocation0], 2434
    %v6507 = vld [vmem:[%s6506] sm:$0x40]
    %vm6508 = vcmask 1046534
    %v6509 = vsel %vm6508, %v6507, %v6505
    %s6510 = scalar_lea.vmem [#allocation0], 2497
    %v6511 = vld [vmem:[%s6510] sm:$0x80]
    %vm6512 = vcmask 1047559
    %v6513 = vsel %vm6512, %v6511, %v6509
    %6514 = vrot.lane.b32.xlu0 %v6513, 14
    %v6515 = vpop.permute.xlu0 %6514
    %vm6516 = vcmask 171120
    %s6517 = scalar_lea.vmem %s1, 32
    %6518 = vst.msk [vmem:[%s6517] sm:$0xff] %vm6516, %v6515
    %s6519 = scalar_lea.vmem [#allocation0], 520
    %v6520 = vld [vmem:[%s6519] sm:$0x1]
    %s6521 = scalar_lea.vmem [#allocation0], 583
    %v6522 = vld [vmem:[%s6521] sm:$0x2]
    %vm6523 = vcmask 1041409
    %v6524 = vsel %vm6523, %v6522, %v6520
    %s6525 = scalar_lea.vmem [#allocation0], 646
    %v6526 = vld [vmem:[%s6525] sm:$0x4]
    %vm6527 = vcmask 1042434
    %v6528 = vsel %vm6527, %v6526, %v6524
    %s6529 = scalar_lea.vmem [#allocation0], 709
    %v6530 = vld [vmem:[%s6529] sm:$0x8]
    %vm6531 = vcmask 1043459
    %v6532 = vsel %vm6531, %v6530, %v6528
    %s6533 = scalar_lea.vmem [#allocation0], 772
    %v6534 = vld [vmem:[%s6533] sm:$0x10]
    %vm6535 = vcmask 1044484
    %v6536 = vsel %vm6535, %v6534, %v6532
    %s6537 = scalar_lea.vmem [#allocation0], 835
    %v6538 = vld [vmem:[%s6537] sm:$0x20]
    %vm6539 = vcmask 1045509
    %v6540 = vsel %vm6539, %v6538, %v6536
    %s6541 = scalar_lea.vmem [#allocation0], 898
    %v6542 = vld [vmem:[%s6541] sm:$0x40]
    %vm6543 = vcmask 1046534
    %v6544 = vsel %vm6543, %v6542, %v6540
    %s6545 = scalar_lea.vmem [#allocation0], 961
    %v6546 = vld [vmem:[%s6545] sm:$0x80]
    %vm6547 = vcmask 1047559
    %v6548 = vsel %vm6547, %v6546, %v6544
    %6549 = vrot.lane.b32.xlu0 %v6548, 14
    %v6550 = vpop.permute.xlu0 %6549
    %vm6551 = vcmask 171120
    %s6552 = scalar_lea.vmem %s1, 8
    %6553 = vst.msk [vmem:[%s6552] sm:$0xff] %vm6551, %v6550
    %s6554 = scalar_lea.vmem [#allocation0], 2568
    %v6555 = vld [vmem:[%s6554] sm:$0x1]
    %s6556 = scalar_lea.vmem [#allocation0], 2631
    %v6557 = vld [vmem:[%s6556] sm:$0x2]
    %vm6558 = vcmask 1041409
    %v6559 = vsel %vm6558, %v6557, %v6555
    %s6560 = scalar_lea.vmem [#allocation0], 2694
    %v6561 = vld [vmem:[%s6560] sm:$0x4]
    %vm6562 = vcmask 1042434
    %v6563 = vsel %vm6562, %v6561, %v6559
    %s6564 = scalar_lea.vmem [#allocation0], 2757
    %v6565 = vld [vmem:[%s6564] sm:$0x8]
    %vm6566 = vcmask 1043459
    %v6567 = vsel %vm6566, %v6565, %v6563
    %s6568 = scalar_lea.vmem [#allocation0], 2820
    %v6569 = vld [vmem:[%s6568] sm:$0x10]
    %vm6570 = vcmask 1044484
    %v6571 = vsel %vm6570, %v6569, %v6567
    %s6572 = scalar_lea.vmem [#allocation0], 2883
    %v6573 = vld [vmem:[%s6572] sm:$0x20]
    %vm6574 = vcmask 1045509
    %v6575 = vsel %vm6574, %v6573, %v6571
    %s6576 = scalar_lea.vmem [#allocation0], 2946
    %v6577 = vld [vmem:[%s6576] sm:$0x40]
    %vm6578 = vcmask 1046534
    %v6579 = vsel %vm6578, %v6577, %v6575
    %s6580 = scalar_lea.vmem [#allocation0], 3009
    %v6581 = vld [vmem:[%s6580] sm:$0x80]
    %vm6582 = vcmask 1047559
    %v6583 = vsel %vm6582, %v6581, %v6579
    %6584 = vrot.lane.b32.xlu0 %v6583, 14
    %v6585 = vpop.permute.xlu0 %6584
    %vm6586 = vcmask 171120
    %s6587 = scalar_lea.vmem %s1, 40
    %6588 = vst.msk [vmem:[%s6587] sm:$0xff] %vm6586, %v6585
    %s6589 = scalar_lea.vmem [#allocation0], 1032
    %v6590 = vld [vmem:[%s6589] sm:$0x1]
    %s6591 = scalar_lea.vmem [#allocation0], 1095
    %v6592 = vld [vmem:[%s6591] sm:$0x2]
    %vm6593 = vcmask 1041409
    %v6594 = vsel %vm6593, %v6592, %v6590
    %s6595 = scalar_lea.vmem [#allocation0], 1158
    %v6596 = vld [vmem:[%s6595] sm:$0x4]
    %vm6597 = vcmask 1042434
    %v6598 = vsel %vm6597, %v6596, %v6594
    %s6599 = scalar_lea.vmem [#allocation0], 1221
    %v6600 = vld [vmem:[%s6599] sm:$0x8]
    %vm6601 = vcmask 1043459
    %v6602 = vsel %vm6601, %v6600, %v6598
    %s6603 = scalar_lea.vmem [#allocation0], 1284
    %v6604 = vld [vmem:[%s6603] sm:$0x10]
    %vm6605 = vcmask 1044484
    %v6606 = vsel %vm6605, %v6604, %v6602
    %s6607 = scalar_lea.vmem [#allocation0], 1347
    %v6608 = vld [vmem:[%s6607] sm:$0x20]
    %vm6609 = vcmask 1045509
    %v6610 = vsel %vm6609, %v6608, %v6606
    %s6611 = scalar_lea.vmem [#allocation0], 1410
    %v6612 = vld [vmem:[%s6611] sm:$0x40]
    %vm6613 = vcmask 1046534
    %v6614 = vsel %vm6613, %v6612, %v6610
    %s6615 = scalar_lea.vmem [#allocation0], 1473
    %v6616 = vld [vmem:[%s6615] sm:$0x80]
    %vm6617 = vcmask 1047559
    %v6618 = vsel %vm6617, %v6616, %v6614
    %6619 = vrot.lane.b32.xlu0 %v6618, 14
    %v6620 = vpop.permute.xlu0 %6619
    %vm6621 = vcmask 171120
    %s6622 = scalar_lea.vmem %s1, 16
    %6623 = vst.msk [vmem:[%s6622] sm:$0xff] %vm6621, %v6620
    %s6624 = scalar_lea.vmem [#allocation0], 3080
    %v6625 = vld [vmem:[%s6624] sm:$0x1]
    %s6626 = scalar_lea.vmem [#allocation0], 3143
    %v6627 = vld [vmem:[%s6626] sm:$0x2]
    %vm6628 = vcmask 1041409
    %v6629 = vsel %vm6628, %v6627, %v6625
    %s6630 = scalar_lea.vmem [#allocation0], 3206
    %v6631 = vld [vmem:[%s6630] sm:$0x4]
    %vm6632 = vcmask 1042434
    %v6633 = vsel %vm6632, %v6631, %v6629
    %s6634 = scalar_lea.vmem [#allocation0], 3269
    %v6635 = vld [vmem:[%s6634] sm:$0x8]
    %vm6636 = vcmask 1043459
    %v6637 = vsel %vm6636, %v6635, %v6633
    %s6638 = scalar_lea.vmem [#allocation0], 3332
    %v6639 = vld [vmem:[%s6638] sm:$0x10]
    %vm6640 = vcmask 1044484
    %v6641 = vsel %vm6640, %v6639, %v6637
    %s6642 = scalar_lea.vmem [#allocation0], 3395
    %v6643 = vld [vmem:[%s6642] sm:$0x20]
    %vm6644 = vcmask 1045509
    %v6645 = vsel %vm6644, %v6643, %v6641
    %s6646 = scalar_lea.vmem [#allocation0], 3458
    %v6647 = vld [vmem:[%s6646] sm:$0x40]
    %vm6648 = vcmask 1046534
    %v6649 = vsel %vm6648, %v6647, %v6645
    %s6650 = scalar_lea.vmem [#allocation0], 3521
    %v6651 = vld [vmem:[%s6650] sm:$0x80]
    %vm6652 = vcmask 1047559
    %v6653 = vsel %vm6652, %v6651, %v6649
    %6654 = vrot.lane.b32.xlu0 %v6653, 14
    %v6655 = vpop.permute.xlu0 %6654
    %vm6656 = vcmask 171120
    %s6657 = scalar_lea.vmem %s1, 48
    %6658 = vst.msk [vmem:[%s6657] sm:$0xff] %vm6656, %v6655
    %s6659 = scalar_lea.vmem [#allocation0], 1544
    %v6660 = vld [vmem:[%s6659] sm:$0x1]
    %s6661 = scalar_lea.vmem [#allocation0], 1607
    %v6662 = vld [vmem:[%s6661] sm:$0x2]
    %vm6663 = vcmask 1041409
    %v6664 = vsel %vm6663, %v6662, %v6660
    %s6665 = scalar_lea.vmem [#allocation0], 1670
    %v6666 = vld [vmem:[%s6665] sm:$0x4]
    %vm6667 = vcmask 1042434
    %v6668 = vsel %vm6667, %v6666, %v6664
    %s6669 = scalar_lea.vmem [#allocation0], 1733
    %v6670 = vld [vmem:[%s6669] sm:$0x8]
    %vm6671 = vcmask 1043459
    %v6672 = vsel %vm6671, %v6670, %v6668
    %s6673 = scalar_lea.vmem [#allocation0], 1796
    %v6674 = vld [vmem:[%s6673] sm:$0x10]
    %vm6675 = vcmask 1044484
    %v6676 = vsel %vm6675, %v6674, %v6672
    %s6677 = scalar_lea.vmem [#allocation0], 1859
    %v6678 = vld [vmem:[%s6677] sm:$0x20]
    %vm6679 = vcmask 1045509
    %v6680 = vsel %vm6679, %v6678, %v6676
    %s6681 = scalar_lea.vmem [#allocation0], 1922
    %v6682 = vld [vmem:[%s6681] sm:$0x40]
    %vm6683 = vcmask 1046534
    %v6684 = vsel %vm6683, %v6682, %v6680
    %s6685 = scalar_lea.vmem [#allocation0], 1985
    %v6686 = vld [vmem:[%s6685] sm:$0x80]
    %vm6687 = vcmask 1047559
    %v6688 = vsel %vm6687, %v6686, %v6684
    %6689 = vrot.lane.b32.xlu0 %v6688, 14
    %v6690 = vpop.permute.xlu0 %6689
    %vm6691 = vcmask 171120
    %s6692 = scalar_lea.vmem %s1, 24
    %6693 = vst.msk [vmem:[%s6692] sm:$0xff] %vm6691, %v6690
    %s6694 = scalar_lea.vmem [#allocation0], 3592
    %v6695 = vld [vmem:[%s6694] sm:$0x1]
    %s6696 = scalar_lea.vmem [#allocation0], 3655
    %v6697 = vld [vmem:[%s6696] sm:$0x2]
    %vm6698 = vcmask 1041409
    %v6699 = vsel %vm6698, %v6697, %v6695
    %s6700 = scalar_lea.vmem [#allocation0], 3718
    %v6701 = vld [vmem:[%s6700] sm:$0x4]
    %vm6702 = vcmask 1042434
    %v6703 = vsel %vm6702, %v6701, %v6699
    %s6704 = scalar_lea.vmem [#allocation0], 3781
    %v6705 = vld [vmem:[%s6704] sm:$0x8]
    %vm6706 = vcmask 1043459
    %v6707 = vsel %vm6706, %v6705, %v6703
    %s6708 = scalar_lea.vmem [#allocation0], 3844
    %v6709 = vld [vmem:[%s6708] sm:$0x10]
    %vm6710 = vcmask 1044484
    %v6711 = vsel %vm6710, %v6709, %v6707
    %s6712 = scalar_lea.vmem [#allocation0], 3907
    %v6713 = vld [vmem:[%s6712] sm:$0x20]
    %vm6714 = vcmask 1045509
    %v6715 = vsel %vm6714, %v6713, %v6711
    %s6716 = scalar_lea.vmem [#allocation0], 3970
    %v6717 = vld [vmem:[%s6716] sm:$0x40]
    %vm6718 = vcmask 1046534
    %v6719 = vsel %vm6718, %v6717, %v6715
    %s6720 = scalar_lea.vmem [#allocation0], 4033
    %v6721 = vld [vmem:[%s6720] sm:$0x80]
    %vm6722 = vcmask 1047559
    %v6723 = vsel %vm6722, %v6721, %v6719
    %6724 = vrot.lane.b32.xlu0 %v6723, 14
    %v6725 = vpop.permute.xlu0 %6724
    %vm6726 = vcmask 171120
    %s6727 = scalar_lea.vmem %s1, 56
    %6728 = vst.msk [vmem:[%s6727] sm:$0xff] %vm6726, %v6725
    %s6729 = scalar_lea.vmem [#allocation0], 1
    %v6730 = vld [vmem:[%s6729] sm:$0x1]
    %s6731 = scalar_lea.vmem [#allocation0], 64
    %v6732 = vld [vmem:[%s6731] sm:$0x2]
    %vm6733 = vcmask 1041409
    %v6734 = vsel %vm6733, %v6732, %v6730
    %s6735 = scalar_lea.vmem [#allocation0], 127
    %v6736 = vld [vmem:[%s6735] sm:$0x4]
    %vm6737 = vcmask 1042434
    %v6738 = vsel %vm6737, %v6736, %v6734
    %s6739 = scalar_lea.vmem [#allocation0], 190
    %v6740 = vld [vmem:[%s6739] sm:$0x8]
    %vm6741 = vcmask 1043459
    %v6742 = vsel %vm6741, %v6740, %v6738
    %s6743 = scalar_lea.vmem [#allocation0], 253
    %v6744 = vld [vmem:[%s6743] sm:$0x10]
    %vm6745 = vcmask 1044484
    %v6746 = vsel %vm6745, %v6744, %v6742
    %s6747 = scalar_lea.vmem [#allocation0], 316
    %v6748 = vld [vmem:[%s6747] sm:$0x20]
    %vm6749 = vcmask 1045509
    %v6750 = vsel %vm6749, %v6748, %v6746
    %s6751 = scalar_lea.vmem [#allocation0], 379
    %v6752 = vld [vmem:[%s6751] sm:$0x40]
    %vm6753 = vcmask 1046534
    %v6754 = vsel %vm6753, %v6752, %v6750
    %s6755 = scalar_lea.vmem [#allocation0], 442
    %v6756 = vld [vmem:[%s6755] sm:$0x80]
    %vm6757 = vcmask 1047559
    %v6758 = vsel %vm6757, %v6756, %v6754
    %6759 = vrot.lane.b32.xlu0 %v6758, 7
    %v6760 = vpop.permute.xlu0 %6759
    %vm6761 = vcmask 113720
    %6762 = vst.msk [vmem:[%s1] sm:$0xff] %vm6761, %v6760
    %s6763 = scalar_lea.vmem [#allocation0], 2049
    %v6764 = vld [vmem:[%s6763] sm:$0x1]
    %s6765 = scalar_lea.vmem [#allocation0], 2112
    %v6766 = vld [vmem:[%s6765] sm:$0x2]
    %vm6767 = vcmask 1041409
    %v6768 = vsel %vm6767, %v6766, %v6764
    %s6769 = scalar_lea.vmem [#allocation0], 2175
    %v6770 = vld [vmem:[%s6769] sm:$0x4]
    %vm6771 = vcmask 1042434
    %v6772 = vsel %vm6771, %v6770, %v6768
    %s6773 = scalar_lea.vmem [#allocation0], 2238
    %v6774 = vld [vmem:[%s6773] sm:$0x8]
    %vm6775 = vcmask 1043459
    %v6776 = vsel %vm6775, %v6774, %v6772
    %s6777 = scalar_lea.vmem [#allocation0], 2301
    %v6778 = vld [vmem:[%s6777] sm:$0x10]
    %vm6779 = vcmask 1044484
    %v6780 = vsel %vm6779, %v6778, %v6776
    %s6781 = scalar_lea.vmem [#allocation0], 2364
    %v6782 = vld [vmem:[%s6781] sm:$0x20]
    %vm6783 = vcmask 1045509
    %v6784 = vsel %vm6783, %v6782, %v6780
    %s6785 = scalar_lea.vmem [#allocation0], 2427
    %v6786 = vld [vmem:[%s6785] sm:$0x40]
    %vm6787 = vcmask 1046534
    %v6788 = vsel %vm6787, %v6786, %v6784
    %s6789 = scalar_lea.vmem [#allocation0], 2490
    %v6790 = vld [vmem:[%s6789] sm:$0x80]
    %vm6791 = vcmask 1047559
    %v6792 = vsel %vm6791, %v6790, %v6788
    %6793 = vrot.lane.b32.xlu0 %v6792, 7
    %v6794 = vpop.permute.xlu0 %6793
    %vm6795 = vcmask 113720
    %s6796 = scalar_lea.vmem %s1, 32
    %6797 = vst.msk [vmem:[%s6796] sm:$0xff] %vm6795, %v6794
    %s6798 = scalar_lea.vmem [#allocation0], 513
    %v6799 = vld [vmem:[%s6798] sm:$0x1]
    %s6800 = scalar_lea.vmem [#allocation0], 576
    %v6801 = vld [vmem:[%s6800] sm:$0x2]
    %vm6802 = vcmask 1041409
    %v6803 = vsel %vm6802, %v6801, %v6799
    %s6804 = scalar_lea.vmem [#allocation0], 639
    %v6805 = vld [vmem:[%s6804] sm:$0x4]
    %vm6806 = vcmask 1042434
    %v6807 = vsel %vm6806, %v6805, %v6803
    %s6808 = scalar_lea.vmem [#allocation0], 702
    %v6809 = vld [vmem:[%s6808] sm:$0x8]
    %vm6810 = vcmask 1043459
    %v6811 = vsel %vm6810, %v6809, %v6807
    %s6812 = scalar_lea.vmem [#allocation0], 765
    %v6813 = vld [vmem:[%s6812] sm:$0x10]
    %vm6814 = vcmask 1044484
    %v6815 = vsel %vm6814, %v6813, %v6811
    %s6816 = scalar_lea.vmem [#allocation0], 828
    %v6817 = vld [vmem:[%s6816] sm:$0x20]
    %vm6818 = vcmask 1045509
    %v6819 = vsel %vm6818, %v6817, %v6815
    %s6820 = scalar_lea.vmem [#allocation0], 891
    %v6821 = vld [vmem:[%s6820] sm:$0x40]
    %vm6822 = vcmask 1046534
    %v6823 = vsel %vm6822, %v6821, %v6819
    %s6824 = scalar_lea.vmem [#allocation0], 954
    %v6825 = vld [vmem:[%s6824] sm:$0x80]
    %vm6826 = vcmask 1047559
    %v6827 = vsel %vm6826, %v6825, %v6823
    %6828 = vrot.lane.b32.xlu0 %v6827, 7
    %v6829 = vpop.permute.xlu0 %6828
    %vm6830 = vcmask 113720
    %s6831 = scalar_lea.vmem %s1, 8
    %6832 = vst.msk [vmem:[%s6831] sm:$0xff] %vm6830, %v6829
    %s6833 = scalar_lea.vmem [#allocation0], 2561
    %v6834 = vld [vmem:[%s6833] sm:$0x1]
    %s6835 = scalar_lea.vmem [#allocation0], 2624
    %v6836 = vld [vmem:[%s6835] sm:$0x2]
    %vm6837 = vcmask 1041409
    %v6838 = vsel %vm6837, %v6836, %v6834
    %s6839 = scalar_lea.vmem [#allocation0], 2687
    %v6840 = vld [vmem:[%s6839] sm:$0x4]
    %vm6841 = vcmask 1042434
    %v6842 = vsel %vm6841, %v6840, %v6838
    %s6843 = scalar_lea.vmem [#allocation0], 2750
    %v6844 = vld [vmem:[%s6843] sm:$0x8]
    %vm6845 = vcmask 1043459
    %v6846 = vsel %vm6845, %v6844, %v6842
    %s6847 = scalar_lea.vmem [#allocation0], 2813
    %v6848 = vld [vmem:[%s6847] sm:$0x10]
    %vm6849 = vcmask 1044484
    %v6850 = vsel %vm6849, %v6848, %v6846
    %s6851 = scalar_lea.vmem [#allocation0], 2876
    %v6852 = vld [vmem:[%s6851] sm:$0x20]
    %vm6853 = vcmask 1045509
    %v6854 = vsel %vm6853, %v6852, %v6850
    %s6855 = scalar_lea.vmem [#allocation0], 2939
    %v6856 = vld [vmem:[%s6855] sm:$0x40]
    %vm6857 = vcmask 1046534
    %v6858 = vsel %vm6857, %v6856, %v6854
    %s6859 = scalar_lea.vmem [#allocation0], 3002
    %v6860 = vld [vmem:[%s6859] sm:$0x80]
    %vm6861 = vcmask 1047559
    %v6862 = vsel %vm6861, %v6860, %v6858
    %6863 = vrot.lane.b32.xlu0 %v6862, 7
    %v6864 = vpop.permute.xlu0 %6863
    %vm6865 = vcmask 113720
    %s6866 = scalar_lea.vmem %s1, 40
    %6867 = vst.msk [vmem:[%s6866] sm:$0xff] %vm6865, %v6864
    %s6868 = scalar_lea.vmem [#allocation0], 1025
    %v6869 = vld [vmem:[%s6868] sm:$0x1]
    %s6870 = scalar_lea.vmem [#allocation0], 1088
    %v6871 = vld [vmem:[%s6870] sm:$0x2]
    %vm6872 = vcmask 1041409
    %v6873 = vsel %vm6872, %v6871, %v6869
    %s6874 = scalar_lea.vmem [#allocation0], 1151
    %v6875 = vld [vmem:[%s6874] sm:$0x4]
    %vm6876 = vcmask 1042434
    %v6877 = vsel %vm6876, %v6875, %v6873
    %s6878 = scalar_lea.vmem [#allocation0], 1214
    %v6879 = vld [vmem:[%s6878] sm:$0x8]
    %vm6880 = vcmask 1043459
    %v6881 = vsel %vm6880, %v6879, %v6877
    %s6882 = scalar_lea.vmem [#allocation0], 1277
    %v6883 = vld [vmem:[%s6882] sm:$0x10]
    %vm6884 = vcmask 1044484
    %v6885 = vsel %vm6884, %v6883, %v6881
    %s6886 = scalar_lea.vmem [#allocation0], 1340
    %v6887 = vld [vmem:[%s6886] sm:$0x20]
    %vm6888 = vcmask 1045509
    %v6889 = vsel %vm6888, %v6887, %v6885
    %s6890 = scalar_lea.vmem [#allocation0], 1403
    %v6891 = vld [vmem:[%s6890] sm:$0x40]
    %vm6892 = vcmask 1046534
    %v6893 = vsel %vm6892, %v6891, %v6889
    %s6894 = scalar_lea.vmem [#allocation0], 1466
    %v6895 = vld [vmem:[%s6894] sm:$0x80]
    %vm6896 = vcmask 1047559
    %v6897 = vsel %vm6896, %v6895, %v6893
    %6898 = vrot.lane.b32.xlu0 %v6897, 7
    %v6899 = vpop.permute.xlu0 %6898
    %vm6900 = vcmask 113720
    %s6901 = scalar_lea.vmem %s1, 16
    %6902 = vst.msk [vmem:[%s6901] sm:$0xff] %vm6900, %v6899
    %s6903 = scalar_lea.vmem [#allocation0], 3073
    %v6904 = vld [vmem:[%s6903] sm:$0x1]
    %s6905 = scalar_lea.vmem [#allocation0], 3136
    %v6906 = vld [vmem:[%s6905] sm:$0x2]
    %vm6907 = vcmask 1041409
    %v6908 = vsel %vm6907, %v6906, %v6904
    %s6909 = scalar_lea.vmem [#allocation0], 3199
    %v6910 = vld [vmem:[%s6909] sm:$0x4]
    %vm6911 = vcmask 1042434
    %v6912 = vsel %vm6911, %v6910, %v6908
    %s6913 = scalar_lea.vmem [#allocation0], 3262
    %v6914 = vld [vmem:[%s6913] sm:$0x8]
    %vm6915 = vcmask 1043459
    %v6916 = vsel %vm6915, %v6914, %v6912
    %s6917 = scalar_lea.vmem [#allocation0], 3325
    %v6918 = vld [vmem:[%s6917] sm:$0x10]
    %vm6919 = vcmask 1044484
    %v6920 = vsel %vm6919, %v6918, %v6916
    %s6921 = scalar_lea.vmem [#allocation0], 3388
    %v6922 = vld [vmem:[%s6921] sm:$0x20]
    %vm6923 = vcmask 1045509
    %v6924 = vsel %vm6923, %v6922, %v6920
    %s6925 = scalar_lea.vmem [#allocation0], 3451
    %v6926 = vld [vmem:[%s6925] sm:$0x40]
    %vm6927 = vcmask 1046534
    %v6928 = vsel %vm6927, %v6926, %v6924
    %s6929 = scalar_lea.vmem [#allocation0], 3514
    %v6930 = vld [vmem:[%s6929] sm:$0x80]
    %vm6931 = vcmask 1047559
    %v6932 = vsel %vm6931, %v6930, %v6928
    %6933 = vrot.lane.b32.xlu0 %v6932, 7
    %v6934 = vpop.permute.xlu0 %6933
    %vm6935 = vcmask 113720
    %s6936 = scalar_lea.vmem %s1, 48
    %6937 = vst.msk [vmem:[%s6936] sm:$0xff] %vm6935, %v6934
    %s6938 = scalar_lea.vmem [#allocation0], 1537
    %v6939 = vld [vmem:[%s6938] sm:$0x1]
    %s6940 = scalar_lea.vmem [#allocation0], 1600
    %v6941 = vld [vmem:[%s6940] sm:$0x2]
    %vm6942 = vcmask 1041409
    %v6943 = vsel %vm6942, %v6941, %v6939
    %s6944 = scalar_lea.vmem [#allocation0], 1663
    %v6945 = vld [vmem:[%s6944] sm:$0x4]
    %vm6946 = vcmask 1042434
    %v6947 = vsel %vm6946, %v6945, %v6943
    %s6948 = scalar_lea.vmem [#allocation0], 1726
    %v6949 = vld [vmem:[%s6948] sm:$0x8]
    %vm6950 = vcmask 1043459
    %v6951 = vsel %vm6950, %v6949, %v6947
    %s6952 = scalar_lea.vmem [#allocation0], 1789
    %v6953 = vld [vmem:[%s6952] sm:$0x10]
    %vm6954 = vcmask 1044484
    %v6955 = vsel %vm6954, %v6953, %v6951
    %s6956 = scalar_lea.vmem [#allocation0], 1852
    %v6957 = vld [vmem:[%s6956] sm:$0x20]
    %vm6958 = vcmask 1045509
    %v6959 = vsel %vm6958, %v6957, %v6955
    %s6960 = scalar_lea.vmem [#allocation0], 1915
    %v6961 = vld [vmem:[%s6960] sm:$0x40]
    %vm6962 = vcmask 1046534
    %v6963 = vsel %vm6962, %v6961, %v6959
    %s6964 = scalar_lea.vmem [#allocation0], 1978
    %v6965 = vld [vmem:[%s6964] sm:$0x80]
    %vm6966 = vcmask 1047559
    %v6967 = vsel %vm6966, %v6965, %v6963
    %6968 = vrot.lane.b32.xlu0 %v6967, 7
    %v6969 = vpop.permute.xlu0 %6968
    %vm6970 = vcmask 113720
    %s6971 = scalar_lea.vmem %s1, 24
    %6972 = vst.msk [vmem:[%s6971] sm:$0xff] %vm6970, %v6969
    %s6973 = scalar_lea.vmem [#allocation0], 3585
    %v6974 = vld [vmem:[%s6973] sm:$0x1]
    %s6975 = scalar_lea.vmem [#allocation0], 3648
    %v6976 = vld [vmem:[%s6975] sm:$0x2]
    %vm6977 = vcmask 1041409
    %v6978 = vsel %vm6977, %v6976, %v6974
    %s6979 = scalar_lea.vmem [#allocation0], 3711
    %v6980 = vld [vmem:[%s6979] sm:$0x4]
    %vm6981 = vcmask 1042434
    %v6982 = vsel %vm6981, %v6980, %v6978
    %s6983 = scalar_lea.vmem [#allocation0], 3774
    %v6984 = vld [vmem:[%s6983] sm:$0x8]
    %vm6985 = vcmask 1043459
    %v6986 = vsel %vm6985, %v6984, %v6982
    %s6987 = scalar_lea.vmem [#allocation0], 3837
    %v6988 = vld [vmem:[%s6987] sm:$0x10]
    %vm6989 = vcmask 1044484
    %v6990 = vsel %vm6989, %v6988, %v6986
    %s6991 = scalar_lea.vmem [#allocation0], 3900
    %v6992 = vld [vmem:[%s6991] sm:$0x20]
    %vm6993 = vcmask 1045509
    %v6994 = vsel %vm6993, %v6992, %v6990
    %s6995 = scalar_lea.vmem [#allocation0], 3963
    %v6996 = vld [vmem:[%s6995] sm:$0x40]
    %vm6997 = vcmask 1046534
    %v6998 = vsel %vm6997, %v6996, %v6994
    %s6999 = scalar_lea.vmem [#allocation0], 4026
    %v7000 = vld [vmem:[%s6999] sm:$0x80]
    %vm7001 = vcmask 1047559
    %v7002 = vsel %vm7001, %v7000, %v6998
    %7003 = vrot.lane.b32.xlu0 %v7002, 7
    %v7004 = vpop.permute.xlu0 %7003
    %vm7005 = vcmask 113720
    %s7006 = scalar_lea.vmem %s1, 56
    %7007 = vst.msk [vmem:[%s7006] sm:$0xff] %vm7005, %v7004

// kernel: upsample_block.1
$region0: #{upsample_block.1}
  #allocation0 [shape = 'u32[]', space=smem, size = 0x4, offset = 0x4, fixed_abs, tag = 'smem constant byte address 0x4 - core index']
  #allocation1 [shape = 'u32[144,128]{1,0:T(1,128)}', space=vmem, size = 0x12000, scoped, tag = 'internal scratch']
  #allocation2 [shape = 'f32[18,80]{1,0:T(8,128)}', space=vmem, size = 0x3000, scoped, tag = 'scratch operand']
  %s0 = inlined_call_operand.vmem [shape: f32[2,16,64], index: 0, kind: input, shape index: {}]
  %s1 = inlined_call_operand.vmem [shape: f32[112,64], index: 1, kind: input, shape index: {}]
  %s2 = inlined_call_operand.vmem [shape: f32[1,64], index: 2, kind: input, shape index: {}]
  %s3 = inlined_call_operand.vmem [shape: f32[2,16,256], index: 3, kind: output, shape index: {}]
  %s4 = sld [smem:[#allocation0]]
  $region45: #{upsample_block.1} parent=0
    _
  %s6 = ssub.s32 1, %s4
  %s7 = scalar_select 0, %s6, %s4
  loop: start=0, step=1, limit=4
  $region2: #{upsample_block.1} parent=0 // loop_pre_header
    _
  $region3: #{upsample_block.1} parent=0 // loop_header
    %s9 = sphi 0, %s13
    %p10 = scmp.ge.s32.totalorder %s9, 4
    %s19 = sphi 0, %s21
    %s22 = sphi 0, %s19
    %s23 = sphi 0, %s22
    %s39 = sphi 0, %s23
    %s43 = sphi 0, %s43
    %s45 = sphi 0, %s43
    %s46 = sphi 0, %s45
    %s60 = sphi 0, %s46
    %s64 = sphi 0, %s64
    %s66 = sphi 0, %s64
    %s67 = sphi 0, %s66
    %s81 = sphi 0, %s67
    %s87 = sphi 0, %s89
    %s90 = sphi 0, %s87
    %s91 = sphi 0, %s90
    %s107 = sphi 0, %s91
  $region4: #{upsample_block.1} parent=0 // loop_header_branch
    %12 = sbr.rel (%p10) target = $region8
  $region5: #{upsample_block.1} parent=0 // loop_body
    %s14 = ssub.s32 %s9, 1
    %s15 = ssub.s32 %s9, 2
    %s16 = sadd.s32 %s9, 1
    %s17 = ssub.s32 %s9, %s16
    %p18 = scmp.eq.s32.totalorder %s17, 0
    %s20 = sadd.s32 %s19, 1
    %s21 = scalar_select %p18, %s19, %s20
    %p24 = pneg %p18
    %p25 = scmp.eq.s32.totalorder %s9, 1
    %p26 = por %p24, %p25
    %p27 = scmp.ne.s32.totalorder %s19, %s22
    %p28 = scmp.eq.s32.totalorder %s9, 0
    %p29 = por %p27, %p28
    %p30 = scmp.ne.s32.totalorder %s19, %s22
    %p31 = scmp.eq.s32.totalorder %s14, 1
    %p32 = por %p30, %p31
    %p33 = scmp.ne.s32.totalorder %s22, %s23
    %p34 = scmp.eq.s32.totalorder %s14, 0
    %p35 = por %p33, %p34
    %p36 = scmp.ne.s32.totalorder %s22, %s23
    %p37 = scmp.eq.s32.totalorder %s15, 1
    %p38 = por %p36, %p37
    %p40 = scmp.ne.s32.totalorder %s23, %s39
    %p41 = scmp.eq.s32.totalorder %s15, 0
    %p42 = por %p40, %p41
    %s44 = sadd.s32 %s43, 1
    %p47 = scmp.eq.s32.totalorder %s9, 1
    %p48 = scmp.ne.s32.totalorder %s43, %s45
    %p49 = scmp.eq.s32.totalorder %s9, 0
    %p50 = por %p48, %p49
    %p51 = scmp.ne.s32.totalorder %s43, %s45
    %p52 = scmp.eq.s32.totalorder %s14, 1
    %p53 = por %p51, %p52
    %p54 = scmp.ne.s32.totalorder %s45, %s46
    %p55 = scmp.eq.s32.totalorder %s14, 0
    %p56 = por %p54, %p55
    %p57 = scmp.ne.s32.totalorder %s45, %s46
    %p58 = scmp.eq.s32.totalorder %s15, 1
    %p59 = por %p57, %p58
    %p61 = scmp.ne.s32.totalorder %s46, %s60
    %p62 = scmp.eq.s32.totalorder %s15, 0
    %p63 = por %p61, %p62
    %s65 = sadd.s32 %s64, 1
    %p68 = scmp.eq.s32.totalorder %s9, 1
    %p69 = scmp.ne.s32.totalorder %s64, %s66
    %p70 = scmp.eq.s32.totalorder %s9, 0
    %p71 = por %p69, %p70
    %p72 = scmp.ne.s32.totalorder %s64, %s66
    %p73 = scmp.eq.s32.totalorder %s14, 1
    %p74 = por %p72, %p73
    %p75 = scmp.ne.s32.totalorder %s66, %s67
    %p76 = scmp.eq.s32.totalorder %s14, 0
    %p77 = por %p75, %p76
    %p78 = scmp.ne.s32.totalorder %s66, %s67
    %p79 = scmp.eq.s32.totalorder %s15, 1
    %p80 = por %p78, %p79
    %p82 = scmp.ne.s32.totalorder %s67, %s81
    %p83 = scmp.eq.s32.totalorder %s15, 0
    %p84 = por %p82, %p83
    %s85 = ssub.s32 %s9, %s16
    %p86 = scmp.eq.s32.totalorder %s85, 0
    %s88 = sadd.s32 %s87, 1
    %s89 = scalar_select %p86, %s87, %s88
    %p92 = pneg %p86
    %p93 = scmp.eq.s32.totalorder %s9, 1
    %p94 = por %p92, %p93
    %p95 = scmp.ne.s32.totalorder %s87, %s90
    %p96 = scmp.eq.s32.totalorder %s9, 0
    %p97 = por %p95, %p96
    %p98 = scmp.ne.s32.totalorder %s87, %s90
    %p99 = scmp.eq.s32.totalorder %s14, 1
    %p100 = por %p98, %p99
    %p101 = scmp.ne.s32.totalorder %s90, %s91
    %p102 = scmp.eq.s32.totalorder %s14, 0
    %p103 = por %p101, %p102
    %p104 = scmp.ne.s32.totalorder %s90, %s91
    %p105 = scmp.eq.s32.totalorder %s15, 1
    %p106 = por %p104, %p105
    %p108 = scmp.ne.s32.totalorder %s91, %s107
    %p109 = scmp.eq.s32.totalorder %s15, 0
    %p110 = por %p108, %p109
    %p111 = scmp.le.s32.totalorder 1, %s9
    %p112 = scmp.lt.s32.totalorder %s9, 3
    %p113 = pnand %p111, %p112
    %p114 = pneg %p113
    // Predicated region
    $region9: #{upsample_block.1} parent=5 // pred_check
      _
    $region10: #{upsample_block.1} parent=5 // pred_check_branch
      %116 = sbr.rel (%p113) target = $region12
    $region11: #{upsample_block.1} parent=5 // pred_region
      %s117 = ssub.s32 %s9, 1
      // Predicated region
      $region13: #{upsample_block.1} parent=11 // pred_check
        %p118 = pneg %p56
      $region14: #{upsample_block.1} parent=11 // pred_check_branch
        %120 = sbr.rel (%p118) target = $region16
      $region15: #{upsample_block.1} parent=11 // pred_region
        _
      $region16: #{upsample_block.1} parent=11 // pred_fallthru
        _
      // Predicated region
      $region17: #{upsample_block.1} parent=11 // pred_check
        %p121 = pneg %p77
      $region18: #{upsample_block.1} parent=11 // pred_check_branch
        %123 = sbr.rel (%p121) target = $region20
      $region19: #{upsample_block.1} parent=11 // pred_region
        _
      $region20: #{upsample_block.1} parent=11 // pred_fallthru
        _
    $region12: #{upsample_block.1} parent=5 // pred_fallthru
      _
    %p124 = scmp.lt.s32.totalorder %s9, 2
    // Predicated region
    $region21: #{upsample_block.1} parent=5 // pred_check
      %p125 = pneg %p124
    $region22: #{upsample_block.1} parent=5 // pred_check_branch
      %127 = sbr.rel (%p125) target = $region24
    $region23: #{upsample_block.1} parent=5 // pred_region
      // Predicated region
      $region25: #{upsample_block.1} parent=23 // pred_check
        %p128 = pneg %p29
      $region26: #{upsample_block.1} parent=23 // pred_check_branch
        %130 = sbr.rel (%p128) target = $region28
      $region27: #{upsample_block.1} parent=23 // pred_region
        %p131 = scmp.lt.s32.totalorder %s9, 1
        %s132 = scalar_select %p131, %s9, 1
        %s133 = smul.addr %s132, 2
        %s134 = smul.addr %s133, 8
        %s135 = scalar_lea.vmem %s0, %s134
      $region28: #{upsample_block.1} parent=23 // pred_fallthru
        _
    $region24: #{upsample_block.1} parent=5 // pred_fallthru
      _
    %p136 = scmp.le.s32.totalorder 1, %s9
    %p137 = scmp.lt.s32.totalorder %s9, 3
    %p138 = pnand %p136, %p137
    %p139 = pneg %p138
    // Predicated region
    $region29: #{upsample_block.1} parent=5 // pred_check
      _
    $region30: #{upsample_block.1} parent=5 // pred_check_branch
      %141 = sbr.rel (%p138) target = $region32
    $region31: #{upsample_block.1} parent=5 // pred_region
      %s142 = ssub.s32 %s9, 1
      %p143 = scmp.lt.s32.totalorder %s14, 1
      %s144 = scalar_select %p143, %s14, 1
      %s145 = smul.addr %s144, 2
      %s146 = smul.addr %s145, 8
      %s147 = scalar_lea.vmem %s0, %s146
      %p148 = pneg %p35
      %p149 = pneg %p32
      %p150 = pneg %p56
      %p151 = pneg %p53
      %p152 = pneg %p77
      %p153 = pneg %p74
      %p154 = pneg %p103
      %p155 = pneg %p100
      %p156 = scmp.lt.s32.totalorder %s14, 1
      %s157 = scalar_select %p156, %s14, 1
      %s158 = smul.addr %s157, 4
      %s159 = smul.addr %s158, 8
      %s160 = scalar_lea.vmem %s3, %s159
      %p161 = scmp.lt.s32.totalorder %s14, 1
      %s162 = scalar_select %p161, %s14, 1
      %s163 = smul.addr %s162, 2
      %s164 = smul.addr %s163, 8
      %s165 = scalar_lea.vmem %s0, %s164
      %p166 = scmp.lt.s32.totalorder %s14, 1
      %s167 = scalar_select %p166, %s14, 1
      %s168 = smul.addr %s167, 4
      %s169 = smul.addr %s168, 8
      %s170 = scalar_lea.vmem %s3, %s169
      %vm171 = vcmask 654336
      %172 = vst.msk [vmem:[#allocation2] sm:$0xff] %vm171, 0.0
      %173 = vst.msk [vmem:[#allocation2 + $0x8] sm:$0xff] %vm171, 0.0
      %vm174 = vcmask 648192
      %175 = vst.msk [vmem:[#allocation2 + $0x10] sm:$0x3] %vm174, 0.0
      %v176 = vld [vmem:[%s165] sm:$0xff]
      %v177 = vld [vmem:[%s165 + $0x8] sm:$0xff]
      %180 = vrot.lane.b32.xlu0 %v176, 8
      %v181 = vpop.permute.xlu0 %180
      %182 = vrot.lane.b32.xlu0 %v177, 8
      %v183 = vpop.permute.xlu0 %182
      %vm186 = vcmask 588864
      %187 = vst.msk [vmem:[#allocation2 + $0x1] sm:$0xff] %vm186, %v181
      %188 = vst.msk [vmem:[#allocation2 + $0x9] sm:$0xff] %vm186, %v183
      %v189 = vld [vmem:[%s2] sm:$0x1]
      %v191 = vlaneseq
      %v192 = vshrl.u32 %v191, 7
      %v193 = vsub.s32 0, %v192
      %v194 = vrot.slane %v189, %v193
      %v196 = vld [vmem:[#allocation2] sm:$0xff]
      %v197 = vld [vmem:[#allocation2 + $0x8] sm:$0xff]
      %v198 = vld [vmem:[%s1] sm:$0x1]
      %v199 = vlaneseq
      %v200 = vshrl.u32 %v199, 7
      %v201 = vsub.s32 0, %v200
      %v202 = vrot.slane %v198, %v201
      %204 = vrot.lane.b32.xlu0 %v202, 1
      %v205 = vpop.permute.xlu0 %204
      %v207 = vmul.f32 %v196, %v205
      %v208 = vmul.f32 %v197, %v205
      %211 = vrot.lane.b32.xlu0 %v207, 127
      %v212 = vpop.permute.xlu0 %211
      %213 = vrot.lane.b32.xlu0 %v208, 127
      %v214 = vpop.permute.xlu0 %213
      %v217 = vadd.f32 %v194, %v212
      %v218 = vadd.f32 %v194, %v214
      %v219 = vld [vmem:[%s1 + $0x1] sm:$0x1]
      %v220 = vlaneseq
      %v221 = vshrl.u32 %v220, 7
      %v222 = vsub.s32 0, %v221
      %v223 = vrot.slane %v219, %v222
      %225 = vrot.lane.b32.xlu0 %v223, 2
      %v226 = vpop.permute.xlu0 %225
      %v228 = vmul.f32 %v196, %v226
      %v229 = vmul.f32 %v197, %v226
      %232 = vrot.lane.b32.xlu0 %v228, 126
      %v233 = vpop.permute.xlu0 %232
      %234 = vrot.lane.b32.xlu0 %v229, 126
      %v235 = vpop.permute.xlu0 %234
      %v238 = vadd.f32 %v217, %v233
      %v239 = vadd.f32 %v218, %v235
      %v240 = vld [vmem:[%s1 + $0x2] sm:$0x1]
      %v241 = vlaneseq
      %v242 = vshrl.u32 %v241, 7
      %v243 = vsub.s32 0, %v242
      %v244 = vrot.slane %v240, %v243
      %246 = vrot.lane.b32.xlu0 %v244, 3
      %v247 = vpop.permute.xlu0 %246
      %v249 = vmul.f32 %v196, %v247
      %v250 = vmul.f32 %v197, %v247
      %253 = vrot.lane.b32.xlu0 %v249, 125
      %v254 = vpop.permute.xlu0 %253
      %255 = vrot.lane.b32.xlu0 %v250, 125
      %v256 = vpop.permute.xlu0 %255
      %v259 = vadd.f32 %v238, %v254
      %v260 = vadd.f32 %v239, %v256
      %v261 = vld [vmem:[%s1 + $0x3] sm:$0x1]
      %v262 = vlaneseq
      %v263 = vshrl.u32 %v262, 7
      %v264 = vsub.s32 0, %v263
      %v265 = vrot.slane %v261, %v264
      %267 = vrot.lane.b32.xlu0 %v265, 4
      %v268 = vpop.permute.xlu0 %267
      %v270 = vmul.f32 %v196, %v268
      %v271 = vmul.f32 %v197, %v268
      %274 = vrot.lane.b32.xlu0 %v270, 124
      %v275 = vpop.permute.xlu0 %274
      %276 = vrot.lane.b32.xlu0 %v271, 124
      %v277 = vpop.permute.xlu0 %276
      %v280 = vadd.f32 %v259, %v275
      %v281 = vadd.f32 %v260, %v277
      %v282 = vld [vmem:[%s1 + $0x4] sm:$0x1]
      %v283 = vlaneseq
      %v284 = vshrl.u32 %v283, 7
      %v285 = vsub.s32 0, %v284
      %v286 = vrot.slane %v282, %v285
      %288 = vrot.lane.b32.xlu0 %v286, 5
      %v289 = vpop.permute.xlu0 %288
      %v291 = vmul.f32 %v196, %v289
      %v292 = vmul.f32 %v197, %v289
      %295 = vrot.lane.b32.xlu0 %v291, 123
      %v296 = vpop.permute.xlu0 %295
      %297 = vrot.lane.b32.xlu0 %v292, 123
      %v298 = vpop.permute.xlu0 %297
      %v301 = vadd.f32 %v280, %v296
      %v302 = vadd.f32 %v281, %v298
      %v303 = vld [vmem:[%s1 + $0x5] sm:$0x1]
      %v304 = vlaneseq
      %v305 = vshrl.u32 %v304, 7
      %v306 = vsub.s32 0, %v305
      %v307 = vrot.slane %v303, %v306
      %309 = vrot.lane.b32.xlu0 %v307, 6
      %v310 = vpop.permute.xlu0 %309
      %v312 = vmul.f32 %v196, %v310
      %v313 = vmul.f32 %v197, %v310
      %316 = vrot.lane.b32.xlu0 %v312, 122
      %v317 = vpop.permute.xlu0 %316
      %318 = vrot.lane.b32.xlu0 %v313, 122
      %v319 = vpop.permute.xlu0 %318
      %v322 = vadd.f32 %v301, %v317
      %v323 = vadd.f32 %v302, %v319
      %v324 = vld [vmem:[%s1 + $0x6] sm:$0x1]
      %v325 = vlaneseq
      %v326 = vshrl.u32 %v325, 7
      %v327 = vsub.s32 0, %v326
      %v328 = vrot.slane %v324, %v327
      %330 = vrot.lane.b32.xlu0 %v328, 7
      %v331 = vpop.permute.xlu0 %330
      %v333 = vmul.f32 %v196, %v331
      %v334 = vmul.f32 %v197, %v331
      %337 = vrot.lane.b32.xlu0 %v333, 121
      %v338 = vpop.permute.xlu0 %337
      %339 = vrot.lane.b32.xlu0 %v334, 121
      %v340 = vpop.permute.xlu0 %339
      %v343 = vadd.f32 %v322, %v338
      %v344 = vadd.f32 %v323, %v340
      %v345 = vld [vmem:[%s1 + $0x7] sm:$0x1]
      %v346 = vlaneseq
      %v347 = vshrl.u32 %v346, 7
      %v348 = vsub.s32 0, %v347
      %v349 = vrot.slane %v345, %v348
      %351 = vrot.lane.b32.xlu0 %v349, 5
      %v352 = vpop.permute.xlu0 %351
      %v354 = vmul.f32 %v196, %v352
      %v355 = vmul.f32 %v197, %v352
      %358 = vrot.lane.b32.xlu0 %v354, 123
      %v359 = vpop.permute.xlu0 %358
      %360 = vrot.lane.b32.xlu0 %v355, 123
      %v361 = vpop.permute.xlu0 %360
      %v364 = vadd.f32 %v343, %v359
      %v365 = vadd.f32 %v344, %v361
      %v366 = vld [vmem:[%s1 + $0x1c] sm:$0x1]
      %v367 = vlaneseq
      %v368 = vshrl.u32 %v367, 7
      %v369 = vsub.s32 0, %v368
      %v370 = vrot.slane %v366, %v369
      %372 = vrot.lane.b32.xlu0 %v370, 5
      %v373 = vpop.permute.xlu0 %372
      %v375 = vmul.f32 %v196, %v373
      %v376 = vmul.f32 %v197, %v373
      %379 = vrot.lane.b32.xlu0 %v375, 123
      %v380 = vpop.permute.xlu0 %379
      %381 = vrot.lane.b32.xlu0 %v376, 123
      %v382 = vpop.permute.xlu0 %381
      %v385 = vadd.f32 %v194, %v380
      %v386 = vadd.f32 %v194, %v382
      %v387 = vld [vmem:[%s1 + $0x8] sm:$0x1]
      %v388 = vlaneseq
      %v389 = vshrl.u32 %v388, 7
      %v390 = vsub.s32 0, %v389
      %v391 = vrot.slane %v387, %v390
      %393 = vrot.lane.b32.xlu0 %v391, 6
      %v394 = vpop.permute.xlu0 %393
      %v396 = vmul.f32 %v196, %v394
      %v397 = vmul.f32 %v197, %v394
      %400 = vrot.lane.b32.xlu0 %v396, 122
      %v401 = vpop.permute.xlu0 %400
      %402 = vrot.lane.b32.xlu0 %v397, 122
      %v403 = vpop.permute.xlu0 %402
      %v406 = vadd.f32 %v364, %v401
      %v407 = vadd.f32 %v365, %v403
      %v408 = vld [vmem:[%s1 + $0x1d] sm:$0x1]
      %v409 = vlaneseq
      %v410 = vshrl.u32 %v409, 7
      %v411 = vsub.s32 0, %v410
      %v412 = vrot.slane %v408, %v411
      %414 = vrot.lane.b32.xlu0 %v412, 6
      %v415 = vpop.permute.xlu0 %414
      %v417 = vmul.f32 %v196, %v415
      %v418 = vmul.f32 %v197, %v415
      %421 = vrot.lane.b32.xlu0 %v417, 122
      %v422 = vpop.permute.xlu0 %421
      %423 = vrot.lane.b32.xlu0 %v418, 122
      %v424 = vpop.permute.xlu0 %423
      %v427 = vadd.f32 %v385, %v422
      %v428 = vadd.f32 %v386, %v424
      %v429 = vld [vmem:[%s1 + $0x9] sm:$0x1]
      %v430 = vlaneseq
      %v431 = vshrl.u32 %v430, 7
      %v432 = vsub.s32 0, %v431
      %v433 = vrot.slane %v429, %v432
      %435 = vrot.lane.b32.xlu0 %v433, 7
      %v436 = vpop.permute.xlu0 %435
      %v438 = vmul.f32 %v196, %v436
      %v439 = vmul.f32 %v197, %v436
      %442 = vrot.lane.b32.xlu0 %v438, 121
      %v443 = vpop.permute.xlu0 %442
      %444 = vrot.lane.b32.xlu0 %v439, 121
      %v445 = vpop.permute.xlu0 %444
      %v448 = vadd.f32 %v406, %v443
      %v449 = vadd.f32 %v407, %v445
      %v450 = vld [vmem:[%s1 + $0x1e] sm:$0x1]
      %v451 = vlaneseq
      %v452 = vshrl.u32 %v451, 7
      %v453 = vsub.s32 0, %v452
      %v454 = vrot.slane %v450, %v453
      %456 = vrot.lane.b32.xlu0 %v454, 7
      %v457 = vpop.permute.xlu0 %456
      %v459 = vmul.f32 %v196, %v457
      %v460 = vmul.f32 %v197, %v457
      %463 = vrot.lane.b32.xlu0 %v459, 121
      %v464 = vpop.permute.xlu0 %463
      %465 = vrot.lane.b32.xlu0 %v460, 121
      %v466 = vpop.permute.xlu0 %465
      %v469 = vadd.f32 %v427, %v464
      %v470 = vadd.f32 %v428, %v466
      %v471 = vld [vmem:[%s1 + $0xa] sm:$0x1]
      %v472 = vlaneseq
      %v473 = vshrl.u32 %v472, 7
      %v474 = vsub.s32 0, %v473
      %v475 = vrot.slane %v471, %v474
      %477 = vrot.lane.b32.xlu0 %v475, 8
      %v478 = vpop.permute.xlu0 %477
      %v480 = vmul.f32 %v196, %v478
      %v481 = vmul.f32 %v197, %v478
      %484 = vrot.lane.b32.xlu0 %v480, 120
      %v485 = vpop.permute.xlu0 %484
      %486 = vrot.lane.b32.xlu0 %v481, 120
      %v487 = vpop.permute.xlu0 %486
      %v490 = vadd.f32 %v448, %v485
      %v491 = vadd.f32 %v449, %v487
      %v492 = vld [vmem:[%s1 + $0x1f] sm:$0x1]
      %v493 = vlaneseq
      %v494 = vshrl.u32 %v493, 7
      %v495 = vsub.s32 0, %v494
      %v496 = vrot.slane %v492, %v495
      %498 = vrot.lane.b32.xlu0 %v496, 8
      %v499 = vpop.permute.xlu0 %498
      %v501 = vmul.f32 %v196, %v499
      %v502 = vmul.f32 %v197, %v499
      %505 = vrot.lane.b32.xlu0 %v501, 120
      %v506 = vpop.permute.xlu0 %505
      %507 = vrot.lane.b32.xlu0 %v502, 120
      %v508 = vpop.permute.xlu0 %507
      %v511 = vadd.f32 %v469, %v506
      %v512 = vadd.f32 %v470, %v508
      %v513 = vld [vmem:[%s1 + $0xb] sm:$0x1]
      %v514 = vlaneseq
      %v515 = vshrl.u32 %v514, 7
      %v516 = vsub.s32 0, %v515
      %v517 = vrot.slane %v513, %v516
      %519 = vrot.lane.b32.xlu0 %v517, 9
      %v520 = vpop.permute.xlu0 %519
      %v522 = vmul.f32 %v196, %v520
      %v523 = vmul.f32 %v197, %v520
      %526 = vrot.lane.b32.xlu0 %v522, 119
      %v527 = vpop.permute.xlu0 %526
      %528 = vrot.lane.b32.xlu0 %v523, 119
      %v529 = vpop.permute.xlu0 %528
      %v532 = vadd.f32 %v490, %v527
      %v533 = vadd.f32 %v491, %v529
      %v534 = vld [vmem:[%s1 + $0x20] sm:$0x1]
      %v535 = vlaneseq
      %v536 = vshrl.u32 %v535, 7
      %v537 = vsub.s32 0, %v536
      %v538 = vrot.slane %v534, %v537
      %540 = vrot.lane.b32.xlu0 %v538, 9
      %v541 = vpop.permute.xlu0 %540
      %v543 = vmul.f32 %v196, %v541
      %v544 = vmul.f32 %v197, %v541
      %547 = vrot.lane.b32.xlu0 %v543, 119
      %v548 = vpop.permute.xlu0 %547
      %549 = vrot.lane.b32.xlu0 %v544, 119
      %v550 = vpop.permute.xlu0 %549
      %v553 = vadd.f32 %v511, %v548
      %v554 = vadd.f32 %v512, %v550
      %v555 = vld [vmem:[%s1 + $0xc] sm:$0x1]
      %v556 = vlaneseq
      %v557 = vshrl.u32 %v556, 7
      %v558 = vsub.s32 0, %v557
      %v559 = vrot.slane %v555, %v558
      %561 = vrot.lane.b32.xlu0 %v559, 10
      %v562 = vpop.permute.xlu0 %561
      %v564 = vmul.f32 %v196, %v562
      %v565 = vmul.f32 %v197, %v562
      %568 = vrot.lane.b32.xlu0 %v564, 118
      %v569 = vpop.permute.xlu0 %568
      %570 = vrot.lane.b32.xlu0 %v565, 118
      %v571 = vpop.permute.xlu0 %570
      %v574 = vadd.f32 %v532, %v569
      %v575 = vadd.f32 %v533, %v571
      %v576 = vld [vmem:[%s1 + $0x21] sm:$0x1]
      %v577 = vlaneseq
      %v578 = vshrl.u32 %v577, 7
      %v579 = vsub.s32 0, %v578
      %v580 = vrot.slane %v576, %v579
      %582 = vrot.lane.b32.xlu0 %v580, 10
      %v583 = vpop.permute.xlu0 %582
      %v585 = vmul.f32 %v196, %v583
      %v586 = vmul.f32 %v197, %v583
      %589 = vrot.lane.b32.xlu0 %v585, 118
      %v590 = vpop.permute.xlu0 %589
      %591 = vrot.lane.b32.xlu0 %v586, 118
      %v592 = vpop.permute.xlu0 %591
      %v595 = vadd.f32 %v553, %v590
      %v596 = vadd.f32 %v554, %v592
      %v597 = vld [vmem:[%s1 + $0xd] sm:$0x1]
      %v598 = vlaneseq
      %v599 = vshrl.u32 %v598, 7
      %v600 = vsub.s32 0, %v599
      %v601 = vrot.slane %v597, %v600
      %603 = vrot.lane.b32.xlu0 %v601, 11
      %v604 = vpop.permute.xlu0 %603
      %v606 = vmul.f32 %v196, %v604
      %v607 = vmul.f32 %v197, %v604
      %610 = vrot.lane.b32.xlu0 %v606, 117
      %v611 = vpop.permute.xlu0 %610
      %612 = vrot.lane.b32.xlu0 %v607, 117
      %v613 = vpop.permute.xlu0 %612
      %v616 = vadd.f32 %v574, %v611
      %v617 = vadd.f32 %v575, %v613
      %v618 = vld [vmem:[%s1 + $0x22] sm:$0x1]
      %v619 = vlaneseq
      %v620 = vshrl.u32 %v619, 7
      %v621 = vsub.s32 0, %v620
      %v622 = vrot.slane %v618, %v621
      %624 = vrot.lane.b32.xlu0 %v622, 11
      %v625 = vpop.permute.xlu0 %624
      %v627 = vmul.f32 %v196, %v625
      %v628 = vmul.f32 %v197, %v625
      %631 = vrot.lane.b32.xlu0 %v627, 117
      %v632 = vpop.permute.xlu0 %631
      %633 = vrot.lane.b32.xlu0 %v628, 117
      %v634 = vpop.permute.xlu0 %633
      %v637 = vadd.f32 %v595, %v632
      %v638 = vadd.f32 %v596, %v634
      %v639 = vld [vmem:[%s1 + $0x23] sm:$0x1]
      %v640 = vlaneseq
      %v641 = vshrl.u32 %v640, 7
      %v642 = vsub.s32 0, %v641
      %v643 = vrot.slane %v639, %v642
      %645 = vrot.lane.b32.xlu0 %v643, 9
      %v646 = vpop.permute.xlu0 %645
      %v648 = vmul.f32 %v196, %v646
      %v649 = vmul.f32 %v197, %v646
      %652 = vrot.lane.b32.xlu0 %v648, 119
      %v653 = vpop.permute.xlu0 %652
      %654 = vrot.lane.b32.xlu0 %v649, 119
      %v655 = vpop.permute.xlu0 %654
      %v658 = vadd.f32 %v637, %v653
      %v659 = vadd.f32 %v638, %v655
      %v660 = vld [vmem:[%s1 + $0x24] sm:$0x1]
      %v661 = vlaneseq
      %v662 = vshrl.u32 %v661, 7
      %v663 = vsub.s32 0, %v662
      %v664 = vrot.slane %v660, %v663
      %666 = vrot.lane.b32.xlu0 %v664, 10
      %v667 = vpop.permute.xlu0 %666
      %v669 = vmul.f32 %v196, %v667
      %v670 = vmul.f32 %v197, %v667
      %673 = vrot.lane.b32.xlu0 %v669, 118
      %v674 = vpop.permute.xlu0 %673
      %675 = vrot.lane.b32.xlu0 %v670, 118
      %v676 = vpop.permute.xlu0 %675
      %v679 = vadd.f32 %v658, %v674
      %v680 = vadd.f32 %v659, %v676
      %v681 = vld [vmem:[%s1 + $0x25] sm:$0x1]
      %v682 = vlaneseq
      %v683 = vshrl.u32 %v682, 7
      %v684 = vsub.s32 0, %v683
      %v685 = vrot.slane %v681, %v684
      %687 = vrot.lane.b32.xlu0 %v685, 11
      %v688 = vpop.permute.xlu0 %687
      %v690 = vmul.f32 %v196, %v688
      %v691 = vmul.f32 %v197, %v688
      %694 = vrot.lane.b32.xlu0 %v690, 117
      %v695 = vpop.permute.xlu0 %694
      %696 = vrot.lane.b32.xlu0 %v691, 117
      %v697 = vpop.permute.xlu0 %696
      %v700 = vadd.f32 %v679, %v695
      %v701 = vadd.f32 %v680, %v697
      %v702 = vld [vmem:[%s1 + $0x26] sm:$0x1]
      %v703 = vlaneseq
      %v704 = vshrl.u32 %v703, 7
      %v705 = vsub.s32 0, %v704
      %v706 = vrot.slane %v702, %v705
      %708 = vrot.lane.b32.xlu0 %v706, 12
      %v709 = vpop.permute.xlu0 %708
      %v711 = vmul.f32 %v196, %v709
      %v712 = vmul.f32 %v197, %v709
      %715 = vrot.lane.b32.xlu0 %v711, 116
      %v716 = vpop.permute.xlu0 %715
      %717 = vrot.lane.b32.xlu0 %v712, 116
      %v718 = vpop.permute.xlu0 %717
      %v721 = vadd.f32 %v700, %v716
      %v722 = vadd.f32 %v701, %v718
      %v723 = vld [vmem:[%s1 + $0x27] sm:$0x1]
      %v724 = vlaneseq
      %v725 = vshrl.u32 %v724, 7
      %v726 = vsub.s32 0, %v725
      %v727 = vrot.slane %v723, %v726
      %729 = vrot.lane.b32.xlu0 %v727, 13
      %v730 = vpop.permute.xlu0 %729
      %v732 = vmul.f32 %v196, %v730
      %v733 = vmul.f32 %v197, %v730
      %736 = vrot.lane.b32.xlu0 %v732, 115
      %v737 = vpop.permute.xlu0 %736
      %738 = vrot.lane.b32.xlu0 %v733, 115
      %v739 = vpop.permute.xlu0 %738
      %v742 = vadd.f32 %v721, %v737
      %v743 = vadd.f32 %v722, %v739
      %v744 = vld [vmem:[%s1 + $0x28] sm:$0x1]
      %v745 = vlaneseq
      %v746 = vshrl.u32 %v745, 7
      %v747 = vsub.s32 0, %v746
      %v748 = vrot.slane %v744, %v747
      %750 = vrot.lane.b32.xlu0 %v748, 14
      %v751 = vpop.permute.xlu0 %750
      %v753 = vmul.f32 %v196, %v751
      %v754 = vmul.f32 %v197, %v751
      %757 = vrot.lane.b32.xlu0 %v753, 114
      %v758 = vpop.permute.xlu0 %757
      %759 = vrot.lane.b32.xlu0 %v754, 114
      %v760 = vpop.permute.xlu0 %759
      %v763 = vadd.f32 %v742, %v758
      %v764 = vadd.f32 %v743, %v760
      %v765 = vld [vmem:[%s1 + $0x29] sm:$0x1]
      %v766 = vlaneseq
      %v767 = vshrl.u32 %v766, 7
      %v768 = vsub.s32 0, %v767
      %v769 = vrot.slane %v765, %v768
      %771 = vrot.lane.b32.xlu0 %v769, 15
      %v772 = vpop.permute.xlu0 %771
      %v774 = vmul.f32 %v196, %v772
      %v775 = vmul.f32 %v197, %v772
      %778 = vrot.lane.b32.xlu0 %v774, 113
      %v779 = vpop.permute.xlu0 %778
      %780 = vrot.lane.b32.xlu0 %v775, 113
      %v781 = vpop.permute.xlu0 %780
      %v784 = vadd.f32 %v763, %v779
      %v785 = vadd.f32 %v764, %v781
      %v786 = vld [vmem:[#allocation2 + $0x1] sm:$0xff]
      %v787 = vld [vmem:[#allocation2 + $0x9] sm:$0xff]
      %v788 = vld [vmem:[%s1 + $0xe] sm:$0x1]
      %v789 = vlaneseq
      %v790 = vshrl.u32 %v789, 7
      %v791 = vsub.s32 0, %v790
      %v792 = vrot.slane %v788, %v791
      %794 = vrot.lane.b32.xlu0 %v792, 1
      %v795 = vpop.permute.xlu0 %794
      %v797 = vmul.f32 %v786, %v795
      %v798 = vmul.f32 %v787, %v795
      %801 = vrot.lane.b32.xlu0 %v797, 127
      %v802 = vpop.permute.xlu0 %801
      %803 = vrot.lane.b32.xlu0 %v798, 127
      %v804 = vpop.permute.xlu0 %803
      %v807 = vadd.f32 %v616, %v802
      %v808 = vadd.f32 %v617, %v804
      %v809 = vld [vmem:[%s1 + $0x38] sm:$0x1]
      %v810 = vlaneseq
      %v811 = vshrl.u32 %v810, 7
      %v812 = vsub.s32 0, %v811
      %v813 = vrot.slane %v809, %v812
      %815 = vrot.lane.b32.xlu0 %v813, 1
      %v816 = vpop.permute.xlu0 %815
      %v818 = vmul.f32 %v786, %v816
      %v819 = vmul.f32 %v787, %v816
      %822 = vrot.lane.b32.xlu0 %v818, 127
      %v823 = vpop.permute.xlu0 %822
      %824 = vrot.lane.b32.xlu0 %v819, 127
      %v825 = vpop.permute.xlu0 %824
      %v828 = vadd.f32 %v194, %v823
      %v829 = vadd.f32 %v194, %v825
      %v830 = vld [vmem:[%s1 + $0xf] sm:$0x1]
      %v831 = vlaneseq
      %v832 = vshrl.u32 %v831, 7
      %v833 = vsub.s32 0, %v832
      %v834 = vrot.slane %v830, %v833
      %836 = vrot.lane.b32.xlu0 %v834, 2
      %v837 = vpop.permute.xlu0 %836
      %v839 = vmul.f32 %v786, %v837
      %v840 = vmul.f32 %v787, %v837
      %843 = vrot.lane.b32.xlu0 %v839, 126
      %v844 = vpop.permute.xlu0 %843
      %845 = vrot.lane.b32.xlu0 %v840, 126
      %v846 = vpop.permute.xlu0 %845
      %v849 = vadd.f32 %v807, %v844
      %v850 = vadd.f32 %v808, %v846
      %v851 = vld [vmem:[%s1 + $0x39] sm:$0x1]
      %v852 = vlaneseq
      %v853 = vshrl.u32 %v852, 7
      %v854 = vsub.s32 0, %v853
      %v855 = vrot.slane %v851, %v854
      %857 = vrot.lane.b32.xlu0 %v855, 2
      %v858 = vpop.permute.xlu0 %857
      %v860 = vmul.f32 %v786, %v858
      %v861 = vmul.f32 %v787, %v858
      %864 = vrot.lane.b32.xlu0 %v860, 126
      %v865 = vpop.permute.xlu0 %864
      %866 = vrot.lane.b32.xlu0 %v861, 126
      %v867 = vpop.permute.xlu0 %866
      %v870 = vadd.f32 %v828, %v865
      %v871 = vadd.f32 %v829, %v867
      %v872 = vld [vmem:[%s1 + $0x10] sm:$0x1]
      %v873 = vlaneseq
      %v874 = vshrl.u32 %v873, 7
      %v875 = vsub.s32 0, %v874
      %v876 = vrot.slane %v872, %v875
      %878 = vrot.lane.b32.xlu0 %v876, 3
      %v879 = vpop.permute.xlu0 %878
      %v881 = vmul.f32 %v786, %v879
      %v882 = vmul.f32 %v787, %v879
      %885 = vrot.lane.b32.xlu0 %v881, 125
      %v886 = vpop.permute.xlu0 %885
      %887 = vrot.lane.b32.xlu0 %v882, 125
      %v888 = vpop.permute.xlu0 %887
      %v891 = vadd.f32 %v849, %v886
      %v892 = vadd.f32 %v850, %v888
      %v893 = vld [vmem:[%s1 + $0x3a] sm:$0x1]
      %v894 = vlaneseq
      %v895 = vshrl.u32 %v894, 7
      %v896 = vsub.s32 0, %v895
      %v897 = vrot.slane %v893, %v896
      %899 = vrot.lane.b32.xlu0 %v897, 3
      %v900 = vpop.permute.xlu0 %899
      %v902 = vmul.f32 %v786, %v900
      %v903 = vmul.f32 %v787, %v900
      %906 = vrot.lane.b32.xlu0 %v902, 125
      %v907 = vpop.permute.xlu0 %906
      %908 = vrot.lane.b32.xlu0 %v903, 125
      %v909 = vpop.permute.xlu0 %908
      %v912 = vadd.f32 %v870, %v907
      %v913 = vadd.f32 %v871, %v909
      %v914 = vld [vmem:[%s1 + $0x11] sm:$0x1]
      %v915 = vlaneseq
      %v916 = vshrl.u32 %v915, 7
      %v917 = vsub.s32 0, %v916
      %v918 = vrot.slane %v914, %v917
      %920 = vrot.lane.b32.xlu0 %v918, 4
      %v921 = vpop.permute.xlu0 %920
      %v923 = vmul.f32 %v786, %v921
      %v924 = vmul.f32 %v787, %v921
      %927 = vrot.lane.b32.xlu0 %v923, 124
      %v928 = vpop.permute.xlu0 %927
      %929 = vrot.lane.b32.xlu0 %v924, 124
      %v930 = vpop.permute.xlu0 %929
      %v933 = vadd.f32 %v891, %v928
      %v934 = vadd.f32 %v892, %v930
      %v935 = vld [vmem:[%s1 + $0x3b] sm:$0x1]
      %v936 = vlaneseq
      %v937 = vshrl.u32 %v936, 7
      %v938 = vsub.s32 0, %v937
      %v939 = vrot.slane %v935, %v938
      %941 = vrot.lane.b32.xlu0 %v939, 4
      %v942 = vpop.permute.xlu0 %941
      %v944 = vmul.f32 %v786, %v942
      %v945 = vmul.f32 %v787, %v942
      %948 = vrot.lane.b32.xlu0 %v944, 124
      %v949 = vpop.permute.xlu0 %948
      %950 = vrot.lane.b32.xlu0 %v945, 124
      %v951 = vpop.permute.xlu0 %950
      %v954 = vadd.f32 %v912, %v949
      %v955 = vadd.f32 %v913, %v951
      %v956 = vld [vmem:[%s1 + $0x12] sm:$0x1]
      %v957 = vlaneseq
      %v958 = vshrl.u32 %v957, 7
      %v959 = vsub.s32 0, %v958
      %v960 = vrot.slane %v956, %v959
      %962 = vrot.lane.b32.xlu0 %v960, 5
      %v963 = vpop.permute.xlu0 %962
      %v965 = vmul.f32 %v786, %v963
      %v966 = vmul.f32 %v787, %v963
      %969 = vrot.lane.b32.xlu0 %v965, 123
      %v970 = vpop.permute.xlu0 %969
      %971 = vrot.lane.b32.xlu0 %v966, 123
      %v972 = vpop.permute.xlu0 %971
      %v975 = vadd.f32 %v933, %v970
      %v976 = vadd.f32 %v934, %v972
      %v977 = vld [vmem:[%s1 + $0x3c] sm:$0x1]
      %v978 = vlaneseq
      %v979 = vshrl.u32 %v978, 7
      %v980 = vsub.s32 0, %v979
      %v981 = vrot.slane %v977, %v980
      %983 = vrot.lane.b32.xlu0 %v981, 5
      %v984 = vpop.permute.xlu0 %983
      %v986 = vmul.f32 %v786, %v984
      %v987 = vmul.f32 %v787, %v984
      %990 = vrot.lane.b32.xlu0 %v986, 123
      %v991 = vpop.permute.xlu0 %990
      %992 = vrot.lane.b32.xlu0 %v987, 123
      %v993 = vpop.permute.xlu0 %992
      %v996 = vadd.f32 %v954, %v991
      %v997 = vadd.f32 %v955, %v993
      %v998 = vld [vmem:[%s1 + $0x13] sm:$0x1]
      %v999 = vlaneseq
      %v1000 = vshrl.u32 %v999, 7
      %v1001 = vsub.s32 0, %v1000
      %v1002 = vrot.slane %v998, %v1001
      %1004 = vrot.lane.b32.xlu0 %v1002, 6
      %v1005 = vpop.permute.xlu0 %1004
      %v1007 = vmul.f32 %v786, %v1005
      %v1008 = vmul.f32 %v787, %v1005
      %1011 = vrot.lane.b32.xlu0 %v1007, 122
      %v1012 = vpop.permute.xlu0 %1011
      %1013 = vrot.lane.b32.xlu0 %v1008, 122
      %v1014 = vpop.permute.xlu0 %1013
      %v1017 = vadd.f32 %v975, %v1012
      %v1018 = vadd.f32 %v976, %v1014
      %v1019 = vld [vmem:[%s1 + $0x3d] sm:$0x1]
      %v1020 = vlaneseq
      %v1021 = vshrl.u32 %v1020, 7
      %v1022 = vsub.s32 0, %v1021
      %v1023 = vrot.slane %v1019, %v1022
      %1025 = vrot.lane.b32.xlu0 %v1023, 6
      %v1026 = vpop.permute.xlu0 %1025
      %v1028 = vmul.f32 %v786, %v1026
      %v1029 = vmul.f32 %v787, %v1026
      %1032 = vrot.lane.b32.xlu0 %v1028, 122
      %v1033 = vpop.permute.xlu0 %1032
      %1034 = vrot.lane.b32.xlu0 %v1029, 122
      %v1035 = vpop.permute.xlu0 %1034
      %v1038 = vadd.f32 %v996, %v1033
      %v1039 = vadd.f32 %v997, %v1035
      %v1040 = vld [vmem:[%s1 + $0x14] sm:$0x1]
      %v1041 = vlaneseq
      %v1042 = vshrl.u32 %v1041, 7
      %v1043 = vsub.s32 0, %v1042
      %v1044 = vrot.slane %v1040, %v1043
      %1046 = vrot.lane.b32.xlu0 %v1044, 7
      %v1047 = vpop.permute.xlu0 %1046
      %v1049 = vmul.f32 %v786, %v1047
      %v1050 = vmul.f32 %v787, %v1047
      %1053 = vrot.lane.b32.xlu0 %v1049, 121
      %v1054 = vpop.permute.xlu0 %1053
      %1055 = vrot.lane.b32.xlu0 %v1050, 121
      %v1056 = vpop.permute.xlu0 %1055
      %v1059 = vadd.f32 %v1017, %v1054
      %v1060 = vadd.f32 %v1018, %v1056
      %v1061 = vld [vmem:[%s1 + $0x3e] sm:$0x1]
      %v1062 = vlaneseq
      %v1063 = vshrl.u32 %v1062, 7
      %v1064 = vsub.s32 0, %v1063
      %v1065 = vrot.slane %v1061, %v1064
      %1067 = vrot.lane.b32.xlu0 %v1065, 7
      %v1068 = vpop.permute.xlu0 %1067
      %v1070 = vmul.f32 %v786, %v1068
      %v1071 = vmul.f32 %v787, %v1068
      %1074 = vrot.lane.b32.xlu0 %v1070, 121
      %v1075 = vpop.permute.xlu0 %1074
      %1076 = vrot.lane.b32.xlu0 %v1071, 121
      %v1077 = vpop.permute.xlu0 %1076
      %v1080 = vadd.f32 %v1038, %v1075
      %v1081 = vadd.f32 %v1039, %v1077
      %v1082 = vld [vmem:[%s1 + $0x15] sm:$0x1]
      %v1083 = vlaneseq
      %v1084 = vshrl.u32 %v1083, 7
      %v1085 = vsub.s32 0, %v1084
      %v1086 = vrot.slane %v1082, %v1085
      %1088 = vrot.lane.b32.xlu0 %v1086, 5
      %v1089 = vpop.permute.xlu0 %1088
      %v1091 = vmul.f32 %v786, %v1089
      %v1092 = vmul.f32 %v787, %v1089
      %1095 = vrot.lane.b32.xlu0 %v1091, 123
      %v1096 = vpop.permute.xlu0 %1095
      %1097 = vrot.lane.b32.xlu0 %v1092, 123
      %v1098 = vpop.permute.xlu0 %1097
      %v1101 = vadd.f32 %v1059, %v1096
      %v1102 = vadd.f32 %v1060, %v1098
      %v1103 = vld [vmem:[%s1 + $0x2a] sm:$0x1]
      %v1104 = vlaneseq
      %v1105 = vshrl.u32 %v1104, 7
      %v1106 = vsub.s32 0, %v1105
      %v1107 = vrot.slane %v1103, %v1106
      %1109 = vrot.lane.b32.xlu0 %v1107, 5
      %v1110 = vpop.permute.xlu0 %1109
      %v1112 = vmul.f32 %v786, %v1110
      %v1113 = vmul.f32 %v787, %v1110
      %1116 = vrot.lane.b32.xlu0 %v1112, 123
      %v1117 = vpop.permute.xlu0 %1116
      %1118 = vrot.lane.b32.xlu0 %v1113, 123
      %v1119 = vpop.permute.xlu0 %1118
      %v1122 = vadd.f32 %v784, %v1117
      %v1123 = vadd.f32 %v785, %v1119
      %v1124 = vld [vmem:[%s1 + $0x3f] sm:$0x1]
      %v1125 = vlaneseq
      %v1126 = vshrl.u32 %v1125, 7
      %v1127 = vsub.s32 0, %v1126
      %v1128 = vrot.slane %v1124, %v1127
      %1130 = vrot.lane.b32.xlu0 %v1128, 5
      %v1131 = vpop.permute.xlu0 %1130
      %v1133 = vmul.f32 %v786, %v1131
      %v1134 = vmul.f32 %v787, %v1131
      %1137 = vrot.lane.b32.xlu0 %v1133, 123
      %v1138 = vpop.permute.xlu0 %1137
      %1139 = vrot.lane.b32.xlu0 %v1134, 123
      %v1140 = vpop.permute.xlu0 %1139
      %v1143 = vadd.f32 %v1080, %v1138
      %v1144 = vadd.f32 %v1081, %v1140
      %v1145 = vld [vmem:[%s1 + $0x54] sm:$0x1]
      %v1146 = vlaneseq
      %v1147 = vshrl.u32 %v1146, 7
      %v1148 = vsub.s32 0, %v1147
      %v1149 = vrot.slane %v1145, %v1148
      %1151 = vrot.lane.b32.xlu0 %v1149, 5
      %v1152 = vpop.permute.xlu0 %1151
      %v1154 = vmul.f32 %v786, %v1152
      %v1155 = vmul.f32 %v787, %v1152
      %1158 = vrot.lane.b32.xlu0 %v1154, 123
      %v1159 = vpop.permute.xlu0 %1158
      %1160 = vrot.lane.b32.xlu0 %v1155, 123
      %v1161 = vpop.permute.xlu0 %1160
      %v1164 = vadd.f32 %v194, %v1159
      %v1165 = vadd.f32 %v194, %v1161
      %v1166 = vld [vmem:[%s1 + $0x16] sm:$0x1]
      %v1167 = vlaneseq
      %v1168 = vshrl.u32 %v1167, 7
      %v1169 = vsub.s32 0, %v1168
      %v1170 = vrot.slane %v1166, %v1169
      %1172 = vrot.lane.b32.xlu0 %v1170, 6
      %v1173 = vpop.permute.xlu0 %1172
      %v1175 = vmul.f32 %v786, %v1173
      %v1176 = vmul.f32 %v787, %v1173
      %1179 = vrot.lane.b32.xlu0 %v1175, 122
      %v1180 = vpop.permute.xlu0 %1179
      %1181 = vrot.lane.b32.xlu0 %v1176, 122
      %v1182 = vpop.permute.xlu0 %1181
      %v1185 = vadd.f32 %v1101, %v1180
      %v1186 = vadd.f32 %v1102, %v1182
      %v1187 = vld [vmem:[%s1 + $0x2b] sm:$0x1]
      %v1188 = vlaneseq
      %v1189 = vshrl.u32 %v1188, 7
      %v1190 = vsub.s32 0, %v1189
      %v1191 = vrot.slane %v1187, %v1190
      %1193 = vrot.lane.b32.xlu0 %v1191, 6
      %v1194 = vpop.permute.xlu0 %1193
      %v1196 = vmul.f32 %v786, %v1194
      %v1197 = vmul.f32 %v787, %v1194
      %1200 = vrot.lane.b32.xlu0 %v1196, 122
      %v1201 = vpop.permute.xlu0 %1200
      %1202 = vrot.lane.b32.xlu0 %v1197, 122
      %v1203 = vpop.permute.xlu0 %1202
      %v1206 = vadd.f32 %v1122, %v1201
      %v1207 = vadd.f32 %v1123, %v1203
      %v1208 = vld [vmem:[%s1 + $0x40] sm:$0x1]
      %v1209 = vlaneseq
      %v1210 = vshrl.u32 %v1209, 7
      %v1211 = vsub.s32 0, %v1210
      %v1212 = vrot.slane %v1208, %v1211
      %1214 = vrot.lane.b32.xlu0 %v1212, 6
      %v1215 = vpop.permute.xlu0 %1214
      %v1217 = vmul.f32 %v786, %v1215
      %v1218 = vmul.f32 %v787, %v1215
      %1221 = vrot.lane.b32.xlu0 %v1217, 122
      %v1222 = vpop.permute.xlu0 %1221
      %1223 = vrot.lane.b32.xlu0 %v1218, 122
      %v1224 = vpop.permute.xlu0 %1223
      %v1227 = vadd.f32 %v1143, %v1222
      %v1228 = vadd.f32 %v1144, %v1224
      %v1229 = vld [vmem:[%s1 + $0x55] sm:$0x1]
      %v1230 = vlaneseq
      %v1231 = vshrl.u32 %v1230, 7
      %v1232 = vsub.s32 0, %v1231
      %v1233 = vrot.slane %v1229, %v1232
      %1235 = vrot.lane.b32.xlu0 %v1233, 6
      %v1236 = vpop.permute.xlu0 %1235
      %v1238 = vmul.f32 %v786, %v1236
      %v1239 = vmul.f32 %v787, %v1236
      %1242 = vrot.lane.b32.xlu0 %v1238, 122
      %v1243 = vpop.permute.xlu0 %1242
      %1244 = vrot.lane.b32.xlu0 %v1239, 122
      %v1245 = vpop.permute.xlu0 %1244
      %v1248 = vadd.f32 %v1164, %v1243
      %v1249 = vadd.f32 %v1165, %v1245
      %v1250 = vld [vmem:[%s1 + $0x17] sm:$0x1]
      %v1251 = vlaneseq
      %v1252 = vshrl.u32 %v1251, 7
      %v1253 = vsub.s32 0, %v1252
      %v1254 = vrot.slane %v1250, %v1253
      %1256 = vrot.lane.b32.xlu0 %v1254, 7
      %v1257 = vpop.permute.xlu0 %1256
      %v1259 = vmul.f32 %v786, %v1257
      %v1260 = vmul.f32 %v787, %v1257
      %1263 = vrot.lane.b32.xlu0 %v1259, 121
      %v1264 = vpop.permute.xlu0 %1263
      %1265 = vrot.lane.b32.xlu0 %v1260, 121
      %v1266 = vpop.permute.xlu0 %1265
      %v1269 = vadd.f32 %v1185, %v1264
      %v1270 = vadd.f32 %v1186, %v1266
      %v1271 = vld [vmem:[%s1 + $0x2c] sm:$0x1]
      %v1272 = vlaneseq
      %v1273 = vshrl.u32 %v1272, 7
      %v1274 = vsub.s32 0, %v1273
      %v1275 = vrot.slane %v1271, %v1274
      %1277 = vrot.lane.b32.xlu0 %v1275, 7
      %v1278 = vpop.permute.xlu0 %1277
      %v1280 = vmul.f32 %v786, %v1278
      %v1281 = vmul.f32 %v787, %v1278
      %1284 = vrot.lane.b32.xlu0 %v1280, 121
      %v1285 = vpop.permute.xlu0 %1284
      %1286 = vrot.lane.b32.xlu0 %v1281, 121
      %v1287 = vpop.permute.xlu0 %1286
      %v1290 = vadd.f32 %v1206, %v1285
      %v1291 = vadd.f32 %v1207, %v1287
      %v1292 = vld [vmem:[%s1 + $0x41] sm:$0x1]
      %v1293 = vlaneseq
      %v1294 = vshrl.u32 %v1293, 7
      %v1295 = vsub.s32 0, %v1294
      %v1296 = vrot.slane %v1292, %v1295
      %1298 = vrot.lane.b32.xlu0 %v1296, 7
      %v1299 = vpop.permute.xlu0 %1298
      %v1301 = vmul.f32 %v786, %v1299
      %v1302 = vmul.f32 %v787, %v1299
      %1305 = vrot.lane.b32.xlu0 %v1301, 121
      %v1306 = vpop.permute.xlu0 %1305
      %1307 = vrot.lane.b32.xlu0 %v1302, 121
      %v1308 = vpop.permute.xlu0 %1307
      %v1311 = vadd.f32 %v1227, %v1306
      %v1312 = vadd.f32 %v1228, %v1308
      %v1313 = vld [vmem:[%s1 + $0x56] sm:$0x1]
      %v1314 = vlaneseq
      %v1315 = vshrl.u32 %v1314, 7
      %v1316 = vsub.s32 0, %v1315
      %v1317 = vrot.slane %v1313, %v1316
      %1319 = vrot.lane.b32.xlu0 %v1317, 7
      %v1320 = vpop.permute.xlu0 %1319
      %v1322 = vmul.f32 %v786, %v1320
      %v1323 = vmul.f32 %v787, %v1320
      %1326 = vrot.lane.b32.xlu0 %v1322, 121
      %v1327 = vpop.permute.xlu0 %1326
      %1328 = vrot.lane.b32.xlu0 %v1323, 121
      %v1329 = vpop.permute.xlu0 %1328
      %v1332 = vadd.f32 %v1248, %v1327
      %v1333 = vadd.f32 %v1249, %v1329
      %v1334 = vld [vmem:[%s1 + $0x18] sm:$0x1]
      %v1335 = vlaneseq
      %v1336 = vshrl.u32 %v1335, 7
      %v1337 = vsub.s32 0, %v1336
      %v1338 = vrot.slane %v1334, %v1337
      %1340 = vrot.lane.b32.xlu0 %v1338, 8
      %v1341 = vpop.permute.xlu0 %1340
      %v1343 = vmul.f32 %v786, %v1341
      %v1344 = vmul.f32 %v787, %v1341
      %1347 = vrot.lane.b32.xlu0 %v1343, 120
      %v1348 = vpop.permute.xlu0 %1347
      %1349 = vrot.lane.b32.xlu0 %v1344, 120
      %v1350 = vpop.permute.xlu0 %1349
      %v1353 = vadd.f32 %v1269, %v1348
      %v1354 = vadd.f32 %v1270, %v1350
      %v1355 = vld [vmem:[%s1 + $0x2d] sm:$0x1]
      %v1356 = vlaneseq
      %v1357 = vshrl.u32 %v1356, 7
      %v1358 = vsub.s32 0, %v1357
      %v1359 = vrot.slane %v1355, %v1358
      %1361 = vrot.lane.b32.xlu0 %v1359, 8
      %v1362 = vpop.permute.xlu0 %1361
      %v1364 = vmul.f32 %v786, %v1362
      %v1365 = vmul.f32 %v787, %v1362
      %1368 = vrot.lane.b32.xlu0 %v1364, 120
      %v1369 = vpop.permute.xlu0 %1368
      %1370 = vrot.lane.b32.xlu0 %v1365, 120
      %v1371 = vpop.permute.xlu0 %1370
      %v1374 = vadd.f32 %v1290, %v1369
      %v1375 = vadd.f32 %v1291, %v1371
      %v1376 = vld [vmem:[%s1 + $0x42] sm:$0x1]
      %v1377 = vlaneseq
      %v1378 = vshrl.u32 %v1377, 7
      %v1379 = vsub.s32 0, %v1378
      %v1380 = vrot.slane %v1376, %v1379
      %1382 = vrot.lane.b32.xlu0 %v1380, 8
      %v1383 = vpop.permute.xlu0 %1382
      %v1385 = vmul.f32 %v786, %v1383
      %v1386 = vmul.f32 %v787, %v1383
      %1389 = vrot.lane.b32.xlu0 %v1385, 120
      %v1390 = vpop.permute.xlu0 %1389
      %1391 = vrot.lane.b32.xlu0 %v1386, 120
      %v1392 = vpop.permute.xlu0 %1391
      %v1395 = vadd.f32 %v1311, %v1390
      %v1396 = vadd.f32 %v1312, %v1392
      %v1397 = vld [vmem:[%s1 + $0x57] sm:$0x1]
      %v1398 = vlaneseq
      %v1399 = vshrl.u32 %v1398, 7
      %v1400 = vsub.s32 0, %v1399
      %v1401 = vrot.slane %v1397, %v1400
      %1403 = vrot.lane.b32.xlu0 %v1401, 8
      %v1404 = vpop.permute.xlu0 %1403
      %v1406 = vmul.f32 %v786, %v1404
      %v1407 = vmul.f32 %v787, %v1404
      %1410 = vrot.lane.b32.xlu0 %v1406, 120
      %v1411 = vpop.permute.xlu0 %1410
      %1412 = vrot.lane.b32.xlu0 %v1407, 120
      %v1413 = vpop.permute.xlu0 %1412
      %v1416 = vadd.f32 %v1332, %v1411
      %v1417 = vadd.f32 %v1333, %v1413
      %v1418 = vld [vmem:[%s1 + $0x19] sm:$0x1]
      %v1419 = vlaneseq
      %v1420 = vshrl.u32 %v1419, 7
      %v1421 = vsub.s32 0, %v1420
      %v1422 = vrot.slane %v1418, %v1421
      %1424 = vrot.lane.b32.xlu0 %v1422, 9
      %v1425 = vpop.permute.xlu0 %1424
      %v1427 = vmul.f32 %v786, %v1425
      %v1428 = vmul.f32 %v787, %v1425
      %1431 = vrot.lane.b32.xlu0 %v1427, 119
      %v1432 = vpop.permute.xlu0 %1431
      %1433 = vrot.lane.b32.xlu0 %v1428, 119
      %v1434 = vpop.permute.xlu0 %1433
      %v1437 = vadd.f32 %v1353, %v1432
      %v1438 = vadd.f32 %v1354, %v1434
      %v1439 = vld [vmem:[%s1 + $0x2e] sm:$0x1]
      %v1440 = vlaneseq
      %v1441 = vshrl.u32 %v1440, 7
      %v1442 = vsub.s32 0, %v1441
      %v1443 = vrot.slane %v1439, %v1442
      %1445 = vrot.lane.b32.xlu0 %v1443, 9
      %v1446 = vpop.permute.xlu0 %1445
      %v1448 = vmul.f32 %v786, %v1446
      %v1449 = vmul.f32 %v787, %v1446
      %1452 = vrot.lane.b32.xlu0 %v1448, 119
      %v1453 = vpop.permute.xlu0 %1452
      %1454 = vrot.lane.b32.xlu0 %v1449, 119
      %v1455 = vpop.permute.xlu0 %1454
      %v1458 = vadd.f32 %v1374, %v1453
      %v1459 = vadd.f32 %v1375, %v1455
      %v1460 = vld [vmem:[%s1 + $0x43] sm:$0x1]
      %v1461 = vlaneseq
      %v1462 = vshrl.u32 %v1461, 7
      %v1463 = vsub.s32 0, %v1462
      %v1464 = vrot.slane %v1460, %v1463
      %1466 = vrot.lane.b32.xlu0 %v1464, 9
      %v1467 = vpop.permute.xlu0 %1466
      %v1469 = vmul.f32 %v786, %v1467
      %v1470 = vmul.f32 %v787, %v1467
      %1473 = vrot.lane.b32.xlu0 %v1469, 119
      %v1474 = vpop.permute.xlu0 %1473
      %1475 = vrot.lane.b32.xlu0 %v1470, 119
      %v1476 = vpop.permute.xlu0 %1475
      %v1479 = vadd.f32 %v1395, %v1474
      %v1480 = vadd.f32 %v1396, %v1476
      %v1481 = vld [vmem:[%s1 + $0x58] sm:$0x1]
      %v1482 = vlaneseq
      %v1483 = vshrl.u32 %v1482, 7
      %v1484 = vsub.s32 0, %v1483
      %v1485 = vrot.slane %v1481, %v1484
      %1487 = vrot.lane.b32.xlu0 %v1485, 9
      %v1488 = vpop.permute.xlu0 %1487
      %v1490 = vmul.f32 %v786, %v1488
      %v1491 = vmul.f32 %v787, %v1488
      %1494 = vrot.lane.b32.xlu0 %v1490, 119
      %v1495 = vpop.permute.xlu0 %1494
      %1496 = vrot.lane.b32.xlu0 %v1491, 119
      %v1497 = vpop.permute.xlu0 %1496
      %v1500 = vadd.f32 %v1416, %v1495
      %v1501 = vadd.f32 %v1417, %v1497
      %v1502 = vld [vmem:[%s1 + $0x1a] sm:$0x1]
      %v1503 = vlaneseq
      %v1504 = vshrl.u32 %v1503, 7
      %v1505 = vsub.s32 0, %v1504
      %v1506 = vrot.slane %v1502, %v1505
      %1508 = vrot.lane.b32.xlu0 %v1506, 10
      %v1509 = vpop.permute.xlu0 %1508
      %v1511 = vmul.f32 %v786, %v1509
      %v1512 = vmul.f32 %v787, %v1509
      %1515 = vrot.lane.b32.xlu0 %v1511, 118
      %v1516 = vpop.permute.xlu0 %1515
      %1517 = vrot.lane.b32.xlu0 %v1512, 118
      %v1518 = vpop.permute.xlu0 %1517
      %v1521 = vadd.f32 %v1437, %v1516
      %v1522 = vadd.f32 %v1438, %v1518
      %v1523 = vld [vmem:[%s1 + $0x2f] sm:$0x1]
      %v1524 = vlaneseq
      %v1525 = vshrl.u32 %v1524, 7
      %v1526 = vsub.s32 0, %v1525
      %v1527 = vrot.slane %v1523, %v1526
      %1529 = vrot.lane.b32.xlu0 %v1527, 10
      %v1530 = vpop.permute.xlu0 %1529
      %v1532 = vmul.f32 %v786, %v1530
      %v1533 = vmul.f32 %v787, %v1530
      %1536 = vrot.lane.b32.xlu0 %v1532, 118
      %v1537 = vpop.permute.xlu0 %1536
      %1538 = vrot.lane.b32.xlu0 %v1533, 118
      %v1539 = vpop.permute.xlu0 %1538
      %v1542 = vadd.f32 %v1458, %v1537
      %v1543 = vadd.f32 %v1459, %v1539
      %v1544 = vld [vmem:[%s1 + $0x44] sm:$0x1]
      %v1545 = vlaneseq
      %v1546 = vshrl.u32 %v1545, 7
      %v1547 = vsub.s32 0, %v1546
      %v1548 = vrot.slane %v1544, %v1547
      %1550 = vrot.lane.b32.xlu0 %v1548, 10
      %v1551 = vpop.permute.xlu0 %1550
      %v1553 = vmul.f32 %v786, %v1551
      %v1554 = vmul.f32 %v787, %v1551
      %1557 = vrot.lane.b32.xlu0 %v1553, 118
      %v1558 = vpop.permute.xlu0 %1557
      %1559 = vrot.lane.b32.xlu0 %v1554, 118
      %v1560 = vpop.permute.xlu0 %1559
      %v1563 = vadd.f32 %v1479, %v1558
      %v1564 = vadd.f32 %v1480, %v1560
      %v1565 = vld [vmem:[%s1 + $0x59] sm:$0x1]
      %v1566 = vlaneseq
      %v1567 = vshrl.u32 %v1566, 7
      %v1568 = vsub.s32 0, %v1567
      %v1569 = vrot.slane %v1565, %v1568
      %1571 = vrot.lane.b32.xlu0 %v1569, 10
      %v1572 = vpop.permute.xlu0 %1571
      %v1574 = vmul.f32 %v786, %v1572
      %v1575 = vmul.f32 %v787, %v1572
      %1578 = vrot.lane.b32.xlu0 %v1574, 118
      %v1579 = vpop.permute.xlu0 %1578
      %1580 = vrot.lane.b32.xlu0 %v1575, 118
      %v1581 = vpop.permute.xlu0 %1580
      %v1584 = vadd.f32 %v1500, %v1579
      %v1585 = vadd.f32 %v1501, %v1581
      %v1586 = vld [vmem:[%s1 + $0x1b] sm:$0x1]
      %v1587 = vlaneseq
      %v1588 = vshrl.u32 %v1587, 7
      %v1589 = vsub.s32 0, %v1588
      %v1590 = vrot.slane %v1586, %v1589
      %1592 = vrot.lane.b32.xlu0 %v1590, 11
      %v1593 = vpop.permute.xlu0 %1592
      %v1595 = vmul.f32 %v786, %v1593
      %v1596 = vmul.f32 %v787, %v1593
      %1599 = vrot.lane.b32.xlu0 %v1595, 117
      %v1600 = vpop.permute.xlu0 %1599
      %1601 = vrot.lane.b32.xlu0 %v1596, 117
      %v1602 = vpop.permute.xlu0 %1601
      %v1605 = vadd.f32 %v1521, %v1600
      %v1606 = vadd.f32 %v1522, %v1602
      %v1607 = vld [vmem:[%s1 + $0x30] sm:$0x1]
      %v1608 = vlaneseq
      %v1609 = vshrl.u32 %v1608, 7
      %v1610 = vsub.s32 0, %v1609
      %v1611 = vrot.slane %v1607, %v1610
      %1613 = vrot.lane.b32.xlu0 %v1611, 11
      %v1614 = vpop.permute.xlu0 %1613
      %v1616 = vmul.f32 %v786, %v1614
      %v1617 = vmul.f32 %v787, %v1614
      %1620 = vrot.lane.b32.xlu0 %v1616, 117
      %v1621 = vpop.permute.xlu0 %1620
      %1622 = vrot.lane.b32.xlu0 %v1617, 117
      %v1623 = vpop.permute.xlu0 %1622
      %v1626 = vadd.f32 %v1542, %v1621
      %v1627 = vadd.f32 %v1543, %v1623
      %v1628 = vld [vmem:[%s1 + $0x45] sm:$0x1]
      %v1629 = vlaneseq
      %v1630 = vshrl.u32 %v1629, 7
      %v1631 = vsub.s32 0, %v1630
      %v1632 = vrot.slane %v1628, %v1631
      %1634 = vrot.lane.b32.xlu0 %v1632, 11
      %v1635 = vpop.permute.xlu0 %1634
      %v1637 = vmul.f32 %v786, %v1635
      %v1638 = vmul.f32 %v787, %v1635
      %1641 = vrot.lane.b32.xlu0 %v1637, 117
      %v1642 = vpop.permute.xlu0 %1641
      %1643 = vrot.lane.b32.xlu0 %v1638, 117
      %v1644 = vpop.permute.xlu0 %1643
      %v1647 = vadd.f32 %v1563, %v1642
      %v1648 = vadd.f32 %v1564, %v1644
      %v1649 = vld [vmem:[%s1 + $0x5a] sm:$0x1]
      %v1650 = vlaneseq
      %v1651 = vshrl.u32 %v1650, 7
      %v1652 = vsub.s32 0, %v1651
      %v1653 = vrot.slane %v1649, %v1652
      %1655 = vrot.lane.b32.xlu0 %v1653, 11
      %v1656 = vpop.permute.xlu0 %1655
      %v1658 = vmul.f32 %v786, %v1656
      %v1659 = vmul.f32 %v787, %v1656
      %1662 = vrot.lane.b32.xlu0 %v1658, 117
      %v1663 = vpop.permute.xlu0 %1662
      %1664 = vrot.lane.b32.xlu0 %v1659, 117
      %v1665 = vpop.permute.xlu0 %1664
      %v1668 = vadd.f32 %v1584, %v1663
      %v1669 = vadd.f32 %v1585, %v1665
      %v1670 = vld [vmem:[%s1 + $0x31] sm:$0x1]
      %v1671 = vlaneseq
      %v1672 = vshrl.u32 %v1671, 7
      %v1673 = vsub.s32 0, %v1672
      %v1674 = vrot.slane %v1670, %v1673
      %1676 = vrot.lane.b32.xlu0 %v1674, 9
      %v1677 = vpop.permute.xlu0 %1676
      %v1679 = vmul.f32 %v786, %v1677
      %v1680 = vmul.f32 %v787, %v1677
      %1683 = vrot.lane.b32.xlu0 %v1679, 119
      %v1684 = vpop.permute.xlu0 %1683
      %1685 = vrot.lane.b32.xlu0 %v1680, 119
      %v1686 = vpop.permute.xlu0 %1685
      %v1689 = vadd.f32 %v1626, %v1684
      %v1690 = vadd.f32 %v1627, %v1686
      %v1691 = vld [vmem:[%s1 + $0x5b] sm:$0x1]
      %v1692 = vlaneseq
      %v1693 = vshrl.u32 %v1692, 7
      %v1694 = vsub.s32 0, %v1693
      %v1695 = vrot.slane %v1691, %v1694
      %1697 = vrot.lane.b32.xlu0 %v1695, 9
      %v1698 = vpop.permute.xlu0 %1697
      %v1700 = vmul.f32 %v786, %v1698
      %v1701 = vmul.f32 %v787, %v1698
      %1704 = vrot.lane.b32.xlu0 %v1700, 119
      %v1705 = vpop.permute.xlu0 %1704
      %1706 = vrot.lane.b32.xlu0 %v1701, 119
      %v1707 = vpop.permute.xlu0 %1706
      %v1710 = vadd.f32 %v1668, %v1705
      %v1711 = vadd.f32 %v1669, %v1707
      %v1712 = vld [vmem:[%s1 + $0x32] sm:$0x1]
      %v1713 = vlaneseq
      %v1714 = vshrl.u32 %v1713, 7
      %v1715 = vsub.s32 0, %v1714
      %v1716 = vrot.slane %v1712, %v1715
      %1718 = vrot.lane.b32.xlu0 %v1716, 10
      %v1719 = vpop.permute.xlu0 %1718
      %v1721 = vmul.f32 %v786, %v1719
      %v1722 = vmul.f32 %v787, %v1719
      %1725 = vrot.lane.b32.xlu0 %v1721, 118
      %v1726 = vpop.permute.xlu0 %1725
      %1727 = vrot.lane.b32.xlu0 %v1722, 118
      %v1728 = vpop.permute.xlu0 %1727
      %v1731 = vadd.f32 %v1689, %v1726
      %v1732 = vadd.f32 %v1690, %v1728
      %v1733 = vld [vmem:[%s1 + $0x5c] sm:$0x1]
      %v1734 = vlaneseq
      %v1735 = vshrl.u32 %v1734, 7
      %v1736 = vsub.s32 0, %v1735
      %v1737 = vrot.slane %v1733, %v1736
      %1739 = vrot.lane.b32.xlu0 %v1737, 10
      %v1740 = vpop.permute.xlu0 %1739
      %v1742 = vmul.f32 %v786, %v1740
      %v1743 = vmul.f32 %v787, %v1740
      %1746 = vrot.lane.b32.xlu0 %v1742, 118
      %v1747 = vpop.permute.xlu0 %1746
      %1748 = vrot.lane.b32.xlu0 %v1743, 118
      %v1749 = vpop.permute.xlu0 %1748
      %v1752 = vadd.f32 %v1710, %v1747
      %v1753 = vadd.f32 %v1711, %v1749
      %v1754 = vld [vmem:[%s1 + $0x33] sm:$0x1]
      %v1755 = vlaneseq
      %v1756 = vshrl.u32 %v1755, 7
      %v1757 = vsub.s32 0, %v1756
      %v1758 = vrot.slane %v1754, %v1757
      %1760 = vrot.lane.b32.xlu0 %v1758, 11
      %v1761 = vpop.permute.xlu0 %1760
      %v1763 = vmul.f32 %v786, %v1761
      %v1764 = vmul.f32 %v787, %v1761
      %1767 = vrot.lane.b32.xlu0 %v1763, 117
      %v1768 = vpop.permute.xlu0 %1767
      %1769 = vrot.lane.b32.xlu0 %v1764, 117
      %v1770 = vpop.permute.xlu0 %1769
      %v1773 = vadd.f32 %v1731, %v1768
      %v1774 = vadd.f32 %v1732, %v1770
      %v1775 = vld [vmem:[%s1 + $0x5d] sm:$0x1]
      %v1776 = vlaneseq
      %v1777 = vshrl.u32 %v1776, 7
      %v1778 = vsub.s32 0, %v1777
      %v1779 = vrot.slane %v1775, %v1778
      %1781 = vrot.lane.b32.xlu0 %v1779, 11
      %v1782 = vpop.permute.xlu0 %1781
      %v1784 = vmul.f32 %v786, %v1782
      %v1785 = vmul.f32 %v787, %v1782
      %1788 = vrot.lane.b32.xlu0 %v1784, 117
      %v1789 = vpop.permute.xlu0 %1788
      %1790 = vrot.lane.b32.xlu0 %v1785, 117
      %v1791 = vpop.permute.xlu0 %1790
      %v1794 = vadd.f32 %v1752, %v1789
      %v1795 = vadd.f32 %v1753, %v1791
      %v1796 = vld [vmem:[%s1 + $0x34] sm:$0x1]
      %v1797 = vlaneseq
      %v1798 = vshrl.u32 %v1797, 7
      %v1799 = vsub.s32 0, %v1798
      %v1800 = vrot.slane %v1796, %v1799
      %1802 = vrot.lane.b32.xlu0 %v1800, 12
      %v1803 = vpop.permute.xlu0 %1802
      %v1805 = vmul.f32 %v786, %v1803
      %v1806 = vmul.f32 %v787, %v1803
      %1809 = vrot.lane.b32.xlu0 %v1805, 116
      %v1810 = vpop.permute.xlu0 %1809
      %1811 = vrot.lane.b32.xlu0 %v1806, 116
      %v1812 = vpop.permute.xlu0 %1811
      %v1815 = vadd.f32 %v1773, %v1810
      %v1816 = vadd.f32 %v1774, %v1812
      %v1817 = vld [vmem:[%s1 + $0x5e] sm:$0x1]
      %v1818 = vlaneseq
      %v1819 = vshrl.u32 %v1818, 7
      %v1820 = vsub.s32 0, %v1819
      %v1821 = vrot.slane %v1817, %v1820
      %1823 = vrot.lane.b32.xlu0 %v1821, 12
      %v1824 = vpop.permute.xlu0 %1823
      %v1826 = vmul.f32 %v786, %v1824
      %v1827 = vmul.f32 %v787, %v1824
      %1830 = vrot.lane.b32.xlu0 %v1826, 116
      %v1831 = vpop.permute.xlu0 %1830
      %1832 = vrot.lane.b32.xlu0 %v1827, 116
      %v1833 = vpop.permute.xlu0 %1832
      %v1836 = vadd.f32 %v1794, %v1831
      %v1837 = vadd.f32 %v1795, %v1833
      %v1838 = vld [vmem:[%s1 + $0x35] sm:$0x1]
      %v1839 = vlaneseq
      %v1840 = vshrl.u32 %v1839, 7
      %v1841 = vsub.s32 0, %v1840
      %v1842 = vrot.slane %v1838, %v1841
      %1844 = vrot.lane.b32.xlu0 %v1842, 13
      %v1845 = vpop.permute.xlu0 %1844
      %v1847 = vmul.f32 %v786, %v1845
      %v1848 = vmul.f32 %v787, %v1845
      %1851 = vrot.lane.b32.xlu0 %v1847, 115
      %v1852 = vpop.permute.xlu0 %1851
      %1853 = vrot.lane.b32.xlu0 %v1848, 115
      %v1854 = vpop.permute.xlu0 %1853
      %v1857 = vadd.f32 %v1815, %v1852
      %v1858 = vadd.f32 %v1816, %v1854
      %v1859 = vld [vmem:[%s1 + $0x5f] sm:$0x1]
      %v1860 = vlaneseq
      %v1861 = vshrl.u32 %v1860, 7
      %v1862 = vsub.s32 0, %v1861
      %v1863 = vrot.slane %v1859, %v1862
      %1865 = vrot.lane.b32.xlu0 %v1863, 13
      %v1866 = vpop.permute.xlu0 %1865
      %v1868 = vmul.f32 %v786, %v1866
      %v1869 = vmul.f32 %v787, %v1866
      %1872 = vrot.lane.b32.xlu0 %v1868, 115
      %v1873 = vpop.permute.xlu0 %1872
      %1874 = vrot.lane.b32.xlu0 %v1869, 115
      %v1875 = vpop.permute.xlu0 %1874
      %v1878 = vadd.f32 %v1836, %v1873
      %v1879 = vadd.f32 %v1837, %v1875
      %v1880 = vld [vmem:[%s1 + $0x36] sm:$0x1]
      %v1881 = vlaneseq
      %v1882 = vshrl.u32 %v1881, 7
      %v1883 = vsub.s32 0, %v1882
      %v1884 = vrot.slane %v1880, %v1883
      %1886 = vrot.lane.b32.xlu0 %v1884, 14
      %v1887 = vpop.permute.xlu0 %1886
      %v1889 = vmul.f32 %v786, %v1887
      %v1890 = vmul.f32 %v787, %v1887
      %1893 = vrot.lane.b32.xlu0 %v1889, 114
      %v1894 = vpop.permute.xlu0 %1893
      %1895 = vrot.lane.b32.xlu0 %v1890, 114
      %v1896 = vpop.permute.xlu0 %1895
      %v1899 = vadd.f32 %v1857, %v1894
      %v1900 = vadd.f32 %v1858, %v1896
      %v1901 = vld [vmem:[%s1 + $0x60] sm:$0x1]
      %v1902 = vlaneseq
      %v1903 = vshrl.u32 %v1902, 7
      %v1904 = vsub.s32 0, %v1903
      %v1905 = vrot.slane %v1901, %v1904
      %1907 = vrot.lane.b32.xlu0 %v1905, 14
      %v1908 = vpop.permute.xlu0 %1907
      %v1910 = vmul.f32 %v786, %v1908
      %v1911 = vmul.f32 %v787, %v1908
      %1914 = vrot.lane.b32.xlu0 %v1910, 114
      %v1915 = vpop.permute.xlu0 %1914
      %1916 = vrot.lane.b32.xlu0 %v1911, 114
      %v1917 = vpop.permute.xlu0 %1916
      %v1920 = vadd.f32 %v1878, %v1915
      %v1921 = vadd.f32 %v1879, %v1917
      %v1922 = vld [vmem:[%s1 + $0x37] sm:$0x1]
      %v1923 = vlaneseq
      %v1924 = vshrl.u32 %v1923, 7
      %v1925 = vsub.s32 0, %v1924
      %v1926 = vrot.slane %v1922, %v1925
      %1928 = vrot.lane.b32.xlu0 %v1926, 15
      %v1929 = vpop.permute.xlu0 %1928
      %v1931 = vmul.f32 %v786, %v1929
      %v1932 = vmul.f32 %v787, %v1929
      %1935 = vrot.lane.b32.xlu0 %v1931, 113
      %v1936 = vpop.permute.xlu0 %1935
      %1937 = vrot.lane.b32.xlu0 %v1932, 113
      %v1938 = vpop.permute.xlu0 %1937
      %v1941 = vadd.f32 %v1899, %v1936
      %v1942 = vadd.f32 %v1900, %v1938
      %v1943 = vld [vmem:[%s1 + $0x61] sm:$0x1]
      %v1944 = vlaneseq
      %v1945 = vshrl.u32 %v1944, 7
      %v1946 = vsub.s32 0, %v1945
      %v1947 = vrot.slane %v1943, %v1946
      %1949 = vrot.lane.b32.xlu0 %v1947, 15
      %v1950 = vpop.permute.xlu0 %1949
      %v1952 = vmul.f32 %v786, %v1950
      %v1953 = vmul.f32 %v787, %v1950
      %1956 = vrot.lane.b32.xlu0 %v1952, 113
      %v1957 = vpop.permute.xlu0 %1956
      %1958 = vrot.lane.b32.xlu0 %v1953, 113
      %v1959 = vpop.permute.xlu0 %1958
      %v1962 = vadd.f32 %v1920, %v1957
      %v1963 = vadd.f32 %v1921, %v1959
      %v1964 = vld [vmem:[#allocation2 + $0x2] sm:$0xff]
      %v1965 = vld [vmem:[#allocation2 + $0xa] sm:$0xff]
      %v1966 = vld [vmem:[%s1 + $0x46] sm:$0x1]
      %v1967 = vlaneseq
      %v1968 = vshrl.u32 %v1967, 7
      %v1969 = vsub.s32 0, %v1968
      %v1970 = vrot.slane %v1966, %v1969
      %1972 = vrot.lane.b32.xlu0 %v1970, 1
      %v1973 = vpop.permute.xlu0 %1972
      %v1975 = vmul.f32 %v1964, %v1973
      %v1976 = vmul.f32 %v1965, %v1973
      %1979 = vrot.lane.b32.xlu0 %v1975, 127
      %v1980 = vpop.permute.xlu0 %1979
      %1981 = vrot.lane.b32.xlu0 %v1976, 127
      %v1982 = vpop.permute.xlu0 %1981
      %v1985 = vadd.f32 %v1647, %v1980
      %v1986 = vadd.f32 %v1648, %v1982
      %v1987 = vld [vmem:[%s1 + $0x47] sm:$0x1]
      %v1988 = vlaneseq
      %v1989 = vshrl.u32 %v1988, 7
      %v1990 = vsub.s32 0, %v1989
      %v1991 = vrot.slane %v1987, %v1990
      %1993 = vrot.lane.b32.xlu0 %v1991, 2
      %v1994 = vpop.permute.xlu0 %1993
      %v1996 = vmul.f32 %v1964, %v1994
      %v1997 = vmul.f32 %v1965, %v1994
      %2000 = vrot.lane.b32.xlu0 %v1996, 126
      %v2001 = vpop.permute.xlu0 %2000
      %2002 = vrot.lane.b32.xlu0 %v1997, 126
      %v2003 = vpop.permute.xlu0 %2002
      %v2006 = vadd.f32 %v1985, %v2001
      %v2007 = vadd.f32 %v1986, %v2003
      %v2008 = vld [vmem:[%s1 + $0x48] sm:$0x1]
      %v2009 = vlaneseq
      %v2010 = vshrl.u32 %v2009, 7
      %v2011 = vsub.s32 0, %v2010
      %v2012 = vrot.slane %v2008, %v2011
      %2014 = vrot.lane.b32.xlu0 %v2012, 3
      %v2015 = vpop.permute.xlu0 %2014
      %v2017 = vmul.f32 %v1964, %v2015
      %v2018 = vmul.f32 %v1965, %v2015
      %2021 = vrot.lane.b32.xlu0 %v2017, 125
      %v2022 = vpop.permute.xlu0 %2021
      %2023 = vrot.lane.b32.xlu0 %v2018, 125
      %v2024 = vpop.permute.xlu0 %2023
      %v2027 = vadd.f32 %v2006, %v2022
      %v2028 = vadd.f32 %v2007, %v2024
      %v2029 = vld [vmem:[%s1 + $0x49] sm:$0x1]
      %v2030 = vlaneseq
      %v2031 = vshrl.u32 %v2030, 7
      %v2032 = vsub.s32 0, %v2031
      %v2033 = vrot.slane %v2029, %v2032
      %2035 = vrot.lane.b32.xlu0 %v2033, 4
      %v2036 = vpop.permute.xlu0 %2035
      %v2038 = vmul.f32 %v1964, %v2036
      %v2039 = vmul.f32 %v1965, %v2036
      %2042 = vrot.lane.b32.xlu0 %v2038, 124
      %v2043 = vpop.permute.xlu0 %2042
      %2044 = vrot.lane.b32.xlu0 %v2039, 124
      %v2045 = vpop.permute.xlu0 %2044
      %v2048 = vadd.f32 %v2027, %v2043
      %v2049 = vadd.f32 %v2028, %v2045
      %v2050 = vld [vmem:[%s1 + $0x4a] sm:$0x1]
      %v2051 = vlaneseq
      %v2052 = vshrl.u32 %v2051, 7
      %v2053 = vsub.s32 0, %v2052
      %v2054 = vrot.slane %v2050, %v2053
      %2056 = vrot.lane.b32.xlu0 %v2054, 5
      %v2057 = vpop.permute.xlu0 %2056
      %v2059 = vmul.f32 %v1964, %v2057
      %v2060 = vmul.f32 %v1965, %v2057
      %2063 = vrot.lane.b32.xlu0 %v2059, 123
      %v2064 = vpop.permute.xlu0 %2063
      %2065 = vrot.lane.b32.xlu0 %v2060, 123
      %v2066 = vpop.permute.xlu0 %2065
      %v2069 = vadd.f32 %v2048, %v2064
      %v2070 = vadd.f32 %v2049, %v2066
      %v2071 = vld [vmem:[%s1 + $0x4b] sm:$0x1]
      %v2072 = vlaneseq
      %v2073 = vshrl.u32 %v2072, 7
      %v2074 = vsub.s32 0, %v2073
      %v2075 = vrot.slane %v2071, %v2074
      %2077 = vrot.lane.b32.xlu0 %v2075, 6
      %v2078 = vpop.permute.xlu0 %2077
      %v2080 = vmul.f32 %v1964, %v2078
      %v2081 = vmul.f32 %v1965, %v2078
      %2084 = vrot.lane.b32.xlu0 %v2080, 122
      %v2085 = vpop.permute.xlu0 %2084
      %2086 = vrot.lane.b32.xlu0 %v2081, 122
      %v2087 = vpop.permute.xlu0 %2086
      %v2090 = vadd.f32 %v2069, %v2085
      %v2091 = vadd.f32 %v2070, %v2087
      %v2092 = vld [vmem:[%s1 + $0x4c] sm:$0x1]
      %v2093 = vlaneseq
      %v2094 = vshrl.u32 %v2093, 7
      %v2095 = vsub.s32 0, %v2094
      %v2096 = vrot.slane %v2092, %v2095
      %2098 = vrot.lane.b32.xlu0 %v2096, 7
      %v2099 = vpop.permute.xlu0 %2098
      %v2101 = vmul.f32 %v1964, %v2099
      %v2102 = vmul.f32 %v1965, %v2099
      %2105 = vrot.lane.b32.xlu0 %v2101, 121
      %v2106 = vpop.permute.xlu0 %2105
      %2107 = vrot.lane.b32.xlu0 %v2102, 121
      %v2108 = vpop.permute.xlu0 %2107
      %v2111 = vadd.f32 %v2090, %v2106
      %v2112 = vadd.f32 %v2091, %v2108
      %v2113 = vld [vmem:[%s1 + $0x4d] sm:$0x1]
      %v2114 = vlaneseq
      %v2115 = vshrl.u32 %v2114, 7
      %v2116 = vsub.s32 0, %v2115
      %v2117 = vrot.slane %v2113, %v2116
      %2119 = vrot.lane.b32.xlu0 %v2117, 5
      %v2120 = vpop.permute.xlu0 %2119
      %v2122 = vmul.f32 %v1964, %v2120
      %v2123 = vmul.f32 %v1965, %v2120
      %2126 = vrot.lane.b32.xlu0 %v2122, 123
      %v2127 = vpop.permute.xlu0 %2126
      %2128 = vrot.lane.b32.xlu0 %v2123, 123
      %v2129 = vpop.permute.xlu0 %2128
      %v2132 = vadd.f32 %v2111, %v2127
      %v2133 = vadd.f32 %v2112, %v2129
      %v2134 = vld [vmem:[%s1 + $0x62] sm:$0x1]
      %v2135 = vlaneseq
      %v2136 = vshrl.u32 %v2135, 7
      %v2137 = vsub.s32 0, %v2136
      %v2138 = vrot.slane %v2134, %v2137
      %2140 = vrot.lane.b32.xlu0 %v2138, 5
      %v2141 = vpop.permute.xlu0 %2140
      %v2143 = vmul.f32 %v1964, %v2141
      %v2144 = vmul.f32 %v1965, %v2141
      %2147 = vrot.lane.b32.xlu0 %v2143, 123
      %v2148 = vpop.permute.xlu0 %2147
      %2149 = vrot.lane.b32.xlu0 %v2144, 123
      %v2150 = vpop.permute.xlu0 %2149
      %v2153 = vadd.f32 %v1962, %v2148
      %v2154 = vadd.f32 %v1963, %v2150
      %v2155 = vld [vmem:[%s1 + $0x4e] sm:$0x1]
      %v2156 = vlaneseq
      %v2157 = vshrl.u32 %v2156, 7
      %v2158 = vsub.s32 0, %v2157
      %v2159 = vrot.slane %v2155, %v2158
      %2161 = vrot.lane.b32.xlu0 %v2159, 6
      %v2162 = vpop.permute.xlu0 %2161
      %v2164 = vmul.f32 %v1964, %v2162
      %v2165 = vmul.f32 %v1965, %v2162
      %2168 = vrot.lane.b32.xlu0 %v2164, 122
      %v2169 = vpop.permute.xlu0 %2168
      %2170 = vrot.lane.b32.xlu0 %v2165, 122
      %v2171 = vpop.permute.xlu0 %2170
      %v2174 = vadd.f32 %v2132, %v2169
      %v2175 = vadd.f32 %v2133, %v2171
      %v2176 = vld [vmem:[%s1 + $0x63] sm:$0x1]
      %v2177 = vlaneseq
      %v2178 = vshrl.u32 %v2177, 7
      %v2179 = vsub.s32 0, %v2178
      %v2180 = vrot.slane %v2176, %v2179
      %2182 = vrot.lane.b32.xlu0 %v2180, 6
      %v2183 = vpop.permute.xlu0 %2182
      %v2185 = vmul.f32 %v1964, %v2183
      %v2186 = vmul.f32 %v1965, %v2183
      %2189 = vrot.lane.b32.xlu0 %v2185, 122
      %v2190 = vpop.permute.xlu0 %2189
      %2191 = vrot.lane.b32.xlu0 %v2186, 122
      %v2192 = vpop.permute.xlu0 %2191
      %v2195 = vadd.f32 %v2153, %v2190
      %v2196 = vadd.f32 %v2154, %v2192
      %v2197 = vld [vmem:[%s1 + $0x4f] sm:$0x1]
      %v2198 = vlaneseq
      %v2199 = vshrl.u32 %v2198, 7
      %v2200 = vsub.s32 0, %v2199
      %v2201 = vrot.slane %v2197, %v2200
      %2203 = vrot.lane.b32.xlu0 %v2201, 7
      %v2204 = vpop.permute.xlu0 %2203
      %v2206 = vmul.f32 %v1964, %v2204
      %v2207 = vmul.f32 %v1965, %v2204
      %2210 = vrot.lane.b32.xlu0 %v2206, 121
      %v2211 = vpop.permute.xlu0 %2210
      %2212 = vrot.lane.b32.xlu0 %v2207, 121
      %v2213 = vpop.permute.xlu0 %2212
      %v2216 = vadd.f32 %v2174, %v2211
      %v2217 = vadd.f32 %v2175, %v2213
      %v2218 = vld [vmem:[%s1 + $0x64] sm:$0x1]
      %v2219 = vlaneseq
      %v2220 = vshrl.u32 %v2219, 7
      %v2221 = vsub.s32 0, %v2220
      %v2222 = vrot.slane %v2218, %v2221
      %2224 = vrot.lane.b32.xlu0 %v2222, 7
      %v2225 = vpop.permute.xlu0 %2224
      %v2227 = vmul.f32 %v1964, %v2225
      %v2228 = vmul.f32 %v1965, %v2225
      %2231 = vrot.lane.b32.xlu0 %v2227, 121
      %v2232 = vpop.permute.xlu0 %2231
      %2233 = vrot.lane.b32.xlu0 %v2228, 121
      %v2234 = vpop.permute.xlu0 %2233
      %v2237 = vadd.f32 %v2195, %v2232
      %v2238 = vadd.f32 %v2196, %v2234
      %v2239 = vld [vmem:[%s1 + $0x50] sm:$0x1]
      %v2240 = vlaneseq
      %v2241 = vshrl.u32 %v2240, 7
      %v2242 = vsub.s32 0, %v2241
      %v2243 = vrot.slane %v2239, %v2242
      %2245 = vrot.lane.b32.xlu0 %v2243, 8
      %v2246 = vpop.permute.xlu0 %2245
      %v2248 = vmul.f32 %v1964, %v2246
      %v2249 = vmul.f32 %v1965, %v2246
      %2252 = vrot.lane.b32.xlu0 %v2248, 120
      %v2253 = vpop.permute.xlu0 %2252
      %2254 = vrot.lane.b32.xlu0 %v2249, 120
      %v2255 = vpop.permute.xlu0 %2254
      %v2258 = vadd.f32 %v2216, %v2253
      %v2259 = vadd.f32 %v2217, %v2255
      %v2260 = vld [vmem:[%s1 + $0x65] sm:$0x1]
      %v2261 = vlaneseq
      %v2262 = vshrl.u32 %v2261, 7
      %v2263 = vsub.s32 0, %v2262
      %v2264 = vrot.slane %v2260, %v2263
      %2266 = vrot.lane.b32.xlu0 %v2264, 8
      %v2267 = vpop.permute.xlu0 %2266
      %v2269 = vmul.f32 %v1964, %v2267
      %v2270 = vmul.f32 %v1965, %v2267
      %2273 = vrot.lane.b32.xlu0 %v2269, 120
      %v2274 = vpop.permute.xlu0 %2273
      %2275 = vrot.lane.b32.xlu0 %v2270, 120
      %v2276 = vpop.permute.xlu0 %2275
      %v2279 = vadd.f32 %v2237, %v2274
      %v2280 = vadd.f32 %v2238, %v2276
      %v2281 = vld [vmem:[%s1 + $0x51] sm:$0x1]
      %v2282 = vlaneseq
      %v2283 = vshrl.u32 %v2282, 7
      %v2284 = vsub.s32 0, %v2283
      %v2285 = vrot.slane %v2281, %v2284
      %2287 = vrot.lane.b32.xlu0 %v2285, 9
      %v2288 = vpop.permute.xlu0 %2287
      %v2290 = vmul.f32 %v1964, %v2288
      %v2291 = vmul.f32 %v1965, %v2288
      %2294 = vrot.lane.b32.xlu0 %v2290, 119
      %v2295 = vpop.permute.xlu0 %2294
      %2296 = vrot.lane.b32.xlu0 %v2291, 119
      %v2297 = vpop.permute.xlu0 %2296
      %v2300 = vadd.f32 %v2258, %v2295
      %v2301 = vadd.f32 %v2259, %v2297
      %v2302 = vld [vmem:[%s1 + $0x66] sm:$0x1]
      %v2303 = vlaneseq
      %v2304 = vshrl.u32 %v2303, 7
      %v2305 = vsub.s32 0, %v2304
      %v2306 = vrot.slane %v2302, %v2305
      %2308 = vrot.lane.b32.xlu0 %v2306, 9
      %v2309 = vpop.permute.xlu0 %2308
      %v2311 = vmul.f32 %v1964, %v2309
      %v2312 = vmul.f32 %v1965, %v2309
      %2315 = vrot.lane.b32.xlu0 %v2311, 119
      %v2316 = vpop.permute.xlu0 %2315
      %2317 = vrot.lane.b32.xlu0 %v2312, 119
      %v2318 = vpop.permute.xlu0 %2317
      %v2321 = vadd.f32 %v2279, %v2316
      %v2322 = vadd.f32 %v2280, %v2318
      %v2323 = vld [vmem:[%s1 + $0x52] sm:$0x1]
      %v2324 = vlaneseq
      %v2325 = vshrl.u32 %v2324, 7
      %v2326 = vsub.s32 0, %v2325
      %v2327 = vrot.slane %v2323, %v2326
      %2329 = vrot.lane.b32.xlu0 %v2327, 10
      %v2330 = vpop.permute.xlu0 %2329
      %v2332 = vmul.f32 %v1964, %v2330
      %v2333 = vmul.f32 %v1965, %v2330
      %2336 = vrot.lane.b32.xlu0 %v2332, 118
      %v2337 = vpop.permute.xlu0 %2336
      %2338 = vrot.lane.b32.xlu0 %v2333, 118
      %v2339 = vpop.permute.xlu0 %2338
      %v2342 = vadd.f32 %v2300, %v2337
      %v2343 = vadd.f32 %v2301, %v2339
      %v2344 = vld [vmem:[%s1 + $0x67] sm:$0x1]
      %v2345 = vlaneseq
      %v2346 = vshrl.u32 %v2345, 7
      %v2347 = vsub.s32 0, %v2346
      %v2348 = vrot.slane %v2344, %v2347
      %2350 = vrot.lane.b32.xlu0 %v2348, 10
      %v2351 = vpop.permute.xlu0 %2350
      %v2353 = vmul.f32 %v1964, %v2351
      %v2354 = vmul.f32 %v1965, %v2351
      %2357 = vrot.lane.b32.xlu0 %v2353, 118
      %v2358 = vpop.permute.xlu0 %2357
      %2359 = vrot.lane.b32.xlu0 %v2354, 118
      %v2360 = vpop.permute.xlu0 %2359
      %v2363 = vadd.f32 %v2321, %v2358
      %v2364 = vadd.f32 %v2322, %v2360
      %v2365 = vld [vmem:[%s1 + $0x53] sm:$0x1]
      %v2366 = vlaneseq
      %v2367 = vshrl.u32 %v2366, 7
      %v2368 = vsub.s32 0, %v2367
      %v2369 = vrot.slane %v2365, %v2368
      %2371 = vrot.lane.b32.xlu0 %v2369, 11
      %v2372 = vpop.permute.xlu0 %2371
      %v2374 = vmul.f32 %v1964, %v2372
      %v2375 = vmul.f32 %v1965, %v2372
      %2378 = vrot.lane.b32.xlu0 %v2374, 117
      %v2379 = vpop.permute.xlu0 %2378
      %2380 = vrot.lane.b32.xlu0 %v2375, 117
      %v2381 = vpop.permute.xlu0 %2380
      %v2384 = vadd.f32 %v2342, %v2379
      %v2385 = vadd.f32 %v2343, %v2381
      %v2386 = vld [vmem:[%s1 + $0x68] sm:$0x1]
      %v2387 = vlaneseq
      %v2388 = vshrl.u32 %v2387, 7
      %v2389 = vsub.s32 0, %v2388
      %v2390 = vrot.slane %v2386, %v2389
      %2392 = vrot.lane.b32.xlu0 %v2390, 11
      %v2393 = vpop.permute.xlu0 %2392
      %v2395 = vmul.f32 %v1964, %v2393
      %v2396 = vmul.f32 %v1965, %v2393
      %2399 = vrot.lane.b32.xlu0 %v2395, 117
      %v2400 = vpop.permute.xlu0 %2399
      %2401 = vrot.lane.b32.xlu0 %v2396, 117
      %v2402 = vpop.permute.xlu0 %2401
      %v2405 = vadd.f32 %v2363, %v2400
      %v2406 = vadd.f32 %v2364, %v2402
      %v2407 = vld [vmem:[%s1 + $0x69] sm:$0x1]
      %v2408 = vlaneseq
      %v2409 = vshrl.u32 %v2408, 7
      %v2410 = vsub.s32 0, %v2409
      %v2411 = vrot.slane %v2407, %v2410
      %2413 = vrot.lane.b32.xlu0 %v2411, 9
      %v2414 = vpop.permute.xlu0 %2413
      %v2416 = vmul.f32 %v1964, %v2414
      %v2417 = vmul.f32 %v1965, %v2414
      %2420 = vrot.lane.b32.xlu0 %v2416, 119
      %v2421 = vpop.permute.xlu0 %2420
      %2422 = vrot.lane.b32.xlu0 %v2417, 119
      %v2423 = vpop.permute.xlu0 %2422
      %v2426 = vadd.f32 %v2405, %v2421
      %v2427 = vadd.f32 %v2406, %v2423
      %v2428 = vld [vmem:[%s1 + $0x6a] sm:$0x1]
      %v2429 = vlaneseq
      %v2430 = vshrl.u32 %v2429, 7
      %v2431 = vsub.s32 0, %v2430
      %v2432 = vrot.slane %v2428, %v2431
      %2434 = vrot.lane.b32.xlu0 %v2432, 10
      %v2435 = vpop.permute.xlu0 %2434
      %v2437 = vmul.f32 %v1964, %v2435
      %v2438 = vmul.f32 %v1965, %v2435
      %2441 = vrot.lane.b32.xlu0 %v2437, 118
      %v2442 = vpop.permute.xlu0 %2441
      %2443 = vrot.lane.b32.xlu0 %v2438, 118
      %v2444 = vpop.permute.xlu0 %2443
      %v2447 = vadd.f32 %v2426, %v2442
      %v2448 = vadd.f32 %v2427, %v2444
      %v2449 = vld [vmem:[%s1 + $0x6b] sm:$0x1]
      %v2450 = vlaneseq
      %v2451 = vshrl.u32 %v2450, 7
      %v2452 = vsub.s32 0, %v2451
      %v2453 = vrot.slane %v2449, %v2452
      %2455 = vrot.lane.b32.xlu0 %v2453, 11
      %v2456 = vpop.permute.xlu0 %2455
      %v2458 = vmul.f32 %v1964, %v2456
      %v2459 = vmul.f32 %v1965, %v2456
      %2462 = vrot.lane.b32.xlu0 %v2458, 117
      %v2463 = vpop.permute.xlu0 %2462
      %2464 = vrot.lane.b32.xlu0 %v2459, 117
      %v2465 = vpop.permute.xlu0 %2464
      %v2468 = vadd.f32 %v2447, %v2463
      %v2469 = vadd.f32 %v2448, %v2465
      %v2470 = vld [vmem:[%s1 + $0x6c] sm:$0x1]
      %v2471 = vlaneseq
      %v2472 = vshrl.u32 %v2471, 7
      %v2473 = vsub.s32 0, %v2472
      %v2474 = vrot.slane %v2470, %v2473
      %2476 = vrot.lane.b32.xlu0 %v2474, 12
      %v2477 = vpop.permute.xlu0 %2476
      %v2479 = vmul.f32 %v1964, %v2477
      %v2480 = vmul.f32 %v1965, %v2477
      %2483 = vrot.lane.b32.xlu0 %v2479, 116
      %v2484 = vpop.permute.xlu0 %2483
      %2485 = vrot.lane.b32.xlu0 %v2480, 116
      %v2486 = vpop.permute.xlu0 %2485
      %v2489 = vadd.f32 %v2468, %v2484
      %v2490 = vadd.f32 %v2469, %v2486
      %v2491 = vld [vmem:[%s1 + $0x6d] sm:$0x1]
      %v2492 = vlaneseq
      %v2493 = vshrl.u32 %v2492, 7
      %v2494 = vsub.s32 0, %v2493
      %v2495 = vrot.slane %v2491, %v2494
      %2497 = vrot.lane.b32.xlu0 %v2495, 13
      %v2498 = vpop.permute.xlu0 %2497
      %v2500 = vmul.f32 %v1964, %v2498
      %v2501 = vmul.f32 %v1965, %v2498
      %2504 = vrot.lane.b32.xlu0 %v2500, 115
      %v2505 = vpop.permute.xlu0 %2504
      %2506 = vrot.lane.b32.xlu0 %v2501, 115
      %v2507 = vpop.permute.xlu0 %2506
      %v2510 = vadd.f32 %v2489, %v2505
      %v2511 = vadd.f32 %v2490, %v2507
      %v2512 = vld [vmem:[%s1 + $0x6e] sm:$0x1]
      %v2513 = vlaneseq
      %v2514 = vshrl.u32 %v2513, 7
      %v2515 = vsub.s32 0, %v2514
      %v2516 = vrot.slane %v2512, %v2515
      %2518 = vrot.lane.b32.xlu0 %v2516, 14
      %v2519 = vpop.permute.xlu0 %2518
      %v2521 = vmul.f32 %v1964, %v2519
      %v2522 = vmul.f32 %v1965, %v2519
      %2525 = vrot.lane.b32.xlu0 %v2521, 114
      %v2526 = vpop.permute.xlu0 %2525
      %2527 = vrot.lane.b32.xlu0 %v2522, 114
      %v2528 = vpop.permute.xlu0 %2527
      %v2531 = vadd.f32 %v2510, %v2526
      %v2532 = vadd.f32 %v2511, %v2528
      %v2533 = vld [vmem:[%s1 + $0x6f] sm:$0x1]
      %v2534 = vlaneseq
      %v2535 = vshrl.u32 %v2534, 7
      %v2536 = vsub.s32 0, %v2535
      %v2537 = vrot.slane %v2533, %v2536
      %2539 = vrot.lane.b32.xlu0 %v2537, 15
      %v2540 = vpop.permute.xlu0 %2539
      %v2542 = vmul.f32 %v1964, %v2540
      %v2543 = vmul.f32 %v1965, %v2540
      %2546 = vrot.lane.b32.xlu0 %v2542, 113
      %v2547 = vpop.permute.xlu0 %2546
      %2548 = vrot.lane.b32.xlu0 %v2543, 113
      %v2549 = vpop.permute.xlu0 %2548
      %v2552 = vadd.f32 %v2531, %v2547
      %v2553 = vadd.f32 %v2532, %v2549
      %vm2554 = vcmp.ge.f32.partialorder %v1605, 0.0
      %vm2555 = vcmp.ge.f32.partialorder %v1606, 0.0
      %v2556 = vmul.f32 %v1605, 0.2
      %v2557 = vmul.f32 %v1606, 0.2
      %v2558 = vsel %vm2554, %v1605, %v2556
      %v2559 = vsel %vm2555, %v1606, %v2557
      %vm2560 = vcmp.ge.f32.partialorder %v1941, 0.0
      %vm2561 = vcmp.ge.f32.partialorder %v1942, 0.0
      %v2562 = vmul.f32 %v1941, 0.2
      %v2563 = vmul.f32 %v1942, 0.2
      %v2564 = vsel %vm2560, %v1941, %v2562
      %v2565 = vsel %vm2561, %v1942, %v2563
      %vm2566 = vcmp.ge.f32.partialorder %v2384, 0.0
      %vm2567 = vcmp.ge.f32.partialorder %v2385, 0.0
      %v2568 = vmul.f32 %v2384, 0.2
      %v2569 = vmul.f32 %v2385, 0.2
      %v2570 = vsel %vm2566, %v2384, %v2568
      %v2571 = vsel %vm2567, %v2385, %v2569
      %vm2572 = vcmp.ge.f32.partialorder %v2552, 0.0
      %vm2573 = vcmp.ge.f32.partialorder %v2553, 0.0
      %v2574 = vmul.f32 %v2552, 0.2
      %v2575 = vmul.f32 %v2553, 0.2
      %v2576 = vsel %vm2572, %v2552, %v2574
      %v2577 = vsel %vm2573, %v2553, %v2575
      %2580 = vrot.lane.b32.xlu0 %v2564, 64
      %v2581 = vpop.permute.xlu0 %2580
      %2582 = vrot.lane.b32.xlu0 %v2565, 64
      %v2583 = vpop.permute.xlu0 %2582
      %2588 = vrot.lane.b32.xlu0 %v2576, 64
      %v2589 = vpop.permute.xlu0 %2588
      %2590 = vrot.lane.b32.xlu0 %v2577, 64
      %v2591 = vpop.permute.xlu0 %2590
      %vm2594 = vcmask 523264
      %v2595 = vsel %vm2594, %v2558, %v2581
      %v2596 = vsel %vm2594, %v2559, %v2583
      %v2597 = vsel %vm2594, %v2570, %v2589
      %v2598 = vsel %vm2594, %v2571, %v2591
      %2599 = vst [vmem:[%s170] sm:$0xff] %v2595
      %2600 = vst [vmem:[%s170 + $0x8] sm:$0xff] %v2597
      %2601 = vst [vmem:[%s170 + $0x10] sm:$0xff] %v2596
      %2602 = vst [vmem:[%s170 + $0x18] sm:$0xff] %v2598
      %p2603 = scmp.lt.s32.totalorder %s14, 1
      %s2604 = scalar_select %p2603, %s14, 1
      %s2605 = smul.addr %s2604, 4
      %s2606 = smul.addr %s2605, 8
      %s2607 = scalar_lea.vmem %s3, %s2606
      // Predicated region
      $region33: #{upsample_block.1} parent=31 // pred_check
        %p2608 = pneg %p100
      $region34: #{upsample_block.1} parent=31 // pred_check_branch
        %2610 = sbr.rel (%p2608) target = $region36
      $region35: #{upsample_block.1} parent=31 // pred_region
        _
      $region36: #{upsample_block.1} parent=31 // pred_fallthru
        _
    $region32: #{upsample_block.1} parent=5 // pred_fallthru
      _
    %p2611 = scmp.le.s32.totalorder 2, %s9
    // Predicated region
    $region37: #{upsample_block.1} parent=5 // pred_check
      %p2612 = pneg %p2611
    $region38: #{upsample_block.1} parent=5 // pred_check_branch
      %2614 = sbr.rel (%p2612) target = $region40
    $region39: #{upsample_block.1} parent=5 // pred_region
      %s2615 = ssub.s32 %s9, 2
      // Predicated region
      $region41: #{upsample_block.1} parent=39 // pred_check
        %p2616 = pneg %p106
      $region42: #{upsample_block.1} parent=39 // pred_check_branch
        %2618 = sbr.rel (%p2616) target = $region44
      $region43: #{upsample_block.1} parent=39 // pred_region
        %p2619 = scmp.lt.s32.totalorder %s15, 1
        %s2620 = scalar_select %p2619, %s15, 1
        %s2621 = smul.addr %s2620, 4
        %s2622 = smul.addr %s2621, 8
        %s2623 = scalar_lea.vmem %s3, %s2622
      $region44: #{upsample_block.1} parent=39 // pred_fallthru
        _
    $region40: #{upsample_block.1} parent=5 // pred_fallthru
      _
  $region6: #{upsample_block.1} parent=0 // loop_footer
    %s13 = sadd.s32 1, %s9
  $region7: #{upsample_block.1} parent=0 // loop_footer_branch
    %8 = sbr.rel target = $region3
  $region8: #{upsample_block.1} parent=0 // loop_exit
    _

</llo_original>
